<compile_context>
chip_gen: v7x
topology: tpu7x:2x2x1
jax: 0.10.0
libtpu: 0.0.40
codegen_flags: <defaults>
</compile_context>

<pallas_src>
import functools
import math

import jax
import jax.numpy as jnp
from jax.experimental import pallas as pl
from jax.experimental.pallas import tpu as pltpu

CFG = dict(B=2, V=128, E=64, S=16, P=16, T=2,
           Hg=32, nhg=2, FFg=64, Lg=2,
           Hd=64, nhd=2, FFd=128, Ld=2)


# ------------------------------------------------------------ kernel helpers --

def _gelu(x):
    # TODO(synk): HF ELECTRA uses erf-based GELU; tanh approximation used here.
    return 0.5 * x * (1.0 + jnp.tanh(
        0.7978845608028654 * (x + 0.044715 * x * x * x)))


def _ln(x, g, b):
    mu = jnp.mean(x, axis=-1, keepdims=True)
    var = jnp.mean((x - mu) * (x - mu), axis=-1, keepdims=True)
    return (x - mu) * jax.lax.rsqrt(var + 1e-12) * g + b


def _embed(ids, wemb_ref, postype_ref, g_ref, b_ref):
    """Shared ELECTRA embeddings, gather fused as a one-hot MXU matmul."""
    M = ids.shape[0]
    V = wemb_ref.shape[0]
    iota_v = jax.lax.broadcasted_iota(jnp.int32, (M, V), 1)
    onehot = jnp.where(iota_v == ids, 1.0, 0.0).astype(jnp.bfloat16)     # [M, V]
    xw = jnp.dot(onehot, wemb_ref[...], preferred_element_type=jnp.float32)
    return _ln(xw + postype_ref[...], g_ref[...], b_ref[...])            # [M, E]


def _encoder_stack(x, bias, wq, bq, wk, bk, wv, bv, wo, bo, ln1g, ln1b,
                   w1, b1, w2, b2, ln2g, ln2b, ctx_sc, *, B, S, nh, L):
    """All L transformer layers, fully VMEM/vreg resident.

    Per-head weights: wq/wk/wv [L*nh, H, dh] (scale folded into wq),
    wo [L*nh, dh, H].  Per-layer: bo/ln/w1/w2 stacked along a leading L axis.
    ctx_sc: VMEM scratch [B*S, dh] bf16 used to assemble per-batch context rows.
    """
    M, H = x.shape
    for l in range(L):
        x_bf = x.astype(jnp.bfloat16)
        attn = jnp.zeros((M, H), jnp.float32)
        for h in range(nh):
            i = l * nh + h
            # Per-head projections for ALL rows at once (no lane-offset slicing).
            qh = (jnp.dot(x_bf, wq[i], preferred_element_type=jnp.float32)
                  + bq[i]).astype(jnp.bfloat16)                    # [M, dh]
            kh = (jnp.dot(x_bf, wk[i], preferred_element_type=jnp.float32)
                  + bk[i]).astype(jnp.bfloat16)
            vh = (jnp.dot(x_bf, wv[i], preferred_element_type=jnp.float32)
                  + bv[i]).astype(jnp.bfloat16)
            for b in range(B):
                r0, r1 = b * S, (b + 1) * S                        # sublane-aligned
                s = jax.lax.dot_general(
                    qh[r0:r1, :], kh[r0:r1, :],
                    (((1,), (1,)), ((), ())),
                    preferred_element_type=jnp.float32)            # [S, S]
                s = s + bias[b:b + 1, :]                           # additive mask bias
                s = s - jnp.max(s, axis=-1, keepdims=True)         # softmax in f32
                p = jnp.exp(s)
                p = p * pl.reciprocal(jnp.sum(p, axis=-1, keepdims=True), approx=True)
                ctx = jnp.dot(p.astype(jnp.bfloat16), vh[r0:r1, :],
                              preferred_element_type=jnp.float32)  # [S, dh]
                ctx_sc[r0:r1, :] = ctx.astype(jnp.bfloat16)        # direct scratch write
            # One output-projection matmul per head over all rows.
            attn = attn + jnp.dot(ctx_sc[...], wo[i],
                                  preferred_element_type=jnp.float32)
        attn = attn + bo[l]
        h1 = _ln(x + attn, ln1g[l], ln1b[l])
        ff = _gelu(jnp.dot(h1.astype(jnp.bfloat16), w1[l],
                           preferred_element_type=jnp.float32) + b1[l])
        ff = jnp.dot(ff.astype(jnp.bfloat16), w2[l],
                     preferred_element_type=jnp.float32) + b2[l]
        x = _ln(h1 + ff, ln2g[l], ln2b[l])
    return x


# ---------------------------------------------------------------- kernels -----

def _generator_kernel(ids_ref, mask_ref,
                      wemb_ref, postype_ref, elng_ref, elnb_ref,
                      projw_ref, projb_ref,
                      wq_ref, bq_ref, wk_ref, bk_ref, wv_ref, bv_ref,
                      wo_ref, bo_ref, ln1g_ref, ln1b_ref,
                      w1_ref, b1_ref, w2_ref, b2_ref, ln2g_ref, ln2b_ref,
                      gpw_ref, gpb_ref, gplng_ref, gplnb_ref,
                      lmw_ref, lmb_ref,
                      logits_ref, idx_ref,
                      ctx_ref, *, B, S, nh, L):
    """Whole generator: embeddings -> project -> L layers -> MLM head -> argmax."""
    V = wemb_ref.shape[0]
    ids = ids_ref[...]                                             # [M, 1] int32

    # Embeddings (one-hot gather) + LayerNorm, then embeddings_project E -> Hg.
    x = _embed(ids, wemb_ref, postype_ref, elng_ref, elnb_ref)     # [M, E]
    x = jnp.dot(x.astype(jnp.bfloat16), projw_ref[...],
                preferred_element_type=jnp.float32) + projb_ref[...]   # [M, Hg]

    # Additive attention-mask bias, computed in-kernel.
    bias = (1.0 - mask_ref[...].astype(jnp.float32)) * -10000.0    # [B, S]

    x = _encoder_stack(x, bias, wq_ref, bq_ref, wk_ref, bk_ref, wv_ref, bv_ref,
                       wo_ref, bo_ref, ln1g_ref, ln1b_ref, w1_ref, b1_ref,
                       w2_ref, b2_ref, ln2g_ref, ln2b_ref, ctx_ref,
                       B=B, S=S, nh=nh, L=L)

    # Generator prediction head + tied LM head (+ fused argmax).
    hh = _gelu(jnp.dot(x.astype(jnp.bfloat16), gpw_ref[...],
                       preferred_element_type=jnp.float32) + gpb_ref[...])
    hh = _ln(hh, gplng_ref[...], gplnb_ref[...])
    logits = jnp.dot(hh.astype(jnp.bfloat16), lmw_ref[...],
                     preferred_element_type=jnp.float32) + lmb_ref[...]   # [M, V]
    logits_ref[...] = logits

    iota = jax.lax.broadcasted_iota(jnp.int32, logits.shape, 1)
    m = jnp.max(logits, axis=-1, keepdims=True)
    cand = jnp.where(logits == m, iota, V)                          # sentinel V for non-max
    idx_ref[...] = jnp.min(cand, axis=-1, keepdims=True)            # first-max (torch rule)


def _discriminator_kernel(ids_ref, tok_ref, mask_ref,
                          wemb_ref, postype_ref, elng_ref, elnb_ref,
                          wq_ref, bq_ref, wk_ref, bk_ref, wv_ref, bv_ref,
                          wo_ref, bo_ref, ln1g_ref, ln1b_ref,
                          w1_ref, b1_ref, w2_ref, b2_ref, ln2g_ref, ln2b_ref,
                          dpw_ref, dpb_ref, predw_ref, predb_ref,
                          dlogits_ref, dy_ref,
                          ctx_ref, *, B, S, nh, L):
    """Whole discriminator: embeddings -> L layers -> RTD head (+ fused labels)."""
    ids = ids_ref[...]                                              # generator's yhat

    x = _embed(ids, wemb_ref, postype_ref, elng_ref, elnb_ref)      # [M, E] (E == Hd)
    bias = (1.0 - mask_ref[...].astype(jnp.float32)) * -10000.0

    x = _encoder_stack(x, bias, wq_ref, bq_ref, wk_ref, bk_ref, wv_ref, bv_ref,
                       wo_ref, bo_ref, ln1g_ref, ln1b_ref, w1_ref, b1_ref,
                       w2_ref, b2_ref, ln2g_ref, ln2b_ref, ctx_ref,
                       B=B, S=S, nh=nh, L=L)

    hh = _gelu(jnp.dot(x.astype(jnp.bfloat16), dpw_ref[...],
                       preferred_element_type=jnp.float32) + dpb_ref[...])
    dlogits_ref[...] = jnp.dot(hh.astype(jnp.bfloat16), predw_ref[...],
                               preferred_element_type=jnp.float32) + predb_ref[...]
    # discriminator_y = where(yhat == tokens, 0, 1), fused here.
    dy_ref[...] = (ids != tok_ref[...]).astype(jnp.float32)


# --------------------------------------------------------------- model glue ---

def generator_call(ids_m, gen_mask, params):
    shared, g = params["shared"], params["gen"]
    M = ids_m.shape[0]
    B, S = gen_mask.shape
    V = shared["lm_w"].shape[1]
    nh, L = CFG["nhg"], CFG["Lg"]
    dh = CFG["Hg"] // nh
    lay = g["layers"]
    kern = functools.partial(_generator_kernel, B=B, S=S, nh=nh, L=L)
    return pl.pallas_call(
        kern,
        out_shape=(jax.ShapeDtypeStruct((M, V), jnp.float32),
                   jax.ShapeDtypeStruct((M, 1), jnp.int32)),
        scratch_shapes=[pltpu.VMEM((M, dh), jnp.bfloat16)],
    )(ids_m, gen_mask,
      shared["word_emb"], shared["postype"], shared["ln_g"], shared["ln_b"],
      g["proj_w"], g["proj_b"],
      lay["wq"], lay["bq"], lay["wk"], lay["bk"], lay["wv"], lay["bv"],
      lay["wo"], lay["bo"], lay["ln1_g"], lay["ln1_b"],
      lay["w1"], lay["b1"], lay["w2"], lay["b2"], lay["ln2_g"], lay["ln2_b"],
      g["gp_w"], g["gp_b"], g["gp_ln_g"], g["gp_ln_b"],
      shared["lm_w"], g["lm_bias"])


def discriminator_call(ids_m, tokens_m, disc_mask, params):
    shared, d = params["shared"], params["disc"]
    M = ids_m.shape[0]
    B, S = disc_mask.shape
    nh, L = CFG["nhd"], CFG["Ld"]
    dh = CFG["Hd"] // nh
    lay = d["layers"]
    kern = functools.partial(_discriminator_kernel, B=B, S=S, nh=nh, L=L)
    return pl.pallas_call(
        kern,
        out_shape=(jax.ShapeDtypeStruct((M, 1), jnp.float32),
                   jax.ShapeDtypeStruct((M, 1), jnp.float32)),
        scratch_shapes=[pltpu.VMEM((M, dh), jnp.bfloat16)],
    )(ids_m, tokens_m, disc_mask,
      shared["word_emb"], shared["postype"], shared["ln_g"], shared["ln_b"],
      lay["wq"], lay["bq"], lay["wk"], lay["bk"], lay["wv"], lay["bv"],
      lay["wo"], lay["bo"], lay["ln1_g"], lay["ln1_b"],
      lay["w1"], lay["b1"], lay["w2"], lay["b2"], lay["ln2_g"], lay["ln2_b"],
      d["dp_w"], d["dp_b"], d["dpred_w"], d["dpred_b"])


def model_forward(tokens, tokens_with_mask, generator_mask, discriminator_mask, params):
    B, S = tokens.shape
    M = B * S
    gen_logits, gen_yhat = generator_call(
        tokens_with_mask.reshape(M, 1), generator_mask, params)     # [M, V], [M, 1]
    disc_logits, disc_y = discriminator_call(
        gen_yhat, tokens.reshape(M, 1), discriminator_mask, params) # [M, 1], [M, 1]
    V = gen_logits.shape[-1]
    return (gen_logits.reshape(B, S, V), tokens,
            disc_logits.reshape(B, S), disc_y.reshape(B, S))


# ------------------------------------------------------------------- params ---

def _dense(key, fan_in, fan_out):
    return jax.random.normal(key, (fan_in, fan_out), jnp.float32) * 0.02


def _layer_params(key, H, FF, nh):
    dh = H // nh
    ks = jax.random.split(key, 6)
    scale = 1.0 / math.sqrt(dh)

    def heads(w):  # [H, H] -> [nh, H, dh]  (per-head projection weights)
        return jnp.transpose(w.reshape(H, nh, dh), (1, 0, 2))

    return dict(
        # 1/sqrt(dh) softmax scale folded into Wq at init.
        wq=(heads(_dense(ks[0], H, H)) * scale).astype(jnp.bfloat16),
        bq=jnp.zeros((nh, 1, dh), jnp.float32),
        wk=heads(_dense(ks[1], H, H)).astype(jnp.bfloat16),
        bk=jnp.zeros((nh, 1, dh), jnp.float32),
        wv=heads(_dense(ks[2], H, H)).astype(jnp.bfloat16),
        bv=jnp.zeros((nh, 1, dh), jnp.float32),
        wo=_dense(ks[3], H, H).reshape(nh, dh, H).astype(jnp.bfloat16),
        bo=jnp.zeros((1, H), jnp.float32),
        ln1_g=jnp.ones((1, H), jnp.float32), ln1_b=jnp.zeros((1, H), jnp.float32),
        w1=_dense(ks[4], H, FF).astype(jnp.bfloat16), b1=jnp.zeros((1, FF), jnp.float32),
        w2=_dense(ks[5], FF, H).astype(jnp.bfloat16), b2=jnp.zeros((1, H), jnp.float32),
        ln2_g=jnp.ones((1, H), jnp.float32), ln2_b=jnp.zeros((1, H), jnp.float32),
    )


def _stack_layers(keys, H, FF, nh):
    """Stack per-layer params along a leading L axis; flatten (L, nh) -> L*nh."""
    layers = [_layer_params(k, H, FF, nh) for k in keys]
    stacked = {name: jnp.stack([lp[name] for lp in layers], axis=0)
               for name in layers[0]}
    for name in ("wq", "bq", "wk", "bk", "wv", "bv", "wo"):
        s = stacked[name]
        stacked[name] = s.reshape((s.shape[0] * s.shape[1],) + s.shape[2:])
    return stacked


def init_params(key):
    B, V, E, S, P, T = CFG["B"], CFG["V"], CFG["E"], CFG["S"], CFG["P"], CFG["T"]
    Hg, FFg, Lg, nhg = CFG["Hg"], CFG["FFg"], CFG["Lg"], CFG["nhg"]
    Hd, FFd, Ld, nhd = CFG["Hd"], CFG["FFd"], CFG["Ld"], CFG["nhd"]
    k = jax.random.split(key, 10)

    word_emb = _dense(k[0], V, E)
    pos_emb = _dense(k[1], P, E)
    type_emb = _dense(k[2], T, E)
    pos_type = pos_emb[:S] + type_emb[0][None, :]                    # [S, E]
    shared = dict(
        word_emb=word_emb.astype(jnp.bfloat16),          # in-kernel one-hot gather
        lm_w=word_emb.T.astype(jnp.bfloat16),            # tied LM head, pre-transposed
        postype=jnp.tile(pos_type, (B, 1)),              # [B*S, E] precomputed once
        ln_g=jnp.ones((1, E), jnp.float32), ln_b=jnp.zeros((1, E), jnp.float32),
    )
    gen = dict(
        proj_w=_dense(k[3], E, Hg).astype(jnp.bfloat16),
        proj_b=jnp.zeros((1, Hg), jnp.float32),
        layers=_stack_layers(jax.random.split(k[4], Lg), Hg, FFg, nhg),
        gp_w=_dense(k[5], Hg, E).astype(jnp.bfloat16),
        gp_b=jnp.zeros((1, E), jnp.float32),
        gp_ln_g=jnp.ones((1, E), jnp.float32), gp_ln_b=jnp.zeros((1, E), jnp.float32),
        lm_bias=jnp.zeros((1, V), jnp.float32),
    )
    disc = dict(
        layers=_stack_layers(jax.random.split(k[6], Ld), Hd, FFd, nhd),
        dp_w=_dense(k[7], Hd, Hd).astype(jnp.bfloat16),
        dp_b=jnp.zeros((1, Hd), jnp.float32),
        dpred_w=_dense(k[8], Hd, 1).astype(jnp.bfloat16),
        dpred_b=jnp.zeros((1, 1), jnp.float32),
    )
    return dict(shared=shared, gen=gen, disc=disc)


# --------------------------------------------------------------------- main ---

if __name__ == "__main__":
    B, S, V = CFG["B"], CFG["S"], CFG["V"]
    root = jax.random.PRNGKey(0)
    kp, k1, k2 = jax.random.split(root, 3)

    params = init_params(kp)

    tokens = jax.random.randint(k1, (B, S), 0, V, dtype=jnp.int32)
    mask_positions = jax.random.bernoulli(k2, 0.15, (B, S))
    tokens_with_mask = jnp.where(mask_positions, jnp.int32(V - 1), tokens)  # [MASK] = V-1
    generator_mask = jnp.ones((B, S), jnp.int32)
    discriminator_mask = jnp.ones((B, S), jnp.int32)

    fwd = jax.jit(model_forward)
    gen_logits, toks_out, disc_logits, disc_y = fwd(
        tokens, tokens_with_mask, generator_mask, discriminator_mask, params)
    jax.block_until_ready((gen_logits, toks_out, disc_logits, disc_y))

    assert gen_logits.shape == (B, S, V)
    assert toks_out.shape == (B, S)
    assert disc_logits.shape == (B, S)
    assert disc_y.shape == (B, S)
    print("KERNEL_OK")
</pallas_src>

<mosaic_0001>
module attributes {stable_mosaic.version = 11 : i64} {
  func.func @_generator_kernel(%arg0: memref<32x1xi32, #tpu.memory_space<vmem>>, %arg1: memref<2x16xi32, #tpu.memory_space<vmem>>, %arg2: memref<128x64xbf16, #tpu.memory_space<vmem>>, %arg3: memref<32x64xf32, #tpu.memory_space<vmem>>, %arg4: memref<1x64xf32, #tpu.memory_space<vmem>>, %arg5: memref<1x64xf32, #tpu.memory_space<vmem>>, %arg6: memref<64x32xbf16, #tpu.memory_space<vmem>>, %arg7: memref<1x32xf32, #tpu.memory_space<vmem>>, %arg8: memref<4x32x16xbf16, #tpu.memory_space<vmem>>, %arg9: memref<4x1x16xf32, #tpu.memory_space<vmem>>, %arg10: memref<4x32x16xbf16, #tpu.memory_space<vmem>>, %arg11: memref<4x1x16xf32, #tpu.memory_space<vmem>>, %arg12: memref<4x32x16xbf16, #tpu.memory_space<vmem>>, %arg13: memref<4x1x16xf32, #tpu.memory_space<vmem>>, %arg14: memref<4x16x32xbf16, #tpu.memory_space<vmem>>, %arg15: memref<2x1x32xf32, #tpu.memory_space<vmem>>, %arg16: memref<2x1x32xf32, #tpu.memory_space<vmem>>, %arg17: memref<2x1x32xf32, #tpu.memory_space<vmem>>, %arg18: memref<2x32x64xbf16, #tpu.memory_space<vmem>>, %arg19: memref<2x1x64xf32, #tpu.memory_space<vmem>>, %arg20: memref<2x64x32xbf16, #tpu.memory_space<vmem>>, %arg21: memref<2x1x32xf32, #tpu.memory_space<vmem>>, %arg22: memref<2x1x32xf32, #tpu.memory_space<vmem>>, %arg23: memref<2x1x32xf32, #tpu.memory_space<vmem>>, %arg24: memref<32x64xbf16, #tpu.memory_space<vmem>>, %arg25: memref<1x64xf32, #tpu.memory_space<vmem>>, %arg26: memref<1x64xf32, #tpu.memory_space<vmem>>, %arg27: memref<1x64xf32, #tpu.memory_space<vmem>>, %arg28: memref<64x128xbf16, #tpu.memory_space<vmem>>, %arg29: memref<1x128xf32, #tpu.memory_space<vmem>>, %arg30: memref<32x128xf32, #tpu.memory_space<vmem>>, %arg31: memref<32x1xi32, #tpu.memory_space<vmem>>, %arg32: memref<32x16xbf16, #tpu.memory_space<vmem>>) attributes {dimension_semantics = [], scalar_prefetch = 0 : i64, scratch_operands = 1 : i64, tpu.core_type = #tpu.core_type<tc>} {
    %c0 = arith.constant 0 : index
    %c0_0 = arith.constant 0 : index
    %0 = vector.load %arg0[%c0, %c0_0] : memref<32x1xi32, #tpu.memory_space<vmem>>, vector<32x1xi32>
    %1 = tpu.iota {dimensions = array<i32: 1>} : vector<32x128xi32>
    %2 = vector.broadcast %0 : vector<32x1xi32> to vector<32x128xi32>
    %3 = arith.cmpi eq, %1, %2 : vector<32x128xi32>
    %cst = arith.constant 1.000000e+00 : f32
    %cst_1 = arith.constant 0.000000e+00 : f32
    %4 = vector.broadcast %cst : f32 to vector<32x128xf32>
    %5 = vector.broadcast %cst_1 : f32 to vector<32x128xf32>
    %6 = arith.select %3, %4, %5 : vector<32x128xi1>, vector<32x128xf32>
    %7 = arith.truncf %6 : vector<32x128xf32> to vector<32x128xbf16>
    %c0_2 = arith.constant 0 : index
    %c0_3 = arith.constant 0 : index
    %8 = vector.load %arg2[%c0_2, %c0_3] : memref<128x64xbf16, #tpu.memory_space<vmem>>, vector<128x64xbf16>
    %cst_4 = arith.constant dense<0.000000e+00> : vector<32x64xf32>
    %9 = tpu.matmul %7, %8, %cst_4 {dimension_numbers = #tpu.dot_dimension_numbers<[1], [0], [0], [1], [0, 0, 1, 1], [], []>} : vector<32x128xbf16>, vector<128x64xbf16>, vector<32x64xf32> -> vector<32x64xf32>
    %c0_5 = arith.constant 0 : index
    %c0_6 = arith.constant 0 : index
    %10 = vector.load %arg3[%c0_5, %c0_6] : memref<32x64xf32, #tpu.memory_space<vmem>>, vector<32x64xf32>
    %11 = arith.addf %9, %10 : vector<32x64xf32>
    %c0_7 = arith.constant 0 : index
    %c0_8 = arith.constant 0 : index
    %12 = vector.load %arg4[%c0_7, %c0_8] : memref<1x64xf32, #tpu.memory_space<vmem>>, vector<1x64xf32>
    %c0_9 = arith.constant 0 : index
    %c0_10 = arith.constant 0 : index
    %13 = vector.load %arg5[%c0_9, %c0_10] : memref<1x64xf32, #tpu.memory_space<vmem>>, vector<1x64xf32>
    %cst_11 = arith.constant dense<0.000000e+00> : vector<32xf32>
    %14 = vector.multi_reduction <add>, %11, %cst_11 [1] : vector<32x64xf32> to vector<32xf32>
    %15 = vector.shape_cast %14 : vector<32xf32> to vector<32x1xf32>
    %cst_12 = arith.constant 6.400000e+01 : f32
    %16 = vector.broadcast %cst_12 : f32 to vector<32x1xf32>
    %17 = arith.divf %15, %16 : vector<32x1xf32>
    %18 = vector.broadcast %17 : vector<32x1xf32> to vector<32x64xf32>
    %19 = arith.subf %11, %18 : vector<32x64xf32>
    %20 = vector.broadcast %17 : vector<32x1xf32> to vector<32x64xf32>
    %21 = arith.subf %11, %20 : vector<32x64xf32>
    %22 = arith.mulf %19, %21 : vector<32x64xf32>
    %cst_13 = arith.constant dense<0.000000e+00> : vector<32xf32>
    %23 = vector.multi_reduction <add>, %22, %cst_13 [1] : vector<32x64xf32> to vector<32xf32>
    %24 = vector.shape_cast %23 : vector<32xf32> to vector<32x1xf32>
    %cst_14 = arith.constant 6.400000e+01 : f32
    %25 = vector.broadcast %cst_14 : f32 to vector<32x1xf32>
    %26 = arith.divf %24, %25 : vector<32x1xf32>
    %27 = vector.broadcast %17 : vector<32x1xf32> to vector<32x64xf32>
    %28 = arith.subf %11, %27 : vector<32x64xf32>
    %cst_15 = arith.constant 9.99999996E-13 : f32
    %29 = vector.broadcast %cst_15 : f32 to vector<32x1xf32>
    %30 = arith.addf %26, %29 : vector<32x1xf32>
    %31 = math.rsqrt %30 : vector<32x1xf32>
    %32 = vector.broadcast %31 : vector<32x1xf32> to vector<32x64xf32>
    %33 = arith.mulf %28, %32 : vector<32x64xf32>
    %34 = vector.broadcast %12 : vector<1x64xf32> to vector<32x64xf32>
    %35 = arith.mulf %33, %34 : vector<32x64xf32>
    %36 = vector.broadcast %13 : vector<1x64xf32> to vector<32x64xf32>
    %37 = arith.addf %35, %36 : vector<32x64xf32>
    %38 = arith.truncf %37 : vector<32x64xf32> to vector<32x64xbf16>
    %c0_16 = arith.constant 0 : index
    %c0_17 = arith.constant 0 : index
    %39 = vector.load %arg6[%c0_16, %c0_17] : memref<64x32xbf16, #tpu.memory_space<vmem>>, vector<64x32xbf16>
    %cst_18 = arith.constant dense<0.000000e+00> : vector<32x32xf32>
    %40 = tpu.matmul %38, %39, %cst_18 {dimension_numbers = #tpu.dot_dimension_numbers<[1], [0], [0], [1], [0, 0, 1, 1], [], []>} : vector<32x64xbf16>, vector<64x32xbf16>, vector<32x32xf32> -> vector<32x32xf32>
    %c0_19 = arith.constant 0 : index
    %c0_20 = arith.constant 0 : index
    %41 = vector.load %arg7[%c0_19, %c0_20] : memref<1x32xf32, #tpu.memory_space<vmem>>, vector<1x32xf32>
    %42 = vector.broadcast %41 : vector<1x32xf32> to vector<32x32xf32>
    %43 = arith.addf %40, %42 : vector<32x32xf32>
    %c0_21 = arith.constant 0 : index
    %c0_22 = arith.constant 0 : index
    %44 = vector.load %arg1[%c0_21, %c0_22] : memref<2x16xi32, #tpu.memory_space<vmem>>, vector<2x16xi32>
    %45 = arith.sitofp %44 : vector<2x16xi32> to vector<2x16xf32>
    %cst_23 = arith.constant 1.000000e+00 : f32
    %46 = vector.broadcast %cst_23 : f32 to vector<2x16xf32>
    %47 = arith.subf %46, %45 : vector<2x16xf32>
    %cst_24 = arith.constant -1.000000e+04 : f32
    %48 = vector.broadcast %cst_24 : f32 to vector<2x16xf32>
    %49 = arith.mulf %47, %48 : vector<2x16xf32>
    %50 = arith.truncf %43 : vector<32x32xf32> to vector<32x32xbf16>
    %cst_25 = arith.constant 0.000000e+00 : f32
    %51 = vector.broadcast %cst_25 : f32 to vector<32x32xf32>
    %c0_26 = arith.constant 0 : index
    %c0_27 = arith.constant 0 : index
    %c0_28 = arith.constant 0 : index
    %52 = vector.load %arg8[%c0_26, %c0_27, %c0_28] : memref<4x32x16xbf16, #tpu.memory_space<vmem>>, vector<1x32x16xbf16>
    %53 = vector.shape_cast %52 : vector<1x32x16xbf16> to vector<32x16xbf16>
    %cst_29 = arith.constant dense<0.000000e+00> : vector<32x16xf32>
    %54 = tpu.matmul %50, %53, %cst_29 {dimension_numbers = #tpu.dot_dimension_numbers<[1], [0], [0], [1], [0, 0, 1, 1], [], []>} : vector<32x32xbf16>, vector<32x16xbf16>, vector<32x16xf32> -> vector<32x16xf32>
    %c0_30 = arith.constant 0 : index
    %c0_31 = arith.constant 0 : index
    %c0_32 = arith.constant 0 : index
    %55 = vector.load %arg9[%c0_30, %c0_31, %c0_32] : memref<4x1x16xf32, #tpu.memory_space<vmem>>, vector<1x1x16xf32>
    %56 = vector.shape_cast %55 : vector<1x1x16xf32> to vector<1x16xf32>
    %57 = vector.broadcast %56 : vector<1x16xf32> to vector<32x16xf32>
    %58 = arith.addf %54, %57 : vector<32x16xf32>
    %59 = arith.truncf %58 : vector<32x16xf32> to vector<32x16xbf16>
    %c0_33 = arith.constant 0 : index
    %c0_34 = arith.constant 0 : index
    %c0_35 = arith.constant 0 : index
    %60 = vector.load %arg10[%c0_33, %c0_34, %c0_35] : memref<4x32x16xbf16, #tpu.memory_space<vmem>>, vector<1x32x16xbf16>
    %61 = vector.shape_cast %60 : vector<1x32x16xbf16> to vector<32x16xbf16>
    %cst_36 = arith.constant dense<0.000000e+00> : vector<32x16xf32>
    %62 = tpu.matmul %50, %61, %cst_36 {dimension_numbers = #tpu.dot_dimension_numbers<[1], [0], [0], [1], [0, 0, 1, 1], [], []>} : vector<32x32xbf16>, vector<32x16xbf16>, vector<32x16xf32> -> vector<32x16xf32>
    %c0_37 = arith.constant 0 : index
    %c0_38 = arith.constant 0 : index
    %c0_39 = arith.constant 0 : index
    %63 = vector.load %arg11[%c0_37, %c0_38, %c0_39] : memref<4x1x16xf32, #tpu.memory_space<vmem>>, vector<1x1x16xf32>
    %64 = vector.shape_cast %63 : vector<1x1x16xf32> to vector<1x16xf32>
    %65 = vector.broadcast %64 : vector<1x16xf32> to vector<32x16xf32>
    %66 = arith.addf %62, %65 : vector<32x16xf32>
    %67 = arith.truncf %66 : vector<32x16xf32> to vector<32x16xbf16>
    %c0_40 = arith.constant 0 : index
    %c0_41 = arith.constant 0 : index
    %c0_42 = arith.constant 0 : index
    %68 = vector.load %arg12[%c0_40, %c0_41, %c0_42] : memref<4x32x16xbf16, #tpu.memory_space<vmem>>, vector<1x32x16xbf16>
    %69 = vector.shape_cast %68 : vector<1x32x16xbf16> to vector<32x16xbf16>
    %cst_43 = arith.constant dense<0.000000e+00> : vector<32x16xf32>
    %70 = tpu.matmul %50, %69, %cst_43 {dimension_numbers = #tpu.dot_dimension_numbers<[1], [0], [0], [1], [0, 0, 1, 1], [], []>} : vector<32x32xbf16>, vector<32x16xbf16>, vector<32x16xf32> -> vector<32x16xf32>
    %c0_44 = arith.constant 0 : index
    %c0_45 = arith.constant 0 : index
    %c0_46 = arith.constant 0 : index
    %71 = vector.load %arg13[%c0_44, %c0_45, %c0_46] : memref<4x1x16xf32, #tpu.memory_space<vmem>>, vector<1x1x16xf32>
    %72 = vector.shape_cast %71 : vector<1x1x16xf32> to vector<1x16xf32>
    %73 = vector.broadcast %72 : vector<1x16xf32> to vector<32x16xf32>
    %74 = arith.addf %70, %73 : vector<32x16xf32>
    %75 = arith.truncf %74 : vector<32x16xf32> to vector<32x16xbf16>
    %76 = vector.extract_strided_slice %59 {offsets = [0, 0], sizes = [16, 16], strides = [1, 1]} : vector<32x16xbf16> to vector<16x16xbf16>
    %77 = vector.extract_strided_slice %67 {offsets = [0, 0], sizes = [16, 16], strides = [1, 1]} : vector<32x16xbf16> to vector<16x16xbf16>
    %cst_47 = arith.constant dense<0.000000e+00> : vector<16x16xf32>
    %78 = tpu.matmul %76, %77, %cst_47 {dimension_numbers = #tpu.dot_dimension_numbers<[1], [1], [0], [0], [0, 0, 1, 0], [], []>} : vector<16x16xbf16>, vector<16x16xbf16>, vector<16x16xf32> -> vector<16x16xf32>
    %79 = vector.extract_strided_slice %49 {offsets = [0, 0], sizes = [1, 16], strides = [1, 1]} : vector<2x16xf32> to vector<1x16xf32>
    %80 = vector.broadcast %79 : vector<1x16xf32> to vector<16x16xf32>
    %81 = arith.addf %78, %80 : vector<16x16xf32>
    %cst_48 = arith.constant dense<0xFF800000> : vector<16xf32>
    %82 = vector.multi_reduction <maximumf>, %81, %cst_48 [1] : vector<16x16xf32> to vector<16xf32>
    %83 = vector.shape_cast %82 : vector<16xf32> to vector<16x1xf32>
    %84 = vector.broadcast %83 : vector<16x1xf32> to vector<16x16xf32>
    %85 = arith.subf %81, %84 : vector<16x16xf32>
    %86 = math.exp %85 : vector<16x16xf32>
    %cst_49 = arith.constant dense<0.000000e+00> : vector<16xf32>
    %87 = vector.multi_reduction <add>, %86, %cst_49 [1] : vector<16x16xf32> to vector<16xf32>
    %88 = vector.shape_cast %87 : vector<16xf32> to vector<16x1xf32>
    %89 = tpu.reciprocal %88 {approx = true} : vector<16x1xf32> -> vector<16x1xf32>
    %90 = vector.broadcast %89 : vector<16x1xf32> to vector<16x16xf32>
    %91 = arith.mulf %86, %90 : vector<16x16xf32>
    %92 = arith.truncf %91 : vector<16x16xf32> to vector<16x16xbf16>
    %93 = vector.extract_strided_slice %75 {offsets = [0, 0], sizes = [16, 16], strides = [1, 1]} : vector<32x16xbf16> to vector<16x16xbf16>
    %cst_50 = arith.constant dense<0.000000e+00> : vector<16x16xf32>
    %94 = tpu.matmul %92, %93, %cst_50 {dimension_numbers = #tpu.dot_dimension_numbers<[1], [0], [0], [1], [0, 0, 1, 1], [], []>} : vector<16x16xbf16>, vector<16x16xbf16>, vector<16x16xf32> -> vector<16x16xf32>
    %95 = arith.truncf %94 : vector<16x16xf32> to vector<16x16xbf16>
    %c0_51 = arith.constant 0 : index
    %c0_52 = arith.constant 0 : index
    %96 = vector.load %arg32[%c0_51, %c0_52] : memref<32x16xbf16, #tpu.memory_space<vmem>>, vector<16x16xbf16>
    tpu.vector_store %arg32[%c0_51, %c0_52], %95 {strides = array<i32>} : memref<32x16xbf16, #tpu.memory_space<vmem>>, vector<16x16xbf16>,
    %97 = vector.extract_strided_slice %59 {offsets = [16, 0], sizes = [16, 16], strides = [1, 1]} : vector<32x16xbf16> to vector<16x16xbf16>
    %98 = vector.extract_strided_slice %67 {offsets = [16, 0], sizes = [16, 16], strides = [1, 1]} : vector<32x16xbf16> to vector<16x16xbf16>
    %cst_53 = arith.constant dense<0.000000e+00> : vector<16x16xf32>
    %99 = tpu.matmul %97, %98, %cst_53 {dimension_numbers = #tpu.dot_dimension_numbers<[1], [1], [0], [0], [0, 0, 1, 0], [], []>} : vector<16x16xbf16>, vector<16x16xbf16>, vector<16x16xf32> -> vector<16x16xf32>
    %100 = vector.extract_strided_slice %49 {offsets = [1, 0], sizes = [1, 16], strides = [1, 1]} : vector<2x16xf32> to vector<1x16xf32>
    %101 = vector.broadcast %100 : vector<1x16xf32> to vector<16x16xf32>
    %102 = arith.addf %99, %101 : vector<16x16xf32>
    %cst_54 = arith.constant dense<0xFF800000> : vector<16xf32>
    %103 = vector.multi_reduction <maximumf>, %102, %cst_54 [1] : vector<16x16xf32> to vector<16xf32>
    %104 = vector.shape_cast %103 : vector<16xf32> to vector<16x1xf32>
    %105 = vector.broadcast %104 : vector<16x1xf32> to vector<16x16xf32>
    %106 = arith.subf %102, %105 : vector<16x16xf32>
    %107 = math.exp %106 : vector<16x16xf32>
    %cst_55 = arith.constant dense<0.000000e+00> : vector<16xf32>
    %108 = vector.multi_reduction <add>, %107, %cst_55 [1] : vector<16x16xf32> to vector<16xf32>
    %109 = vector.shape_cast %108 : vector<16xf32> to vector<16x1xf32>
    %110 = tpu.reciprocal %109 {approx = true} : vector<16x1xf32> -> vector<16x1xf32>
    %111 = vector.broadcast %110 : vector<16x1xf32> to vector<16x16xf32>
    %112 = arith.mulf %107, %111 : vector<16x16xf32>
    %113 = arith.truncf %112 : vector<16x16xf32> to vector<16x16xbf16>
    %114 = vector.extract_strided_slice %75 {offsets = [16, 0], sizes = [16, 16], strides = [1, 1]} : vector<32x16xbf16> to vector<16x16xbf16>
    %cst_56 = arith.constant dense<0.000000e+00> : vector<16x16xf32>
    %115 = tpu.matmul %113, %114, %cst_56 {dimension_numbers = #tpu.dot_dimension_numbers<[1], [0], [0], [1], [0, 0, 1, 1], [], []>} : vector<16x16xbf16>, vector<16x16xbf16>, vector<16x16xf32> -> vector<16x16xf32>
    %116 = arith.truncf %115 : vector<16x16xf32> to vector<16x16xbf16>
    %c16 = arith.constant 16 : index
    %c0_57 = arith.constant 0 : index
    %117 = vector.load %arg32[%c16, %c0_57] : memref<32x16xbf16, #tpu.memory_space<vmem>>, vector<16x16xbf16>
    tpu.vector_store %arg32[%c16, %c0_57], %116 {strides = array<i32>} : memref<32x16xbf16, #tpu.memory_space<vmem>>, vector<16x16xbf16>,
    %c0_58 = arith.constant 0 : index
    %c0_59 = arith.constant 0 : index
    %118 = vector.load %arg32[%c0_58, %c0_59] : memref<32x16xbf16, #tpu.memory_space<vmem>>, vector<32x16xbf16>
    %c0_60 = arith.constant 0 : index
    %c0_61 = arith.constant 0 : index
    %c0_62 = arith.constant 0 : index
    %119 = vector.load %arg14[%c0_60, %c0_61, %c0_62] : memref<4x16x32xbf16, #tpu.memory_space<vmem>>, vector<1x16x32xbf16>
    %120 = vector.shape_cast %119 : vector<1x16x32xbf16> to vector<16x32xbf16>
    %cst_63 = arith.constant dense<0.000000e+00> : vector<32x32xf32>
    %121 = tpu.matmul %118, %120, %cst_63 {dimension_numbers = #tpu.dot_dimension_numbers<[1], [0], [0], [1], [0, 0, 1, 1], [], []>} : vector<32x16xbf16>, vector<16x32xbf16>, vector<32x32xf32> -> vector<32x32xf32>
    %122 = arith.addf %51, %121 : vector<32x32xf32>
    %c1 = arith.constant 1 : index
    %c0_64 = arith.constant 0 : index
    %c0_65 = arith.constant 0 : index
    %123 = vector.load %arg8[%c1, %c0_64, %c0_65] : memref<4x32x16xbf16, #tpu.memory_space<vmem>>, vector<1x32x16xbf16>
    %124 = vector.shape_cast %123 : vector<1x32x16xbf16> to vector<32x16xbf16>
    %cst_66 = arith.constant dense<0.000000e+00> : vector<32x16xf32>
    %125 = tpu.matmul %50, %124, %cst_66 {dimension_numbers = #tpu.dot_dimension_numbers<[1], [0], [0], [1], [0, 0, 1, 1], [], []>} : vector<32x32xbf16>, vector<32x16xbf16>, vector<32x16xf32> -> vector<32x16xf32>
    %c1_67 = arith.constant 1 : index
    %c0_68 = arith.constant 0 : index
    %c0_69 = arith.constant 0 : index
    %126 = vector.load %arg9[%c1_67, %c0_68, %c0_69] : memref<4x1x16xf32, #tpu.memory_space<vmem>>, vector<1x1x16xf32>
    %127 = vector.shape_cast %126 : vector<1x1x16xf32> to vector<1x16xf32>
    %128 = vector.broadcast %127 : vector<1x16xf32> to vector<32x16xf32>
    %129 = arith.addf %125, %128 : vector<32x16xf32>
    %130 = arith.truncf %129 : vector<32x16xf32> to vector<32x16xbf16>
    %c1_70 = arith.constant 1 : index
    %c0_71 = arith.constant 0 : index
    %c0_72 = arith.constant 0 : index
    %131 = vector.load %arg10[%c1_70, %c0_71, %c0_72] : memref<4x32x16xbf16, #tpu.memory_space<vmem>>, vector<1x32x16xbf16>
    %132 = vector.shape_cast %131 : vector<1x32x16xbf16> to vector<32x16xbf16>
    %cst_73 = arith.constant dense<0.000000e+00> : vector<32x16xf32>
    %133 = tpu.matmul %50, %132, %cst_73 {dimension_numbers = #tpu.dot_dimension_numbers<[1], [0], [0], [1], [0, 0, 1, 1], [], []>} : vector<32x32xbf16>, vector<32x16xbf16>, vector<32x16xf32> -> vector<32x16xf32>
    %c1_74 = arith.constant 1 : index
    %c0_75 = arith.constant 0 : index
    %c0_76 = arith.constant 0 : index
    %134 = vector.load %arg11[%c1_74, %c0_75, %c0_76] : memref<4x1x16xf32, #tpu.memory_space<vmem>>, vector<1x1x16xf32>
    %135 = vector.shape_cast %134 : vector<1x1x16xf32> to vector<1x16xf32>
    %136 = vector.broadcast %135 : vector<1x16xf32> to vector<32x16xf32>
    %137 = arith.addf %133, %136 : vector<32x16xf32>
    %138 = arith.truncf %137 : vector<32x16xf32> to vector<32x16xbf16>
    %c1_77 = arith.constant 1 : index
    %c0_78 = arith.constant 0 : index
    %c0_79 = arith.constant 0 : index
    %139 = vector.load %arg12[%c1_77, %c0_78, %c0_79] : memref<4x32x16xbf16, #tpu.memory_space<vmem>>, vector<1x32x16xbf16>
    %140 = vector.shape_cast %139 : vector<1x32x16xbf16> to vector<32x16xbf16>
    %cst_80 = arith.constant dense<0.000000e+00> : vector<32x16xf32>
    %141 = tpu.matmul %50, %140, %cst_80 {dimension_numbers = #tpu.dot_dimension_numbers<[1], [0], [0], [1], [0, 0, 1, 1], [], []>} : vector<32x32xbf16>, vector<32x16xbf16>, vector<32x16xf32> -> vector<32x16xf32>
    %c1_81 = arith.constant 1 : index
    %c0_82 = arith.constant 0 : index
    %c0_83 = arith.constant 0 : index
    %142 = vector.load %arg13[%c1_81, %c0_82, %c0_83] : memref<4x1x16xf32, #tpu.memory_space<vmem>>, vector<1x1x16xf32>
    %143 = vector.shape_cast %142 : vector<1x1x16xf32> to vector<1x16xf32>
    %144 = vector.broadcast %143 : vector<1x16xf32> to vector<32x16xf32>
    %145 = arith.addf %141, %144 : vector<32x16xf32>
    %146 = arith.truncf %145 : vector<32x16xf32> to vector<32x16xbf16>
    %147 = vector.extract_strided_slice %130 {offsets = [0, 0], sizes = [16, 16], strides = [1, 1]} : vector<32x16xbf16> to vector<16x16xbf16>
    %148 = vector.extract_strided_slice %138 {offsets = [0, 0], sizes = [16, 16], strides = [1, 1]} : vector<32x16xbf16> to vector<16x16xbf16>
    %cst_84 = arith.constant dense<0.000000e+00> : vector<16x16xf32>
    %149 = tpu.matmul %147, %148, %cst_84 {dimension_numbers = #tpu.dot_dimension_numbers<[1], [1], [0], [0], [0, 0, 1, 0], [], []>} : vector<16x16xbf16>, vector<16x16xbf16>, vector<16x16xf32> -> vector<16x16xf32>
    %150 = vector.extract_strided_slice %49 {offsets = [0, 0], sizes = [1, 16], strides = [1, 1]} : vector<2x16xf32> to vector<1x16xf32>
    %151 = vector.broadcast %150 : vector<1x16xf32> to vector<16x16xf32>
    %152 = arith.addf %149, %151 : vector<16x16xf32>
    %cst_85 = arith.constant dense<0xFF800000> : vector<16xf32>
    %153 = vector.multi_reduction <maximumf>, %152, %cst_85 [1] : vector<16x16xf32> to vector<16xf32>
    %154 = vector.shape_cast %153 : vector<16xf32> to vector<16x1xf32>
    %155 = vector.broadcast %154 : vector<16x1xf32> to vector<16x16xf32>
    %156 = arith.subf %152, %155 : vector<16x16xf32>
    %157 = math.exp %156 : vector<16x16xf32>
    %cst_86 = arith.constant dense<0.000000e+00> : vector<16xf32>
    %158 = vector.multi_reduction <add>, %157, %cst_86 [1] : vector<16x16xf32> to vector<16xf32>
    %159 = vector.shape_cast %158 : vector<16xf32> to vector<16x1xf32>
    %160 = tpu.reciprocal %159 {approx = true} : vector<16x1xf32> -> vector<16x1xf32>
    %161 = vector.broadcast %160 : vector<16x1xf32> to vector<16x16xf32>
    %162 = arith.mulf %157, %161 : vector<16x16xf32>
    %163 = arith.truncf %162 : vector<16x16xf32> to vector<16x16xbf16>
    %164 = vector.extract_strided_slice %146 {offsets = [0, 0], sizes = [16, 16], strides = [1, 1]} : vector<32x16xbf16> to vector<16x16xbf16>
    %cst_87 = arith.constant dense<0.000000e+00> : vector<16x16xf32>
    %165 = tpu.matmul %163, %164, %cst_87 {dimension_numbers = #tpu.dot_dimension_numbers<[1], [0], [0], [1], [0, 0, 1, 1], [], []>} : vector<16x16xbf16>, vector<16x16xbf16>, vector<16x16xf32> -> vector<16x16xf32>
    %166 = arith.truncf %165 : vector<16x16xf32> to vector<16x16xbf16>
    %c0_88 = arith.constant 0 : index
    %c0_89 = arith.constant 0 : index
    %167 = vector.load %arg32[%c0_88, %c0_89] : memref<32x16xbf16, #tpu.memory_space<vmem>>, vector<16x16xbf16>
    tpu.vector_store %arg32[%c0_88, %c0_89], %166 {strides = array<i32>} : memref<32x16xbf16, #tpu.memory_space<vmem>>, vector<16x16xbf16>,
    %168 = vector.extract_strided_slice %130 {offsets = [16, 0], sizes = [16, 16], strides = [1, 1]} : vector<32x16xbf16> to vector<16x16xbf16>
    %169 = vector.extract_strided_slice %138 {offsets = [16, 0], sizes = [16, 16], strides = [1, 1]} : vector<32x16xbf16> to vector<16x16xbf16>
    %cst_90 = arith.constant dense<0.000000e+00> : vector<16x16xf32>
    %170 = tpu.matmul %168, %169, %cst_90 {dimension_numbers = #tpu.dot_dimension_numbers<[1], [1], [0], [0], [0, 0, 1, 0], [], []>} : vector<16x16xbf16>, vector<16x16xbf16>, vector<16x16xf32> -> vector<16x16xf32>
    %171 = vector.extract_strided_slice %49 {offsets = [1, 0], sizes = [1, 16], strides = [1, 1]} : vector<2x16xf32> to vector<1x16xf32>
    %172 = vector.broadcast %171 : vector<1x16xf32> to vector<16x16xf32>
    %173 = arith.addf %170, %172 : vector<16x16xf32>
    %cst_91 = arith.constant dense<0xFF800000> : vector<16xf32>
    %174 = vector.multi_reduction <maximumf>, %173, %cst_91 [1] : vector<16x16xf32> to vector<16xf32>
    %175 = vector.shape_cast %174 : vector<16xf32> to vector<16x1xf32>
    %176 = vector.broadcast %175 : vector<16x1xf32> to vector<16x16xf32>
    %177 = arith.subf %173, %176 : vector<16x16xf32>
    %178 = math.exp %177 : vector<16x16xf32>
    %cst_92 = arith.constant dense<0.000000e+00> : vector<16xf32>
    %179 = vector.multi_reduction <add>, %178, %cst_92 [1] : vector<16x16xf32> to vector<16xf32>
    %180 = vector.shape_cast %179 : vector<16xf32> to vector<16x1xf32>
    %181 = tpu.reciprocal %180 {approx = true} : vector<16x1xf32> -> vector<16x1xf32>
    %182 = vector.broadcast %181 : vector<16x1xf32> to vector<16x16xf32>
    %183 = arith.mulf %178, %182 : vector<16x16xf32>
    %184 = arith.truncf %183 : vector<16x16xf32> to vector<16x16xbf16>
    %185 = vector.extract_strided_slice %146 {offsets = [16, 0], sizes = [16, 16], strides = [1, 1]} : vector<32x16xbf16> to vector<16x16xbf16>
    %cst_93 = arith.constant dense<0.000000e+00> : vector<16x16xf32>
    %186 = tpu.matmul %184, %185, %cst_93 {dimension_numbers = #tpu.dot_dimension_numbers<[1], [0], [0], [1], [0, 0, 1, 1], [], []>} : vector<16x16xbf16>, vector<16x16xbf16>, vector<16x16xf32> -> vector<16x16xf32>
    %187 = arith.truncf %186 : vector<16x16xf32> to vector<16x16xbf16>
    %c16_94 = arith.constant 16 : index
    %c0_95 = arith.constant 0 : index
    %188 = vector.load %arg32[%c16_94, %c0_95] : memref<32x16xbf16, #tpu.memory_space<vmem>>, vector<16x16xbf16>
    tpu.vector_store %arg32[%c16_94, %c0_95], %187 {strides = array<i32>} : memref<32x16xbf16, #tpu.memory_space<vmem>>, vector<16x16xbf16>,
    %c0_96 = arith.constant 0 : index
    %c0_97 = arith.constant 0 : index
    %189 = vector.load %arg32[%c0_96, %c0_97] : memref<32x16xbf16, #tpu.memory_space<vmem>>, vector<32x16xbf16>
    %c1_98 = arith.constant 1 : index
    %c0_99 = arith.constant 0 : index
    %c0_100 = arith.constant 0 : index
    %190 = vector.load %arg14[%c1_98, %c0_99, %c0_100] : memref<4x16x32xbf16, #tpu.memory_space<vmem>>, vector<1x16x32xbf16>
    %191 = vector.shape_cast %190 : vector<1x16x32xbf16> to vector<16x32xbf16>
    %cst_101 = arith.constant dense<0.000000e+00> : vector<32x32xf32>
    %192 = tpu.matmul %189, %191, %cst_101 {dimension_numbers = #tpu.dot_dimension_numbers<[1], [0], [0], [1], [0, 0, 1, 1], [], []>} : vector<32x16xbf16>, vector<16x32xbf16>, vector<32x32xf32> -> vector<32x32xf32>
    %193 = arith.addf %122, %192 : vector<32x32xf32>
    %c0_102 = arith.constant 0 : index
    %c0_103 = arith.constant 0 : index
    %c0_104 = arith.constant 0 : index
    %194 = vector.load %arg15[%c0_102, %c0_103, %c0_104] : memref<2x1x32xf32, #tpu.memory_space<vmem>>, vector<1x1x32xf32>
    %195 = vector.shape_cast %194 : vector<1x1x32xf32> to vector<1x32xf32>
    %196 = vector.broadcast %195 : vector<1x32xf32> to vector<32x32xf32>
    %197 = arith.addf %193, %196 : vector<32x32xf32>
    %198 = arith.addf %43, %197 : vector<32x32xf32>
    %c0_105 = arith.constant 0 : index
    %c0_106 = arith.constant 0 : index
    %c0_107 = arith.constant 0 : index
    %199 = vector.load %arg16[%c0_105, %c0_106, %c0_107] : memref<2x1x32xf32, #tpu.memory_space<vmem>>, vector<1x1x32xf32>
    %200 = vector.shape_cast %199 : vector<1x1x32xf32> to vector<1x32xf32>
    %c0_108 = arith.constant 0 : index
    %c0_109 = arith.constant 0 : index
    %c0_110 = arith.constant 0 : index
    %201 = vector.load %arg17[%c0_108, %c0_109, %c0_110] : memref<2x1x32xf32, #tpu.memory_space<vmem>>, vector<1x1x32xf32>
    %202 = vector.shape_cast %201 : vector<1x1x32xf32> to vector<1x32xf32>
    %cst_111 = arith.constant dense<0.000000e+00> : vector<32xf32>
    %203 = vector.multi_reduction <add>, %198, %cst_111 [1] : vector<32x32xf32> to vector<32xf32>
    %204 = vector.shape_cast %203 : vector<32xf32> to vector<32x1xf32>
    %cst_112 = arith.constant 3.200000e+01 : f32
    %205 = vector.broadcast %cst_112 : f32 to vector<32x1xf32>
    %206 = arith.divf %204, %205 : vector<32x1xf32>
    %207 = vector.broadcast %206 : vector<32x1xf32> to vector<32x32xf32>
    %208 = arith.subf %198, %207 : vector<32x32xf32>
    %209 = vector.broadcast %206 : vector<32x1xf32> to vector<32x32xf32>
    %210 = arith.subf %198, %209 : vector<32x32xf32>
    %211 = arith.mulf %208, %210 : vector<32x32xf32>
    %cst_113 = arith.constant dense<0.000000e+00> : vector<32xf32>
    %212 = vector.multi_reduction <add>, %211, %cst_113 [1] : vector<32x32xf32> to vector<32xf32>
    %213 = vector.shape_cast %212 : vector<32xf32> to vector<32x1xf32>
    %cst_114 = arith.constant 3.200000e+01 : f32
    %214 = vector.broadcast %cst_114 : f32 to vector<32x1xf32>
    %215 = arith.divf %213, %214 : vector<32x1xf32>
    %216 = vector.broadcast %206 : vector<32x1xf32> to vector<32x32xf32>
    %217 = arith.subf %198, %216 : vector<32x32xf32>
    %cst_115 = arith.constant 9.99999996E-13 : f32
    %218 = vector.broadcast %cst_115 : f32 to vector<32x1xf32>
    %219 = arith.addf %215, %218 : vector<32x1xf32>
    %220 = math.rsqrt %219 : vector<32x1xf32>
    %221 = vector.broadcast %220 : vector<32x1xf32> to vector<32x32xf32>
    %222 = arith.mulf %217, %221 : vector<32x32xf32>
    %223 = vector.broadcast %200 : vector<1x32xf32> to vector<32x32xf32>
    %224 = arith.mulf %222, %223 : vector<32x32xf32>
    %225 = vector.broadcast %202 : vector<1x32xf32> to vector<32x32xf32>
    %226 = arith.addf %224, %225 : vector<32x32xf32>
    %227 = arith.truncf %226 : vector<32x32xf32> to vector<32x32xbf16>
    %c0_116 = arith.constant 0 : index
    %c0_117 = arith.constant 0 : index
    %c0_118 = arith.constant 0 : index
    %228 = vector.load %arg18[%c0_116, %c0_117, %c0_118] : memref<2x32x64xbf16, #tpu.memory_space<vmem>>, vector<1x32x64xbf16>
    %229 = vector.shape_cast %228 : vector<1x32x64xbf16> to vector<32x64xbf16>
    %cst_119 = arith.constant dense<0.000000e+00> : vector<32x64xf32>
    %230 = tpu.matmul %227, %229, %cst_119 {dimension_numbers = #tpu.dot_dimension_numbers<[1], [0], [0], [1], [0, 0, 1, 1], [], []>} : vector<32x32xbf16>, vector<32x64xbf16>, vector<32x64xf32> -> vector<32x64xf32>
    %c0_120 = arith.constant 0 : index
    %c0_121 = arith.constant 0 : index
    %c0_122 = arith.constant 0 : index
    %231 = vector.load %arg19[%c0_120, %c0_121, %c0_122] : memref<2x1x64xf32, #tpu.memory_space<vmem>>, vector<1x1x64xf32>
    %232 = vector.shape_cast %231 : vector<1x1x64xf32> to vector<1x64xf32>
    %233 = vector.broadcast %232 : vector<1x64xf32> to vector<32x64xf32>
    %234 = arith.addf %230, %233 : vector<32x64xf32>
    %cst_123 = arith.constant 5.000000e-01 : f32
    %235 = vector.broadcast %cst_123 : f32 to vector<32x64xf32>
    %236 = arith.mulf %235, %234 : vector<32x64xf32>
    %cst_124 = arith.constant 4.471500e-02 : f32
    %237 = vector.broadcast %cst_124 : f32 to vector<32x64xf32>
    %238 = arith.mulf %237, %234 : vector<32x64xf32>
    %239 = arith.mulf %238, %234 : vector<32x64xf32>
    %240 = arith.mulf %239, %234 : vector<32x64xf32>
    %241 = arith.addf %234, %240 : vector<32x64xf32>
    %cst_125 = arith.constant 0.797884583 : f32
    %242 = vector.broadcast %cst_125 : f32 to vector<32x64xf32>
    %243 = arith.mulf %242, %241 : vector<32x64xf32>
    %244 = math.tanh %243 : vector<32x64xf32>
    %cst_126 = arith.constant 1.000000e+00 : f32
    %245 = vector.broadcast %cst_126 : f32 to vector<32x64xf32>
    %246 = arith.addf %245, %244 : vector<32x64xf32>
    %247 = arith.mulf %236, %246 : vector<32x64xf32>
    %248 = arith.truncf %247 : vector<32x64xf32> to vector<32x64xbf16>
    %c0_127 = arith.constant 0 : index
    %c0_128 = arith.constant 0 : index
    %c0_129 = arith.constant 0 : index
    %249 = vector.load %arg20[%c0_127, %c0_128, %c0_129] : memref<2x64x32xbf16, #tpu.memory_space<vmem>>, vector<1x64x32xbf16>
    %250 = vector.shape_cast %249 : vector<1x64x32xbf16> to vector<64x32xbf16>
    %cst_130 = arith.constant dense<0.000000e+00> : vector<32x32xf32>
    %251 = tpu.matmul %248, %250, %cst_130 {dimension_numbers = #tpu.dot_dimension_numbers<[1], [0], [0], [1], [0, 0, 1, 1], [], []>} : vector<32x64xbf16>, vector<64x32xbf16>, vector<32x32xf32> -> vector<32x32xf32>
    %c0_131 = arith.constant 0 : index
    %c0_132 = arith.constant 0 : index
    %c0_133 = arith.constant 0 : index
    %252 = vector.load %arg21[%c0_131, %c0_132, %c0_133] : memref<2x1x32xf32, #tpu.memory_space<vmem>>, vector<1x1x32xf32>
    %253 = vector.shape_cast %252 : vector<1x1x32xf32> to vector<1x32xf32>
    %254 = vector.broadcast %253 : vector<1x32xf32> to vector<32x32xf32>
    %255 = arith.addf %251, %254 : vector<32x32xf32>
    %256 = arith.addf %226, %255 : vector<32x32xf32>
    %c0_134 = arith.constant 0 : index
    %c0_135 = arith.constant 0 : index
    %c0_136 = arith.constant 0 : index
    %257 = vector.load %arg22[%c0_134, %c0_135, %c0_136] : memref<2x1x32xf32, #tpu.memory_space<vmem>>, vector<1x1x32xf32>
    %258 = vector.shape_cast %257 : vector<1x1x32xf32> to vector<1x32xf32>
    %c0_137 = arith.constant 0 : index
    %c0_138 = arith.constant 0 : index
    %c0_139 = arith.constant 0 : index
    %259 = vector.load %arg23[%c0_137, %c0_138, %c0_139] : memref<2x1x32xf32, #tpu.memory_space<vmem>>, vector<1x1x32xf32>
    %260 = vector.shape_cast %259 : vector<1x1x32xf32> to vector<1x32xf32>
    %cst_140 = arith.constant dense<0.000000e+00> : vector<32xf32>
    %261 = vector.multi_reduction <add>, %256, %cst_140 [1] : vector<32x32xf32> to vector<32xf32>
    %262 = vector.shape_cast %261 : vector<32xf32> to vector<32x1xf32>
    %cst_141 = arith.constant 3.200000e+01 : f32
    %263 = vector.broadcast %cst_141 : f32 to vector<32x1xf32>
    %264 = arith.divf %262, %263 : vector<32x1xf32>
    %265 = vector.broadcast %264 : vector<32x1xf32> to vector<32x32xf32>
    %266 = arith.subf %256, %265 : vector<32x32xf32>
    %267 = vector.broadcast %264 : vector<32x1xf32> to vector<32x32xf32>
    %268 = arith.subf %256, %267 : vector<32x32xf32>
    %269 = arith.mulf %266, %268 : vector<32x32xf32>
    %cst_142 = arith.constant dense<0.000000e+00> : vector<32xf32>
    %270 = vector.multi_reduction <add>, %269, %cst_142 [1] : vector<32x32xf32> to vector<32xf32>
    %271 = vector.shape_cast %270 : vector<32xf32> to vector<32x1xf32>
    %cst_143 = arith.constant 3.200000e+01 : f32
    %272 = vector.broadcast %cst_143 : f32 to vector<32x1xf32>
    %273 = arith.divf %271, %272 : vector<32x1xf32>
    %274 = vector.broadcast %264 : vector<32x1xf32> to vector<32x32xf32>
    %275 = arith.subf %256, %274 : vector<32x32xf32>
    %cst_144 = arith.constant 9.99999996E-13 : f32
    %276 = vector.broadcast %cst_144 : f32 to vector<32x1xf32>
    %277 = arith.addf %273, %276 : vector<32x1xf32>
    %278 = math.rsqrt %277 : vector<32x1xf32>
    %279 = vector.broadcast %278 : vector<32x1xf32> to vector<32x32xf32>
    %280 = arith.mulf %275, %279 : vector<32x32xf32>
    %281 = vector.broadcast %258 : vector<1x32xf32> to vector<32x32xf32>
    %282 = arith.mulf %280, %281 : vector<32x32xf32>
    %283 = vector.broadcast %260 : vector<1x32xf32> to vector<32x32xf32>
    %284 = arith.addf %282, %283 : vector<32x32xf32>
    %285 = arith.truncf %284 : vector<32x32xf32> to vector<32x32xbf16>
    %cst_145 = arith.constant 0.000000e+00 : f32
    %286 = vector.broadcast %cst_145 : f32 to vector<32x32xf32>
    %c2 = arith.constant 2 : index
    %c0_146 = arith.constant 0 : index
    %c0_147 = arith.constant 0 : index
    %287 = vector.load %arg8[%c2, %c0_146, %c0_147] : memref<4x32x16xbf16, #tpu.memory_space<vmem>>, vector<1x32x16xbf16>
    %288 = vector.shape_cast %287 : vector<1x32x16xbf16> to vector<32x16xbf16>
    %cst_148 = arith.constant dense<0.000000e+00> : vector<32x16xf32>
    %289 = tpu.matmul %285, %288, %cst_148 {dimension_numbers = #tpu.dot_dimension_numbers<[1], [0], [0], [1], [0, 0, 1, 1], [], []>} : vector<32x32xbf16>, vector<32x16xbf16>, vector<32x16xf32> -> vector<32x16xf32>
    %c2_149 = arith.constant 2 : index
    %c0_150 = arith.constant 0 : index
    %c0_151 = arith.constant 0 : index
    %290 = vector.load %arg9[%c2_149, %c0_150, %c0_151] : memref<4x1x16xf32, #tpu.memory_space<vmem>>, vector<1x1x16xf32>
    %291 = vector.shape_cast %290 : vector<1x1x16xf32> to vector<1x16xf32>
    %292 = vector.broadcast %291 : vector<1x16xf32> to vector<32x16xf32>
    %293 = arith.addf %289, %292 : vector<32x16xf32>
    %294 = arith.truncf %293 : vector<32x16xf32> to vector<32x16xbf16>
    %c2_152 = arith.constant 2 : index
    %c0_153 = arith.constant 0 : index
    %c0_154 = arith.constant 0 : index
    %295 = vector.load %arg10[%c2_152, %c0_153, %c0_154] : memref<4x32x16xbf16, #tpu.memory_space<vmem>>, vector<1x32x16xbf16>
    %296 = vector.shape_cast %295 : vector<1x32x16xbf16> to vector<32x16xbf16>
    %cst_155 = arith.constant dense<0.000000e+00> : vector<32x16xf32>
    %297 = tpu.matmul %285, %296, %cst_155 {dimension_numbers = #tpu.dot_dimension_numbers<[1], [0], [0], [1], [0, 0, 1, 1], [], []>} : vector<32x32xbf16>, vector<32x16xbf16>, vector<32x16xf32> -> vector<32x16xf32>
    %c2_156 = arith.constant 2 : index
    %c0_157 = arith.constant 0 : index
    %c0_158 = arith.constant 0 : index
    %298 = vector.load %arg11[%c2_156, %c0_157, %c0_158] : memref<4x1x16xf32, #tpu.memory_space<vmem>>, vector<1x1x16xf32>
    %299 = vector.shape_cast %298 : vector<1x1x16xf32> to vector<1x16xf32>
    %300 = vector.broadcast %299 : vector<1x16xf32> to vector<32x16xf32>
    %301 = arith.addf %297, %300 : vector<32x16xf32>
    %302 = arith.truncf %301 : vector<32x16xf32> to vector<32x16xbf16>
    %c2_159 = arith.constant 2 : index
    %c0_160 = arith.constant 0 : index
    %c0_161 = arith.constant 0 : index
    %303 = vector.load %arg12[%c2_159, %c0_160, %c0_161] : memref<4x32x16xbf16, #tpu.memory_space<vmem>>, vector<1x32x16xbf16>
    %304 = vector.shape_cast %303 : vector<1x32x16xbf16> to vector<32x16xbf16>
    %cst_162 = arith.constant dense<0.000000e+00> : vector<32x16xf32>
    %305 = tpu.matmul %285, %304, %cst_162 {dimension_numbers = #tpu.dot_dimension_numbers<[1], [0], [0], [1], [0, 0, 1, 1], [], []>} : vector<32x32xbf16>, vector<32x16xbf16>, vector<32x16xf32> -> vector<32x16xf32>
    %c2_163 = arith.constant 2 : index
    %c0_164 = arith.constant 0 : index
    %c0_165 = arith.constant 0 : index
    %306 = vector.load %arg13[%c2_163, %c0_164, %c0_165] : memref<4x1x16xf32, #tpu.memory_space<vmem>>, vector<1x1x16xf32>
    %307 = vector.shape_cast %306 : vector<1x1x16xf32> to vector<1x16xf32>
    %308 = vector.broadcast %307 : vector<1x16xf32> to vector<32x16xf32>
    %309 = arith.addf %305, %308 : vector<32x16xf32>
    %310 = arith.truncf %309 : vector<32x16xf32> to vector<32x16xbf16>
    %311 = vector.extract_strided_slice %294 {offsets = [0, 0], sizes = [16, 16], strides = [1, 1]} : vector<32x16xbf16> to vector<16x16xbf16>
    %312 = vector.extract_strided_slice %302 {offsets = [0, 0], sizes = [16, 16], strides = [1, 1]} : vector<32x16xbf16> to vector<16x16xbf16>
    %cst_166 = arith.constant dense<0.000000e+00> : vector<16x16xf32>
    %313 = tpu.matmul %311, %312, %cst_166 {dimension_numbers = #tpu.dot_dimension_numbers<[1], [1], [0], [0], [0, 0, 1, 0], [], []>} : vector<16x16xbf16>, vector<16x16xbf16>, vector<16x16xf32> -> vector<16x16xf32>
    %314 = vector.extract_strided_slice %49 {offsets = [0, 0], sizes = [1, 16], strides = [1, 1]} : vector<2x16xf32> to vector<1x16xf32>
    %315 = vector.broadcast %314 : vector<1x16xf32> to vector<16x16xf32>
    %316 = arith.addf %313, %315 : vector<16x16xf32>
    %cst_167 = arith.constant dense<0xFF800000> : vector<16xf32>
    %317 = vector.multi_reduction <maximumf>, %316, %cst_167 [1] : vector<16x16xf32> to vector<16xf32>
    %318 = vector.shape_cast %317 : vector<16xf32> to vector<16x1xf32>
    %319 = vector.broadcast %318 : vector<16x1xf32> to vector<16x16xf32>
    %320 = arith.subf %316, %319 : vector<16x16xf32>
    %321 = math.exp %320 : vector<16x16xf32>
    %cst_168 = arith.constant dense<0.000000e+00> : vector<16xf32>
    %322 = vector.multi_reduction <add>, %321, %cst_168 [1] : vector<16x16xf32> to vector<16xf32>
    %323 = vector.shape_cast %322 : vector<16xf32> to vector<16x1xf32>
    %324 = tpu.reciprocal %323 {approx = true} : vector<16x1xf32> -> vector<16x1xf32>
    %325 = vector.broadcast %324 : vector<16x1xf32> to vector<16x16xf32>
    %326 = arith.mulf %321, %325 : vector<16x16xf32>
    %327 = arith.truncf %326 : vector<16x16xf32> to vector<16x16xbf16>
    %328 = vector.extract_strided_slice %310 {offsets = [0, 0], sizes = [16, 16], strides = [1, 1]} : vector<32x16xbf16> to vector<16x16xbf16>
    %cst_169 = arith.constant dense<0.000000e+00> : vector<16x16xf32>
    %329 = tpu.matmul %327, %328, %cst_169 {dimension_numbers = #tpu.dot_dimension_numbers<[1], [0], [0], [1], [0, 0, 1, 1], [], []>} : vector<16x16xbf16>, vector<16x16xbf16>, vector<16x16xf32> -> vector<16x16xf32>
    %330 = arith.truncf %329 : vector<16x16xf32> to vector<16x16xbf16>
    %c0_170 = arith.constant 0 : index
    %c0_171 = arith.constant 0 : index
    %331 = vector.load %arg32[%c0_170, %c0_171] : memref<32x16xbf16, #tpu.memory_space<vmem>>, vector<16x16xbf16>
    tpu.vector_store %arg32[%c0_170, %c0_171], %330 {strides = array<i32>} : memref<32x16xbf16, #tpu.memory_space<vmem>>, vector<16x16xbf16>,
    %332 = vector.extract_strided_slice %294 {offsets = [16, 0], sizes = [16, 16], strides = [1, 1]} : vector<32x16xbf16> to vector<16x16xbf16>
    %333 = vector.extract_strided_slice %302 {offsets = [16, 0], sizes = [16, 16], strides = [1, 1]} : vector<32x16xbf16> to vector<16x16xbf16>
    %cst_172 = arith.constant dense<0.000000e+00> : vector<16x16xf32>
    %334 = tpu.matmul %332, %333, %cst_172 {dimension_numbers = #tpu.dot_dimension_numbers<[1], [1], [0], [0], [0, 0, 1, 0], [], []>} : vector<16x16xbf16>, vector<16x16xbf16>, vector<16x16xf32> -> vector<16x16xf32>
    %335 = vector.extract_strided_slice %49 {offsets = [1, 0], sizes = [1, 16], strides = [1, 1]} : vector<2x16xf32> to vector<1x16xf32>
    %336 = vector.broadcast %335 : vector<1x16xf32> to vector<16x16xf32>
    %337 = arith.addf %334, %336 : vector<16x16xf32>
    %cst_173 = arith.constant dense<0xFF800000> : vector<16xf32>
    %338 = vector.multi_reduction <maximumf>, %337, %cst_173 [1] : vector<16x16xf32> to vector<16xf32>
    %339 = vector.shape_cast %338 : vector<16xf32> to vector<16x1xf32>
    %340 = vector.broadcast %339 : vector<16x1xf32> to vector<16x16xf32>
    %341 = arith.subf %337, %340 : vector<16x16xf32>
    %342 = math.exp %341 : vector<16x16xf32>
    %cst_174 = arith.constant dense<0.000000e+00> : vector<16xf32>
    %343 = vector.multi_reduction <add>, %342, %cst_174 [1] : vector<16x16xf32> to vector<16xf32>
    %344 = vector.shape_cast %343 : vector<16xf32> to vector<16x1xf32>
    %345 = tpu.reciprocal %344 {approx = true} : vector<16x1xf32> -> vector<16x1xf32>
    %346 = vector.broadcast %345 : vector<16x1xf32> to vector<16x16xf32>
    %347 = arith.mulf %342, %346 : vector<16x16xf32>
    %348 = arith.truncf %347 : vector<16x16xf32> to vector<16x16xbf16>
    %349 = vector.extract_strided_slice %310 {offsets = [16, 0], sizes = [16, 16], strides = [1, 1]} : vector<32x16xbf16> to vector<16x16xbf16>
    %cst_175 = arith.constant dense<0.000000e+00> : vector<16x16xf32>
    %350 = tpu.matmul %348, %349, %cst_175 {dimension_numbers = #tpu.dot_dimension_numbers<[1], [0], [0], [1], [0, 0, 1, 1], [], []>} : vector<16x16xbf16>, vector<16x16xbf16>, vector<16x16xf32> -> vector<16x16xf32>
    %351 = arith.truncf %350 : vector<16x16xf32> to vector<16x16xbf16>
    %c16_176 = arith.constant 16 : index
    %c0_177 = arith.constant 0 : index
    %352 = vector.load %arg32[%c16_176, %c0_177] : memref<32x16xbf16, #tpu.memory_space<vmem>>, vector<16x16xbf16>
    tpu.vector_store %arg32[%c16_176, %c0_177], %351 {strides = array<i32>} : memref<32x16xbf16, #tpu.memory_space<vmem>>, vector<16x16xbf16>,
    %c0_178 = arith.constant 0 : index
    %c0_179 = arith.constant 0 : index
    %353 = vector.load %arg32[%c0_178, %c0_179] : memref<32x16xbf16, #tpu.memory_space<vmem>>, vector<32x16xbf16>
    %c2_180 = arith.constant 2 : index
    %c0_181 = arith.constant 0 : index
    %c0_182 = arith.constant 0 : index
    %354 = vector.load %arg14[%c2_180, %c0_181, %c0_182] : memref<4x16x32xbf16, #tpu.memory_space<vmem>>, vector<1x16x32xbf16>
    %355 = vector.shape_cast %354 : vector<1x16x32xbf16> to vector<16x32xbf16>
    %cst_183 = arith.constant dense<0.000000e+00> : vector<32x32xf32>
    %356 = tpu.matmul %353, %355, %cst_183 {dimension_numbers = #tpu.dot_dimension_numbers<[1], [0], [0], [1], [0, 0, 1, 1], [], []>} : vector<32x16xbf16>, vector<16x32xbf16>, vector<32x32xf32> -> vector<32x32xf32>
    %357 = arith.addf %286, %356 : vector<32x32xf32>
    %c3 = arith.constant 3 : index
    %c0_184 = arith.constant 0 : index
    %c0_185 = arith.constant 0 : index
    %358 = vector.load %arg8[%c3, %c0_184, %c0_185] : memref<4x32x16xbf16, #tpu.memory_space<vmem>>, vector<1x32x16xbf16>
    %359 = vector.shape_cast %358 : vector<1x32x16xbf16> to vector<32x16xbf16>
    %cst_186 = arith.constant dense<0.000000e+00> : vector<32x16xf32>
    %360 = tpu.matmul %285, %359, %cst_186 {dimension_numbers = #tpu.dot_dimension_numbers<[1], [0], [0], [1], [0, 0, 1, 1], [], []>} : vector<32x32xbf16>, vector<32x16xbf16>, vector<32x16xf32> -> vector<32x16xf32>
    %c3_187 = arith.constant 3 : index
    %c0_188 = arith.constant 0 : index
    %c0_189 = arith.constant 0 : index
    %361 = vector.load %arg9[%c3_187, %c0_188, %c0_189] : memref<4x1x16xf32, #tpu.memory_space<vmem>>, vector<1x1x16xf32>
    %362 = vector.shape_cast %361 : vector<1x1x16xf32> to vector<1x16xf32>
    %363 = vector.broadcast %362 : vector<1x16xf32> to vector<32x16xf32>
    %364 = arith.addf %360, %363 : vector<32x16xf32>
    %365 = arith.truncf %364 : vector<32x16xf32> to vector<32x16xbf16>
    %c3_190 = arith.constant 3 : index
    %c0_191 = arith.constant 0 : index
    %c0_192 = arith.constant 0 : index
    %366 = vector.load %arg10[%c3_190, %c0_191, %c0_192] : memref<4x32x16xbf16, #tpu.memory_space<vmem>>, vector<1x32x16xbf16>
    %367 = vector.shape_cast %366 : vector<1x32x16xbf16> to vector<32x16xbf16>
    %cst_193 = arith.constant dense<0.000000e+00> : vector<32x16xf32>
    %368 = tpu.matmul %285, %367, %cst_193 {dimension_numbers = #tpu.dot_dimension_numbers<[1], [0], [0], [1], [0, 0, 1, 1], [], []>} : vector<32x32xbf16>, vector<32x16xbf16>, vector<32x16xf32> -> vector<32x16xf32>
    %c3_194 = arith.constant 3 : index
    %c0_195 = arith.constant 0 : index
    %c0_196 = arith.constant 0 : index
    %369 = vector.load %arg11[%c3_194, %c0_195, %c0_196] : memref<4x1x16xf32, #tpu.memory_space<vmem>>, vector<1x1x16xf32>
    %370 = vector.shape_cast %369 : vector<1x1x16xf32> to vector<1x16xf32>
    %371 = vector.broadcast %370 : vector<1x16xf32> to vector<32x16xf32>
    %372 = arith.addf %368, %371 : vector<32x16xf32>
    %373 = arith.truncf %372 : vector<32x16xf32> to vector<32x16xbf16>
    %c3_197 = arith.constant 3 : index
    %c0_198 = arith.constant 0 : index
    %c0_199 = arith.constant 0 : index
    %374 = vector.load %arg12[%c3_197, %c0_198, %c0_199] : memref<4x32x16xbf16, #tpu.memory_space<vmem>>, vector<1x32x16xbf16>
    %375 = vector.shape_cast %374 : vector<1x32x16xbf16> to vector<32x16xbf16>
    %cst_200 = arith.constant dense<0.000000e+00> : vector<32x16xf32>
    %376 = tpu.matmul %285, %375, %cst_200 {dimension_numbers = #tpu.dot_dimension_numbers<[1], [0], [0], [1], [0, 0, 1, 1], [], []>} : vector<32x32xbf16>, vector<32x16xbf16>, vector<32x16xf32> -> vector<32x16xf32>
    %c3_201 = arith.constant 3 : index
    %c0_202 = arith.constant 0 : index
    %c0_203 = arith.constant 0 : index
    %377 = vector.load %arg13[%c3_201, %c0_202, %c0_203] : memref<4x1x16xf32, #tpu.memory_space<vmem>>, vector<1x1x16xf32>
    %378 = vector.shape_cast %377 : vector<1x1x16xf32> to vector<1x16xf32>
    %379 = vector.broadcast %378 : vector<1x16xf32> to vector<32x16xf32>
    %380 = arith.addf %376, %379 : vector<32x16xf32>
    %381 = arith.truncf %380 : vector<32x16xf32> to vector<32x16xbf16>
    %382 = vector.extract_strided_slice %365 {offsets = [0, 0], sizes = [16, 16], strides = [1, 1]} : vector<32x16xbf16> to vector<16x16xbf16>
    %383 = vector.extract_strided_slice %373 {offsets = [0, 0], sizes = [16, 16], strides = [1, 1]} : vector<32x16xbf16> to vector<16x16xbf16>
    %cst_204 = arith.constant dense<0.000000e+00> : vector<16x16xf32>
    %384 = tpu.matmul %382, %383, %cst_204 {dimension_numbers = #tpu.dot_dimension_numbers<[1], [1], [0], [0], [0, 0, 1, 0], [], []>} : vector<16x16xbf16>, vector<16x16xbf16>, vector<16x16xf32> -> vector<16x16xf32>
    %385 = vector.extract_strided_slice %49 {offsets = [0, 0], sizes = [1, 16], strides = [1, 1]} : vector<2x16xf32> to vector<1x16xf32>
    %386 = vector.broadcast %385 : vector<1x16xf32> to vector<16x16xf32>
    %387 = arith.addf %384, %386 : vector<16x16xf32>
    %cst_205 = arith.constant dense<0xFF800000> : vector<16xf32>
    %388 = vector.multi_reduction <maximumf>, %387, %cst_205 [1] : vector<16x16xf32> to vector<16xf32>
    %389 = vector.shape_cast %388 : vector<16xf32> to vector<16x1xf32>
    %390 = vector.broadcast %389 : vector<16x1xf32> to vector<16x16xf32>
    %391 = arith.subf %387, %390 : vector<16x16xf32>
    %392 = math.exp %391 : vector<16x16xf32>
    %cst_206 = arith.constant dense<0.000000e+00> : vector<16xf32>
    %393 = vector.multi_reduction <add>, %392, %cst_206 [1] : vector<16x16xf32> to vector<16xf32>
    %394 = vector.shape_cast %393 : vector<16xf32> to vector<16x1xf32>
    %395 = tpu.reciprocal %394 {approx = true} : vector<16x1xf32> -> vector<16x1xf32>
    %396 = vector.broadcast %395 : vector<16x1xf32> to vector<16x16xf32>
    %397 = arith.mulf %392, %396 : vector<16x16xf32>
    %398 = arith.truncf %397 : vector<16x16xf32> to vector<16x16xbf16>
    %399 = vector.extract_strided_slice %381 {offsets = [0, 0], sizes = [16, 16], strides = [1, 1]} : vector<32x16xbf16> to vector<16x16xbf16>
    %cst_207 = arith.constant dense<0.000000e+00> : vector<16x16xf32>
    %400 = tpu.matmul %398, %399, %cst_207 {dimension_numbers = #tpu.dot_dimension_numbers<[1], [0], [0], [1], [0, 0, 1, 1], [], []>} : vector<16x16xbf16>, vector<16x16xbf16>, vector<16x16xf32> -> vector<16x16xf32>
    %401 = arith.truncf %400 : vector<16x16xf32> to vector<16x16xbf16>
    %c0_208 = arith.constant 0 : index
    %c0_209 = arith.constant 0 : index
    %402 = vector.load %arg32[%c0_208, %c0_209] : memref<32x16xbf16, #tpu.memory_space<vmem>>, vector<16x16xbf16>
    tpu.vector_store %arg32[%c0_208, %c0_209], %401 {strides = array<i32>} : memref<32x16xbf16, #tpu.memory_space<vmem>>, vector<16x16xbf16>,
    %403 = vector.extract_strided_slice %365 {offsets = [16, 0], sizes = [16, 16], strides = [1, 1]} : vector<32x16xbf16> to vector<16x16xbf16>
    %404 = vector.extract_strided_slice %373 {offsets = [16, 0], sizes = [16, 16], strides = [1, 1]} : vector<32x16xbf16> to vector<16x16xbf16>
    %cst_210 = arith.constant dense<0.000000e+00> : vector<16x16xf32>
    %405 = tpu.matmul %403, %404, %cst_210 {dimension_numbers = #tpu.dot_dimension_numbers<[1], [1], [0], [0], [0, 0, 1, 0], [], []>} : vector<16x16xbf16>, vector<16x16xbf16>, vector<16x16xf32> -> vector<16x16xf32>
    %406 = vector.extract_strided_slice %49 {offsets = [1, 0], sizes = [1, 16], strides = [1, 1]} : vector<2x16xf32> to vector<1x16xf32>
    %407 = vector.broadcast %406 : vector<1x16xf32> to vector<16x16xf32>
    %408 = arith.addf %405, %407 : vector<16x16xf32>
    %cst_211 = arith.constant dense<0xFF800000> : vector<16xf32>
    %409 = vector.multi_reduction <maximumf>, %408, %cst_211 [1] : vector<16x16xf32> to vector<16xf32>
    %410 = vector.shape_cast %409 : vector<16xf32> to vector<16x1xf32>
    %411 = vector.broadcast %410 : vector<16x1xf32> to vector<16x16xf32>
    %412 = arith.subf %408, %411 : vector<16x16xf32>
    %413 = math.exp %412 : vector<16x16xf32>
    %cst_212 = arith.constant dense<0.000000e+00> : vector<16xf32>
    %414 = vector.multi_reduction <add>, %413, %cst_212 [1] : vector<16x16xf32> to vector<16xf32>
    %415 = vector.shape_cast %414 : vector<16xf32> to vector<16x1xf32>
    %416 = tpu.reciprocal %415 {approx = true} : vector<16x1xf32> -> vector<16x1xf32>
    %417 = vector.broadcast %416 : vector<16x1xf32> to vector<16x16xf32>
    %418 = arith.mulf %413, %417 : vector<16x16xf32>
    %419 = arith.truncf %418 : vector<16x16xf32> to vector<16x16xbf16>
    %420 = vector.extract_strided_slice %381 {offsets = [16, 0], sizes = [16, 16], strides = [1, 1]} : vector<32x16xbf16> to vector<16x16xbf16>
    %cst_213 = arith.constant dense<0.000000e+00> : vector<16x16xf32>
    %421 = tpu.matmul %419, %420, %cst_213 {dimension_numbers = #tpu.dot_dimension_numbers<[1], [0], [0], [1], [0, 0, 1, 1], [], []>} : vector<16x16xbf16>, vector<16x16xbf16>, vector<16x16xf32> -> vector<16x16xf32>
    %422 = arith.truncf %421 : vector<16x16xf32> to vector<16x16xbf16>
    %c16_214 = arith.constant 16 : index
    %c0_215 = arith.constant 0 : index
    %423 = vector.load %arg32[%c16_214, %c0_215] : memref<32x16xbf16, #tpu.memory_space<vmem>>, vector<16x16xbf16>
    tpu.vector_store %arg32[%c16_214, %c0_215], %422 {strides = array<i32>} : memref<32x16xbf16, #tpu.memory_space<vmem>>, vector<16x16xbf16>,
    %c0_216 = arith.constant 0 : index
    %c0_217 = arith.constant 0 : index
    %424 = vector.load %arg32[%c0_216, %c0_217] : memref<32x16xbf16, #tpu.memory_space<vmem>>, vector<32x16xbf16>
    %c3_218 = arith.constant 3 : index
    %c0_219 = arith.constant 0 : index
    %c0_220 = arith.constant 0 : index
    %425 = vector.load %arg14[%c3_218, %c0_219, %c0_220] : memref<4x16x32xbf16, #tpu.memory_space<vmem>>, vector<1x16x32xbf16>
    %426 = vector.shape_cast %425 : vector<1x16x32xbf16> to vector<16x32xbf16>
    %cst_221 = arith.constant dense<0.000000e+00> : vector<32x32xf32>
    %427 = tpu.matmul %424, %426, %cst_221 {dimension_numbers = #tpu.dot_dimension_numbers<[1], [0], [0], [1], [0, 0, 1, 1], [], []>} : vector<32x16xbf16>, vector<16x32xbf16>, vector<32x32xf32> -> vector<32x32xf32>
    %428 = arith.addf %357, %427 : vector<32x32xf32>
    %c1_222 = arith.constant 1 : index
    %c0_223 = arith.constant 0 : index
    %c0_224 = arith.constant 0 : index
    %429 = vector.load %arg15[%c1_222, %c0_223, %c0_224] : memref<2x1x32xf32, #tpu.memory_space<vmem>>, vector<1x1x32xf32>
    %430 = vector.shape_cast %429 : vector<1x1x32xf32> to vector<1x32xf32>
    %431 = vector.broadcast %430 : vector<1x32xf32> to vector<32x32xf32>
    %432 = arith.addf %428, %431 : vector<32x32xf32>
    %433 = arith.addf %284, %432 : vector<32x32xf32>
    %c1_225 = arith.constant 1 : index
    %c0_226 = arith.constant 0 : index
    %c0_227 = arith.constant 0 : index
    %434 = vector.load %arg16[%c1_225, %c0_226, %c0_227] : memref<2x1x32xf32, #tpu.memory_space<vmem>>, vector<1x1x32xf32>
    %435 = vector.shape_cast %434 : vector<1x1x32xf32> to vector<1x32xf32>
    %c1_228 = arith.constant 1 : index
    %c0_229 = arith.constant 0 : index
    %c0_230 = arith.constant 0 : index
    %436 = vector.load %arg17[%c1_228, %c0_229, %c0_230] : memref<2x1x32xf32, #tpu.memory_space<vmem>>, vector<1x1x32xf32>
    %437 = vector.shape_cast %436 : vector<1x1x32xf32> to vector<1x32xf32>
    %cst_231 = arith.constant dense<0.000000e+00> : vector<32xf32>
    %438 = vector.multi_reduction <add>, %433, %cst_231 [1] : vector<32x32xf32> to vector<32xf32>
    %439 = vector.shape_cast %438 : vector<32xf32> to vector<32x1xf32>
    %cst_232 = arith.constant 3.200000e+01 : f32
    %440 = vector.broadcast %cst_232 : f32 to vector<32x1xf32>
    %441 = arith.divf %439, %440 : vector<32x1xf32>
    %442 = vector.broadcast %441 : vector<32x1xf32> to vector<32x32xf32>
    %443 = arith.subf %433, %442 : vector<32x32xf32>
    %444 = vector.broadcast %441 : vector<32x1xf32> to vector<32x32xf32>
    %445 = arith.subf %433, %444 : vector<32x32xf32>
    %446 = arith.mulf %443, %445 : vector<32x32xf32>
    %cst_233 = arith.constant dense<0.000000e+00> : vector<32xf32>
    %447 = vector.multi_reduction <add>, %446, %cst_233 [1] : vector<32x32xf32> to vector<32xf32>
    %448 = vector.shape_cast %447 : vector<32xf32> to vector<32x1xf32>
    %cst_234 = arith.constant 3.200000e+01 : f32
    %449 = vector.broadcast %cst_234 : f32 to vector<32x1xf32>
    %450 = arith.divf %448, %449 : vector<32x1xf32>
    %451 = vector.broadcast %441 : vector<32x1xf32> to vector<32x32xf32>
    %452 = arith.subf %433, %451 : vector<32x32xf32>
    %cst_235 = arith.constant 9.99999996E-13 : f32
    %453 = vector.broadcast %cst_235 : f32 to vector<32x1xf32>
    %454 = arith.addf %450, %453 : vector<32x1xf32>
    %455 = math.rsqrt %454 : vector<32x1xf32>
    %456 = vector.broadcast %455 : vector<32x1xf32> to vector<32x32xf32>
    %457 = arith.mulf %452, %456 : vector<32x32xf32>
    %458 = vector.broadcast %435 : vector<1x32xf32> to vector<32x32xf32>
    %459 = arith.mulf %457, %458 : vector<32x32xf32>
    %460 = vector.broadcast %437 : vector<1x32xf32> to vector<32x32xf32>
    %461 = arith.addf %459, %460 : vector<32x32xf32>
    %462 = arith.truncf %461 : vector<32x32xf32> to vector<32x32xbf16>
    %c1_236 = arith.constant 1 : index
    %c0_237 = arith.constant 0 : index
    %c0_238 = arith.constant 0 : index
    %463 = vector.load %arg18[%c1_236, %c0_237, %c0_238] : memref<2x32x64xbf16, #tpu.memory_space<vmem>>, vector<1x32x64xbf16>
    %464 = vector.shape_cast %463 : vector<1x32x64xbf16> to vector<32x64xbf16>
    %cst_239 = arith.constant dense<0.000000e+00> : vector<32x64xf32>
    %465 = tpu.matmul %462, %464, %cst_239 {dimension_numbers = #tpu.dot_dimension_numbers<[1], [0], [0], [1], [0, 0, 1, 1], [], []>} : vector<32x32xbf16>, vector<32x64xbf16>, vector<32x64xf32> -> vector<32x64xf32>
    %c1_240 = arith.constant 1 : index
    %c0_241 = arith.constant 0 : index
    %c0_242 = arith.constant 0 : index
    %466 = vector.load %arg19[%c1_240, %c0_241, %c0_242] : memref<2x1x64xf32, #tpu.memory_space<vmem>>, vector<1x1x64xf32>
    %467 = vector.shape_cast %466 : vector<1x1x64xf32> to vector<1x64xf32>
    %468 = vector.broadcast %467 : vector<1x64xf32> to vector<32x64xf32>
    %469 = arith.addf %465, %468 : vector<32x64xf32>
    %cst_243 = arith.constant 5.000000e-01 : f32
    %470 = vector.broadcast %cst_243 : f32 to vector<32x64xf32>
    %471 = arith.mulf %470, %469 : vector<32x64xf32>
    %cst_244 = arith.constant 4.471500e-02 : f32
    %472 = vector.broadcast %cst_244 : f32 to vector<32x64xf32>
    %473 = arith.mulf %472, %469 : vector<32x64xf32>
    %474 = arith.mulf %473, %469 : vector<32x64xf32>
    %475 = arith.mulf %474, %469 : vector<32x64xf32>
    %476 = arith.addf %469, %475 : vector<32x64xf32>
    %cst_245 = arith.constant 0.797884583 : f32
    %477 = vector.broadcast %cst_245 : f32 to vector<32x64xf32>
    %478 = arith.mulf %477, %476 : vector<32x64xf32>
    %479 = math.tanh %478 : vector<32x64xf32>
    %cst_246 = arith.constant 1.000000e+00 : f32
    %480 = vector.broadcast %cst_246 : f32 to vector<32x64xf32>
    %481 = arith.addf %480, %479 : vector<32x64xf32>
    %482 = arith.mulf %471, %481 : vector<32x64xf32>
    %483 = arith.truncf %482 : vector<32x64xf32> to vector<32x64xbf16>
    %c1_247 = arith.constant 1 : index
    %c0_248 = arith.constant 0 : index
    %c0_249 = arith.constant 0 : index
    %484 = vector.load %arg20[%c1_247, %c0_248, %c0_249] : memref<2x64x32xbf16, #tpu.memory_space<vmem>>, vector<1x64x32xbf16>
    %485 = vector.shape_cast %484 : vector<1x64x32xbf16> to vector<64x32xbf16>
    %cst_250 = arith.constant dense<0.000000e+00> : vector<32x32xf32>
    %486 = tpu.matmul %483, %485, %cst_250 {dimension_numbers = #tpu.dot_dimension_numbers<[1], [0], [0], [1], [0, 0, 1, 1], [], []>} : vector<32x64xbf16>, vector<64x32xbf16>, vector<32x32xf32> -> vector<32x32xf32>
    %c1_251 = arith.constant 1 : index
    %c0_252 = arith.constant 0 : index
    %c0_253 = arith.constant 0 : index
    %487 = vector.load %arg21[%c1_251, %c0_252, %c0_253] : memref<2x1x32xf32, #tpu.memory_space<vmem>>, vector<1x1x32xf32>
    %488 = vector.shape_cast %487 : vector<1x1x32xf32> to vector<1x32xf32>
    %489 = vector.broadcast %488 : vector<1x32xf32> to vector<32x32xf32>
    %490 = arith.addf %486, %489 : vector<32x32xf32>
    %491 = arith.addf %461, %490 : vector<32x32xf32>
    %c1_254 = arith.constant 1 : index
    %c0_255 = arith.constant 0 : index
    %c0_256 = arith.constant 0 : index
    %492 = vector.load %arg22[%c1_254, %c0_255, %c0_256] : memref<2x1x32xf32, #tpu.memory_space<vmem>>, vector<1x1x32xf32>
    %493 = vector.shape_cast %492 : vector<1x1x32xf32> to vector<1x32xf32>
    %c1_257 = arith.constant 1 : index
    %c0_258 = arith.constant 0 : index
    %c0_259 = arith.constant 0 : index
    %494 = vector.load %arg23[%c1_257, %c0_258, %c0_259] : memref<2x1x32xf32, #tpu.memory_space<vmem>>, vector<1x1x32xf32>
    %495 = vector.shape_cast %494 : vector<1x1x32xf32> to vector<1x32xf32>
    %cst_260 = arith.constant dense<0.000000e+00> : vector<32xf32>
    %496 = vector.multi_reduction <add>, %491, %cst_260 [1] : vector<32x32xf32> to vector<32xf32>
    %497 = vector.shape_cast %496 : vector<32xf32> to vector<32x1xf32>
    %cst_261 = arith.constant 3.200000e+01 : f32
    %498 = vector.broadcast %cst_261 : f32 to vector<32x1xf32>
    %499 = arith.divf %497, %498 : vector<32x1xf32>
    %500 = vector.broadcast %499 : vector<32x1xf32> to vector<32x32xf32>
    %501 = arith.subf %491, %500 : vector<32x32xf32>
    %502 = vector.broadcast %499 : vector<32x1xf32> to vector<32x32xf32>
    %503 = arith.subf %491, %502 : vector<32x32xf32>
    %504 = arith.mulf %501, %503 : vector<32x32xf32>
    %cst_262 = arith.constant dense<0.000000e+00> : vector<32xf32>
    %505 = vector.multi_reduction <add>, %504, %cst_262 [1] : vector<32x32xf32> to vector<32xf32>
    %506 = vector.shape_cast %505 : vector<32xf32> to vector<32x1xf32>
    %cst_263 = arith.constant 3.200000e+01 : f32
    %507 = vector.broadcast %cst_263 : f32 to vector<32x1xf32>
    %508 = arith.divf %506, %507 : vector<32x1xf32>
    %509 = vector.broadcast %499 : vector<32x1xf32> to vector<32x32xf32>
    %510 = arith.subf %491, %509 : vector<32x32xf32>
    %cst_264 = arith.constant 9.99999996E-13 : f32
    %511 = vector.broadcast %cst_264 : f32 to vector<32x1xf32>
    %512 = arith.addf %508, %511 : vector<32x1xf32>
    %513 = math.rsqrt %512 : vector<32x1xf32>
    %514 = vector.broadcast %513 : vector<32x1xf32> to vector<32x32xf32>
    %515 = arith.mulf %510, %514 : vector<32x32xf32>
    %516 = vector.broadcast %493 : vector<1x32xf32> to vector<32x32xf32>
    %517 = arith.mulf %515, %516 : vector<32x32xf32>
    %518 = vector.broadcast %495 : vector<1x32xf32> to vector<32x32xf32>
    %519 = arith.addf %517, %518 : vector<32x32xf32>
    %520 = arith.truncf %519 : vector<32x32xf32> to vector<32x32xbf16>
    %c0_265 = arith.constant 0 : index
    %c0_266 = arith.constant 0 : index
    %521 = vector.load %arg24[%c0_265, %c0_266] : memref<32x64xbf16, #tpu.memory_space<vmem>>, vector<32x64xbf16>
    %cst_267 = arith.constant dense<0.000000e+00> : vector<32x64xf32>
    %522 = tpu.matmul %520, %521, %cst_267 {dimension_numbers = #tpu.dot_dimension_numbers<[1], [0], [0], [1], [0, 0, 1, 1], [], []>} : vector<32x32xbf16>, vector<32x64xbf16>, vector<32x64xf32> -> vector<32x64xf32>
    %c0_268 = arith.constant 0 : index
    %c0_269 = arith.constant 0 : index
    %523 = vector.load %arg25[%c0_268, %c0_269] : memref<1x64xf32, #tpu.memory_space<vmem>>, vector<1x64xf32>
    %524 = vector.broadcast %523 : vector<1x64xf32> to vector<32x64xf32>
    %525 = arith.addf %522, %524 : vector<32x64xf32>
    %cst_270 = arith.constant 5.000000e-01 : f32
    %526 = vector.broadcast %cst_270 : f32 to vector<32x64xf32>
    %527 = arith.mulf %526, %525 : vector<32x64xf32>
    %cst_271 = arith.constant 4.471500e-02 : f32
    %528 = vector.broadcast %cst_271 : f32 to vector<32x64xf32>
    %529 = arith.mulf %528, %525 : vector<32x64xf32>
    %530 = arith.mulf %529, %525 : vector<32x64xf32>
    %531 = arith.mulf %530, %525 : vector<32x64xf32>
    %532 = arith.addf %525, %531 : vector<32x64xf32>
    %cst_272 = arith.constant 0.797884583 : f32
    %533 = vector.broadcast %cst_272 : f32 to vector<32x64xf32>
    %534 = arith.mulf %533, %532 : vector<32x64xf32>
    %535 = math.tanh %534 : vector<32x64xf32>
    %cst_273 = arith.constant 1.000000e+00 : f32
    %536 = vector.broadcast %cst_273 : f32 to vector<32x64xf32>
    %537 = arith.addf %536, %535 : vector<32x64xf32>
    %538 = arith.mulf %527, %537 : vector<32x64xf32>
    %c0_274 = arith.constant 0 : index
    %c0_275 = arith.constant 0 : index
    %539 = vector.load %arg26[%c0_274, %c0_275] : memref<1x64xf32, #tpu.memory_space<vmem>>, vector<1x64xf32>
    %c0_276 = arith.constant 0 : index
    %c0_277 = arith.constant 0 : index
    %540 = vector.load %arg27[%c0_276, %c0_277] : memref<1x64xf32, #tpu.memory_space<vmem>>, vector<1x64xf32>
    %cst_278 = arith.constant dense<0.000000e+00> : vector<32xf32>
    %541 = vector.multi_reduction <add>, %538, %cst_278 [1] : vector<32x64xf32> to vector<32xf32>
    %542 = vector.shape_cast %541 : vector<32xf32> to vector<32x1xf32>
    %cst_279 = arith.constant 6.400000e+01 : f32
    %543 = vector.broadcast %cst_279 : f32 to vector<32x1xf32>
    %544 = arith.divf %542, %543 : vector<32x1xf32>
    %545 = vector.broadcast %544 : vector<32x1xf32> to vector<32x64xf32>
    %546 = arith.subf %538, %545 : vector<32x64xf32>
    %547 = vector.broadcast %544 : vector<32x1xf32> to vector<32x64xf32>
    %548 = arith.subf %538, %547 : vector<32x64xf32>
    %549 = arith.mulf %546, %548 : vector<32x64xf32>
    %cst_280 = arith.constant dense<0.000000e+00> : vector<32xf32>
    %550 = vector.multi_reduction <add>, %549, %cst_280 [1] : vector<32x64xf32> to vector<32xf32>
    %551 = vector.shape_cast %550 : vector<32xf32> to vector<32x1xf32>
    %cst_281 = arith.constant 6.400000e+01 : f32
    %552 = vector.broadcast %cst_281 : f32 to vector<32x1xf32>
    %553 = arith.divf %551, %552 : vector<32x1xf32>
    %554 = vector.broadcast %544 : vector<32x1xf32> to vector<32x64xf32>
    %555 = arith.subf %538, %554 : vector<32x64xf32>
    %cst_282 = arith.constant 9.99999996E-13 : f32
    %556 = vector.broadcast %cst_282 : f32 to vector<32x1xf32>
    %557 = arith.addf %553, %556 : vector<32x1xf32>
    %558 = math.rsqrt %557 : vector<32x1xf32>
    %559 = vector.broadcast %558 : vector<32x1xf32> to vector<32x64xf32>
    %560 = arith.mulf %555, %559 : vector<32x64xf32>
    %561 = vector.broadcast %539 : vector<1x64xf32> to vector<32x64xf32>
    %562 = arith.mulf %560, %561 : vector<32x64xf32>
    %563 = vector.broadcast %540 : vector<1x64xf32> to vector<32x64xf32>
    %564 = arith.addf %562, %563 : vector<32x64xf32>
    %565 = arith.truncf %564 : vector<32x64xf32> to vector<32x64xbf16>
    %c0_283 = arith.constant 0 : index
    %c0_284 = arith.constant 0 : index
    %566 = vector.load %arg28[%c0_283, %c0_284] : memref<64x128xbf16, #tpu.memory_space<vmem>>, vector<64x128xbf16>
    %cst_285 = arith.constant dense<0.000000e+00> : vector<32x128xf32>
    %567 = tpu.matmul %565, %566, %cst_285 {dimension_numbers = #tpu.dot_dimension_numbers<[1], [0], [0], [1], [0, 0, 1, 1], [], []>} : vector<32x64xbf16>, vector<64x128xbf16>, vector<32x128xf32> -> vector<32x128xf32>
    %c0_286 = arith.constant 0 : index
    %c0_287 = arith.constant 0 : index
    %568 = vector.load %arg29[%c0_286, %c0_287] : memref<1x128xf32, #tpu.memory_space<vmem>>, vector<1x128xf32>
    %569 = vector.broadcast %568 : vector<1x128xf32> to vector<32x128xf32>
    %570 = arith.addf %567, %569 : vector<32x128xf32>
    %c0_288 = arith.constant 0 : index
    %c0_289 = arith.constant 0 : index
    %571 = vector.load %arg30[%c0_288, %c0_289] : memref<32x128xf32, #tpu.memory_space<vmem>>, vector<32x128xf32>
    tpu.vector_store %arg30[%c0_288, %c0_289], %570 {strides = array<i32>} : memref<32x128xf32, #tpu.memory_space<vmem>>, vector<32x128xf32>,
    %572 = tpu.iota {dimensions = array<i32: 1>} : vector<32x128xi32>
    %cst_290 = arith.constant dense<0xFF800000> : vector<32xf32>
    %573 = vector.multi_reduction <maximumf>, %570, %cst_290 [1] : vector<32x128xf32> to vector<32xf32>
    %574 = vector.shape_cast %573 : vector<32xf32> to vector<32x1xf32>
    %575 = vector.broadcast %574 : vector<32x1xf32> to vector<32x128xf32>
    %576 = arith.cmpf oeq, %570, %575 : vector<32x128xf32>
    %c128_i32 = arith.constant 128 : i32
    %577 = vector.broadcast %c128_i32 : i32 to vector<32x128xi32>
    %578 = arith.select %576, %572, %577 : vector<32x128xi1>, vector<32x128xi32>
    %cst_291 = arith.constant dense<2147483647> : vector<32xi32>
    %579 = vector.multi_reduction <minsi>, %578, %cst_291 [1] : vector<32x128xi32> to vector<32xi32>
    %580 = vector.shape_cast %579 : vector<32xi32> to vector<32x1xi32>
    %c0_292 = arith.constant 0 : index
    %c0_293 = arith.constant 0 : index
    %581 = vector.load %arg31[%c0_292, %c0_293] : memref<32x1xi32, #tpu.memory_space<vmem>>, vector<32x1xi32>
    tpu.vector_store %arg31[%c0_292, %c0_293], %580 {strides = array<i32>} : memref<32x1xi32, #tpu.memory_space<vmem>>, vector<32x1xi32>,
    return
  }
}

module attributes {stable_mosaic.version = 11 : i64} {
  func.func @_discriminator_kernel(%arg0: memref<32x1xi32, #tpu.memory_space<vmem>>, %arg1: memref<32x1xi32, #tpu.memory_space<vmem>>, %arg2: memref<2x16xi32, #tpu.memory_space<vmem>>, %arg3: memref<128x64xbf16, #tpu.memory_space<vmem>>, %arg4: memref<32x64xf32, #tpu.memory_space<vmem>>, %arg5: memref<1x64xf32, #tpu.memory_space<vmem>>, %arg6: memref<1x64xf32, #tpu.memory_space<vmem>>, %arg7: memref<4x64x32xbf16, #tpu.memory_space<vmem>>, %arg8: memref<4x1x32xf32, #tpu.memory_space<vmem>>, %arg9: memref<4x64x32xbf16, #tpu.memory_space<vmem>>, %arg10: memref<4x1x32xf32, #tpu.memory_space<vmem>>, %arg11: memref<4x64x32xbf16, #tpu.memory_space<vmem>>, %arg12: memref<4x1x32xf32, #tpu.memory_space<vmem>>, %arg13: memref<4x32x64xbf16, #tpu.memory_space<vmem>>, %arg14: memref<2x1x64xf32, #tpu.memory_space<vmem>>, %arg15: memref<2x1x64xf32, #tpu.memory_space<vmem>>, %arg16: memref<2x1x64xf32, #tpu.memory_space<vmem>>, %arg17: memref<2x64x128xbf16, #tpu.memory_space<vmem>>, %arg18: memref<2x1x128xf32, #tpu.memory_space<vmem>>, %arg19: memref<2x128x64xbf16, #tpu.memory_space<vmem>>, %arg20: memref<2x1x64xf32, #tpu.memory_space<vmem>>, %arg21: memref<2x1x64xf32, #tpu.memory_space<vmem>>, %arg22: memref<2x1x64xf32, #tpu.memory_space<vmem>>, %arg23: memref<64x64xbf16, #tpu.memory_space<vmem>>, %arg24: memref<1x64xf32, #tpu.memory_space<vmem>>, %arg25: memref<64x1xbf16, #tpu.memory_space<vmem>>, %arg26: memref<1x1xf32, #tpu.memory_space<vmem>>, %arg27: memref<32x1xf32, #tpu.memory_space<vmem>>, %arg28: memref<32x1xf32, #tpu.memory_space<vmem>>, %arg29: memref<32x32xbf16, #tpu.memory_space<vmem>>) attributes {dimension_semantics = [], scalar_prefetch = 0 : i64, scratch_operands = 1 : i64, tpu.core_type = #tpu.core_type<tc>} {
    %c0 = arith.constant 0 : index
    %c0_0 = arith.constant 0 : index
    %0 = vector.load %arg0[%c0, %c0_0] : memref<32x1xi32, #tpu.memory_space<vmem>>, vector<32x1xi32>
    %1 = tpu.iota {dimensions = array<i32: 1>} : vector<32x128xi32>
    %2 = vector.broadcast %0 : vector<32x1xi32> to vector<32x128xi32>
    %3 = arith.cmpi eq, %1, %2 : vector<32x128xi32>
    %cst = arith.constant 1.000000e+00 : f32
    %cst_1 = arith.constant 0.000000e+00 : f32
    %4 = vector.broadcast %cst : f32 to vector<32x128xf32>
    %5 = vector.broadcast %cst_1 : f32 to vector<32x128xf32>
    %6 = arith.select %3, %4, %5 : vector<32x128xi1>, vector<32x128xf32>
    %7 = arith.truncf %6 : vector<32x128xf32> to vector<32x128xbf16>
    %c0_2 = arith.constant 0 : index
    %c0_3 = arith.constant 0 : index
    %8 = vector.load %arg3[%c0_2, %c0_3] : memref<128x64xbf16, #tpu.memory_space<vmem>>, vector<128x64xbf16>
    %cst_4 = arith.constant dense<0.000000e+00> : vector<32x64xf32>
    %9 = tpu.matmul %7, %8, %cst_4 {dimension_numbers = #tpu.dot_dimension_numbers<[1], [0], [0], [1], [0, 0, 1, 1], [], []>} : vector<32x128xbf16>, vector<128x64xbf16>, vector<32x64xf32> -> vector<32x64xf32>
    %c0_5 = arith.constant 0 : index
    %c0_6 = arith.constant 0 : index
    %10 = vector.load %arg4[%c0_5, %c0_6] : memref<32x64xf32, #tpu.memory_space<vmem>>, vector<32x64xf32>
    %11 = arith.addf %9, %10 : vector<32x64xf32>
    %c0_7 = arith.constant 0 : index
    %c0_8 = arith.constant 0 : index
    %12 = vector.load %arg5[%c0_7, %c0_8] : memref<1x64xf32, #tpu.memory_space<vmem>>, vector<1x64xf32>
    %c0_9 = arith.constant 0 : index
    %c0_10 = arith.constant 0 : index
    %13 = vector.load %arg6[%c0_9, %c0_10] : memref<1x64xf32, #tpu.memory_space<vmem>>, vector<1x64xf32>
    %cst_11 = arith.constant dense<0.000000e+00> : vector<32xf32>
    %14 = vector.multi_reduction <add>, %11, %cst_11 [1] : vector<32x64xf32> to vector<32xf32>
    %15 = vector.shape_cast %14 : vector<32xf32> to vector<32x1xf32>
    %cst_12 = arith.constant 6.400000e+01 : f32
    %16 = vector.broadcast %cst_12 : f32 to vector<32x1xf32>
    %17 = arith.divf %15, %16 : vector<32x1xf32>
    %18 = vector.broadcast %17 : vector<32x1xf32> to vector<32x64xf32>
    %19 = arith.subf %11, %18 : vector<32x64xf32>
    %20 = vector.broadcast %17 : vector<32x1xf32> to vector<32x64xf32>
    %21 = arith.subf %11, %20 : vector<32x64xf32>
    %22 = arith.mulf %19, %21 : vector<32x64xf32>
    %cst_13 = arith.constant dense<0.000000e+00> : vector<32xf32>
    %23 = vector.multi_reduction <add>, %22, %cst_13 [1] : vector<32x64xf32> to vector<32xf32>
    %24 = vector.shape_cast %23 : vector<32xf32> to vector<32x1xf32>
    %cst_14 = arith.constant 6.400000e+01 : f32
    %25 = vector.broadcast %cst_14 : f32 to vector<32x1xf32>
    %26 = arith.divf %24, %25 : vector<32x1xf32>
    %27 = vector.broadcast %17 : vector<32x1xf32> to vector<32x64xf32>
    %28 = arith.subf %11, %27 : vector<32x64xf32>
    %cst_15 = arith.constant 9.99999996E-13 : f32
    %29 = vector.broadcast %cst_15 : f32 to vector<32x1xf32>
    %30 = arith.addf %26, %29 : vector<32x1xf32>
    %31 = math.rsqrt %30 : vector<32x1xf32>
    %32 = vector.broadcast %31 : vector<32x1xf32> to vector<32x64xf32>
    %33 = arith.mulf %28, %32 : vector<32x64xf32>
    %34 = vector.broadcast %12 : vector<1x64xf32> to vector<32x64xf32>
    %35 = arith.mulf %33, %34 : vector<32x64xf32>
    %36 = vector.broadcast %13 : vector<1x64xf32> to vector<32x64xf32>
    %37 = arith.addf %35, %36 : vector<32x64xf32>
    %c0_16 = arith.constant 0 : index
    %c0_17 = arith.constant 0 : index
    %38 = vector.load %arg2[%c0_16, %c0_17] : memref<2x16xi32, #tpu.memory_space<vmem>>, vector<2x16xi32>
    %39 = arith.sitofp %38 : vector<2x16xi32> to vector<2x16xf32>
    %cst_18 = arith.constant 1.000000e+00 : f32
    %40 = vector.broadcast %cst_18 : f32 to vector<2x16xf32>
    %41 = arith.subf %40, %39 : vector<2x16xf32>
    %cst_19 = arith.constant -1.000000e+04 : f32
    %42 = vector.broadcast %cst_19 : f32 to vector<2x16xf32>
    %43 = arith.mulf %41, %42 : vector<2x16xf32>
    %44 = arith.truncf %37 : vector<32x64xf32> to vector<32x64xbf16>
    %cst_20 = arith.constant 0.000000e+00 : f32
    %45 = vector.broadcast %cst_20 : f32 to vector<32x64xf32>
    %c0_21 = arith.constant 0 : index
    %c0_22 = arith.constant 0 : index
    %c0_23 = arith.constant 0 : index
    %46 = vector.load %arg7[%c0_21, %c0_22, %c0_23] : memref<4x64x32xbf16, #tpu.memory_space<vmem>>, vector<1x64x32xbf16>
    %47 = vector.shape_cast %46 : vector<1x64x32xbf16> to vector<64x32xbf16>
    %cst_24 = arith.constant dense<0.000000e+00> : vector<32x32xf32>
    %48 = tpu.matmul %44, %47, %cst_24 {dimension_numbers = #tpu.dot_dimension_numbers<[1], [0], [0], [1], [0, 0, 1, 1], [], []>} : vector<32x64xbf16>, vector<64x32xbf16>, vector<32x32xf32> -> vector<32x32xf32>
    %c0_25 = arith.constant 0 : index
    %c0_26 = arith.constant 0 : index
    %c0_27 = arith.constant 0 : index
    %49 = vector.load %arg8[%c0_25, %c0_26, %c0_27] : memref<4x1x32xf32, #tpu.memory_space<vmem>>, vector<1x1x32xf32>
    %50 = vector.shape_cast %49 : vector<1x1x32xf32> to vector<1x32xf32>
    %51 = vector.broadcast %50 : vector<1x32xf32> to vector<32x32xf32>
    %52 = arith.addf %48, %51 : vector<32x32xf32>
    %53 = arith.truncf %52 : vector<32x32xf32> to vector<32x32xbf16>
    %c0_28 = arith.constant 0 : index
    %c0_29 = arith.constant 0 : index
    %c0_30 = arith.constant 0 : index
    %54 = vector.load %arg9[%c0_28, %c0_29, %c0_30] : memref<4x64x32xbf16, #tpu.memory_space<vmem>>, vector<1x64x32xbf16>
    %55 = vector.shape_cast %54 : vector<1x64x32xbf16> to vector<64x32xbf16>
    %cst_31 = arith.constant dense<0.000000e+00> : vector<32x32xf32>
    %56 = tpu.matmul %44, %55, %cst_31 {dimension_numbers = #tpu.dot_dimension_numbers<[1], [0], [0], [1], [0, 0, 1, 1], [], []>} : vector<32x64xbf16>, vector<64x32xbf16>, vector<32x32xf32> -> vector<32x32xf32>
    %c0_32 = arith.constant 0 : index
    %c0_33 = arith.constant 0 : index
    %c0_34 = arith.constant 0 : index
    %57 = vector.load %arg10[%c0_32, %c0_33, %c0_34] : memref<4x1x32xf32, #tpu.memory_space<vmem>>, vector<1x1x32xf32>
    %58 = vector.shape_cast %57 : vector<1x1x32xf32> to vector<1x32xf32>
    %59 = vector.broadcast %58 : vector<1x32xf32> to vector<32x32xf32>
    %60 = arith.addf %56, %59 : vector<32x32xf32>
    %61 = arith.truncf %60 : vector<32x32xf32> to vector<32x32xbf16>
    %c0_35 = arith.constant 0 : index
    %c0_36 = arith.constant 0 : index
    %c0_37 = arith.constant 0 : index
    %62 = vector.load %arg11[%c0_35, %c0_36, %c0_37] : memref<4x64x32xbf16, #tpu.memory_space<vmem>>, vector<1x64x32xbf16>
    %63 = vector.shape_cast %62 : vector<1x64x32xbf16> to vector<64x32xbf16>
    %cst_38 = arith.constant dense<0.000000e+00> : vector<32x32xf32>
    %64 = tpu.matmul %44, %63, %cst_38 {dimension_numbers = #tpu.dot_dimension_numbers<[1], [0], [0], [1], [0, 0, 1, 1], [], []>} : vector<32x64xbf16>, vector<64x32xbf16>, vector<32x32xf32> -> vector<32x32xf32>
    %c0_39 = arith.constant 0 : index
    %c0_40 = arith.constant 0 : index
    %c0_41 = arith.constant 0 : index
    %65 = vector.load %arg12[%c0_39, %c0_40, %c0_41] : memref<4x1x32xf32, #tpu.memory_space<vmem>>, vector<1x1x32xf32>
    %66 = vector.shape_cast %65 : vector<1x1x32xf32> to vector<1x32xf32>
    %67 = vector.broadcast %66 : vector<1x32xf32> to vector<32x32xf32>
    %68 = arith.addf %64, %67 : vector<32x32xf32>
    %69 = arith.truncf %68 : vector<32x32xf32> to vector<32x32xbf16>
    %70 = vector.extract_strided_slice %53 {offsets = [0, 0], sizes = [16, 32], strides = [1, 1]} : vector<32x32xbf16> to vector<16x32xbf16>
    %71 = vector.extract_strided_slice %61 {offsets = [0, 0], sizes = [16, 32], strides = [1, 1]} : vector<32x32xbf16> to vector<16x32xbf16>
    %cst_42 = arith.constant dense<0.000000e+00> : vector<16x16xf32>
    %72 = tpu.matmul %70, %71, %cst_42 {dimension_numbers = #tpu.dot_dimension_numbers<[1], [1], [0], [0], [0, 0, 1, 0], [], []>} : vector<16x32xbf16>, vector<16x32xbf16>, vector<16x16xf32> -> vector<16x16xf32>
    %73 = vector.extract_strided_slice %43 {offsets = [0, 0], sizes = [1, 16], strides = [1, 1]} : vector<2x16xf32> to vector<1x16xf32>
    %74 = vector.broadcast %73 : vector<1x16xf32> to vector<16x16xf32>
    %75 = arith.addf %72, %74 : vector<16x16xf32>
    %cst_43 = arith.constant dense<0xFF800000> : vector<16xf32>
    %76 = vector.multi_reduction <maximumf>, %75, %cst_43 [1] : vector<16x16xf32> to vector<16xf32>
    %77 = vector.shape_cast %76 : vector<16xf32> to vector<16x1xf32>
    %78 = vector.broadcast %77 : vector<16x1xf32> to vector<16x16xf32>
    %79 = arith.subf %75, %78 : vector<16x16xf32>
    %80 = math.exp %79 : vector<16x16xf32>
    %cst_44 = arith.constant dense<0.000000e+00> : vector<16xf32>
    %81 = vector.multi_reduction <add>, %80, %cst_44 [1] : vector<16x16xf32> to vector<16xf32>
    %82 = vector.shape_cast %81 : vector<16xf32> to vector<16x1xf32>
    %83 = tpu.reciprocal %82 {approx = true} : vector<16x1xf32> -> vector<16x1xf32>
    %84 = vector.broadcast %83 : vector<16x1xf32> to vector<16x16xf32>
    %85 = arith.mulf %80, %84 : vector<16x16xf32>
    %86 = arith.truncf %85 : vector<16x16xf32> to vector<16x16xbf16>
    %87 = vector.extract_strided_slice %69 {offsets = [0, 0], sizes = [16, 32], strides = [1, 1]} : vector<32x32xbf16> to vector<16x32xbf16>
    %cst_45 = arith.constant dense<0.000000e+00> : vector<16x32xf32>
    %88 = tpu.matmul %86, %87, %cst_45 {dimension_numbers = #tpu.dot_dimension_numbers<[1], [0], [0], [1], [0, 0, 1, 1], [], []>} : vector<16x16xbf16>, vector<16x32xbf16>, vector<16x32xf32> -> vector<16x32xf32>
    %89 = arith.truncf %88 : vector<16x32xf32> to vector<16x32xbf16>
    %c0_46 = arith.constant 0 : index
    %c0_47 = arith.constant 0 : index
    %90 = vector.load %arg29[%c0_46, %c0_47] : memref<32x32xbf16, #tpu.memory_space<vmem>>, vector<16x32xbf16>
    tpu.vector_store %arg29[%c0_46, %c0_47], %89 {strides = array<i32>} : memref<32x32xbf16, #tpu.memory_space<vmem>>, vector<16x32xbf16>,
    %91 = vector.extract_strided_slice %53 {offsets = [16, 0], sizes = [16, 32], strides = [1, 1]} : vector<32x32xbf16> to vector<16x32xbf16>
    %92 = vector.extract_strided_slice %61 {offsets = [16, 0], sizes = [16, 32], strides = [1, 1]} : vector<32x32xbf16> to vector<16x32xbf16>
    %cst_48 = arith.constant dense<0.000000e+00> : vector<16x16xf32>
    %93 = tpu.matmul %91, %92, %cst_48 {dimension_numbers = #tpu.dot_dimension_numbers<[1], [1], [0], [0], [0, 0, 1, 0], [], []>} : vector<16x32xbf16>, vector<16x32xbf16>, vector<16x16xf32> -> vector<16x16xf32>
    %94 = vector.extract_strided_slice %43 {offsets = [1, 0], sizes = [1, 16], strides = [1, 1]} : vector<2x16xf32> to vector<1x16xf32>
    %95 = vector.broadcast %94 : vector<1x16xf32> to vector<16x16xf32>
    %96 = arith.addf %93, %95 : vector<16x16xf32>
    %cst_49 = arith.constant dense<0xFF800000> : vector<16xf32>
    %97 = vector.multi_reduction <maximumf>, %96, %cst_49 [1] : vector<16x16xf32> to vector<16xf32>
    %98 = vector.shape_cast %97 : vector<16xf32> to vector<16x1xf32>
    %99 = vector.broadcast %98 : vector<16x1xf32> to vector<16x16xf32>
    %100 = arith.subf %96, %99 : vector<16x16xf32>
    %101 = math.exp %100 : vector<16x16xf32>
    %cst_50 = arith.constant dense<0.000000e+00> : vector<16xf32>
    %102 = vector.multi_reduction <add>, %101, %cst_50 [1] : vector<16x16xf32> to vector<16xf32>
    %103 = vector.shape_cast %102 : vector<16xf32> to vector<16x1xf32>
    %104 = tpu.reciprocal %103 {approx = true} : vector<16x1xf32> -> vector<16x1xf32>
    %105 = vector.broadcast %104 : vector<16x1xf32> to vector<16x16xf32>
    %106 = arith.mulf %101, %105 : vector<16x16xf32>
    %107 = arith.truncf %106 : vector<16x16xf32> to vector<16x16xbf16>
    %108 = vector.extract_strided_slice %69 {offsets = [16, 0], sizes = [16, 32], strides = [1, 1]} : vector<32x32xbf16> to vector<16x32xbf16>
    %cst_51 = arith.constant dense<0.000000e+00> : vector<16x32xf32>
    %109 = tpu.matmul %107, %108, %cst_51 {dimension_numbers = #tpu.dot_dimension_numbers<[1], [0], [0], [1], [0, 0, 1, 1], [], []>} : vector<16x16xbf16>, vector<16x32xbf16>, vector<16x32xf32> -> vector<16x32xf32>
    %110 = arith.truncf %109 : vector<16x32xf32> to vector<16x32xbf16>
    %c16 = arith.constant 16 : index
    %c0_52 = arith.constant 0 : index
    %111 = vector.load %arg29[%c16, %c0_52] : memref<32x32xbf16, #tpu.memory_space<vmem>>, vector<16x32xbf16>
    tpu.vector_store %arg29[%c16, %c0_52], %110 {strides = array<i32>} : memref<32x32xbf16, #tpu.memory_space<vmem>>, vector<16x32xbf16>,
    %c0_53 = arith.constant 0 : index
    %c0_54 = arith.constant 0 : index
    %112 = vector.load %arg29[%c0_53, %c0_54] : memref<32x32xbf16, #tpu.memory_space<vmem>>, vector<32x32xbf16>
    %c0_55 = arith.constant 0 : index
    %c0_56 = arith.constant 0 : index
    %c0_57 = arith.constant 0 : index
    %113 = vector.load %arg13[%c0_55, %c0_56, %c0_57] : memref<4x32x64xbf16, #tpu.memory_space<vmem>>, vector<1x32x64xbf16>
    %114 = vector.shape_cast %113 : vector<1x32x64xbf16> to vector<32x64xbf16>
    %cst_58 = arith.constant dense<0.000000e+00> : vector<32x64xf32>
    %115 = tpu.matmul %112, %114, %cst_58 {dimension_numbers = #tpu.dot_dimension_numbers<[1], [0], [0], [1], [0, 0, 1, 1], [], []>} : vector<32x32xbf16>, vector<32x64xbf16>, vector<32x64xf32> -> vector<32x64xf32>
    %116 = arith.addf %45, %115 : vector<32x64xf32>
    %c1 = arith.constant 1 : index
    %c0_59 = arith.constant 0 : index
    %c0_60 = arith.constant 0 : index
    %117 = vector.load %arg7[%c1, %c0_59, %c0_60] : memref<4x64x32xbf16, #tpu.memory_space<vmem>>, vector<1x64x32xbf16>
    %118 = vector.shape_cast %117 : vector<1x64x32xbf16> to vector<64x32xbf16>
    %cst_61 = arith.constant dense<0.000000e+00> : vector<32x32xf32>
    %119 = tpu.matmul %44, %118, %cst_61 {dimension_numbers = #tpu.dot_dimension_numbers<[1], [0], [0], [1], [0, 0, 1, 1], [], []>} : vector<32x64xbf16>, vector<64x32xbf16>, vector<32x32xf32> -> vector<32x32xf32>
    %c1_62 = arith.constant 1 : index
    %c0_63 = arith.constant 0 : index
    %c0_64 = arith.constant 0 : index
    %120 = vector.load %arg8[%c1_62, %c0_63, %c0_64] : memref<4x1x32xf32, #tpu.memory_space<vmem>>, vector<1x1x32xf32>
    %121 = vector.shape_cast %120 : vector<1x1x32xf32> to vector<1x32xf32>
    %122 = vector.broadcast %121 : vector<1x32xf32> to vector<32x32xf32>
    %123 = arith.addf %119, %122 : vector<32x32xf32>
    %124 = arith.truncf %123 : vector<32x32xf32> to vector<32x32xbf16>
    %c1_65 = arith.constant 1 : index
    %c0_66 = arith.constant 0 : index
    %c0_67 = arith.constant 0 : index
    %125 = vector.load %arg9[%c1_65, %c0_66, %c0_67] : memref<4x64x32xbf16, #tpu.memory_space<vmem>>, vector<1x64x32xbf16>
    %126 = vector.shape_cast %125 : vector<1x64x32xbf16> to vector<64x32xbf16>
    %cst_68 = arith.constant dense<0.000000e+00> : vector<32x32xf32>
    %127 = tpu.matmul %44, %126, %cst_68 {dimension_numbers = #tpu.dot_dimension_numbers<[1], [0], [0], [1], [0, 0, 1, 1], [], []>} : vector<32x64xbf16>, vector<64x32xbf16>, vector<32x32xf32> -> vector<32x32xf32>
    %c1_69 = arith.constant 1 : index
    %c0_70 = arith.constant 0 : index
    %c0_71 = arith.constant 0 : index
    %128 = vector.load %arg10[%c1_69, %c0_70, %c0_71] : memref<4x1x32xf32, #tpu.memory_space<vmem>>, vector<1x1x32xf32>
    %129 = vector.shape_cast %128 : vector<1x1x32xf32> to vector<1x32xf32>
    %130 = vector.broadcast %129 : vector<1x32xf32> to vector<32x32xf32>
    %131 = arith.addf %127, %130 : vector<32x32xf32>
    %132 = arith.truncf %131 : vector<32x32xf32> to vector<32x32xbf16>
    %c1_72 = arith.constant 1 : index
    %c0_73 = arith.constant 0 : index
    %c0_74 = arith.constant 0 : index
    %133 = vector.load %arg11[%c1_72, %c0_73, %c0_74] : memref<4x64x32xbf16, #tpu.memory_space<vmem>>, vector<1x64x32xbf16>
    %134 = vector.shape_cast %133 : vector<1x64x32xbf16> to vector<64x32xbf16>
    %cst_75 = arith.constant dense<0.000000e+00> : vector<32x32xf32>
    %135 = tpu.matmul %44, %134, %cst_75 {dimension_numbers = #tpu.dot_dimension_numbers<[1], [0], [0], [1], [0, 0, 1, 1], [], []>} : vector<32x64xbf16>, vector<64x32xbf16>, vector<32x32xf32> -> vector<32x32xf32>
    %c1_76 = arith.constant 1 : index
    %c0_77 = arith.constant 0 : index
    %c0_78 = arith.constant 0 : index
    %136 = vector.load %arg12[%c1_76, %c0_77, %c0_78] : memref<4x1x32xf32, #tpu.memory_space<vmem>>, vector<1x1x32xf32>
    %137 = vector.shape_cast %136 : vector<1x1x32xf32> to vector<1x32xf32>
    %138 = vector.broadcast %137 : vector<1x32xf32> to vector<32x32xf32>
    %139 = arith.addf %135, %138 : vector<32x32xf32>
    %140 = arith.truncf %139 : vector<32x32xf32> to vector<32x32xbf16>
    %141 = vector.extract_strided_slice %124 {offsets = [0, 0], sizes = [16, 32], strides = [1, 1]} : vector<32x32xbf16> to vector<16x32xbf16>
    %142 = vector.extract_strided_slice %132 {offsets = [0, 0], sizes = [16, 32], strides = [1, 1]} : vector<32x32xbf16> to vector<16x32xbf16>
    %cst_79 = arith.constant dense<0.000000e+00> : vector<16x16xf32>
    %143 = tpu.matmul %141, %142, %cst_79 {dimension_numbers = #tpu.dot_dimension_numbers<[1], [1], [0], [0], [0, 0, 1, 0], [], []>} : vector<16x32xbf16>, vector<16x32xbf16>, vector<16x16xf32> -> vector<16x16xf32>
    %144 = vector.extract_strided_slice %43 {offsets = [0, 0], sizes = [1, 16], strides = [1, 1]} : vector<2x16xf32> to vector<1x16xf32>
    %145 = vector.broadcast %144 : vector<1x16xf32> to vector<16x16xf32>
    %146 = arith.addf %143, %145 : vector<16x16xf32>
    %cst_80 = arith.constant dense<0xFF800000> : vector<16xf32>
    %147 = vector.multi_reduction <maximumf>, %146, %cst_80 [1] : vector<16x16xf32> to vector<16xf32>
    %148 = vector.shape_cast %147 : vector<16xf32> to vector<16x1xf32>
    %149 = vector.broadcast %148 : vector<16x1xf32> to vector<16x16xf32>
    %150 = arith.subf %146, %149 : vector<16x16xf32>
    %151 = math.exp %150 : vector<16x16xf32>
    %cst_81 = arith.constant dense<0.000000e+00> : vector<16xf32>
    %152 = vector.multi_reduction <add>, %151, %cst_81 [1] : vector<16x16xf32> to vector<16xf32>
    %153 = vector.shape_cast %152 : vector<16xf32> to vector<16x1xf32>
    %154 = tpu.reciprocal %153 {approx = true} : vector<16x1xf32> -> vector<16x1xf32>
    %155 = vector.broadcast %154 : vector<16x1xf32> to vector<16x16xf32>
    %156 = arith.mulf %151, %155 : vector<16x16xf32>
    %157 = arith.truncf %156 : vector<16x16xf32> to vector<16x16xbf16>
    %158 = vector.extract_strided_slice %140 {offsets = [0, 0], sizes = [16, 32], strides = [1, 1]} : vector<32x32xbf16> to vector<16x32xbf16>
    %cst_82 = arith.constant dense<0.000000e+00> : vector<16x32xf32>
    %159 = tpu.matmul %157, %158, %cst_82 {dimension_numbers = #tpu.dot_dimension_numbers<[1], [0], [0], [1], [0, 0, 1, 1], [], []>} : vector<16x16xbf16>, vector<16x32xbf16>, vector<16x32xf32> -> vector<16x32xf32>
    %160 = arith.truncf %159 : vector<16x32xf32> to vector<16x32xbf16>
    %c0_83 = arith.constant 0 : index
    %c0_84 = arith.constant 0 : index
    %161 = vector.load %arg29[%c0_83, %c0_84] : memref<32x32xbf16, #tpu.memory_space<vmem>>, vector<16x32xbf16>
    tpu.vector_store %arg29[%c0_83, %c0_84], %160 {strides = array<i32>} : memref<32x32xbf16, #tpu.memory_space<vmem>>, vector<16x32xbf16>,
    %162 = vector.extract_strided_slice %124 {offsets = [16, 0], sizes = [16, 32], strides = [1, 1]} : vector<32x32xbf16> to vector<16x32xbf16>
    %163 = vector.extract_strided_slice %132 {offsets = [16, 0], sizes = [16, 32], strides = [1, 1]} : vector<32x32xbf16> to vector<16x32xbf16>
    %cst_85 = arith.constant dense<0.000000e+00> : vector<16x16xf32>
    %164 = tpu.matmul %162, %163, %cst_85 {dimension_numbers = #tpu.dot_dimension_numbers<[1], [1], [0], [0], [0, 0, 1, 0], [], []>} : vector<16x32xbf16>, vector<16x32xbf16>, vector<16x16xf32> -> vector<16x16xf32>
    %165 = vector.extract_strided_slice %43 {offsets = [1, 0], sizes = [1, 16], strides = [1, 1]} : vector<2x16xf32> to vector<1x16xf32>
    %166 = vector.broadcast %165 : vector<1x16xf32> to vector<16x16xf32>
    %167 = arith.addf %164, %166 : vector<16x16xf32>
    %cst_86 = arith.constant dense<0xFF800000> : vector<16xf32>
    %168 = vector.multi_reduction <maximumf>, %167, %cst_86 [1] : vector<16x16xf32> to vector<16xf32>
    %169 = vector.shape_cast %168 : vector<16xf32> to vector<16x1xf32>
    %170 = vector.broadcast %169 : vector<16x1xf32> to vector<16x16xf32>
    %171 = arith.subf %167, %170 : vector<16x16xf32>
    %172 = math.exp %171 : vector<16x16xf32>
    %cst_87 = arith.constant dense<0.000000e+00> : vector<16xf32>
    %173 = vector.multi_reduction <add>, %172, %cst_87 [1] : vector<16x16xf32> to vector<16xf32>
    %174 = vector.shape_cast %173 : vector<16xf32> to vector<16x1xf32>
    %175 = tpu.reciprocal %174 {approx = true} : vector<16x1xf32> -> vector<16x1xf32>
    %176 = vector.broadcast %175 : vector<16x1xf32> to vector<16x16xf32>
    %177 = arith.mulf %172, %176 : vector<16x16xf32>
    %178 = arith.truncf %177 : vector<16x16xf32> to vector<16x16xbf16>
    %179 = vector.extract_strided_slice %140 {offsets = [16, 0], sizes = [16, 32], strides = [1, 1]} : vector<32x32xbf16> to vector<16x32xbf16>
    %cst_88 = arith.constant dense<0.000000e+00> : vector<16x32xf32>
    %180 = tpu.matmul %178, %179, %cst_88 {dimension_numbers = #tpu.dot_dimension_numbers<[1], [0], [0], [1], [0, 0, 1, 1], [], []>} : vector<16x16xbf16>, vector<16x32xbf16>, vector<16x32xf32> -> vector<16x32xf32>
    %181 = arith.truncf %180 : vector<16x32xf32> to vector<16x32xbf16>
    %c16_89 = arith.constant 16 : index
    %c0_90 = arith.constant 0 : index
    %182 = vector.load %arg29[%c16_89, %c0_90] : memref<32x32xbf16, #tpu.memory_space<vmem>>, vector<16x32xbf16>
    tpu.vector_store %arg29[%c16_89, %c0_90], %181 {strides = array<i32>} : memref<32x32xbf16, #tpu.memory_space<vmem>>, vector<16x32xbf16>,
    %c0_91 = arith.constant 0 : index
    %c0_92 = arith.constant 0 : index
    %183 = vector.load %arg29[%c0_91, %c0_92] : memref<32x32xbf16, #tpu.memory_space<vmem>>, vector<32x32xbf16>
    %c1_93 = arith.constant 1 : index
    %c0_94 = arith.constant 0 : index
    %c0_95 = arith.constant 0 : index
    %184 = vector.load %arg13[%c1_93, %c0_94, %c0_95] : memref<4x32x64xbf16, #tpu.memory_space<vmem>>, vector<1x32x64xbf16>
    %185 = vector.shape_cast %184 : vector<1x32x64xbf16> to vector<32x64xbf16>
    %cst_96 = arith.constant dense<0.000000e+00> : vector<32x64xf32>
    %186 = tpu.matmul %183, %185, %cst_96 {dimension_numbers = #tpu.dot_dimension_numbers<[1], [0], [0], [1], [0, 0, 1, 1], [], []>} : vector<32x32xbf16>, vector<32x64xbf16>, vector<32x64xf32> -> vector<32x64xf32>
    %187 = arith.addf %116, %186 : vector<32x64xf32>
    %c0_97 = arith.constant 0 : index
    %c0_98 = arith.constant 0 : index
    %c0_99 = arith.constant 0 : index
    %188 = vector.load %arg14[%c0_97, %c0_98, %c0_99] : memref<2x1x64xf32, #tpu.memory_space<vmem>>, vector<1x1x64xf32>
    %189 = vector.shape_cast %188 : vector<1x1x64xf32> to vector<1x64xf32>
    %190 = vector.broadcast %189 : vector<1x64xf32> to vector<32x64xf32>
    %191 = arith.addf %187, %190 : vector<32x64xf32>
    %192 = arith.addf %37, %191 : vector<32x64xf32>
    %c0_100 = arith.constant 0 : index
    %c0_101 = arith.constant 0 : index
    %c0_102 = arith.constant 0 : index
    %193 = vector.load %arg15[%c0_100, %c0_101, %c0_102] : memref<2x1x64xf32, #tpu.memory_space<vmem>>, vector<1x1x64xf32>
    %194 = vector.shape_cast %193 : vector<1x1x64xf32> to vector<1x64xf32>
    %c0_103 = arith.constant 0 : index
    %c0_104 = arith.constant 0 : index
    %c0_105 = arith.constant 0 : index
    %195 = vector.load %arg16[%c0_103, %c0_104, %c0_105] : memref<2x1x64xf32, #tpu.memory_space<vmem>>, vector<1x1x64xf32>
    %196 = vector.shape_cast %195 : vector<1x1x64xf32> to vector<1x64xf32>
    %cst_106 = arith.constant dense<0.000000e+00> : vector<32xf32>
    %197 = vector.multi_reduction <add>, %192, %cst_106 [1] : vector<32x64xf32> to vector<32xf32>
    %198 = vector.shape_cast %197 : vector<32xf32> to vector<32x1xf32>
    %cst_107 = arith.constant 6.400000e+01 : f32
    %199 = vector.broadcast %cst_107 : f32 to vector<32x1xf32>
    %200 = arith.divf %198, %199 : vector<32x1xf32>
    %201 = vector.broadcast %200 : vector<32x1xf32> to vector<32x64xf32>
    %202 = arith.subf %192, %201 : vector<32x64xf32>
    %203 = vector.broadcast %200 : vector<32x1xf32> to vector<32x64xf32>
    %204 = arith.subf %192, %203 : vector<32x64xf32>
    %205 = arith.mulf %202, %204 : vector<32x64xf32>
    %cst_108 = arith.constant dense<0.000000e+00> : vector<32xf32>
    %206 = vector.multi_reduction <add>, %205, %cst_108 [1] : vector<32x64xf32> to vector<32xf32>
    %207 = vector.shape_cast %206 : vector<32xf32> to vector<32x1xf32>
    %cst_109 = arith.constant 6.400000e+01 : f32
    %208 = vector.broadcast %cst_109 : f32 to vector<32x1xf32>
    %209 = arith.divf %207, %208 : vector<32x1xf32>
    %210 = vector.broadcast %200 : vector<32x1xf32> to vector<32x64xf32>
    %211 = arith.subf %192, %210 : vector<32x64xf32>
    %cst_110 = arith.constant 9.99999996E-13 : f32
    %212 = vector.broadcast %cst_110 : f32 to vector<32x1xf32>
    %213 = arith.addf %209, %212 : vector<32x1xf32>
    %214 = math.rsqrt %213 : vector<32x1xf32>
    %215 = vector.broadcast %214 : vector<32x1xf32> to vector<32x64xf32>
    %216 = arith.mulf %211, %215 : vector<32x64xf32>
    %217 = vector.broadcast %194 : vector<1x64xf32> to vector<32x64xf32>
    %218 = arith.mulf %216, %217 : vector<32x64xf32>
    %219 = vector.broadcast %196 : vector<1x64xf32> to vector<32x64xf32>
    %220 = arith.addf %218, %219 : vector<32x64xf32>
    %221 = arith.truncf %220 : vector<32x64xf32> to vector<32x64xbf16>
    %c0_111 = arith.constant 0 : index
    %c0_112 = arith.constant 0 : index
    %c0_113 = arith.constant 0 : index
    %222 = vector.load %arg17[%c0_111, %c0_112, %c0_113] : memref<2x64x128xbf16, #tpu.memory_space<vmem>>, vector<1x64x128xbf16>
    %223 = vector.shape_cast %222 : vector<1x64x128xbf16> to vector<64x128xbf16>
    %cst_114 = arith.constant dense<0.000000e+00> : vector<32x128xf32>
    %224 = tpu.matmul %221, %223, %cst_114 {dimension_numbers = #tpu.dot_dimension_numbers<[1], [0], [0], [1], [0, 0, 1, 1], [], []>} : vector<32x64xbf16>, vector<64x128xbf16>, vector<32x128xf32> -> vector<32x128xf32>
    %c0_115 = arith.constant 0 : index
    %c0_116 = arith.constant 0 : index
    %c0_117 = arith.constant 0 : index
    %225 = vector.load %arg18[%c0_115, %c0_116, %c0_117] : memref<2x1x128xf32, #tpu.memory_space<vmem>>, vector<1x1x128xf32>
    %226 = vector.shape_cast %225 : vector<1x1x128xf32> to vector<1x128xf32>
    %227 = vector.broadcast %226 : vector<1x128xf32> to vector<32x128xf32>
    %228 = arith.addf %224, %227 : vector<32x128xf32>
    %cst_118 = arith.constant 5.000000e-01 : f32
    %229 = vector.broadcast %cst_118 : f32 to vector<32x128xf32>
    %230 = arith.mulf %229, %228 : vector<32x128xf32>
    %cst_119 = arith.constant 4.471500e-02 : f32
    %231 = vector.broadcast %cst_119 : f32 to vector<32x128xf32>
    %232 = arith.mulf %231, %228 : vector<32x128xf32>
    %233 = arith.mulf %232, %228 : vector<32x128xf32>
    %234 = arith.mulf %233, %228 : vector<32x128xf32>
    %235 = arith.addf %228, %234 : vector<32x128xf32>
    %cst_120 = arith.constant 0.797884583 : f32
    %236 = vector.broadcast %cst_120 : f32 to vector<32x128xf32>
    %237 = arith.mulf %236, %235 : vector<32x128xf32>
    %238 = math.tanh %237 : vector<32x128xf32>
    %cst_121 = arith.constant 1.000000e+00 : f32
    %239 = vector.broadcast %cst_121 : f32 to vector<32x128xf32>
    %240 = arith.addf %239, %238 : vector<32x128xf32>
    %241 = arith.mulf %230, %240 : vector<32x128xf32>
    %242 = arith.truncf %241 : vector<32x128xf32> to vector<32x128xbf16>
    %c0_122 = arith.constant 0 : index
    %c0_123 = arith.constant 0 : index
    %c0_124 = arith.constant 0 : index
    %243 = vector.load %arg19[%c0_122, %c0_123, %c0_124] : memref<2x128x64xbf16, #tpu.memory_space<vmem>>, vector<1x128x64xbf16>
    %244 = vector.shape_cast %243 : vector<1x128x64xbf16> to vector<128x64xbf16>
    %cst_125 = arith.constant dense<0.000000e+00> : vector<32x64xf32>
    %245 = tpu.matmul %242, %244, %cst_125 {dimension_numbers = #tpu.dot_dimension_numbers<[1], [0], [0], [1], [0, 0, 1, 1], [], []>} : vector<32x128xbf16>, vector<128x64xbf16>, vector<32x64xf32> -> vector<32x64xf32>
    %c0_126 = arith.constant 0 : index
    %c0_127 = arith.constant 0 : index
    %c0_128 = arith.constant 0 : index
    %246 = vector.load %arg20[%c0_126, %c0_127, %c0_128] : memref<2x1x64xf32, #tpu.memory_space<vmem>>, vector<1x1x64xf32>
    %247 = vector.shape_cast %246 : vector<1x1x64xf32> to vector<1x64xf32>
    %248 = vector.broadcast %247 : vector<1x64xf32> to vector<32x64xf32>
    %249 = arith.addf %245, %248 : vector<32x64xf32>
    %250 = arith.addf %220, %249 : vector<32x64xf32>
    %c0_129 = arith.constant 0 : index
    %c0_130 = arith.constant 0 : index
    %c0_131 = arith.constant 0 : index
    %251 = vector.load %arg21[%c0_129, %c0_130, %c0_131] : memref<2x1x64xf32, #tpu.memory_space<vmem>>, vector<1x1x64xf32>
    %252 = vector.shape_cast %251 : vector<1x1x64xf32> to vector<1x64xf32>
    %c0_132 = arith.constant 0 : index
    %c0_133 = arith.constant 0 : index
    %c0_134 = arith.constant 0 : index
    %253 = vector.load %arg22[%c0_132, %c0_133, %c0_134] : memref<2x1x64xf32, #tpu.memory_space<vmem>>, vector<1x1x64xf32>
    %254 = vector.shape_cast %253 : vector<1x1x64xf32> to vector<1x64xf32>
    %cst_135 = arith.constant dense<0.000000e+00> : vector<32xf32>
    %255 = vector.multi_reduction <add>, %250, %cst_135 [1] : vector<32x64xf32> to vector<32xf32>
    %256 = vector.shape_cast %255 : vector<32xf32> to vector<32x1xf32>
    %cst_136 = arith.constant 6.400000e+01 : f32
    %257 = vector.broadcast %cst_136 : f32 to vector<32x1xf32>
    %258 = arith.divf %256, %257 : vector<32x1xf32>
    %259 = vector.broadcast %258 : vector<32x1xf32> to vector<32x64xf32>
    %260 = arith.subf %250, %259 : vector<32x64xf32>
    %261 = vector.broadcast %258 : vector<32x1xf32> to vector<32x64xf32>
    %262 = arith.subf %250, %261 : vector<32x64xf32>
    %263 = arith.mulf %260, %262 : vector<32x64xf32>
    %cst_137 = arith.constant dense<0.000000e+00> : vector<32xf32>
    %264 = vector.multi_reduction <add>, %263, %cst_137 [1] : vector<32x64xf32> to vector<32xf32>
    %265 = vector.shape_cast %264 : vector<32xf32> to vector<32x1xf32>
    %cst_138 = arith.constant 6.400000e+01 : f32
    %266 = vector.broadcast %cst_138 : f32 to vector<32x1xf32>
    %267 = arith.divf %265, %266 : vector<32x1xf32>
    %268 = vector.broadcast %258 : vector<32x1xf32> to vector<32x64xf32>
    %269 = arith.subf %250, %268 : vector<32x64xf32>
    %cst_139 = arith.constant 9.99999996E-13 : f32
    %270 = vector.broadcast %cst_139 : f32 to vector<32x1xf32>
    %271 = arith.addf %267, %270 : vector<32x1xf32>
    %272 = math.rsqrt %271 : vector<32x1xf32>
    %273 = vector.broadcast %272 : vector<32x1xf32> to vector<32x64xf32>
    %274 = arith.mulf %269, %273 : vector<32x64xf32>
    %275 = vector.broadcast %252 : vector<1x64xf32> to vector<32x64xf32>
    %276 = arith.mulf %274, %275 : vector<32x64xf32>
    %277 = vector.broadcast %254 : vector<1x64xf32> to vector<32x64xf32>
    %278 = arith.addf %276, %277 : vector<32x64xf32>
    %279 = arith.truncf %278 : vector<32x64xf32> to vector<32x64xbf16>
    %cst_140 = arith.constant 0.000000e+00 : f32
    %280 = vector.broadcast %cst_140 : f32 to vector<32x64xf32>
    %c2 = arith.constant 2 : index
    %c0_141 = arith.constant 0 : index
    %c0_142 = arith.constant 0 : index
    %281 = vector.load %arg7[%c2, %c0_141, %c0_142] : memref<4x64x32xbf16, #tpu.memory_space<vmem>>, vector<1x64x32xbf16>
    %282 = vector.shape_cast %281 : vector<1x64x32xbf16> to vector<64x32xbf16>
    %cst_143 = arith.constant dense<0.000000e+00> : vector<32x32xf32>
    %283 = tpu.matmul %279, %282, %cst_143 {dimension_numbers = #tpu.dot_dimension_numbers<[1], [0], [0], [1], [0, 0, 1, 1], [], []>} : vector<32x64xbf16>, vector<64x32xbf16>, vector<32x32xf32> -> vector<32x32xf32>
    %c2_144 = arith.constant 2 : index
    %c0_145 = arith.constant 0 : index
    %c0_146 = arith.constant 0 : index
    %284 = vector.load %arg8[%c2_144, %c0_145, %c0_146] : memref<4x1x32xf32, #tpu.memory_space<vmem>>, vector<1x1x32xf32>
    %285 = vector.shape_cast %284 : vector<1x1x32xf32> to vector<1x32xf32>
    %286 = vector.broadcast %285 : vector<1x32xf32> to vector<32x32xf32>
    %287 = arith.addf %283, %286 : vector<32x32xf32>
    %288 = arith.truncf %287 : vector<32x32xf32> to vector<32x32xbf16>
    %c2_147 = arith.constant 2 : index
    %c0_148 = arith.constant 0 : index
    %c0_149 = arith.constant 0 : index
    %289 = vector.load %arg9[%c2_147, %c0_148, %c0_149] : memref<4x64x32xbf16, #tpu.memory_space<vmem>>, vector<1x64x32xbf16>
    %290 = vector.shape_cast %289 : vector<1x64x32xbf16> to vector<64x32xbf16>
    %cst_150 = arith.constant dense<0.000000e+00> : vector<32x32xf32>
    %291 = tpu.matmul %279, %290, %cst_150 {dimension_numbers = #tpu.dot_dimension_numbers<[1], [0], [0], [1], [0, 0, 1, 1], [], []>} : vector<32x64xbf16>, vector<64x32xbf16>, vector<32x32xf32> -> vector<32x32xf32>
    %c2_151 = arith.constant 2 : index
    %c0_152 = arith.constant 0 : index
    %c0_153 = arith.constant 0 : index
    %292 = vector.load %arg10[%c2_151, %c0_152, %c0_153] : memref<4x1x32xf32, #tpu.memory_space<vmem>>, vector<1x1x32xf32>
    %293 = vector.shape_cast %292 : vector<1x1x32xf32> to vector<1x32xf32>
    %294 = vector.broadcast %293 : vector<1x32xf32> to vector<32x32xf32>
    %295 = arith.addf %291, %294 : vector<32x32xf32>
    %296 = arith.truncf %295 : vector<32x32xf32> to vector<32x32xbf16>
    %c2_154 = arith.constant 2 : index
    %c0_155 = arith.constant 0 : index
    %c0_156 = arith.constant 0 : index
    %297 = vector.load %arg11[%c2_154, %c0_155, %c0_156] : memref<4x64x32xbf16, #tpu.memory_space<vmem>>, vector<1x64x32xbf16>
    %298 = vector.shape_cast %297 : vector<1x64x32xbf16> to vector<64x32xbf16>
    %cst_157 = arith.constant dense<0.000000e+00> : vector<32x32xf32>
    %299 = tpu.matmul %279, %298, %cst_157 {dimension_numbers = #tpu.dot_dimension_numbers<[1], [0], [0], [1], [0, 0, 1, 1], [], []>} : vector<32x64xbf16>, vector<64x32xbf16>, vector<32x32xf32> -> vector<32x32xf32>
    %c2_158 = arith.constant 2 : index
    %c0_159 = arith.constant 0 : index
    %c0_160 = arith.constant 0 : index
    %300 = vector.load %arg12[%c2_158, %c0_159, %c0_160] : memref<4x1x32xf32, #tpu.memory_space<vmem>>, vector<1x1x32xf32>
    %301 = vector.shape_cast %300 : vector<1x1x32xf32> to vector<1x32xf32>
    %302 = vector.broadcast %301 : vector<1x32xf32> to vector<32x32xf32>
    %303 = arith.addf %299, %302 : vector<32x32xf32>
    %304 = arith.truncf %303 : vector<32x32xf32> to vector<32x32xbf16>
    %305 = vector.extract_strided_slice %288 {offsets = [0, 0], sizes = [16, 32], strides = [1, 1]} : vector<32x32xbf16> to vector<16x32xbf16>
    %306 = vector.extract_strided_slice %296 {offsets = [0, 0], sizes = [16, 32], strides = [1, 1]} : vector<32x32xbf16> to vector<16x32xbf16>
    %cst_161 = arith.constant dense<0.000000e+00> : vector<16x16xf32>
    %307 = tpu.matmul %305, %306, %cst_161 {dimension_numbers = #tpu.dot_dimension_numbers<[1], [1], [0], [0], [0, 0, 1, 0], [], []>} : vector<16x32xbf16>, vector<16x32xbf16>, vector<16x16xf32> -> vector<16x16xf32>
    %308 = vector.extract_strided_slice %43 {offsets = [0, 0], sizes = [1, 16], strides = [1, 1]} : vector<2x16xf32> to vector<1x16xf32>
    %309 = vector.broadcast %308 : vector<1x16xf32> to vector<16x16xf32>
    %310 = arith.addf %307, %309 : vector<16x16xf32>
    %cst_162 = arith.constant dense<0xFF800000> : vector<16xf32>
    %311 = vector.multi_reduction <maximumf>, %310, %cst_162 [1] : vector<16x16xf32> to vector<16xf32>
    %312 = vector.shape_cast %311 : vector<16xf32> to vector<16x1xf32>
    %313 = vector.broadcast %312 : vector<16x1xf32> to vector<16x16xf32>
    %314 = arith.subf %310, %313 : vector<16x16xf32>
    %315 = math.exp %314 : vector<16x16xf32>
    %cst_163 = arith.constant dense<0.000000e+00> : vector<16xf32>
    %316 = vector.multi_reduction <add>, %315, %cst_163 [1] : vector<16x16xf32> to vector<16xf32>
    %317 = vector.shape_cast %316 : vector<16xf32> to vector<16x1xf32>
    %318 = tpu.reciprocal %317 {approx = true} : vector<16x1xf32> -> vector<16x1xf32>
    %319 = vector.broadcast %318 : vector<16x1xf32> to vector<16x16xf32>
    %320 = arith.mulf %315, %319 : vector<16x16xf32>
    %321 = arith.truncf %320 : vector<16x16xf32> to vector<16x16xbf16>
    %322 = vector.extract_strided_slice %304 {offsets = [0, 0], sizes = [16, 32], strides = [1, 1]} : vector<32x32xbf16> to vector<16x32xbf16>
    %cst_164 = arith.constant dense<0.000000e+00> : vector<16x32xf32>
    %323 = tpu.matmul %321, %322, %cst_164 {dimension_numbers = #tpu.dot_dimension_numbers<[1], [0], [0], [1], [0, 0, 1, 1], [], []>} : vector<16x16xbf16>, vector<16x32xbf16>, vector<16x32xf32> -> vector<16x32xf32>
    %324 = arith.truncf %323 : vector<16x32xf32> to vector<16x32xbf16>
    %c0_165 = arith.constant 0 : index
    %c0_166 = arith.constant 0 : index
    %325 = vector.load %arg29[%c0_165, %c0_166] : memref<32x32xbf16, #tpu.memory_space<vmem>>, vector<16x32xbf16>
    tpu.vector_store %arg29[%c0_165, %c0_166], %324 {strides = array<i32>} : memref<32x32xbf16, #tpu.memory_space<vmem>>, vector<16x32xbf16>,
    %326 = vector.extract_strided_slice %288 {offsets = [16, 0], sizes = [16, 32], strides = [1, 1]} : vector<32x32xbf16> to vector<16x32xbf16>
    %327 = vector.extract_strided_slice %296 {offsets = [16, 0], sizes = [16, 32], strides = [1, 1]} : vector<32x32xbf16> to vector<16x32xbf16>
    %cst_167 = arith.constant dense<0.000000e+00> : vector<16x16xf32>
    %328 = tpu.matmul %326, %327, %cst_167 {dimension_numbers = #tpu.dot_dimension_numbers<[1], [1], [0], [0], [0, 0, 1, 0], [], []>} : vector<16x32xbf16>, vector<16x32xbf16>, vector<16x16xf32> -> vector<16x16xf32>
    %329 = vector.extract_strided_slice %43 {offsets = [1, 0], sizes = [1, 16], strides = [1, 1]} : vector<2x16xf32> to vector<1x16xf32>
    %330 = vector.broadcast %329 : vector<1x16xf32> to vector<16x16xf32>
    %331 = arith.addf %328, %330 : vector<16x16xf32>
    %cst_168 = arith.constant dense<0xFF800000> : vector<16xf32>
    %332 = vector.multi_reduction <maximumf>, %331, %cst_168 [1] : vector<16x16xf32> to vector<16xf32>
    %333 = vector.shape_cast %332 : vector<16xf32> to vector<16x1xf32>
    %334 = vector.broadcast %333 : vector<16x1xf32> to vector<16x16xf32>
    %335 = arith.subf %331, %334 : vector<16x16xf32>
    %336 = math.exp %335 : vector<16x16xf32>
    %cst_169 = arith.constant dense<0.000000e+00> : vector<16xf32>
    %337 = vector.multi_reduction <add>, %336, %cst_169 [1] : vector<16x16xf32> to vector<16xf32>
    %338 = vector.shape_cast %337 : vector<16xf32> to vector<16x1xf32>
    %339 = tpu.reciprocal %338 {approx = true} : vector<16x1xf32> -> vector<16x1xf32>
    %340 = vector.broadcast %339 : vector<16x1xf32> to vector<16x16xf32>
    %341 = arith.mulf %336, %340 : vector<16x16xf32>
    %342 = arith.truncf %341 : vector<16x16xf32> to vector<16x16xbf16>
    %343 = vector.extract_strided_slice %304 {offsets = [16, 0], sizes = [16, 32], strides = [1, 1]} : vector<32x32xbf16> to vector<16x32xbf16>
    %cst_170 = arith.constant dense<0.000000e+00> : vector<16x32xf32>
    %344 = tpu.matmul %342, %343, %cst_170 {dimension_numbers = #tpu.dot_dimension_numbers<[1], [0], [0], [1], [0, 0, 1, 1], [], []>} : vector<16x16xbf16>, vector<16x32xbf16>, vector<16x32xf32> -> vector<16x32xf32>
    %345 = arith.truncf %344 : vector<16x32xf32> to vector<16x32xbf16>
    %c16_171 = arith.constant 16 : index
    %c0_172 = arith.constant 0 : index
    %346 = vector.load %arg29[%c16_171, %c0_172] : memref<32x32xbf16, #tpu.memory_space<vmem>>, vector<16x32xbf16>
    tpu.vector_store %arg29[%c16_171, %c0_172], %345 {strides = array<i32>} : memref<32x32xbf16, #tpu.memory_space<vmem>>, vector<16x32xbf16>,
    %c0_173 = arith.constant 0 : index
    %c0_174 = arith.constant 0 : index
    %347 = vector.load %arg29[%c0_173, %c0_174] : memref<32x32xbf16, #tpu.memory_space<vmem>>, vector<32x32xbf16>
    %c2_175 = arith.constant 2 : index
    %c0_176 = arith.constant 0 : index
    %c0_177 = arith.constant 0 : index
    %348 = vector.load %arg13[%c2_175, %c0_176, %c0_177] : memref<4x32x64xbf16, #tpu.memory_space<vmem>>, vector<1x32x64xbf16>
    %349 = vector.shape_cast %348 : vector<1x32x64xbf16> to vector<32x64xbf16>
    %cst_178 = arith.constant dense<0.000000e+00> : vector<32x64xf32>
    %350 = tpu.matmul %347, %349, %cst_178 {dimension_numbers = #tpu.dot_dimension_numbers<[1], [0], [0], [1], [0, 0, 1, 1], [], []>} : vector<32x32xbf16>, vector<32x64xbf16>, vector<32x64xf32> -> vector<32x64xf32>
    %351 = arith.addf %280, %350 : vector<32x64xf32>
    %c3 = arith.constant 3 : index
    %c0_179 = arith.constant 0 : index
    %c0_180 = arith.constant 0 : index
    %352 = vector.load %arg7[%c3, %c0_179, %c0_180] : memref<4x64x32xbf16, #tpu.memory_space<vmem>>, vector<1x64x32xbf16>
    %353 = vector.shape_cast %352 : vector<1x64x32xbf16> to vector<64x32xbf16>
    %cst_181 = arith.constant dense<0.000000e+00> : vector<32x32xf32>
    %354 = tpu.matmul %279, %353, %cst_181 {dimension_numbers = #tpu.dot_dimension_numbers<[1], [0], [0], [1], [0, 0, 1, 1], [], []>} : vector<32x64xbf16>, vector<64x32xbf16>, vector<32x32xf32> -> vector<32x32xf32>
    %c3_182 = arith.constant 3 : index
    %c0_183 = arith.constant 0 : index
    %c0_184 = arith.constant 0 : index
    %355 = vector.load %arg8[%c3_182, %c0_183, %c0_184] : memref<4x1x32xf32, #tpu.memory_space<vmem>>, vector<1x1x32xf32>
    %356 = vector.shape_cast %355 : vector<1x1x32xf32> to vector<1x32xf32>
    %357 = vector.broadcast %356 : vector<1x32xf32> to vector<32x32xf32>
    %358 = arith.addf %354, %357 : vector<32x32xf32>
    %359 = arith.truncf %358 : vector<32x32xf32> to vector<32x32xbf16>
    %c3_185 = arith.constant 3 : index
    %c0_186 = arith.constant 0 : index
    %c0_187 = arith.constant 0 : index
    %360 = vector.load %arg9[%c3_185, %c0_186, %c0_187] : memref<4x64x32xbf16, #tpu.memory_space<vmem>>, vector<1x64x32xbf16>
    %361 = vector.shape_cast %360 : vector<1x64x32xbf16> to vector<64x32xbf16>
    %cst_188 = arith.constant dense<0.000000e+00> : vector<32x32xf32>
    %362 = tpu.matmul %279, %361, %cst_188 {dimension_numbers = #tpu.dot_dimension_numbers<[1], [0], [0], [1], [0, 0, 1, 1], [], []>} : vector<32x64xbf16>, vector<64x32xbf16>, vector<32x32xf32> -> vector<32x32xf32>
    %c3_189 = arith.constant 3 : index
    %c0_190 = arith.constant 0 : index
    %c0_191 = arith.constant 0 : index
    %363 = vector.load %arg10[%c3_189, %c0_190, %c0_191] : memref<4x1x32xf32, #tpu.memory_space<vmem>>, vector<1x1x32xf32>
    %364 = vector.shape_cast %363 : vector<1x1x32xf32> to vector<1x32xf32>
    %365 = vector.broadcast %364 : vector<1x32xf32> to vector<32x32xf32>
    %366 = arith.addf %362, %365 : vector<32x32xf32>
    %367 = arith.truncf %366 : vector<32x32xf32> to vector<32x32xbf16>
    %c3_192 = arith.constant 3 : index
    %c0_193 = arith.constant 0 : index
    %c0_194 = arith.constant 0 : index
    %368 = vector.load %arg11[%c3_192, %c0_193, %c0_194] : memref<4x64x32xbf16, #tpu.memory_space<vmem>>, vector<1x64x32xbf16>
    %369 = vector.shape_cast %368 : vector<1x64x32xbf16> to vector<64x32xbf16>
    %cst_195 = arith.constant dense<0.000000e+00> : vector<32x32xf32>
    %370 = tpu.matmul %279, %369, %cst_195 {dimension_numbers = #tpu.dot_dimension_numbers<[1], [0], [0], [1], [0, 0, 1, 1], [], []>} : vector<32x64xbf16>, vector<64x32xbf16>, vector<32x32xf32> -> vector<32x32xf32>
    %c3_196 = arith.constant 3 : index
    %c0_197 = arith.constant 0 : index
    %c0_198 = arith.constant 0 : index
    %371 = vector.load %arg12[%c3_196, %c0_197, %c0_198] : memref<4x1x32xf32, #tpu.memory_space<vmem>>, vector<1x1x32xf32>
    %372 = vector.shape_cast %371 : vector<1x1x32xf32> to vector<1x32xf32>
    %373 = vector.broadcast %372 : vector<1x32xf32> to vector<32x32xf32>
    %374 = arith.addf %370, %373 : vector<32x32xf32>
    %375 = arith.truncf %374 : vector<32x32xf32> to vector<32x32xbf16>
    %376 = vector.extract_strided_slice %359 {offsets = [0, 0], sizes = [16, 32], strides = [1, 1]} : vector<32x32xbf16> to vector<16x32xbf16>
    %377 = vector.extract_strided_slice %367 {offsets = [0, 0], sizes = [16, 32], strides = [1, 1]} : vector<32x32xbf16> to vector<16x32xbf16>
    %cst_199 = arith.constant dense<0.000000e+00> : vector<16x16xf32>
    %378 = tpu.matmul %376, %377, %cst_199 {dimension_numbers = #tpu.dot_dimension_numbers<[1], [1], [0], [0], [0, 0, 1, 0], [], []>} : vector<16x32xbf16>, vector<16x32xbf16>, vector<16x16xf32> -> vector<16x16xf32>
    %379 = vector.extract_strided_slice %43 {offsets = [0, 0], sizes = [1, 16], strides = [1, 1]} : vector<2x16xf32> to vector<1x16xf32>
    %380 = vector.broadcast %379 : vector<1x16xf32> to vector<16x16xf32>
    %381 = arith.addf %378, %380 : vector<16x16xf32>
    %cst_200 = arith.constant dense<0xFF800000> : vector<16xf32>
    %382 = vector.multi_reduction <maximumf>, %381, %cst_200 [1] : vector<16x16xf32> to vector<16xf32>
    %383 = vector.shape_cast %382 : vector<16xf32> to vector<16x1xf32>
    %384 = vector.broadcast %383 : vector<16x1xf32> to vector<16x16xf32>
    %385 = arith.subf %381, %384 : vector<16x16xf32>
    %386 = math.exp %385 : vector<16x16xf32>
    %cst_201 = arith.constant dense<0.000000e+00> : vector<16xf32>
    %387 = vector.multi_reduction <add>, %386, %cst_201 [1] : vector<16x16xf32> to vector<16xf32>
    %388 = vector.shape_cast %387 : vector<16xf32> to vector<16x1xf32>
    %389 = tpu.reciprocal %388 {approx = true} : vector<16x1xf32> -> vector<16x1xf32>
    %390 = vector.broadcast %389 : vector<16x1xf32> to vector<16x16xf32>
    %391 = arith.mulf %386, %390 : vector<16x16xf32>
    %392 = arith.truncf %391 : vector<16x16xf32> to vector<16x16xbf16>
    %393 = vector.extract_strided_slice %375 {offsets = [0, 0], sizes = [16, 32], strides = [1, 1]} : vector<32x32xbf16> to vector<16x32xbf16>
    %cst_202 = arith.constant dense<0.000000e+00> : vector<16x32xf32>
    %394 = tpu.matmul %392, %393, %cst_202 {dimension_numbers = #tpu.dot_dimension_numbers<[1], [0], [0], [1], [0, 0, 1, 1], [], []>} : vector<16x16xbf16>, vector<16x32xbf16>, vector<16x32xf32> -> vector<16x32xf32>
    %395 = arith.truncf %394 : vector<16x32xf32> to vector<16x32xbf16>
    %c0_203 = arith.constant 0 : index
    %c0_204 = arith.constant 0 : index
    %396 = vector.load %arg29[%c0_203, %c0_204] : memref<32x32xbf16, #tpu.memory_space<vmem>>, vector<16x32xbf16>
    tpu.vector_store %arg29[%c0_203, %c0_204], %395 {strides = array<i32>} : memref<32x32xbf16, #tpu.memory_space<vmem>>, vector<16x32xbf16>,
    %397 = vector.extract_strided_slice %359 {offsets = [16, 0], sizes = [16, 32], strides = [1, 1]} : vector<32x32xbf16> to vector<16x32xbf16>
    %398 = vector.extract_strided_slice %367 {offsets = [16, 0], sizes = [16, 32], strides = [1, 1]} : vector<32x32xbf16> to vector<16x32xbf16>
    %cst_205 = arith.constant dense<0.000000e+00> : vector<16x16xf32>
    %399 = tpu.matmul %397, %398, %cst_205 {dimension_numbers = #tpu.dot_dimension_numbers<[1], [1], [0], [0], [0, 0, 1, 0], [], []>} : vector<16x32xbf16>, vector<16x32xbf16>, vector<16x16xf32> -> vector<16x16xf32>
    %400 = vector.extract_strided_slice %43 {offsets = [1, 0], sizes = [1, 16], strides = [1, 1]} : vector<2x16xf32> to vector<1x16xf32>
    %401 = vector.broadcast %400 : vector<1x16xf32> to vector<16x16xf32>
    %402 = arith.addf %399, %401 : vector<16x16xf32>
    %cst_206 = arith.constant dense<0xFF800000> : vector<16xf32>
    %403 = vector.multi_reduction <maximumf>, %402, %cst_206 [1] : vector<16x16xf32> to vector<16xf32>
    %404 = vector.shape_cast %403 : vector<16xf32> to vector<16x1xf32>
    %405 = vector.broadcast %404 : vector<16x1xf32> to vector<16x16xf32>
    %406 = arith.subf %402, %405 : vector<16x16xf32>
    %407 = math.exp %406 : vector<16x16xf32>
    %cst_207 = arith.constant dense<0.000000e+00> : vector<16xf32>
    %408 = vector.multi_reduction <add>, %407, %cst_207 [1] : vector<16x16xf32> to vector<16xf32>
    %409 = vector.shape_cast %408 : vector<16xf32> to vector<16x1xf32>
    %410 = tpu.reciprocal %409 {approx = true} : vector<16x1xf32> -> vector<16x1xf32>
    %411 = vector.broadcast %410 : vector<16x1xf32> to vector<16x16xf32>
    %412 = arith.mulf %407, %411 : vector<16x16xf32>
    %413 = arith.truncf %412 : vector<16x16xf32> to vector<16x16xbf16>
    %414 = vector.extract_strided_slice %375 {offsets = [16, 0], sizes = [16, 32], strides = [1, 1]} : vector<32x32xbf16> to vector<16x32xbf16>
    %cst_208 = arith.constant dense<0.000000e+00> : vector<16x32xf32>
    %415 = tpu.matmul %413, %414, %cst_208 {dimension_numbers = #tpu.dot_dimension_numbers<[1], [0], [0], [1], [0, 0, 1, 1], [], []>} : vector<16x16xbf16>, vector<16x32xbf16>, vector<16x32xf32> -> vector<16x32xf32>
    %416 = arith.truncf %415 : vector<16x32xf32> to vector<16x32xbf16>
    %c16_209 = arith.constant 16 : index
    %c0_210 = arith.constant 0 : index
    %417 = vector.load %arg29[%c16_209, %c0_210] : memref<32x32xbf16, #tpu.memory_space<vmem>>, vector<16x32xbf16>
    tpu.vector_store %arg29[%c16_209, %c0_210], %416 {strides = array<i32>} : memref<32x32xbf16, #tpu.memory_space<vmem>>, vector<16x32xbf16>,
    %c0_211 = arith.constant 0 : index
    %c0_212 = arith.constant 0 : index
    %418 = vector.load %arg29[%c0_211, %c0_212] : memref<32x32xbf16, #tpu.memory_space<vmem>>, vector<32x32xbf16>
    %c3_213 = arith.constant 3 : index
    %c0_214 = arith.constant 0 : index
    %c0_215 = arith.constant 0 : index
    %419 = vector.load %arg13[%c3_213, %c0_214, %c0_215] : memref<4x32x64xbf16, #tpu.memory_space<vmem>>, vector<1x32x64xbf16>
    %420 = vector.shape_cast %419 : vector<1x32x64xbf16> to vector<32x64xbf16>
    %cst_216 = arith.constant dense<0.000000e+00> : vector<32x64xf32>
    %421 = tpu.matmul %418, %420, %cst_216 {dimension_numbers = #tpu.dot_dimension_numbers<[1], [0], [0], [1], [0, 0, 1, 1], [], []>} : vector<32x32xbf16>, vector<32x64xbf16>, vector<32x64xf32> -> vector<32x64xf32>
    %422 = arith.addf %351, %421 : vector<32x64xf32>
    %c1_217 = arith.constant 1 : index
    %c0_218 = arith.constant 0 : index
    %c0_219 = arith.constant 0 : index
    %423 = vector.load %arg14[%c1_217, %c0_218, %c0_219] : memref<2x1x64xf32, #tpu.memory_space<vmem>>, vector<1x1x64xf32>
    %424 = vector.shape_cast %423 : vector<1x1x64xf32> to vector<1x64xf32>
    %425 = vector.broadcast %424 : vector<1x64xf32> to vector<32x64xf32>
    %426 = arith.addf %422, %425 : vector<32x64xf32>
    %427 = arith.addf %278, %426 : vector<32x64xf32>
    %c1_220 = arith.constant 1 : index
    %c0_221 = arith.constant 0 : index
    %c0_222 = arith.constant 0 : index
    %428 = vector.load %arg15[%c1_220, %c0_221, %c0_222] : memref<2x1x64xf32, #tpu.memory_space<vmem>>, vector<1x1x64xf32>
    %429 = vector.shape_cast %428 : vector<1x1x64xf32> to vector<1x64xf32>
    %c1_223 = arith.constant 1 : index
    %c0_224 = arith.constant 0 : index
    %c0_225 = arith.constant 0 : index
    %430 = vector.load %arg16[%c1_223, %c0_224, %c0_225] : memref<2x1x64xf32, #tpu.memory_space<vmem>>, vector<1x1x64xf32>
    %431 = vector.shape_cast %430 : vector<1x1x64xf32> to vector<1x64xf32>
    %cst_226 = arith.constant dense<0.000000e+00> : vector<32xf32>
    %432 = vector.multi_reduction <add>, %427, %cst_226 [1] : vector<32x64xf32> to vector<32xf32>
    %433 = vector.shape_cast %432 : vector<32xf32> to vector<32x1xf32>
    %cst_227 = arith.constant 6.400000e+01 : f32
    %434 = vector.broadcast %cst_227 : f32 to vector<32x1xf32>
    %435 = arith.divf %433, %434 : vector<32x1xf32>
    %436 = vector.broadcast %435 : vector<32x1xf32> to vector<32x64xf32>
    %437 = arith.subf %427, %436 : vector<32x64xf32>
    %438 = vector.broadcast %435 : vector<32x1xf32> to vector<32x64xf32>
    %439 = arith.subf %427, %438 : vector<32x64xf32>
    %440 = arith.mulf %437, %439 : vector<32x64xf32>
    %cst_228 = arith.constant dense<0.000000e+00> : vector<32xf32>
    %441 = vector.multi_reduction <add>, %440, %cst_228 [1] : vector<32x64xf32> to vector<32xf32>
    %442 = vector.shape_cast %441 : vector<32xf32> to vector<32x1xf32>
    %cst_229 = arith.constant 6.400000e+01 : f32
    %443 = vector.broadcast %cst_229 : f32 to vector<32x1xf32>
    %444 = arith.divf %442, %443 : vector<32x1xf32>
    %445 = vector.broadcast %435 : vector<32x1xf32> to vector<32x64xf32>
    %446 = arith.subf %427, %445 : vector<32x64xf32>
    %cst_230 = arith.constant 9.99999996E-13 : f32
    %447 = vector.broadcast %cst_230 : f32 to vector<32x1xf32>
    %448 = arith.addf %444, %447 : vector<32x1xf32>
    %449 = math.rsqrt %448 : vector<32x1xf32>
    %450 = vector.broadcast %449 : vector<32x1xf32> to vector<32x64xf32>
    %451 = arith.mulf %446, %450 : vector<32x64xf32>
    %452 = vector.broadcast %429 : vector<1x64xf32> to vector<32x64xf32>
    %453 = arith.mulf %451, %452 : vector<32x64xf32>
    %454 = vector.broadcast %431 : vector<1x64xf32> to vector<32x64xf32>
    %455 = arith.addf %453, %454 : vector<32x64xf32>
    %456 = arith.truncf %455 : vector<32x64xf32> to vector<32x64xbf16>
    %c1_231 = arith.constant 1 : index
    %c0_232 = arith.constant 0 : index
    %c0_233 = arith.constant 0 : index
    %457 = vector.load %arg17[%c1_231, %c0_232, %c0_233] : memref<2x64x128xbf16, #tpu.memory_space<vmem>>, vector<1x64x128xbf16>
    %458 = vector.shape_cast %457 : vector<1x64x128xbf16> to vector<64x128xbf16>
    %cst_234 = arith.constant dense<0.000000e+00> : vector<32x128xf32>
    %459 = tpu.matmul %456, %458, %cst_234 {dimension_numbers = #tpu.dot_dimension_numbers<[1], [0], [0], [1], [0, 0, 1, 1], [], []>} : vector<32x64xbf16>, vector<64x128xbf16>, vector<32x128xf32> -> vector<32x128xf32>
    %c1_235 = arith.constant 1 : index
    %c0_236 = arith.constant 0 : index
    %c0_237 = arith.constant 0 : index
    %460 = vector.load %arg18[%c1_235, %c0_236, %c0_237] : memref<2x1x128xf32, #tpu.memory_space<vmem>>, vector<1x1x128xf32>
    %461 = vector.shape_cast %460 : vector<1x1x128xf32> to vector<1x128xf32>
    %462 = vector.broadcast %461 : vector<1x128xf32> to vector<32x128xf32>
    %463 = arith.addf %459, %462 : vector<32x128xf32>
    %cst_238 = arith.constant 5.000000e-01 : f32
    %464 = vector.broadcast %cst_238 : f32 to vector<32x128xf32>
    %465 = arith.mulf %464, %463 : vector<32x128xf32>
    %cst_239 = arith.constant 4.471500e-02 : f32
    %466 = vector.broadcast %cst_239 : f32 to vector<32x128xf32>
    %467 = arith.mulf %466, %463 : vector<32x128xf32>
    %468 = arith.mulf %467, %463 : vector<32x128xf32>
    %469 = arith.mulf %468, %463 : vector<32x128xf32>
    %470 = arith.addf %463, %469 : vector<32x128xf32>
    %cst_240 = arith.constant 0.797884583 : f32
    %471 = vector.broadcast %cst_240 : f32 to vector<32x128xf32>
    %472 = arith.mulf %471, %470 : vector<32x128xf32>
    %473 = math.tanh %472 : vector<32x128xf32>
    %cst_241 = arith.constant 1.000000e+00 : f32
    %474 = vector.broadcast %cst_241 : f32 to vector<32x128xf32>
    %475 = arith.addf %474, %473 : vector<32x128xf32>
    %476 = arith.mulf %465, %475 : vector<32x128xf32>
    %477 = arith.truncf %476 : vector<32x128xf32> to vector<32x128xbf16>
    %c1_242 = arith.constant 1 : index
    %c0_243 = arith.constant 0 : index
    %c0_244 = arith.constant 0 : index
    %478 = vector.load %arg19[%c1_242, %c0_243, %c0_244] : memref<2x128x64xbf16, #tpu.memory_space<vmem>>, vector<1x128x64xbf16>
    %479 = vector.shape_cast %478 : vector<1x128x64xbf16> to vector<128x64xbf16>
    %cst_245 = arith.constant dense<0.000000e+00> : vector<32x64xf32>
    %480 = tpu.matmul %477, %479, %cst_245 {dimension_numbers = #tpu.dot_dimension_numbers<[1], [0], [0], [1], [0, 0, 1, 1], [], []>} : vector<32x128xbf16>, vector<128x64xbf16>, vector<32x64xf32> -> vector<32x64xf32>
    %c1_246 = arith.constant 1 : index
    %c0_247 = arith.constant 0 : index
    %c0_248 = arith.constant 0 : index
    %481 = vector.load %arg20[%c1_246, %c0_247, %c0_248] : memref<2x1x64xf32, #tpu.memory_space<vmem>>, vector<1x1x64xf32>
    %482 = vector.shape_cast %481 : vector<1x1x64xf32> to vector<1x64xf32>
    %483 = vector.broadcast %482 : vector<1x64xf32> to vector<32x64xf32>
    %484 = arith.addf %480, %483 : vector<32x64xf32>
    %485 = arith.addf %455, %484 : vector<32x64xf32>
    %c1_249 = arith.constant 1 : index
    %c0_250 = arith.constant 0 : index
    %c0_251 = arith.constant 0 : index
    %486 = vector.load %arg21[%c1_249, %c0_250, %c0_251] : memref<2x1x64xf32, #tpu.memory_space<vmem>>, vector<1x1x64xf32>
    %487 = vector.shape_cast %486 : vector<1x1x64xf32> to vector<1x64xf32>
    %c1_252 = arith.constant 1 : index
    %c0_253 = arith.constant 0 : index
    %c0_254 = arith.constant 0 : index
    %488 = vector.load %arg22[%c1_252, %c0_253, %c0_254] : memref<2x1x64xf32, #tpu.memory_space<vmem>>, vector<1x1x64xf32>
    %489 = vector.shape_cast %488 : vector<1x1x64xf32> to vector<1x64xf32>
    %cst_255 = arith.constant dense<0.000000e+00> : vector<32xf32>
    %490 = vector.multi_reduction <add>, %485, %cst_255 [1] : vector<32x64xf32> to vector<32xf32>
    %491 = vector.shape_cast %490 : vector<32xf32> to vector<32x1xf32>
    %cst_256 = arith.constant 6.400000e+01 : f32
    %492 = vector.broadcast %cst_256 : f32 to vector<32x1xf32>
    %493 = arith.divf %491, %492 : vector<32x1xf32>
    %494 = vector.broadcast %493 : vector<32x1xf32> to vector<32x64xf32>
    %495 = arith.subf %485, %494 : vector<32x64xf32>
    %496 = vector.broadcast %493 : vector<32x1xf32> to vector<32x64xf32>
    %497 = arith.subf %485, %496 : vector<32x64xf32>
    %498 = arith.mulf %495, %497 : vector<32x64xf32>
    %cst_257 = arith.constant dense<0.000000e+00> : vector<32xf32>
    %499 = vector.multi_reduction <add>, %498, %cst_257 [1] : vector<32x64xf32> to vector<32xf32>
    %500 = vector.shape_cast %499 : vector<32xf32> to vector<32x1xf32>
    %cst_258 = arith.constant 6.400000e+01 : f32
    %501 = vector.broadcast %cst_258 : f32 to vector<32x1xf32>
    %502 = arith.divf %500, %501 : vector<32x1xf32>
    %503 = vector.broadcast %493 : vector<32x1xf32> to vector<32x64xf32>
    %504 = arith.subf %485, %503 : vector<32x64xf32>
    %cst_259 = arith.constant 9.99999996E-13 : f32
    %505 = vector.broadcast %cst_259 : f32 to vector<32x1xf32>
    %506 = arith.addf %502, %505 : vector<32x1xf32>
    %507 = math.rsqrt %506 : vector<32x1xf32>
    %508 = vector.broadcast %507 : vector<32x1xf32> to vector<32x64xf32>
    %509 = arith.mulf %504, %508 : vector<32x64xf32>
    %510 = vector.broadcast %487 : vector<1x64xf32> to vector<32x64xf32>
    %511 = arith.mulf %509, %510 : vector<32x64xf32>
    %512 = vector.broadcast %489 : vector<1x64xf32> to vector<32x64xf32>
    %513 = arith.addf %511, %512 : vector<32x64xf32>
    %514 = arith.truncf %513 : vector<32x64xf32> to vector<32x64xbf16>
    %c0_260 = arith.constant 0 : index
    %c0_261 = arith.constant 0 : index
    %515 = vector.load %arg23[%c0_260, %c0_261] : memref<64x64xbf16, #tpu.memory_space<vmem>>, vector<64x64xbf16>
    %cst_262 = arith.constant dense<0.000000e+00> : vector<32x64xf32>
    %516 = tpu.matmul %514, %515, %cst_262 {dimension_numbers = #tpu.dot_dimension_numbers<[1], [0], [0], [1], [0, 0, 1, 1], [], []>} : vector<32x64xbf16>, vector<64x64xbf16>, vector<32x64xf32> -> vector<32x64xf32>
    %c0_263 = arith.constant 0 : index
    %c0_264 = arith.constant 0 : index
    %517 = vector.load %arg24[%c0_263, %c0_264] : memref<1x64xf32, #tpu.memory_space<vmem>>, vector<1x64xf32>
    %518 = vector.broadcast %517 : vector<1x64xf32> to vector<32x64xf32>
    %519 = arith.addf %516, %518 : vector<32x64xf32>
    %cst_265 = arith.constant 5.000000e-01 : f32
    %520 = vector.broadcast %cst_265 : f32 to vector<32x64xf32>
    %521 = arith.mulf %520, %519 : vector<32x64xf32>
    %cst_266 = arith.constant 4.471500e-02 : f32
    %522 = vector.broadcast %cst_266 : f32 to vector<32x64xf32>
    %523 = arith.mulf %522, %519 : vector<32x64xf32>
    %524 = arith.mulf %523, %519 : vector<32x64xf32>
    %525 = arith.mulf %524, %519 : vector<32x64xf32>
    %526 = arith.addf %519, %525 : vector<32x64xf32>
    %cst_267 = arith.constant 0.797884583 : f32
    %527 = vector.broadcast %cst_267 : f32 to vector<32x64xf32>
    %528 = arith.mulf %527, %526 : vector<32x64xf32>
    %529 = math.tanh %528 : vector<32x64xf32>
    %cst_268 = arith.constant 1.000000e+00 : f32
    %530 = vector.broadcast %cst_268 : f32 to vector<32x64xf32>
    %531 = arith.addf %530, %529 : vector<32x64xf32>
    %532 = arith.mulf %521, %531 : vector<32x64xf32>
    %533 = arith.truncf %532 : vector<32x64xf32> to vector<32x64xbf16>
    %c0_269 = arith.constant 0 : index
    %c0_270 = arith.constant 0 : index
    %534 = vector.load %arg25[%c0_269, %c0_270] : memref<64x1xbf16, #tpu.memory_space<vmem>>, vector<64x1xbf16>
    %cst_271 = arith.constant dense<0.000000e+00> : vector<32x1xf32>
    %535 = tpu.matmul %533, %534, %cst_271 {dimension_numbers = #tpu.dot_dimension_numbers<[1], [0], [0], [1], [0, 0, 1, 1], [], []>} : vector<32x64xbf16>, vector<64x1xbf16>, vector<32x1xf32> -> vector<32x1xf32>
    %c0_272 = arith.constant 0 : index
    %c0_273 = arith.constant 0 : index
    %536 = vector.load %arg26[%c0_272, %c0_273] : memref<1x1xf32, #tpu.memory_space<vmem>>, vector<1x1xf32>
    %537 = vector.broadcast %536 : vector<1x1xf32> to vector<32x1xf32>
    %538 = arith.addf %535, %537 : vector<32x1xf32>
    %c0_274 = arith.constant 0 : index
    %c0_275 = arith.constant 0 : index
    %539 = vector.load %arg27[%c0_274, %c0_275] : memref<32x1xf32, #tpu.memory_space<vmem>>, vector<32x1xf32>
    tpu.vector_store %arg27[%c0_274, %c0_275], %538 {strides = array<i32>} : memref<32x1xf32, #tpu.memory_space<vmem>>, vector<32x1xf32>,
    %c0_276 = arith.constant 0 : index
    %c0_277 = arith.constant 0 : index
    %540 = vector.load %arg1[%c0_276, %c0_277] : memref<32x1xi32, #tpu.memory_space<vmem>>, vector<32x1xi32>
    %541 = arith.cmpi ne, %0, %540 : vector<32x1xi32>
    %542 = arith.extui %541 : vector<32x1xi1> to vector<32x1xi32>
    %543 = arith.sitofp %542 : vector<32x1xi32> to vector<32x1xf32>
    %c0_278 = arith.constant 0 : index
    %c0_279 = arith.constant 0 : index
    %544 = vector.load %arg28[%c0_278, %c0_279] : memref<32x1xf32, #tpu.memory_space<vmem>>, vector<32x1xf32>
    tpu.vector_store %arg28[%c0_278, %c0_279], %543 {strides = array<i32>} : memref<32x1xf32, #tpu.memory_space<vmem>>, vector<32x1xf32>,
    return
  }
}

</mosaic_0001>

<llo_original>
// kernel: model_forward.2
$region0: #{model_forward.2}
  #allocation0 [shape = 'u32[]', space=smem, size = 0x4, offset = 0x4, fixed_abs, tag = 'smem constant byte address 0x4 - core index']
  #allocation1 [shape = 'u32[144,128]{1,0:T(1,128)}', space=vmem, size = 0x12000, scoped, tag = 'internal scratch']
  #allocation2 [shape = 'bf16[32,16]{1,0:T(16,128)(2,1)}', space=vmem, size = 0x2000, scoped, tag = 'scratch operand']
  %s0 = inlined_call_operand.smem [shape: u32[32], index: -1, kind: input, shape index: {}]
  %s1 = sld [smem:[%s0]]
  %s2 = scalar_lea.smem %s0, 1
  %s3 = sld [smem:[%s2]]
  %s4 = scalar_lea.smem %s0, 2
  %s5 = sld [smem:[%s4]]
  %s6 = scalar_lea.smem %s0, 3
  %s7 = sld [smem:[%s6]]
  %s8 = scalar_lea.smem %s0, 4
  %s9 = sld [smem:[%s8]]
  %s10 = scalar_lea.smem %s0, 5
  %s11 = sld [smem:[%s10]]
  %s12 = scalar_lea.smem %s0, 6
  %s13 = sld [smem:[%s12]]
  %s14 = scalar_lea.smem %s0, 7
  %s15 = sld [smem:[%s14]]
  %s16 = scalar_lea.smem %s0, 8
  %s17 = sld [smem:[%s16]]
  %s18 = scalar_lea.smem %s0, 9
  %s19 = sld [smem:[%s18]]
  %s20 = scalar_lea.smem %s0, 10
  %s21 = sld [smem:[%s20]]
  %s22 = scalar_lea.smem %s0, 11
  %s23 = sld [smem:[%s22]]
  %s24 = scalar_lea.smem %s0, 12
  %s25 = sld [smem:[%s24]]
  %s26 = scalar_lea.smem %s0, 13
  %s27 = sld [smem:[%s26]]
  %s28 = scalar_lea.smem %s0, 14
  %s29 = sld [smem:[%s28]]
  %s30 = scalar_lea.smem %s0, 15
  %s31 = sld [smem:[%s30]]
  %s32 = scalar_lea.smem %s0, 16
  %s33 = sld [smem:[%s32]]
  %s34 = scalar_lea.smem %s0, 17
  %s35 = sld [smem:[%s34]]
  %s36 = scalar_lea.smem %s0, 18
  %s37 = sld [smem:[%s36]]
  %s38 = scalar_lea.smem %s0, 19
  %s39 = sld [smem:[%s38]]
  %s40 = scalar_lea.smem %s0, 20
  %s41 = sld [smem:[%s40]]
  %s42 = scalar_lea.smem %s0, 21
  %s43 = sld [smem:[%s42]]
  %s44 = scalar_lea.smem %s0, 22
  %s45 = sld [smem:[%s44]]
  %s46 = scalar_lea.smem %s0, 23
  %s47 = sld [smem:[%s46]]
  %s48 = scalar_lea.smem %s0, 24
  %s49 = sld [smem:[%s48]]
  %s50 = scalar_lea.smem %s0, 25
  %s51 = sld [smem:[%s50]]
  %s52 = scalar_lea.smem %s0, 26
  %s53 = sld [smem:[%s52]]
  %s54 = scalar_lea.smem %s0, 27
  %s55 = sld [smem:[%s54]]
  %s56 = scalar_lea.smem %s0, 28
  %s57 = sld [smem:[%s56]]
  %s58 = scalar_lea.smem %s0, 29
  %s59 = sld [smem:[%s58]]
  %s60 = scalar_lea.smem %s0, 30
  %s61 = sld [smem:[%s60]]
  %s62 = scalar_lea.smem %s0, 31
  %s63 = sld [smem:[%s62]]
  %64 = xla_tuple %s61, %s63
  %s65 = sld [smem:[#allocation0]]
  $region138: #{model_forward.2} parent=0
    _
  %s67 = ssub.s32 1, %s65
  %s68 = scalar_select 0, %s67, %s65
  $region1: #{model_forward.2} parent=0
    #allocation3 [shape = 'u8[16384]{0}', space=vmem, size = 0x4000, scoped, tag = 'output window, operand 0, single buffered']
    #allocation4 [shape = 's32[1]{0}', space=sflag, size = 0x4, scoped, tag = 'scoped memory for model_forward.2']
    %69 = vsyncpa [#allocation4], 0
    // Predicated region
    $region2: #{model_forward.2} parent=1 // pred_check
      _
    $region3: #{model_forward.2} parent=1 // pred_check_branch
      %71 = sbr.rel (0) target = $region5
    $region4: #{model_forward.2} parent=1 // pred_region
      _
    $region5: #{model_forward.2} parent=1 // pred_fallthru
      _
    // Predicated region
    $region6: #{model_forward.2} parent=1 // pred_check
      _
    $region7: #{model_forward.2} parent=1 // pred_check_branch
      %73 = sbr.rel (0) target = $region9
    $region8: #{model_forward.2} parent=1 // pred_region
      _
    $region9: #{model_forward.2} parent=1 // pred_fallthru
      _
    // Predicated region
    $region10: #{model_forward.2} parent=1 // pred_check
      _
    $region11: #{model_forward.2} parent=1 // pred_check_branch
      %75 = sbr.rel (0) target = $region13
    $region12: #{model_forward.2} parent=1 // pred_region
      _
    $region13: #{model_forward.2} parent=1 // pred_fallthru
      _
    // Predicated region
    $region14: #{model_forward.2} parent=1 // pred_check
      _
    $region15: #{model_forward.2} parent=1 // pred_check_branch
      %77 = sbr.rel (0) target = $region17
    $region16: #{model_forward.2} parent=1 // pred_region
      _
    $region17: #{model_forward.2} parent=1 // pred_fallthru
      _
    // Predicated region
    $region18: #{model_forward.2} parent=1 // pred_check
      _
    $region19: #{model_forward.2} parent=1 // pred_check_branch
      %79 = sbr.rel (0) target = $region21
    $region20: #{model_forward.2} parent=1 // pred_region
      _
    $region21: #{model_forward.2} parent=1 // pred_fallthru
      _
    // Predicated region
    $region22: #{model_forward.2} parent=1 // pred_check
      _
    $region23: #{model_forward.2} parent=1 // pred_check_branch
      %81 = sbr.rel (0) target = $region25
    $region24: #{model_forward.2} parent=1 // pred_region
      _
    $region25: #{model_forward.2} parent=1 // pred_fallthru
      _
    // Predicated region
    $region26: #{model_forward.2} parent=1 // pred_check
      _
    $region27: #{model_forward.2} parent=1 // pred_check_branch
      %83 = sbr.rel (0) target = $region29
    $region28: #{model_forward.2} parent=1 // pred_region
      _
    $region29: #{model_forward.2} parent=1 // pred_fallthru
      _
    // Predicated region
    $region30: #{model_forward.2} parent=1 // pred_check
      _
    $region31: #{model_forward.2} parent=1 // pred_check_branch
      %85 = sbr.rel (0) target = $region33
    $region32: #{model_forward.2} parent=1 // pred_region
      _
    $region33: #{model_forward.2} parent=1 // pred_fallthru
      _
    // Predicated region
    $region34: #{model_forward.2} parent=1 // pred_check
      _
    $region35: #{model_forward.2} parent=1 // pred_check_branch
      %87 = sbr.rel (0) target = $region37
    $region36: #{model_forward.2} parent=1 // pred_region
      _
    $region37: #{model_forward.2} parent=1 // pred_fallthru
      _
    // Predicated region
    $region38: #{model_forward.2} parent=1 // pred_check
      _
    $region39: #{model_forward.2} parent=1 // pred_check_branch
      %89 = sbr.rel (0) target = $region41
    $region40: #{model_forward.2} parent=1 // pred_region
      _
    $region41: #{model_forward.2} parent=1 // pred_fallthru
      _
    // Predicated region
    $region42: #{model_forward.2} parent=1 // pred_check
      _
    $region43: #{model_forward.2} parent=1 // pred_check_branch
      %91 = sbr.rel (0) target = $region45
    $region44: #{model_forward.2} parent=1 // pred_region
      _
    $region45: #{model_forward.2} parent=1 // pred_fallthru
      _
    // Predicated region
    $region46: #{model_forward.2} parent=1 // pred_check
      _
    $region47: #{model_forward.2} parent=1 // pred_check_branch
      %93 = sbr.rel (0) target = $region49
    $region48: #{model_forward.2} parent=1 // pred_region
      _
    $region49: #{model_forward.2} parent=1 // pred_fallthru
      _
    // Predicated region
    $region50: #{model_forward.2} parent=1 // pred_check
      _
    $region51: #{model_forward.2} parent=1 // pred_check_branch
      %95 = sbr.rel (0) target = $region53
    $region52: #{model_forward.2} parent=1 // pred_region
      _
    $region53: #{model_forward.2} parent=1 // pred_fallthru
      _
    // Predicated region
    $region54: #{model_forward.2} parent=1 // pred_check
      _
    $region55: #{model_forward.2} parent=1 // pred_check_branch
      %97 = sbr.rel (0) target = $region57
    $region56: #{model_forward.2} parent=1 // pred_region
      _
    $region57: #{model_forward.2} parent=1 // pred_fallthru
      _
    // Predicated region
    $region58: #{model_forward.2} parent=1 // pred_check
      _
    $region59: #{model_forward.2} parent=1 // pred_check_branch
      %99 = sbr.rel (0) target = $region61
    $region60: #{model_forward.2} parent=1 // pred_region
      _
    $region61: #{model_forward.2} parent=1 // pred_fallthru
      _
    // Predicated region
    $region62: #{model_forward.2} parent=1 // pred_check
      _
    $region63: #{model_forward.2} parent=1 // pred_check_branch
      %101 = sbr.rel (0) target = $region65
    $region64: #{model_forward.2} parent=1 // pred_region
      _
    $region65: #{model_forward.2} parent=1 // pred_fallthru
      _
    // Predicated region
    $region66: #{model_forward.2} parent=1 // pred_check
      _
    $region67: #{model_forward.2} parent=1 // pred_check_branch
      %103 = sbr.rel (0) target = $region69
    $region68: #{model_forward.2} parent=1 // pred_region
      _
    $region69: #{model_forward.2} parent=1 // pred_fallthru
      _
    // Predicated region
    $region70: #{model_forward.2} parent=1 // pred_check
      _
    $region71: #{model_forward.2} parent=1 // pred_check_branch
      %105 = sbr.rel (0) target = $region73
    $region72: #{model_forward.2} parent=1 // pred_region
      _
    $region73: #{model_forward.2} parent=1 // pred_fallthru
      _
    // Predicated region
    $region74: #{model_forward.2} parent=1 // pred_check
      _
    $region75: #{model_forward.2} parent=1 // pred_check_branch
      %107 = sbr.rel (0) target = $region77
    $region76: #{model_forward.2} parent=1 // pred_region
      _
    $region77: #{model_forward.2} parent=1 // pred_fallthru
      _
    // Predicated region
    $region78: #{model_forward.2} parent=1 // pred_check
      _
    $region79: #{model_forward.2} parent=1 // pred_check_branch
      %109 = sbr.rel (0) target = $region81
    $region80: #{model_forward.2} parent=1 // pred_region
      _
    $region81: #{model_forward.2} parent=1 // pred_fallthru
      _
    // Predicated region
    $region82: #{model_forward.2} parent=1 // pred_check
      _
    $region83: #{model_forward.2} parent=1 // pred_check_branch
      %111 = sbr.rel (0) target = $region85
    $region84: #{model_forward.2} parent=1 // pred_region
      _
    $region85: #{model_forward.2} parent=1 // pred_fallthru
      _
    // Predicated region
    $region86: #{model_forward.2} parent=1 // pred_check
      _
    $region87: #{model_forward.2} parent=1 // pred_check_branch
      %113 = sbr.rel (0) target = $region89
    $region88: #{model_forward.2} parent=1 // pred_region
      _
    $region89: #{model_forward.2} parent=1 // pred_fallthru
      _
    // Predicated region
    $region90: #{model_forward.2} parent=1 // pred_check
      _
    $region91: #{model_forward.2} parent=1 // pred_check_branch
      %115 = sbr.rel (0) target = $region93
    $region92: #{model_forward.2} parent=1 // pred_region
      _
    $region93: #{model_forward.2} parent=1 // pred_fallthru
      _
    // Predicated region
    $region94: #{model_forward.2} parent=1 // pred_check
      _
    $region95: #{model_forward.2} parent=1 // pred_check_branch
      %117 = sbr.rel (0) target = $region97
    $region96: #{model_forward.2} parent=1 // pred_region
      _
    $region97: #{model_forward.2} parent=1 // pred_fallthru
      _
    // Predicated region
    $region98: #{model_forward.2} parent=1 // pred_check
      _
    $region99: #{model_forward.2} parent=1 // pred_check_branch
      %119 = sbr.rel (0) target = $region101
    $region100: #{model_forward.2} parent=1 // pred_region
      _
    $region101: #{model_forward.2} parent=1 // pred_fallthru
      _
    // Predicated region
    $region102: #{model_forward.2} parent=1 // pred_check
      _
    $region103: #{model_forward.2} parent=1 // pred_check_branch
      %121 = sbr.rel (0) target = $region105
    $region104: #{model_forward.2} parent=1 // pred_region
      _
    $region105: #{model_forward.2} parent=1 // pred_fallthru
      _
    // Predicated region
    $region106: #{model_forward.2} parent=1 // pred_check
      _
    $region107: #{model_forward.2} parent=1 // pred_check_branch
      %123 = sbr.rel (0) target = $region109
    $region108: #{model_forward.2} parent=1 // pred_region
      _
    $region109: #{model_forward.2} parent=1 // pred_fallthru
      _
    // Predicated region
    $region110: #{model_forward.2} parent=1 // pred_check
      _
    $region111: #{model_forward.2} parent=1 // pred_check_branch
      %125 = sbr.rel (0) target = $region113
    $region112: #{model_forward.2} parent=1 // pred_region
      _
    $region113: #{model_forward.2} parent=1 // pred_fallthru
      _
    // Predicated region
    $region114: #{model_forward.2} parent=1 // pred_check
      _
    $region115: #{model_forward.2} parent=1 // pred_check_branch
      %127 = sbr.rel (0) target = $region117
    $region116: #{model_forward.2} parent=1 // pred_region
      _
    $region117: #{model_forward.2} parent=1 // pred_fallthru
      _
    // Predicated region
    $region118: #{model_forward.2} parent=1 // pred_check
      _
    $region119: #{model_forward.2} parent=1 // pred_check_branch
      %129 = sbr.rel (0) target = $region121
    $region120: #{model_forward.2} parent=1 // pred_region
      _
    $region121: #{model_forward.2} parent=1 // pred_fallthru
      _
    %v131 = vld [vmem:[%s1] sm:$0xff]
    %v132 = vld [vmem:[%s1 + $0x8] sm:$0xff]
    %v133 = vld [vmem:[%s1 + $0x10] sm:$0xff]
    %v134 = vld [vmem:[%s1 + $0x18] sm:$0xff]
    %v135 = vlaneseq
    %v136 = vand.u32 %v135, 127
    %137 = vset.pattern.permute.xlu0 0
    %138 = vperm.xlu0 %137, %v131
    %v139 = vpop.permute.xlu0 %138
    %140 = vset.pattern.permute.xlu0 0
    %141 = vperm.xlu0 %140, %v132
    %v142 = vpop.permute.xlu0 %141
    %143 = vset.pattern.permute.xlu0 0
    %144 = vperm.xlu0 %143, %v133
    %v145 = vpop.permute.xlu0 %144
    %146 = vset.pattern.permute.xlu0 0
    %147 = vperm.xlu0 %146, %v134
    %v148 = vpop.permute.xlu0 %147
    %vm149 = vcmp.eq.s32.totalorder %v136, %v139
    %vm150 = vcmp.eq.s32.totalorder %v136, %v142
    %vm151 = vcmp.eq.s32.totalorder %v136, %v145
    %vm152 = vcmp.eq.s32.totalorder %v136, %v148
    %v153 = vsel %vm149, 1.0, 0.0
    %v154 = vsel %vm150, 1.0, 0.0
    %v155 = vsel %vm151, 1.0, 0.0
    %v156 = vsel %vm152, 1.0, 0.0
    %v157 = vpack.c.bf16 %v154, %v153
    %v158 = vpack.c.bf16 %v156, %v155
    %v159 = vld [vmem:[%s5] sm:$0xf]
    %v160 = vld [vmem:[%s5 + $0x4] sm:$0xf]
    %v161 = vld [vmem:[%s5 + $0x8] sm:$0xf]
    %v162 = vld [vmem:[%s5 + $0xc] sm:$0xf]
    %v163 = vld [vmem:[%s5 + $0x10] sm:$0xf]
    %v164 = vld [vmem:[%s5 + $0x14] sm:$0xf]
    %v165 = vld [vmem:[%s5 + $0x18] sm:$0xf]
    %v166 = vld [vmem:[%s5 + $0x1c] sm:$0xf]
    %v167 = vld [vmem:[%s5 + $0x20] sm:$0xf]
    %v168 = vld [vmem:[%s5 + $0x24] sm:$0xf]
    %v169 = vld [vmem:[%s5 + $0x28] sm:$0xf]
    %v170 = vld [vmem:[%s5 + $0x2c] sm:$0xf]
    %v171 = vld [vmem:[%s5 + $0x30] sm:$0xf]
    %v172 = vld [vmem:[%s5 + $0x34] sm:$0xf]
    %v173 = vld [vmem:[%s5 + $0x38] sm:$0xf]
    %v174 = vld [vmem:[%s5 + $0x3c] sm:$0xf]
    %v175 = vld [vmem:[%s7] sm:$0xff]
    %v176 = vld [vmem:[%s7 + $0x8] sm:$0xff]
    %v177 = vld [vmem:[%s7 + $0x10] sm:$0xff]
    %v178 = vld [vmem:[%s7 + $0x18] sm:$0xff]
    %v195 = vunpack.c.l.b16 %v159
    %v196 = vunpack.c.l.b16 %v160
    %v197 = vunpack.c.l.b16 %v161
    %v198 = vunpack.c.l.b16 %v162
    %v199 = vunpack.c.l.b16 %v163
    %v200 = vunpack.c.l.b16 %v164
    %v201 = vunpack.c.l.b16 %v165
    %v202 = vunpack.c.l.b16 %v166
    %v203 = vunpack.c.l.b16 %v167
    %v204 = vunpack.c.l.b16 %v168
    %v205 = vunpack.c.l.b16 %v169
    %v206 = vunpack.c.l.b16 %v170
    %v207 = vunpack.c.l.b16 %v171
    %v208 = vunpack.c.l.b16 %v172
    %v209 = vunpack.c.l.b16 %v173
    %v210 = vunpack.c.l.b16 %v174
    %v211 = vpack.c.b16 %v196, %v195
    %v212 = vpack.c.b16 %v198, %v197
    %v213 = vpack.c.b16 %v200, %v199
    %v214 = vpack.c.b16 %v202, %v201
    %v215 = vpack.c.b16 %v204, %v203
    %v216 = vpack.c.b16 %v206, %v205
    %v217 = vpack.c.b16 %v208, %v207
    %v218 = vpack.c.b16 %v210, %v209
    %227 = vmatprep.subr.bf16.mxu0 0
    %228 = vmatpush1.bf16.msra.mxu0 %v211
    %229 = vmatprep.subr.bf16.mxu0 0
    %230 = vmatpush1.bf16.msra.mxu0 %v212
    %231 = vmatprep.subr.bf16.mxu0 0
    %232 = vmatpush1.bf16.msra.mxu0 %v213
    %233 = vmatprep.subr.bf16.mxu0 0
    %234 = vmatpush1.bf16.msra.mxu0 %v214
    %235 = vmatprep.subr.bf16.mxu0 0
    %236 = vmatpush1.bf16.msra.mxu0 %v215
    %237 = vmatprep.subr.bf16.mxu0 0
    %238 = vmatpush1.bf16.msra.mxu0 %v216
    %239 = vmatprep.subr.bf16.mxu0 0
    %240 = vmatpush1.bf16.msra.mxu0 %v217
    %241 = vmatprep.subr.bf16.mxu0 0
    %242 = vmatpush1.bf16.msra.mxu0 %v218
    %243 = vmatprep.subr.bf16.mxu0 0
    %244 = vmatpush1.bf16.msra.mxu0 0
    %245 = vmatprep.subr.bf16.mxu0 0
    %246 = vmatpush1.bf16.msra.mxu0 0
    %247 = vmatprep.subr.bf16.mxu0 0
    %248 = vmatpush1.bf16.msra.mxu0 0
    %249 = vmatprep.subr.bf16.mxu0 0
    %250 = vmatpush1.bf16.msra.mxu0 0
    %251 = vmatprep.subr.bf16.mxu0 0
    %252 = vmatpush1.bf16.msra.mxu0 0
    %253 = vmatprep.subr.bf16.mxu0 0
    %254 = vmatpush1.bf16.msra.mxu0 0
    %255 = vmatprep.subr.bf16.mxu0 0
    %256 = vmatpush1.bf16.msra.mxu0 0
    %257 = vmatprep.subr.bf16.mxu0 0
    %258 = vmatpush1.bf16.msra.mxu0 0
    %259 = vmatprep.mubr.bf16.mxu0 0
    %260 = vmatmul.mubr.bf16.gmra.mrb[0].mxu0 %v157
    %v261 = vpop.f32.mrb[0].mxu0
    %v262 = vadd.f32 %v175, %v261
    %v263 = vpop.f32.mrb[0].mxu0
    %v264 = vpop.f32.mrb[0].mxu0
    %v265 = vadd.f32 %v176, %v264
    %v266 = vpop.f32.mrb[0].mxu0
    %267 = vmatprep.mubr.bf16.mxu0 0
    %268 = vmatmul.mubr.bf16.gmra.mrb[0].mxu0 %v158
    %v269 = vpop.f32.mrb[0].mxu0
    %v270 = vadd.f32 %v177, %v269
    %v271 = vpop.f32.mrb[0].mxu0
    %v272 = vpop.f32.mrb[0].mxu0
    %v273 = vadd.f32 %v178, %v272
    %v274 = vpop.f32.mrb[0].mxu0
    %275 = vdwg.mxu0
    %v276 = vld [vmem:[%s9] sm:$0x1]
    %v277 = vld [vmem:[%s11] sm:$0x1]
    %vm278 = vcmask 523264
    %v279 = vsel %vm278, %v262, 0.0
    %280 = vadd.xlane.f32.xlu0 %v279
    %v281 = vpop.xlane.xlu0 %280
    %v282 = vsel %vm278, %v265, 0.0
    %283 = vadd.xlane.f32.xlu0 %v282
    %v284 = vpop.xlane.xlu0 %283
    %v285 = vsel %vm278, %v270, 0.0
    %286 = vadd.xlane.f32.xlu0 %v285
    %v287 = vpop.xlane.xlu0 %286
    %v288 = vsel %vm278, %v273, 0.0
    %289 = vadd.xlane.f32.xlu0 %v288
    %v290 = vpop.xlane.xlu0 %289
    %v291 = vrcp.pop 64.0
    %v292 = vmul.f32 %v281, %v291
    %v293 = vmul.f32 %v284, %v291
    %v294 = vmul.f32 %v287, %v291
    %v295 = vmul.f32 %v290, %v291
    %v296 = vsub.f32 %v262, %v292
    %v297 = vsub.f32 %v265, %v293
    %v298 = vsub.f32 %v270, %v294
    %v299 = vsub.f32 %v273, %v295
    %v300 = vmul.f32 %v296, %v296
    %v301 = vmul.f32 %v297, %v297
    %v302 = vmul.f32 %v298, %v298
    %v303 = vmul.f32 %v299, %v299
    %v304 = vsel %vm278, %v300, 0.0
    %305 = vadd.xlane.f32.xlu0 %v304
    %v306 = vpop.xlane.xlu0 %305
    %v307 = vsel %vm278, %v301, 0.0
    %308 = vadd.xlane.f32.xlu0 %v307
    %v309 = vpop.xlane.xlu0 %308
    %v310 = vsel %vm278, %v302, 0.0
    %311 = vadd.xlane.f32.xlu0 %v310
    %v312 = vpop.xlane.xlu0 %311
    %v313 = vsel %vm278, %v303, 0.0
    %314 = vadd.xlane.f32.xlu0 %v313
    %v315 = vpop.xlane.xlu0 %314
    %v316 = vmul.f32 %v306, %v291
    %v317 = vmul.f32 %v309, %v291
    %v318 = vmul.f32 %v312, %v291
    %v319 = vmul.f32 %v315, %v291
    %v320 = vadd.f32 %v316, 1e-12
    %v321 = vadd.f32 %v317, 1e-12
    %v322 = vadd.f32 %v318, 1e-12
    %v323 = vadd.f32 %v319, 1e-12
    %v324 = vrsqrt.pop %v320
    %v325 = vrsqrt.pop %v321
    %v326 = vrsqrt.pop %v322
    %v327 = vrsqrt.pop %v323
    %v328 = vmul.f32 %v296, %v324
    %v329 = vmul.f32 %v297, %v325
    %v330 = vmul.f32 %v298, %v326
    %v331 = vmul.f32 %v299, %v327
    %v333 = vlaneseq
    %v334 = vshrl.u32 %v333, 7
    %v335 = vsub.s32 0, %v334
    %v336 = vrot.slane %v276, %v335
    %v338 = vmul.f32 %v328, %v336
    %v339 = vmul.f32 %v329, %v336
    %v340 = vmul.f32 %v330, %v336
    %v341 = vmul.f32 %v331, %v336
    %v343 = vlaneseq
    %v344 = vshrl.u32 %v343, 7
    %v345 = vsub.s32 0, %v344
    %v346 = vrot.slane %v277, %v345
    %v348 = vadd.f32 %v338, %v346
    %v349 = vadd.f32 %v339, %v346
    %v350 = vadd.f32 %v340, %v346
    %v351 = vadd.f32 %v341, %v346
    %v352 = vpack.c.bf16 %v349, %v348
    %v353 = vpack.c.bf16 %v351, %v350
    %v354 = vld [vmem:[%s13] sm:$0xf]
    %v355 = vld [vmem:[%s13 + $0x4] sm:$0xf]
    %v356 = vld [vmem:[%s13 + $0x8] sm:$0xf]
    %v357 = vld [vmem:[%s13 + $0xc] sm:$0xf]
    %v358 = vld [vmem:[%s13 + $0x10] sm:$0xf]
    %v359 = vld [vmem:[%s13 + $0x14] sm:$0xf]
    %v360 = vld [vmem:[%s13 + $0x18] sm:$0xf]
    %v361 = vld [vmem:[%s13 + $0x1c] sm:$0xf]
    %v362 = vld [vmem:[%s15] sm:$0x1]
    %v364 = vlaneseq
    %v365 = vshrl.u32 %v364, 7
    %v366 = vsub.s32 0, %v365
    %v367 = vrot.slane %v362, %v366
    %v377 = vunpack.c.l.b16 %v354
    %v378 = vunpack.c.l.b16 %v355
    %v379 = vunpack.c.l.b16 %v356
    %v380 = vunpack.c.l.b16 %v357
    %v381 = vunpack.c.l.b16 %v358
    %v382 = vunpack.c.l.b16 %v359
    %v383 = vunpack.c.l.b16 %v360
    %v384 = vunpack.c.l.b16 %v361
    %v385 = vpack.c.b16 %v378, %v377
    %v386 = vpack.c.b16 %v380, %v379
    %v387 = vpack.c.b16 %v382, %v381
    %v388 = vpack.c.b16 %v384, %v383
    %v394 = vsel %vm278, %v352, 0
    %v397 = vsel %vm278, %v353, 0
    %399 = vmatprep.subr.bf16.mxu0 0
    %400 = vmatpush1.bf16.msra.mxu0 %v385
    %401 = vmatprep.subr.bf16.mxu0 0
    %402 = vmatpush1.bf16.msra.mxu0 %v386
    %403 = vmatprep.subr.bf16.mxu0 0
    %404 = vmatpush1.bf16.msra.mxu0 %v387
    %405 = vmatprep.subr.bf16.mxu0 0
    %406 = vmatpush1.bf16.msra.mxu0 %v388
    %407 = vmatprep.subr.bf16.mxu0 0
    %408 = vmatpush1.bf16.msra.mxu0 0
    %409 = vmatprep.subr.bf16.mxu0 0
    %410 = vmatpush1.bf16.msra.mxu0 0
    %411 = vmatprep.subr.bf16.mxu0 0
    %412 = vmatpush1.bf16.msra.mxu0 0
    %413 = vmatprep.subr.bf16.mxu0 0
    %414 = vmatpush1.bf16.msra.mxu0 0
    %415 = vmatprep.subr.bf16.mxu0 0
    %416 = vmatpush1.bf16.msra.mxu0 0
    %417 = vmatprep.subr.bf16.mxu0 0
    %418 = vmatpush1.bf16.msra.mxu0 0
    %419 = vmatprep.subr.bf16.mxu0 0
    %420 = vmatpush1.bf16.msra.mxu0 0
    %421 = vmatprep.subr.bf16.mxu0 0
    %422 = vmatpush1.bf16.msra.mxu0 0
    %423 = vmatprep.subr.bf16.mxu0 0
    %424 = vmatpush1.bf16.msra.mxu0 0
    %425 = vmatprep.subr.bf16.mxu0 0
    %426 = vmatpush1.bf16.msra.mxu0 0
    %427 = vmatprep.subr.bf16.mxu0 0
    %428 = vmatpush1.bf16.msra.mxu0 0
    %429 = vmatprep.subr.bf16.mxu0 0
    %430 = vmatpush1.bf16.msra.mxu0 0
    %431 = vmatprep.mubr.bf16.mxu0 0
    %432 = vmatmul.mubr.bf16.gmra.mrb[0].mxu0 %v394
    %v433 = vpop.f32.mrb[0].mxu0
    %v434 = vadd.f32 %v367, %v433
    %v435 = vpop.f32.mrb[0].mxu0
    %v436 = vpop.f32.mrb[0].mxu0
    %v437 = vadd.f32 %v367, %v436
    %v438 = vpop.f32.mrb[0].mxu0
    %439 = vmatprep.mubr.bf16.mxu0 0
    %440 = vmatmul.mubr.bf16.gmra.mrb[0].mxu0 %v397
    %v441 = vpop.f32.mrb[0].mxu0
    %v442 = vadd.f32 %v367, %v441
    %v443 = vpop.f32.mrb[0].mxu0
    %v444 = vpop.f32.mrb[0].mxu0
    %v445 = vadd.f32 %v367, %v444
    %v446 = vpop.f32.mrb[0].mxu0
    %447 = vdwg.mxu0
    %v448 = vld [vmem:[%s3] sm:$0x3]
    %v449 = vcvt.s32.f32 %v448
    %v450 = vsub.f32 1.0, %v449
    %v451 = vmul.f32 %v450, -10000.0
    %v452 = vpack.c.bf16 %v437, %v434
    %v453 = vpack.c.bf16 %v445, %v442
    %v454 = vld [vmem:[%s17] sm:$0xf]
    %v455 = vld [vmem:[%s17 + $0x4] sm:$0xf]
    %v456 = vld [vmem:[%s17 + $0x8] sm:$0xf]
    %v457 = vld [vmem:[%s17 + $0xc] sm:$0xf]
    %v458 = vld [vmem:[%s19] sm:$0x1]
    %v460 = vlaneseq
    %v461 = vshrl.u32 %v460, 7
    %v462 = vsub.s32 0, %v461
    %v463 = vrot.slane %v458, %v462
    %v469 = vunpack.c.l.b16 %v454
    %v470 = vunpack.c.l.b16 %v455
    %v471 = vunpack.c.l.b16 %v456
    %v472 = vunpack.c.l.b16 %v457
    %v473 = vpack.c.b16 %v470, %v469
    %v474 = vpack.c.b16 %v472, %v471
    %vm477 = vcmask 261120
    %v479 = vsel %vm477, %v452, 0
    %v482 = vsel %vm477, %v453, 0
    %484 = vmatprep.subr.bf16.mxu0 0
    %485 = vmatpush1.bf16.msra.mxu0 %v473
    %486 = vmatprep.subr.bf16.mxu0 0
    %487 = vmatpush1.bf16.msra.mxu0 %v474
    %488 = vmatprep.subr.bf16.mxu0 0
    %489 = vmatpush1.bf16.msra.mxu0 0
    %490 = vmatprep.subr.bf16.mxu0 0
    %491 = vmatpush1.bf16.msra.mxu0 0
    %492 = vmatprep.subr.bf16.mxu0 0
    %493 = vmatpush1.bf16.msra.mxu0 0
    %494 = vmatprep.subr.bf16.mxu0 0
    %495 = vmatpush1.bf16.msra.mxu0 0
    %496 = vmatprep.subr.bf16.mxu0 0
    %497 = vmatpush1.bf16.msra.mxu0 0
    %498 = vmatprep.subr.bf16.mxu0 0
    %499 = vmatpush1.bf16.msra.mxu0 0
    %500 = vmatprep.subr.bf16.mxu0 0
    %501 = vmatpush1.bf16.msra.mxu0 0
    %502 = vmatprep.subr.bf16.mxu0 0
    %503 = vmatpush1.bf16.msra.mxu0 0
    %504 = vmatprep.subr.bf16.mxu0 0
    %505 = vmatpush1.bf16.msra.mxu0 0
    %506 = vmatprep.subr.bf16.mxu0 0
    %507 = vmatpush1.bf16.msra.mxu0 0
    %508 = vmatprep.subr.bf16.mxu0 0
    %509 = vmatpush1.bf16.msra.mxu0 0
    %510 = vmatprep.subr.bf16.mxu0 0
    %511 = vmatpush1.bf16.msra.mxu0 0
    %512 = vmatprep.subr.bf16.mxu0 0
    %513 = vmatpush1.bf16.msra.mxu0 0
    %514 = vmatprep.subr.bf16.mxu0 0
    %515 = vmatpush1.bf16.msra.mxu0 0
    %516 = vmatprep.mubr.bf16.mxu0 0
    %517 = vmatmul.mubr.bf16.gmra.mrb[0].mxu0 %v479
    %v518 = vpop.f32.mrb[0].mxu0
    %v519 = vadd.f32 %v463, %v518
    %v520 = vpop.f32.mrb[0].mxu0
    %v521 = vpop.f32.mrb[0].mxu0
    %v522 = vadd.f32 %v463, %v521
    %v523 = vpop.f32.mrb[0].mxu0
    %524 = vmatprep.mubr.bf16.mxu0 0
    %525 = vmatmul.mubr.bf16.gmra.mrb[0].mxu0 %v482
    %v526 = vpop.f32.mrb[0].mxu0
    %v527 = vadd.f32 %v463, %v526
    %v528 = vpop.f32.mrb[0].mxu0
    %v529 = vpop.f32.mrb[0].mxu0
    %v530 = vadd.f32 %v463, %v529
    %v531 = vpop.f32.mrb[0].mxu0
    %532 = vdwg.mxu0
    %v533 = vpack.c.bf16 %v522, %v519
    %v534 = vpack.c.bf16 %v530, %v527
    %v535 = vld [vmem:[%s21] sm:$0xf]
    %v536 = vld [vmem:[%s21 + $0x4] sm:$0xf]
    %v537 = vld [vmem:[%s21 + $0x8] sm:$0xf]
    %v538 = vld [vmem:[%s21 + $0xc] sm:$0xf]
    %v539 = vld [vmem:[%s23] sm:$0x1]
    %v541 = vlaneseq
    %v542 = vshrl.u32 %v541, 7
    %v543 = vsub.s32 0, %v542
    %v544 = vrot.slane %v539, %v543
    %v550 = vunpack.c.l.b16 %v535
    %v551 = vunpack.c.l.b16 %v536
    %v552 = vunpack.c.l.b16 %v537
    %v553 = vunpack.c.l.b16 %v538
    %v554 = vpack.c.b16 %v551, %v550
    %v555 = vpack.c.b16 %v553, %v552
    %558 = vmatprep.subr.bf16.mxu0 0
    %559 = vmatpush1.bf16.msra.mxu0 %v554
    %560 = vmatprep.subr.bf16.mxu0 0
    %561 = vmatpush1.bf16.msra.mxu0 %v555
    %562 = vmatprep.subr.bf16.mxu0 0
    %563 = vmatpush1.bf16.msra.mxu0 0
    %564 = vmatprep.subr.bf16.mxu0 0
    %565 = vmatpush1.bf16.msra.mxu0 0
    %566 = vmatprep.subr.bf16.mxu0 0
    %567 = vmatpush1.bf16.msra.mxu0 0
    %568 = vmatprep.subr.bf16.mxu0 0
    %569 = vmatpush1.bf16.msra.mxu0 0
    %570 = vmatprep.subr.bf16.mxu0 0
    %571 = vmatpush1.bf16.msra.mxu0 0
    %572 = vmatprep.subr.bf16.mxu0 0
    %573 = vmatpush1.bf16.msra.mxu0 0
    %574 = vmatprep.subr.bf16.mxu0 0
    %575 = vmatpush1.bf16.msra.mxu0 0
    %576 = vmatprep.subr.bf16.mxu0 0
    %577 = vmatpush1.bf16.msra.mxu0 0
    %578 = vmatprep.subr.bf16.mxu0 0
    %579 = vmatpush1.bf16.msra.mxu0 0
    %580 = vmatprep.subr.bf16.mxu0 0
    %581 = vmatpush1.bf16.msra.mxu0 0
    %582 = vmatprep.subr.bf16.mxu0 0
    %583 = vmatpush1.bf16.msra.mxu0 0
    %584 = vmatprep.subr.bf16.mxu0 0
    %585 = vmatpush1.bf16.msra.mxu0 0
    %586 = vmatprep.subr.bf16.mxu0 0
    %587 = vmatpush1.bf16.msra.mxu0 0
    %588 = vmatprep.subr.bf16.mxu0 0
    %589 = vmatpush1.bf16.msra.mxu0 0
    %590 = vmatprep.mubr.bf16.mxu0 0
    %591 = vmatmul.mubr.bf16.gmra.mrb[0].mxu0 %v479
    %v592 = vpop.f32.mrb[0].mxu0
    %v593 = vadd.f32 %v544, %v592
    %v594 = vpop.f32.mrb[0].mxu0
    %v595 = vpop.f32.mrb[0].mxu0
    %v596 = vadd.f32 %v544, %v595
    %v597 = vpop.f32.mrb[0].mxu0
    %598 = vmatprep.mubr.bf16.mxu0 0
    %599 = vmatmul.mubr.bf16.gmra.mrb[0].mxu0 %v482
    %v600 = vpop.f32.mrb[0].mxu0
    %v601 = vadd.f32 %v544, %v600
    %v602 = vpop.f32.mrb[0].mxu0
    %v603 = vpop.f32.mrb[0].mxu0
    %v604 = vadd.f32 %v544, %v603
    %v605 = vpop.f32.mrb[0].mxu0
    %606 = vdwg.mxu0
    %v607 = vpack.c.bf16 %v596, %v593
    %v608 = vpack.c.bf16 %v604, %v601
    %v609 = vld [vmem:[%s25] sm:$0xf]
    %v610 = vld [vmem:[%s25 + $0x4] sm:$0xf]
    %v611 = vld [vmem:[%s25 + $0x8] sm:$0xf]
    %v612 = vld [vmem:[%s25 + $0xc] sm:$0xf]
    %v613 = vld [vmem:[%s27] sm:$0x1]
    %v615 = vlaneseq
    %v616 = vshrl.u32 %v615, 7
    %v617 = vsub.s32 0, %v616
    %v618 = vrot.slane %v613, %v617
    %v624 = vunpack.c.l.b16 %v609
    %v625 = vunpack.c.l.b16 %v610
    %v626 = vunpack.c.l.b16 %v611
    %v627 = vunpack.c.l.b16 %v612
    %v628 = vpack.c.b16 %v625, %v624
    %v629 = vpack.c.b16 %v627, %v626
    %632 = vmatprep.subr.bf16.mxu0 0
    %633 = vmatpush1.bf16.msra.mxu0 %v628
    %634 = vmatprep.subr.bf16.mxu0 0
    %635 = vmatpush1.bf16.msra.mxu0 %v629
    %636 = vmatprep.subr.bf16.mxu0 0
    %637 = vmatpush1.bf16.msra.mxu0 0
    %638 = vmatprep.subr.bf16.mxu0 0
    %639 = vmatpush1.bf16.msra.mxu0 0
    %640 = vmatprep.subr.bf16.mxu0 0
    %641 = vmatpush1.bf16.msra.mxu0 0
    %642 = vmatprep.subr.bf16.mxu0 0
    %643 = vmatpush1.bf16.msra.mxu0 0
    %644 = vmatprep.subr.bf16.mxu0 0
    %645 = vmatpush1.bf16.msra.mxu0 0
    %646 = vmatprep.subr.bf16.mxu0 0
    %647 = vmatpush1.bf16.msra.mxu0 0
    %648 = vmatprep.subr.bf16.mxu0 0
    %649 = vmatpush1.bf16.msra.mxu0 0
    %650 = vmatprep.subr.bf16.mxu0 0
    %651 = vmatpush1.bf16.msra.mxu0 0
    %652 = vmatprep.subr.bf16.mxu0 0
    %653 = vmatpush1.bf16.msra.mxu0 0
    %654 = vmatprep.subr.bf16.mxu0 0
    %655 = vmatpush1.bf16.msra.mxu0 0
    %656 = vmatprep.subr.bf16.mxu0 0
    %657 = vmatpush1.bf16.msra.mxu0 0
    %658 = vmatprep.subr.bf16.mxu0 0
    %659 = vmatpush1.bf16.msra.mxu0 0
    %660 = vmatprep.subr.bf16.mxu0 0
    %661 = vmatpush1.bf16.msra.mxu0 0
    %662 = vmatprep.subr.bf16.mxu0 0
    %663 = vmatpush1.bf16.msra.mxu0 0
    %664 = vmatprep.mubr.bf16.mxu0 0
    %665 = vmatmul.mubr.bf16.gmra.mrb[0].mxu0 %v479
    %v666 = vpop.f32.mrb[0].mxu0
    %v667 = vadd.f32 %v618, %v666
    %v668 = vpop.f32.mrb[0].mxu0
    %v669 = vpop.f32.mrb[0].mxu0
    %v670 = vadd.f32 %v618, %v669
    %v671 = vpop.f32.mrb[0].mxu0
    %672 = vmatprep.mubr.bf16.mxu0 0
    %673 = vmatmul.mubr.bf16.gmra.mrb[0].mxu0 %v482
    %v674 = vpop.f32.mrb[0].mxu0
    %v675 = vadd.f32 %v618, %v674
    %v676 = vpop.f32.mrb[0].mxu0
    %v677 = vpop.f32.mrb[0].mxu0
    %v678 = vadd.f32 %v618, %v677
    %v679 = vpop.f32.mrb[0].mxu0
    %680 = vdwg.mxu0
    %v681 = vpack.c.bf16 %v670, %v667
    %v682 = vpack.c.bf16 %v678, %v675
    %v683 = vlaneseq
    %v684 = vshrl.u32 %v683, 7
    %v685 = vsub.s32 0, %v684
    %v686 = vrot.slane %v451, %v685
    %vm687 = vcmask 130048
    %v689 = vsel %vm687, %v533, 0
    %v692 = vsel %vm687, %v607, 0
    %694 = vmatprep.subr.bf16.mxu0 0
    %695 = vmatpush1.bf16.xpose.msra.mxu0 %v692
    %696 = vmatprep.subr.bf16.mxu0 0
    %697 = vmatpush1.bf16.xpose.msra.mxu0 0
    %698 = vmatprep.subr.bf16.mxu0 0
    %699 = vmatpush1.bf16.xpose.msra.mxu0 0
    %700 = vmatprep.subr.bf16.mxu0 0
    %701 = vmatpush1.bf16.xpose.msra.mxu0 0
    %702 = vmatprep.subr.bf16.mxu0 0
    %703 = vmatpush1.bf16.xpose.msra.mxu0 0
    %704 = vmatprep.subr.bf16.mxu0 0
    %705 = vmatpush1.bf16.xpose.msra.mxu0 0
    %706 = vmatprep.subr.bf16.mxu0 0
    %707 = vmatpush1.bf16.xpose.msra.mxu0 0
    %708 = vmatprep.subr.bf16.mxu0 0
    %709 = vmatpush1.bf16.xpose.msra.mxu0 0
    %710 = vmatprep.subr.bf16.mxu0 0
    %711 = vmatpush1.bf16.xpose.msra.mxu0 0
    %712 = vmatprep.subr.bf16.mxu0 0
    %713 = vmatpush1.bf16.xpose.msra.mxu0 0
    %714 = vmatprep.subr.bf16.mxu0 0
    %715 = vmatpush1.bf16.xpose.msra.mxu0 0
    %716 = vmatprep.subr.bf16.mxu0 0
    %717 = vmatpush1.bf16.xpose.msra.mxu0 0
    %718 = vmatprep.subr.bf16.mxu0 0
    %719 = vmatpush1.bf16.xpose.msra.mxu0 0
    %720 = vmatprep.subr.bf16.mxu0 0
    %721 = vmatpush1.bf16.xpose.msra.mxu0 0
    %722 = vmatprep.subr.bf16.mxu0 0
    %723 = vmatpush1.bf16.xpose.msra.mxu0 0
    %724 = vmatprep.subr.bf16.mxu0 0
    %725 = vmatpush1.bf16.xpose.msra.mxu0 0
    %726 = vmatprep.mubr.bf16.mxu0 0
    %727 = vmatmul.mubr.bf16.gmra.mrb[0].mxu0 %v689
    %v728 = vpop.f32.mrb[0].mxu0
    %v729 = vadd.f32 %v686, %v728
    %v730 = vpop.f32.mrb[0].mxu0
    %v731 = vpop.f32.mrb[0].mxu0
    %v732 = vadd.f32 %v686, %v731
    %v733 = vpop.f32.mrb[0].mxu0
    %734 = vdwg.mxu0
    %v735 = vsel %vm687, %v729, -inf
    %736 = vmax.xlane.f32.xlu0 %v735
    %v737 = vpop.xlane.xlu0 %736
    %v738 = vsel %vm687, %v732, -inf
    %739 = vmax.xlane.f32.xlu0 %v738
    %v740 = vpop.xlane.xlu0 %739
    %v741 = vsub.f32 %v729, %v737
    %v742 = vsub.f32 %v732, %v740
    %v743 = vmul.f32 %v741, 1.442695
    %v744 = vpow.pop %v743
    %v745 = vmul.f32 %v742, 1.442695
    %v746 = vpow.pop %v745
    %v747 = vsel %vm687, %v744, 0.0
    %748 = vadd.xlane.f32.xlu0 %v747
    %v749 = vpop.xlane.xlu0 %748
    %v750 = vsel %vm687, %v746, 0.0
    %751 = vadd.xlane.f32.xlu0 %v750
    %v752 = vpop.xlane.xlu0 %751
    %v753 = vrcp.pop %v749
    %v754 = vrcp.pop %v752
    %v755 = vmul.f32 %v744, %v753
    %v756 = vmul.f32 %v746, %v754
    %v757 = vpack.c.bf16 %v756, %v755
    %v759 = vsel %vm687, %v757, 0
    %761 = vmatprep.subr.bf16.mxu0 0
    %762 = vmatpush1.bf16.msra.mxu0 %v681
    %763 = vmatprep.subr.bf16.mxu0 0
    %764 = vmatpush1.bf16.msra.mxu0 0
    %765 = vmatprep.subr.bf16.mxu0 0
    %766 = vmatpush1.bf16.msra.mxu0 0
    %767 = vmatprep.subr.bf16.mxu0 0
    %768 = vmatpush1.bf16.msra.mxu0 0
    %769 = vmatprep.subr.bf16.mxu0 0
    %770 = vmatpush1.bf16.msra.mxu0 0
    %771 = vmatprep.subr.bf16.mxu0 0
    %772 = vmatpush1.bf16.msra.mxu0 0
    %773 = vmatprep.subr.bf16.mxu0 0
    %774 = vmatpush1.bf16.msra.mxu0 0
    %775 = vmatprep.subr.bf16.mxu0 0
    %776 = vmatpush1.bf16.msra.mxu0 0
    %777 = vmatprep.subr.bf16.mxu0 0
    %778 = vmatpush1.bf16.msra.mxu0 0
    %779 = vmatprep.subr.bf16.mxu0 0
    %780 = vmatpush1.bf16.msra.mxu0 0
    %781 = vmatprep.subr.bf16.mxu0 0
    %782 = vmatpush1.bf16.msra.mxu0 0
    %783 = vmatprep.subr.bf16.mxu0 0
    %784 = vmatpush1.bf16.msra.mxu0 0
    %785 = vmatprep.subr.bf16.mxu0 0
    %786 = vmatpush1.bf16.msra.mxu0 0
    %787 = vmatprep.subr.bf16.mxu0 0
    %788 = vmatpush1.bf16.msra.mxu0 0
    %789 = vmatprep.subr.bf16.mxu0 0
    %790 = vmatpush1.bf16.msra.mxu0 0
    %791 = vmatprep.subr.bf16.mxu0 0
    %792 = vmatpush1.bf16.msra.mxu0 0
    %793 = vmatprep.mubr.bf16.mxu0 0
    %794 = vmatmul.mubr.bf16.gmra.mrb[0].mxu0 %v759
    %v795 = vpop.f32.mrb[0].mxu0
    %v796 = vadd.f32 0.0, %v795
    %v797 = vpop.f32.mrb[0].mxu0
    %v798 = vpop.f32.mrb[0].mxu0
    %v799 = vadd.f32 0.0, %v798
    %v800 = vpop.f32.mrb[0].mxu0
    %801 = vdwg.mxu0
    %v802 = vpack.c.bf16 %v799, %v796
    %803 = vst.msk [vmem:[#allocation2] sm:$0xff] %vm687, %v802
    %v804 = vlaneseq
    %v805 = vshrl.u32 %v804, 7
    %v806 = vsub.s32 1, %v805
    %v807 = vrot.slane %v451, %v806
    %v809 = vsel %vm687, %v534, 0
    %v812 = vsel %vm687, %v608, 0
    %814 = vmatprep.subr.bf16.mxu0 0
    %815 = vmatpush1.bf16.xpose.msra.mxu0 %v812
    %816 = vmatprep.subr.bf16.mxu0 0
    %817 = vmatpush1.bf16.xpose.msra.mxu0 0
    %818 = vmatprep.subr.bf16.mxu0 0
    %819 = vmatpush1.bf16.xpose.msra.mxu0 0
    %820 = vmatprep.subr.bf16.mxu0 0
    %821 = vmatpush1.bf16.xpose.msra.mxu0 0
    %822 = vmatprep.subr.bf16.mxu0 0
    %823 = vmatpush1.bf16.xpose.msra.mxu0 0
    %824 = vmatprep.subr.bf16.mxu0 0
    %825 = vmatpush1.bf16.xpose.msra.mxu0 0
    %826 = vmatprep.subr.bf16.mxu0 0
    %827 = vmatpush1.bf16.xpose.msra.mxu0 0
    %828 = vmatprep.subr.bf16.mxu0 0
    %829 = vmatpush1.bf16.xpose.msra.mxu0 0
    %830 = vmatprep.subr.bf16.mxu0 0
    %831 = vmatpush1.bf16.xpose.msra.mxu0 0
    %832 = vmatprep.subr.bf16.mxu0 0
    %833 = vmatpush1.bf16.xpose.msra.mxu0 0
    %834 = vmatprep.subr.bf16.mxu0 0
    %835 = vmatpush1.bf16.xpose.msra.mxu0 0
    %836 = vmatprep.subr.bf16.mxu0 0
    %837 = vmatpush1.bf16.xpose.msra.mxu0 0
    %838 = vmatprep.subr.bf16.mxu0 0
    %839 = vmatpush1.bf16.xpose.msra.mxu0 0
    %840 = vmatprep.subr.bf16.mxu0 0
    %841 = vmatpush1.bf16.xpose.msra.mxu0 0
    %842 = vmatprep.subr.bf16.mxu0 0
    %843 = vmatpush1.bf16.xpose.msra.mxu0 0
    %844 = vmatprep.subr.bf16.mxu0 0
    %845 = vmatpush1.bf16.xpose.msra.mxu0 0
    %846 = vmatprep.mubr.bf16.mxu0 0
    %847 = vmatmul.mubr.bf16.gmra.mrb[0].mxu0 %v809
    %v848 = vpop.f32.mrb[0].mxu0
    %v849 = vadd.f32 %v807, %v848
    %v850 = vpop.f32.mrb[0].mxu0
    %v851 = vpop.f32.mrb[0].mxu0
    %v852 = vadd.f32 %v807, %v851
    %v853 = vpop.f32.mrb[0].mxu0
    %854 = vdwg.mxu0
    %v855 = vsel %vm687, %v849, -inf
    %856 = vmax.xlane.f32.xlu0 %v855
    %v857 = vpop.xlane.xlu0 %856
    %v858 = vsel %vm687, %v852, -inf
    %859 = vmax.xlane.f32.xlu0 %v858
    %v860 = vpop.xlane.xlu0 %859
    %v861 = vsub.f32 %v849, %v857
    %v862 = vsub.f32 %v852, %v860
    %v863 = vmul.f32 %v861, 1.442695
    %v864 = vpow.pop %v863
    %v865 = vmul.f32 %v862, 1.442695
    %v866 = vpow.pop %v865
    %v867 = vsel %vm687, %v864, 0.0
    %868 = vadd.xlane.f32.xlu0 %v867
    %v869 = vpop.xlane.xlu0 %868
    %v870 = vsel %vm687, %v866, 0.0
    %871 = vadd.xlane.f32.xlu0 %v870
    %v872 = vpop.xlane.xlu0 %871
    %v873 = vrcp.pop %v869
    %v874 = vrcp.pop %v872
    %v875 = vmul.f32 %v864, %v873
    %v876 = vmul.f32 %v866, %v874
    %v877 = vpack.c.bf16 %v876, %v875
    %v879 = vsel %vm687, %v877, 0
    %881 = vmatprep.subr.bf16.mxu0 0
    %882 = vmatpush1.bf16.msra.mxu0 %v682
    %883 = vmatprep.subr.bf16.mxu0 0
    %884 = vmatpush1.bf16.msra.mxu0 0
    %885 = vmatprep.subr.bf16.mxu0 0
    %886 = vmatpush1.bf16.msra.mxu0 0
    %887 = vmatprep.subr.bf16.mxu0 0
    %888 = vmatpush1.bf16.msra.mxu0 0
    %889 = vmatprep.subr.bf16.mxu0 0
    %890 = vmatpush1.bf16.msra.mxu0 0
    %891 = vmatprep.subr.bf16.mxu0 0
    %892 = vmatpush1.bf16.msra.mxu0 0
    %893 = vmatprep.subr.bf16.mxu0 0
    %894 = vmatpush1.bf16.msra.mxu0 0
    %895 = vmatprep.subr.bf16.mxu0 0
    %896 = vmatpush1.bf16.msra.mxu0 0
    %897 = vmatprep.subr.bf16.mxu0 0
    %898 = vmatpush1.bf16.msra.mxu0 0
    %899 = vmatprep.subr.bf16.mxu0 0
    %900 = vmatpush1.bf16.msra.mxu0 0
    %901 = vmatprep.subr.bf16.mxu0 0
    %902 = vmatpush1.bf16.msra.mxu0 0
    %903 = vmatprep.subr.bf16.mxu0 0
    %904 = vmatpush1.bf16.msra.mxu0 0
    %905 = vmatprep.subr.bf16.mxu0 0
    %906 = vmatpush1.bf16.msra.mxu0 0
    %907 = vmatprep.subr.bf16.mxu0 0
    %908 = vmatpush1.bf16.msra.mxu0 0
    %909 = vmatprep.subr.bf16.mxu0 0
    %910 = vmatpush1.bf16.msra.mxu0 0
    %911 = vmatprep.subr.bf16.mxu0 0
    %912 = vmatpush1.bf16.msra.mxu0 0
    %913 = vmatprep.mubr.bf16.mxu0 0
    %914 = vmatmul.mubr.bf16.gmra.mrb[0].mxu0 %v879
    %v915 = vpop.f32.mrb[0].mxu0
    %v916 = vadd.f32 0.0, %v915
    %v917 = vpop.f32.mrb[0].mxu0
    %v918 = vpop.f32.mrb[0].mxu0
    %v919 = vadd.f32 0.0, %v918
    %v920 = vpop.f32.mrb[0].mxu0
    %921 = vdwg.mxu0
    %v922 = vpack.c.bf16 %v919, %v916
    %923 = vst.msk [vmem:[#allocation2 + $0x8] sm:$0xff] %vm687, %v922
    %v924 = vld [vmem:[#allocation2] sm:$0xff]
    %v925 = vld [vmem:[#allocation2 + $0x8] sm:$0xff]
    %v926 = vld [vmem:[%s29] sm:$0xf]
    %v927 = vld [vmem:[%s29 + $0x4] sm:$0xf]
    %s928 = scalar_lea.vmem %s17, 16
    %v929 = vld [vmem:[%s928] sm:$0xf]
    %v930 = vld [vmem:[%s928 + $0x4] sm:$0xf]
    %v931 = vld [vmem:[%s928 + $0x8] sm:$0xf]
    %v932 = vld [vmem:[%s928 + $0xc] sm:$0xf]
    %s933 = scalar_lea.vmem %s19, 1
    %v934 = vld [vmem:[%s933] sm:$0x1]
    %v936 = vlaneseq
    %v937 = vshrl.u32 %v936, 7
    %v938 = vsub.s32 0, %v937
    %v939 = vrot.slane %v934, %v938
    %v945 = vunpack.c.l.b16 %v929
    %v946 = vunpack.c.l.b16 %v930
    %v947 = vunpack.c.l.b16 %v931
    %v948 = vunpack.c.l.b16 %v932
    %v949 = vpack.c.b16 %v946, %v945
    %v950 = vpack.c.b16 %v948, %v947
    %953 = vmatprep.subr.bf16.mxu0 0
    %954 = vmatpush1.bf16.msra.mxu0 %v949
    %955 = vmatprep.subr.bf16.mxu0 0
    %956 = vmatpush1.bf16.msra.mxu0 %v950
    %957 = vmatprep.subr.bf16.mxu0 0
    %958 = vmatpush1.bf16.msra.mxu0 0
    %959 = vmatprep.subr.bf16.mxu0 0
    %960 = vmatpush1.bf16.msra.mxu0 0
    %961 = vmatprep.subr.bf16.mxu0 0
    %962 = vmatpush1.bf16.msra.mxu0 0
    %963 = vmatprep.subr.bf16.mxu0 0
    %964 = vmatpush1.bf16.msra.mxu0 0
    %965 = vmatprep.subr.bf16.mxu0 0
    %966 = vmatpush1.bf16.msra.mxu0 0
    %967 = vmatprep.subr.bf16.mxu0 0
    %968 = vmatpush1.bf16.msra.mxu0 0
    %969 = vmatprep.subr.bf16.mxu0 0
    %970 = vmatpush1.bf16.msra.mxu0 0
    %971 = vmatprep.subr.bf16.mxu0 0
    %972 = vmatpush1.bf16.msra.mxu0 0
    %973 = vmatprep.subr.bf16.mxu0 0
    %974 = vmatpush1.bf16.msra.mxu0 0
    %975 = vmatprep.subr.bf16.mxu0 0
    %976 = vmatpush1.bf16.msra.mxu0 0
    %977 = vmatprep.subr.bf16.mxu0 0
    %978 = vmatpush1.bf16.msra.mxu0 0
    %979 = vmatprep.subr.bf16.mxu0 0
    %980 = vmatpush1.bf16.msra.mxu0 0
    %981 = vmatprep.subr.bf16.mxu0 0
    %982 = vmatpush1.bf16.msra.mxu0 0
    %983 = vmatprep.subr.bf16.mxu0 0
    %984 = vmatpush1.bf16.msra.mxu0 0
    %985 = vmatprep.mubr.bf16.mxu0 0
    %986 = vmatmul.mubr.bf16.gmra.mrb[0].mxu0 %v479
    %v987 = vpop.f32.mrb[0].mxu0
    %v988 = vadd.f32 %v939, %v987
    %v989 = vpop.f32.mrb[0].mxu0
    %v990 = vpop.f32.mrb[0].mxu0
    %v991 = vadd.f32 %v939, %v990
    %v992 = vpop.f32.mrb[0].mxu0
    %993 = vmatprep.mubr.bf16.mxu0 0
    %994 = vmatmul.mubr.bf16.gmra.mrb[0].mxu0 %v482
    %v995 = vpop.f32.mrb[0].mxu0
    %v996 = vadd.f32 %v939, %v995
    %v997 = vpop.f32.mrb[0].mxu0
    %v998 = vpop.f32.mrb[0].mxu0
    %v999 = vadd.f32 %v939, %v998
    %v1000 = vpop.f32.mrb[0].mxu0
    %1001 = vdwg.mxu0
    %v1002 = vpack.c.bf16 %v991, %v988
    %v1003 = vpack.c.bf16 %v999, %v996
    %s1004 = scalar_lea.vmem %s21, 16
    %v1005 = vld [vmem:[%s1004] sm:$0xf]
    %v1006 = vld [vmem:[%s1004 + $0x4] sm:$0xf]
    %v1007 = vld [vmem:[%s1004 + $0x8] sm:$0xf]
    %v1008 = vld [vmem:[%s1004 + $0xc] sm:$0xf]
    %s1009 = scalar_lea.vmem %s23, 1
    %v1010 = vld [vmem:[%s1009] sm:$0x1]
    %v1012 = vlaneseq
    %v1013 = vshrl.u32 %v1012, 7
    %v1014 = vsub.s32 0, %v1013
    %v1015 = vrot.slane %v1010, %v1014
    %v1021 = vunpack.c.l.b16 %v1005
    %v1022 = vunpack.c.l.b16 %v1006
    %v1023 = vunpack.c.l.b16 %v1007
    %v1024 = vunpack.c.l.b16 %v1008
    %v1025 = vpack.c.b16 %v1022, %v1021
    %v1026 = vpack.c.b16 %v1024, %v1023
    %1029 = vmatprep.subr.bf16.mxu0 0
    %1030 = vmatpush1.bf16.msra.mxu0 %v1025
    %1031 = vmatprep.subr.bf16.mxu0 0
    %1032 = vmatpush1.bf16.msra.mxu0 %v1026
    %1033 = vmatprep.subr.bf16.mxu0 0
    %1034 = vmatpush1.bf16.msra.mxu0 0
    %1035 = vmatprep.subr.bf16.mxu0 0
    %1036 = vmatpush1.bf16.msra.mxu0 0
    %1037 = vmatprep.subr.bf16.mxu0 0
    %1038 = vmatpush1.bf16.msra.mxu0 0
    %1039 = vmatprep.subr.bf16.mxu0 0
    %1040 = vmatpush1.bf16.msra.mxu0 0
    %1041 = vmatprep.subr.bf16.mxu0 0
    %1042 = vmatpush1.bf16.msra.mxu0 0
    %1043 = vmatprep.subr.bf16.mxu0 0
    %1044 = vmatpush1.bf16.msra.mxu0 0
    %1045 = vmatprep.subr.bf16.mxu0 0
    %1046 = vmatpush1.bf16.msra.mxu0 0
    %1047 = vmatprep.subr.bf16.mxu0 0
    %1048 = vmatpush1.bf16.msra.mxu0 0
    %1049 = vmatprep.subr.bf16.mxu0 0
    %1050 = vmatpush1.bf16.msra.mxu0 0
    %1051 = vmatprep.subr.bf16.mxu0 0
    %1052 = vmatpush1.bf16.msra.mxu0 0
    %1053 = vmatprep.subr.bf16.mxu0 0
    %1054 = vmatpush1.bf16.msra.mxu0 0
    %1055 = vmatprep.subr.bf16.mxu0 0
    %1056 = vmatpush1.bf16.msra.mxu0 0
    %1057 = vmatprep.subr.bf16.mxu0 0
    %1058 = vmatpush1.bf16.msra.mxu0 0
    %1059 = vmatprep.subr.bf16.mxu0 0
    %1060 = vmatpush1.bf16.msra.mxu0 0
    %1061 = vmatprep.mubr.bf16.mxu0 0
    %1062 = vmatmul.mubr.bf16.gmra.mrb[0].mxu0 %v479
    %v1063 = vpop.f32.mrb[0].mxu0
    %v1064 = vadd.f32 %v1015, %v1063
    %v1065 = vpop.f32.mrb[0].mxu0
    %v1066 = vpop.f32.mrb[0].mxu0
    %v1067 = vadd.f32 %v1015, %v1066
    %v1068 = vpop.f32.mrb[0].mxu0
    %1069 = vmatprep.mubr.bf16.mxu0 0
    %1070 = vmatmul.mubr.bf16.gmra.mrb[0].mxu0 %v482
    %v1071 = vpop.f32.mrb[0].mxu0
    %v1072 = vadd.f32 %v1015, %v1071
    %v1073 = vpop.f32.mrb[0].mxu0
    %v1074 = vpop.f32.mrb[0].mxu0
    %v1075 = vadd.f32 %v1015, %v1074
    %v1076 = vpop.f32.mrb[0].mxu0
    %1077 = vdwg.mxu0
    %v1078 = vpack.c.bf16 %v1067, %v1064
    %v1079 = vpack.c.bf16 %v1075, %v1072
    %s1080 = scalar_lea.vmem %s25, 16
    %v1081 = vld [vmem:[%s1080] sm:$0xf]
    %v1082 = vld [vmem:[%s1080 + $0x4] sm:$0xf]
    %v1083 = vld [vmem:[%s1080 + $0x8] sm:$0xf]
    %v1084 = vld [vmem:[%s1080 + $0xc] sm:$0xf]
    %s1085 = scalar_lea.vmem %s27, 1
    %v1086 = vld [vmem:[%s1085] sm:$0x1]
    %v1088 = vlaneseq
    %v1089 = vshrl.u32 %v1088, 7
    %v1090 = vsub.s32 0, %v1089
    %v1091 = vrot.slane %v1086, %v1090
    %v1097 = vunpack.c.l.b16 %v1081
    %v1098 = vunpack.c.l.b16 %v1082
    %v1099 = vunpack.c.l.b16 %v1083
    %v1100 = vunpack.c.l.b16 %v1084
    %v1101 = vpack.c.b16 %v1098, %v1097
    %v1102 = vpack.c.b16 %v1100, %v1099
    %1105 = vmatprep.subr.bf16.mxu0 0
    %1106 = vmatpush1.bf16.msra.mxu0 %v1101
    %1107 = vmatprep.subr.bf16.mxu0 0
    %1108 = vmatpush1.bf16.msra.mxu0 %v1102
    %1109 = vmatprep.subr.bf16.mxu0 0
    %1110 = vmatpush1.bf16.msra.mxu0 0
    %1111 = vmatprep.subr.bf16.mxu0 0
    %1112 = vmatpush1.bf16.msra.mxu0 0
    %1113 = vmatprep.subr.bf16.mxu0 0
    %1114 = vmatpush1.bf16.msra.mxu0 0
    %1115 = vmatprep.subr.bf16.mxu0 0
    %1116 = vmatpush1.bf16.msra.mxu0 0
    %1117 = vmatprep.subr.bf16.mxu0 0
    %1118 = vmatpush1.bf16.msra.mxu0 0
    %1119 = vmatprep.subr.bf16.mxu0 0
    %1120 = vmatpush1.bf16.msra.mxu0 0
    %1121 = vmatprep.subr.bf16.mxu0 0
    %1122 = vmatpush1.bf16.msra.mxu0 0
    %1123 = vmatprep.subr.bf16.mxu0 0
    %1124 = vmatpush1.bf16.msra.mxu0 0
    %1125 = vmatprep.subr.bf16.mxu0 0
    %1126 = vmatpush1.bf16.msra.mxu0 0
    %1127 = vmatprep.subr.bf16.mxu0 0
    %1128 = vmatpush1.bf16.msra.mxu0 0
    %1129 = vmatprep.subr.bf16.mxu0 0
    %1130 = vmatpush1.bf16.msra.mxu0 0
    %1131 = vmatprep.subr.bf16.mxu0 0
    %1132 = vmatpush1.bf16.msra.mxu0 0
    %1133 = vmatprep.subr.bf16.mxu0 0
    %1134 = vmatpush1.bf16.msra.mxu0 0
    %1135 = vmatprep.subr.bf16.mxu0 0
    %1136 = vmatpush1.bf16.msra.mxu0 0
    %1137 = vmatprep.mubr.bf16.mxu0 0
    %1138 = vmatmul.mubr.bf16.gmra.mrb[0].mxu0 %v479
    %v1139 = vpop.f32.mrb[0].mxu0
    %v1140 = vadd.f32 %v1091, %v1139
    %v1141 = vpop.f32.mrb[0].mxu0
    %v1142 = vpop.f32.mrb[0].mxu0
    %v1143 = vadd.f32 %v1091, %v1142
    %v1144 = vpop.f32.mrb[0].mxu0
    %1145 = vmatprep.mubr.bf16.mxu0 0
    %1146 = vmatmul.mubr.bf16.gmra.mrb[0].mxu0 %v482
    %v1147 = vpop.f32.mrb[0].mxu0
    %v1148 = vadd.f32 %v1091, %v1147
    %v1149 = vpop.f32.mrb[0].mxu0
    %v1150 = vpop.f32.mrb[0].mxu0
    %v1151 = vadd.f32 %v1091, %v1150
    %v1152 = vpop.f32.mrb[0].mxu0
    %1153 = vdwg.mxu0
    %v1154 = vpack.c.bf16 %v1143, %v1140
    %v1155 = vpack.c.bf16 %v1151, %v1148
    %v1157 = vsel %vm687, %v1002, 0
    %v1160 = vsel %vm687, %v1078, 0
    %1162 = vmatprep.subr.bf16.mxu0 0
    %1163 = vmatpush1.bf16.xpose.msra.mxu0 %v1160
    %1164 = vmatprep.subr.bf16.mxu0 0
    %1165 = vmatpush1.bf16.xpose.msra.mxu0 0
    %1166 = vmatprep.subr.bf16.mxu0 0
    %1167 = vmatpush1.bf16.xpose.msra.mxu0 0
    %1168 = vmatprep.subr.bf16.mxu0 0
    %1169 = vmatpush1.bf16.xpose.msra.mxu0 0
    %1170 = vmatprep.subr.bf16.mxu0 0
    %1171 = vmatpush1.bf16.xpose.msra.mxu0 0
    %1172 = vmatprep.subr.bf16.mxu0 0
    %1173 = vmatpush1.bf16.xpose.msra.mxu0 0
    %1174 = vmatprep.subr.bf16.mxu0 0
    %1175 = vmatpush1.bf16.xpose.msra.mxu0 0
    %1176 = vmatprep.subr.bf16.mxu0 0
    %1177 = vmatpush1.bf16.xpose.msra.mxu0 0
    %1178 = vmatprep.subr.bf16.mxu0 0
    %1179 = vmatpush1.bf16.xpose.msra.mxu0 0
    %1180 = vmatprep.subr.bf16.mxu0 0
    %1181 = vmatpush1.bf16.xpose.msra.mxu0 0
    %1182 = vmatprep.subr.bf16.mxu0 0
    %1183 = vmatpush1.bf16.xpose.msra.mxu0 0
    %1184 = vmatprep.subr.bf16.mxu0 0
    %1185 = vmatpush1.bf16.xpose.msra.mxu0 0
    %1186 = vmatprep.subr.bf16.mxu0 0
    %1187 = vmatpush1.bf16.xpose.msra.mxu0 0
    %1188 = vmatprep.subr.bf16.mxu0 0
    %1189 = vmatpush1.bf16.xpose.msra.mxu0 0
    %1190 = vmatprep.subr.bf16.mxu0 0
    %1191 = vmatpush1.bf16.xpose.msra.mxu0 0
    %1192 = vmatprep.subr.bf16.mxu0 0
    %1193 = vmatpush1.bf16.xpose.msra.mxu0 0
    %1194 = vmatprep.mubr.bf16.mxu0 0
    %1195 = vmatmul.mubr.bf16.gmra.mrb[0].mxu0 %v1157
    %v1196 = vpop.f32.mrb[0].mxu0
    %v1197 = vadd.f32 %v686, %v1196
    %v1198 = vpop.f32.mrb[0].mxu0
    %v1199 = vpop.f32.mrb[0].mxu0
    %v1200 = vadd.f32 %v686, %v1199
    %v1201 = vpop.f32.mrb[0].mxu0
    %1202 = vdwg.mxu0
    %v1203 = vsel %vm687, %v1197, -inf
    %1204 = vmax.xlane.f32.xlu0 %v1203
    %v1205 = vpop.xlane.xlu0 %1204
    %v1206 = vsel %vm687, %v1200, -inf
    %1207 = vmax.xlane.f32.xlu0 %v1206
    %v1208 = vpop.xlane.xlu0 %1207
    %v1209 = vsub.f32 %v1197, %v1205
    %v1210 = vsub.f32 %v1200, %v1208
    %v1211 = vmul.f32 %v1209, 1.442695
    %v1212 = vpow.pop %v1211
    %v1213 = vmul.f32 %v1210, 1.442695
    %v1214 = vpow.pop %v1213
    %v1215 = vsel %vm687, %v1212, 0.0
    %1216 = vadd.xlane.f32.xlu0 %v1215
    %v1217 = vpop.xlane.xlu0 %1216
    %v1218 = vsel %vm687, %v1214, 0.0
    %1219 = vadd.xlane.f32.xlu0 %v1218
    %v1220 = vpop.xlane.xlu0 %1219
    %v1221 = vrcp.pop %v1217
    %v1222 = vrcp.pop %v1220
    %v1223 = vmul.f32 %v1212, %v1221
    %v1224 = vmul.f32 %v1214, %v1222
    %v1225 = vpack.c.bf16 %v1224, %v1223
    %v1227 = vsel %vm687, %v1225, 0
    %1229 = vmatprep.subr.bf16.mxu0 0
    %1230 = vmatpush1.bf16.msra.mxu0 %v1154
    %1231 = vmatprep.subr.bf16.mxu0 0
    %1232 = vmatpush1.bf16.msra.mxu0 0
    %1233 = vmatprep.subr.bf16.mxu0 0
    %1234 = vmatpush1.bf16.msra.mxu0 0
    %1235 = vmatprep.subr.bf16.mxu0 0
    %1236 = vmatpush1.bf16.msra.mxu0 0
    %1237 = vmatprep.subr.bf16.mxu0 0
    %1238 = vmatpush1.bf16.msra.mxu0 0
    %1239 = vmatprep.subr.bf16.mxu0 0
    %1240 = vmatpush1.bf16.msra.mxu0 0
    %1241 = vmatprep.subr.bf16.mxu0 0
    %1242 = vmatpush1.bf16.msra.mxu0 0
    %1243 = vmatprep.subr.bf16.mxu0 0
    %1244 = vmatpush1.bf16.msra.mxu0 0
    %1245 = vmatprep.subr.bf16.mxu0 0
    %1246 = vmatpush1.bf16.msra.mxu0 0
    %1247 = vmatprep.subr.bf16.mxu0 0
    %1248 = vmatpush1.bf16.msra.mxu0 0
    %1249 = vmatprep.subr.bf16.mxu0 0
    %1250 = vmatpush1.bf16.msra.mxu0 0
    %1251 = vmatprep.subr.bf16.mxu0 0
    %1252 = vmatpush1.bf16.msra.mxu0 0
    %1253 = vmatprep.subr.bf16.mxu0 0
    %1254 = vmatpush1.bf16.msra.mxu0 0
    %1255 = vmatprep.subr.bf16.mxu0 0
    %1256 = vmatpush1.bf16.msra.mxu0 0
    %1257 = vmatprep.subr.bf16.mxu0 0
    %1258 = vmatpush1.bf16.msra.mxu0 0
    %1259 = vmatprep.subr.bf16.mxu0 0
    %1260 = vmatpush1.bf16.msra.mxu0 0
    %1261 = vmatprep.mubr.bf16.mxu0 0
    %1262 = vmatmul.mubr.bf16.gmra.mrb[0].mxu0 %v1227
    %v1263 = vpop.f32.mrb[0].mxu0
    %v1264 = vadd.f32 0.0, %v1263
    %v1265 = vpop.f32.mrb[0].mxu0
    %v1266 = vpop.f32.mrb[0].mxu0
    %v1267 = vadd.f32 0.0, %v1266
    %v1268 = vpop.f32.mrb[0].mxu0
    %1269 = vdwg.mxu0
    %v1270 = vpack.c.bf16 %v1267, %v1264
    %1271 = vst.msk [vmem:[#allocation2] sm:$0xff] %vm687, %v1270
    %v1273 = vsel %vm687, %v1003, 0
    %v1276 = vsel %vm687, %v1079, 0
    %1278 = vmatprep.subr.bf16.mxu0 0
    %1279 = vmatpush1.bf16.xpose.msra.mxu0 %v1276
    %1280 = vmatprep.subr.bf16.mxu0 0
    %1281 = vmatpush1.bf16.xpose.msra.mxu0 0
    %1282 = vmatprep.subr.bf16.mxu0 0
    %1283 = vmatpush1.bf16.xpose.msra.mxu0 0
    %1284 = vmatprep.subr.bf16.mxu0 0
    %1285 = vmatpush1.bf16.xpose.msra.mxu0 0
    %1286 = vmatprep.subr.bf16.mxu0 0
    %1287 = vmatpush1.bf16.xpose.msra.mxu0 0
    %1288 = vmatprep.subr.bf16.mxu0 0
    %1289 = vmatpush1.bf16.xpose.msra.mxu0 0
    %1290 = vmatprep.subr.bf16.mxu0 0
    %1291 = vmatpush1.bf16.xpose.msra.mxu0 0
    %1292 = vmatprep.subr.bf16.mxu0 0
    %1293 = vmatpush1.bf16.xpose.msra.mxu0 0
    %1294 = vmatprep.subr.bf16.mxu0 0
    %1295 = vmatpush1.bf16.xpose.msra.mxu0 0
    %1296 = vmatprep.subr.bf16.mxu0 0
    %1297 = vmatpush1.bf16.xpose.msra.mxu0 0
    %1298 = vmatprep.subr.bf16.mxu0 0
    %1299 = vmatpush1.bf16.xpose.msra.mxu0 0
    %1300 = vmatprep.subr.bf16.mxu0 0
    %1301 = vmatpush1.bf16.xpose.msra.mxu0 0
    %1302 = vmatprep.subr.bf16.mxu0 0
    %1303 = vmatpush1.bf16.xpose.msra.mxu0 0
    %1304 = vmatprep.subr.bf16.mxu0 0
    %1305 = vmatpush1.bf16.xpose.msra.mxu0 0
    %1306 = vmatprep.subr.bf16.mxu0 0
    %1307 = vmatpush1.bf16.xpose.msra.mxu0 0
    %1308 = vmatprep.subr.bf16.mxu0 0
    %1309 = vmatpush1.bf16.xpose.msra.mxu0 0
    %1310 = vmatprep.mubr.bf16.mxu0 0
    %1311 = vmatmul.mubr.bf16.gmra.mrb[0].mxu0 %v1273
    %v1312 = vpop.f32.mrb[0].mxu0
    %v1313 = vadd.f32 %v807, %v1312
    %v1314 = vpop.f32.mrb[0].mxu0
    %v1315 = vpop.f32.mrb[0].mxu0
    %v1316 = vadd.f32 %v807, %v1315
    %v1317 = vpop.f32.mrb[0].mxu0
    %1318 = vdwg.mxu0
    %v1319 = vsel %vm687, %v1313, -inf
    %1320 = vmax.xlane.f32.xlu0 %v1319
    %v1321 = vpop.xlane.xlu0 %1320
    %v1322 = vsel %vm687, %v1316, -inf
    %1323 = vmax.xlane.f32.xlu0 %v1322
    %v1324 = vpop.xlane.xlu0 %1323
    %v1325 = vsub.f32 %v1313, %v1321
    %v1326 = vsub.f32 %v1316, %v1324
    %v1327 = vmul.f32 %v1325, 1.442695
    %v1328 = vpow.pop %v1327
    %v1329 = vmul.f32 %v1326, 1.442695
    %v1330 = vpow.pop %v1329
    %v1331 = vsel %vm687, %v1328, 0.0
    %1332 = vadd.xlane.f32.xlu0 %v1331
    %v1333 = vpop.xlane.xlu0 %1332
    %v1334 = vsel %vm687, %v1330, 0.0
    %1335 = vadd.xlane.f32.xlu0 %v1334
    %v1336 = vpop.xlane.xlu0 %1335
    %v1337 = vrcp.pop %v1333
    %v1338 = vrcp.pop %v1336
    %v1339 = vmul.f32 %v1328, %v1337
    %v1340 = vmul.f32 %v1330, %v1338
    %v1341 = vpack.c.bf16 %v1340, %v1339
    %v1343 = vsel %vm687, %v1341, 0
    %1345 = vmatprep.subr.bf16.mxu0 0
    %1346 = vmatpush1.bf16.msra.mxu0 %v1155
    %1347 = vmatprep.subr.bf16.mxu0 0
    %1348 = vmatpush1.bf16.msra.mxu0 0
    %1349 = vmatprep.subr.bf16.mxu0 0
    %1350 = vmatpush1.bf16.msra.mxu0 0
    %1351 = vmatprep.subr.bf16.mxu0 0
    %1352 = vmatpush1.bf16.msra.mxu0 0
    %1353 = vmatprep.subr.bf16.mxu0 0
    %1354 = vmatpush1.bf16.msra.mxu0 0
    %1355 = vmatprep.subr.bf16.mxu0 0
    %1356 = vmatpush1.bf16.msra.mxu0 0
    %1357 = vmatprep.subr.bf16.mxu0 0
    %1358 = vmatpush1.bf16.msra.mxu0 0
    %1359 = vmatprep.subr.bf16.mxu0 0
    %1360 = vmatpush1.bf16.msra.mxu0 0
    %1361 = vmatprep.subr.bf16.mxu0 0
    %1362 = vmatpush1.bf16.msra.mxu0 0
    %1363 = vmatprep.subr.bf16.mxu0 0
    %1364 = vmatpush1.bf16.msra.mxu0 0
    %1365 = vmatprep.subr.bf16.mxu0 0
    %1366 = vmatpush1.bf16.msra.mxu0 0
    %1367 = vmatprep.subr.bf16.mxu0 0
    %1368 = vmatpush1.bf16.msra.mxu0 0
    %1369 = vmatprep.subr.bf16.mxu0 0
    %1370 = vmatpush1.bf16.msra.mxu0 0
    %1371 = vmatprep.subr.bf16.mxu0 0
    %1372 = vmatpush1.bf16.msra.mxu0 0
    %1373 = vmatprep.subr.bf16.mxu0 0
    %1374 = vmatpush1.bf16.msra.mxu0 0
    %1375 = vmatprep.subr.bf16.mxu0 0
    %1376 = vmatpush1.bf16.msra.mxu0 0
    %1377 = vmatprep.mubr.bf16.mxu0 0
    %1378 = vmatmul.mubr.bf16.gmra.mrb[0].mxu0 %v1343
    %v1379 = vpop.f32.mrb[0].mxu0
    %v1380 = vadd.f32 0.0, %v1379
    %v1381 = vpop.f32.mrb[0].mxu0
    %v1382 = vpop.f32.mrb[0].mxu0
    %v1383 = vadd.f32 0.0, %v1382
    %v1384 = vpop.f32.mrb[0].mxu0
    %1385 = vdwg.mxu0
    %v1386 = vpack.c.bf16 %v1383, %v1380
    %1387 = vst.msk [vmem:[#allocation2 + $0x8] sm:$0xff] %vm687, %v1386
    %v1388 = vld [vmem:[#allocation2] sm:$0xff]
    %v1389 = vld [vmem:[#allocation2 + $0x8] sm:$0xff]
    %s1390 = scalar_lea.vmem %s29, 8
    %v1391 = vld [vmem:[%s1390] sm:$0xf]
    %v1392 = vld [vmem:[%s1390 + $0x4] sm:$0xf]
    %v1395 = vunpack.c.l.b16 %v1391
    %v1396 = vunpack.c.l.b16 %v1392
    %v1397 = vpack.c.b16 %v1396, %v1395
    %v1400 = vsel %vm687, %v1388, 0
    %v1403 = vsel %vm687, %v1389, 0
    %1405 = vmatprep.subr.bf16.mxu0 0
    %1406 = vmatpush1.bf16.msra.mxu0 %v1397
    %1407 = vmatprep.subr.bf16.mxu0 0
    %1408 = vmatpush1.bf16.msra.mxu0 0
    %1409 = vmatprep.subr.bf16.mxu0 0
    %1410 = vmatpush1.bf16.msra.mxu0 0
    %1411 = vmatprep.subr.bf16.mxu0 0
    %1412 = vmatpush1.bf16.msra.mxu0 0
    %1413 = vmatprep.subr.bf16.mxu0 0
    %1414 = vmatpush1.bf16.msra.mxu0 0
    %1415 = vmatprep.subr.bf16.mxu0 0
    %1416 = vmatpush1.bf16.msra.mxu0 0
    %1417 = vmatprep.subr.bf16.mxu0 0
    %1418 = vmatpush1.bf16.msra.mxu0 0
    %1419 = vmatprep.subr.bf16.mxu0 0
    %1420 = vmatpush1.bf16.msra.mxu0 0
    %1421 = vmatprep.subr.bf16.mxu0 0
    %1422 = vmatpush1.bf16.msra.mxu0 0
    %1423 = vmatprep.subr.bf16.mxu0 0
    %1424 = vmatpush1.bf16.msra.mxu0 0
    %1425 = vmatprep.subr.bf16.mxu0 0
    %1426 = vmatpush1.bf16.msra.mxu0 0
    %1427 = vmatprep.subr.bf16.mxu0 0
    %1428 = vmatpush1.bf16.msra.mxu0 0
    %1429 = vmatprep.subr.bf16.mxu0 0
    %1430 = vmatpush1.bf16.msra.mxu0 0
    %1431 = vmatprep.subr.bf16.mxu0 0
    %1432 = vmatpush1.bf16.msra.mxu0 0
    %1433 = vmatprep.subr.bf16.mxu0 0
    %1434 = vmatpush1.bf16.msra.mxu0 0
    %1435 = vmatprep.subr.bf16.mxu0 0
    %1436 = vmatpush1.bf16.msra.mxu0 0
    %1437 = vmatprep.mubr.bf16.mxu0 0
    %1438 = vmatmul.mubr.bf16.gmra.mrb[0].mxu0 %v1400
    %v1439 = vpop.f32.mrb[0].mxu0
    %v1440 = vadd.f32 0.0, %v1439
    %v1441 = vpop.f32.mrb[0].mxu0
    %v1442 = vpop.f32.mrb[0].mxu0
    %v1443 = vadd.f32 0.0, %v1442
    %v1444 = vpop.f32.mrb[0].mxu0
    %1445 = vmatprep.mubr.bf16.mxu0 0
    %1446 = vmatmul.mubr.bf16.gmra.mrb[0].mxu0 %v1403
    %v1447 = vpop.f32.mrb[0].mxu0
    %v1448 = vadd.f32 0.0, %v1447
    %v1449 = vpop.f32.mrb[0].mxu0
    %v1450 = vpop.f32.mrb[0].mxu0
    %v1451 = vadd.f32 0.0, %v1450
    %v1452 = vpop.f32.mrb[0].mxu0
    %1453 = vdwg.mxu0
    %v1456 = vunpack.c.l.b16 %v926
    %v1457 = vunpack.c.l.b16 %v927
    %v1458 = vpack.c.b16 %v1457, %v1456
    %v1461 = vsel %vm687, %v924, 0
    %v1464 = vsel %vm687, %v925, 0
    %1466 = vmatprep.subr.bf16.mxu0 0
    %1467 = vmatpush1.bf16.msra.mxu0 %v1458
    %1468 = vmatprep.subr.bf16.mxu0 0
    %1469 = vmatpush1.bf16.msra.mxu0 0
    %1470 = vmatprep.subr.bf16.mxu0 0
    %1471 = vmatpush1.bf16.msra.mxu0 0
    %1472 = vmatprep.subr.bf16.mxu0 0
    %1473 = vmatpush1.bf16.msra.mxu0 0
    %1474 = vmatprep.subr.bf16.mxu0 0
    %1475 = vmatpush1.bf16.msra.mxu0 0
    %1476 = vmatprep.subr.bf16.mxu0 0
    %1477 = vmatpush1.bf16.msra.mxu0 0
    %1478 = vmatprep.subr.bf16.mxu0 0
    %1479 = vmatpush1.bf16.msra.mxu0 0
    %1480 = vmatprep.subr.bf16.mxu0 0
    %1481 = vmatpush1.bf16.msra.mxu0 0
    %1482 = vmatprep.subr.bf16.mxu0 0
    %1483 = vmatpush1.bf16.msra.mxu0 0
    %1484 = vmatprep.subr.bf16.mxu0 0
    %1485 = vmatpush1.bf16.msra.mxu0 0
    %1486 = vmatprep.subr.bf16.mxu0 0
    %1487 = vmatpush1.bf16.msra.mxu0 0
    %1488 = vmatprep.subr.bf16.mxu0 0
    %1489 = vmatpush1.bf16.msra.mxu0 0
    %1490 = vmatprep.subr.bf16.mxu0 0
    %1491 = vmatpush1.bf16.msra.mxu0 0
    %1492 = vmatprep.subr.bf16.mxu0 0
    %1493 = vmatpush1.bf16.msra.mxu0 0
    %1494 = vmatprep.subr.bf16.mxu0 0
    %1495 = vmatpush1.bf16.msra.mxu0 0
    %1496 = vmatprep.subr.bf16.mxu0 0
    %1497 = vmatpush1.bf16.msra.mxu0 0
    %1498 = vmatprep.mubr.bf16.mxu0 0
    %1499 = vmatmul.mubr.bf16.gmra.mrb[0].mxu0 %v1461
    %v1500 = vpop.f32.mrb[0].mxu0
    %v1501 = vadd.f32 %v1440, %v1500
    %v1502 = vpop.f32.mrb[0].mxu0
    %v1503 = vpop.f32.mrb[0].mxu0
    %v1504 = vadd.f32 %v1443, %v1503
    %v1505 = vpop.f32.mrb[0].mxu0
    %1506 = vmatprep.mubr.bf16.mxu0 0
    %1507 = vmatmul.mubr.bf16.gmra.mrb[0].mxu0 %v1464
    %v1508 = vpop.f32.mrb[0].mxu0
    %v1509 = vadd.f32 %v1448, %v1508
    %v1510 = vpop.f32.mrb[0].mxu0
    %v1511 = vpop.f32.mrb[0].mxu0
    %v1512 = vadd.f32 %v1451, %v1511
    %v1513 = vpop.f32.mrb[0].mxu0
    %1514 = vdwg.mxu0
    %v1515 = vld [vmem:[%s31] sm:$0x1]
    %v1517 = vlaneseq
    %v1518 = vshrl.u32 %v1517, 7
    %v1519 = vsub.s32 0, %v1518
    %v1520 = vrot.slane %v1515, %v1519
    %v1522 = vadd.f32 %v1501, %v1520
    %v1523 = vadd.f32 %v1504, %v1520
    %v1524 = vadd.f32 %v1509, %v1520
    %v1525 = vadd.f32 %v1512, %v1520
    %v1526 = vadd.f32 %v434, %v1522
    %v1527 = vadd.f32 %v437, %v1523
    %v1528 = vadd.f32 %v442, %v1524
    %v1529 = vadd.f32 %v445, %v1525
    %v1530 = vld [vmem:[%s33] sm:$0x1]
    %v1531 = vld [vmem:[%s35] sm:$0x1]
    %v1532 = vsel %vm477, %v1526, 0.0
    %1533 = vadd.xlane.f32.xlu0 %v1532
    %v1534 = vpop.xlane.xlu0 %1533
    %v1535 = vsel %vm477, %v1527, 0.0
    %1536 = vadd.xlane.f32.xlu0 %v1535
    %v1537 = vpop.xlane.xlu0 %1536
    %v1538 = vsel %vm477, %v1528, 0.0
    %1539 = vadd.xlane.f32.xlu0 %v1538
    %v1540 = vpop.xlane.xlu0 %1539
    %v1541 = vsel %vm477, %v1529, 0.0
    %1542 = vadd.xlane.f32.xlu0 %v1541
    %v1543 = vpop.xlane.xlu0 %1542
    %v1544 = vrcp.pop 32.0
    %v1545 = vmul.f32 %v1534, %v1544
    %v1546 = vmul.f32 %v1537, %v1544
    %v1547 = vmul.f32 %v1540, %v1544
    %v1548 = vmul.f32 %v1543, %v1544
    %v1549 = vsub.f32 %v1526, %v1545
    %v1550 = vsub.f32 %v1527, %v1546
    %v1551 = vsub.f32 %v1528, %v1547
    %v1552 = vsub.f32 %v1529, %v1548
    %v1553 = vmul.f32 %v1549, %v1549
    %v1554 = vmul.f32 %v1550, %v1550
    %v1555 = vmul.f32 %v1551, %v1551
    %v1556 = vmul.f32 %v1552, %v1552
    %v1557 = vsel %vm477, %v1553, 0.0
    %1558 = vadd.xlane.f32.xlu0 %v1557
    %v1559 = vpop.xlane.xlu0 %1558
    %v1560 = vsel %vm477, %v1554, 0.0
    %1561 = vadd.xlane.f32.xlu0 %v1560
    %v1562 = vpop.xlane.xlu0 %1561
    %v1563 = vsel %vm477, %v1555, 0.0
    %1564 = vadd.xlane.f32.xlu0 %v1563
    %v1565 = vpop.xlane.xlu0 %1564
    %v1566 = vsel %vm477, %v1556, 0.0
    %1567 = vadd.xlane.f32.xlu0 %v1566
    %v1568 = vpop.xlane.xlu0 %1567
    %v1569 = vmul.f32 %v1559, %v1544
    %v1570 = vmul.f32 %v1562, %v1544
    %v1571 = vmul.f32 %v1565, %v1544
    %v1572 = vmul.f32 %v1568, %v1544
    %v1573 = vadd.f32 %v1569, 1e-12
    %v1574 = vadd.f32 %v1570, 1e-12
    %v1575 = vadd.f32 %v1571, 1e-12
    %v1576 = vadd.f32 %v1572, 1e-12
    %v1577 = vrsqrt.pop %v1573
    %v1578 = vrsqrt.pop %v1574
    %v1579 = vrsqrt.pop %v1575
    %v1580 = vrsqrt.pop %v1576
    %v1581 = vmul.f32 %v1549, %v1577
    %v1582 = vmul.f32 %v1550, %v1578
    %v1583 = vmul.f32 %v1551, %v1579
    %v1584 = vmul.f32 %v1552, %v1580
    %v1586 = vlaneseq
    %v1587 = vshrl.u32 %v1586, 7
    %v1588 = vsub.s32 0, %v1587
    %v1589 = vrot.slane %v1530, %v1588
    %v1591 = vmul.f32 %v1581, %v1589
    %v1592 = vmul.f32 %v1582, %v1589
    %v1593 = vmul.f32 %v1583, %v1589
    %v1594 = vmul.f32 %v1584, %v1589
    %v1596 = vlaneseq
    %v1597 = vshrl.u32 %v1596, 7
    %v1598 = vsub.s32 0, %v1597
    %v1599 = vrot.slane %v1531, %v1598
    %v1601 = vadd.f32 %v1591, %v1599
    %v1602 = vadd.f32 %v1592, %v1599
    %v1603 = vadd.f32 %v1593, %v1599
    %v1604 = vadd.f32 %v1594, %v1599
    %v1605 = vpack.c.bf16 %v1602, %v1601
    %v1606 = vpack.c.bf16 %v1604, %v1603
    %v1607 = vld [vmem:[%s37] sm:$0xf]
    %v1608 = vld [vmem:[%s37 + $0x4] sm:$0xf]
    %v1609 = vld [vmem:[%s37 + $0x8] sm:$0xf]
    %v1610 = vld [vmem:[%s37 + $0xc] sm:$0xf]
    %v1611 = vld [vmem:[%s39] sm:$0x1]
    %v1613 = vlaneseq
    %v1614 = vshrl.u32 %v1613, 7
    %v1615 = vsub.s32 0, %v1614
    %v1616 = vrot.slane %v1611, %v1615
    %v1622 = vunpack.c.l.b16 %v1607
    %v1623 = vunpack.c.l.b16 %v1608
    %v1624 = vunpack.c.l.b16 %v1609
    %v1625 = vunpack.c.l.b16 %v1610
    %v1626 = vpack.c.b16 %v1623, %v1622
    %v1627 = vpack.c.b16 %v1625, %v1624
    %v1631 = vsel %vm477, %v1605, 0
    %v1634 = vsel %vm477, %v1606, 0
    %1636 = vmatprep.subr.bf16.mxu0 0
    %1637 = vmatpush1.bf16.msra.mxu0 %v1626
    %1638 = vmatprep.subr.bf16.mxu0 0
    %1639 = vmatpush1.bf16.msra.mxu0 %v1627
    %1640 = vmatprep.subr.bf16.mxu0 0
    %1641 = vmatpush1.bf16.msra.mxu0 0
    %1642 = vmatprep.subr.bf16.mxu0 0
    %1643 = vmatpush1.bf16.msra.mxu0 0
    %1644 = vmatprep.subr.bf16.mxu0 0
    %1645 = vmatpush1.bf16.msra.mxu0 0
    %1646 = vmatprep.subr.bf16.mxu0 0
    %1647 = vmatpush1.bf16.msra.mxu0 0
    %1648 = vmatprep.subr.bf16.mxu0 0
    %1649 = vmatpush1.bf16.msra.mxu0 0
    %1650 = vmatprep.subr.bf16.mxu0 0
    %1651 = vmatpush1.bf16.msra.mxu0 0
    %1652 = vmatprep.subr.bf16.mxu0 0
    %1653 = vmatpush1.bf16.msra.mxu0 0
    %1654 = vmatprep.subr.bf16.mxu0 0
    %1655 = vmatpush1.bf16.msra.mxu0 0
    %1656 = vmatprep.subr.bf16.mxu0 0
    %1657 = vmatpush1.bf16.msra.mxu0 0
    %1658 = vmatprep.subr.bf16.mxu0 0
    %1659 = vmatpush1.bf16.msra.mxu0 0
    %1660 = vmatprep.subr.bf16.mxu0 0
    %1661 = vmatpush1.bf16.msra.mxu0 0
    %1662 = vmatprep.subr.bf16.mxu0 0
    %1663 = vmatpush1.bf16.msra.mxu0 0
    %1664 = vmatprep.subr.bf16.mxu0 0
    %1665 = vmatpush1.bf16.msra.mxu0 0
    %1666 = vmatprep.subr.bf16.mxu0 0
    %1667 = vmatpush1.bf16.msra.mxu0 0
    %1668 = vmatprep.mubr.bf16.mxu0 0
    %1669 = vmatmul.mubr.bf16.gmra.mrb[0].mxu0 %v1631
    %v1670 = vpop.f32.mrb[0].mxu0
    %v1671 = vadd.f32 %v1616, %v1670
    %v1672 = vpop.f32.mrb[0].mxu0
    %v1673 = vpop.f32.mrb[0].mxu0
    %v1674 = vadd.f32 %v1616, %v1673
    %v1675 = vpop.f32.mrb[0].mxu0
    %1676 = vmatprep.mubr.bf16.mxu0 0
    %1677 = vmatmul.mubr.bf16.gmra.mrb[0].mxu0 %v1634
    %v1678 = vpop.f32.mrb[0].mxu0
    %v1679 = vadd.f32 %v1616, %v1678
    %v1680 = vpop.f32.mrb[0].mxu0
    %v1681 = vpop.f32.mrb[0].mxu0
    %v1682 = vadd.f32 %v1616, %v1681
    %v1683 = vpop.f32.mrb[0].mxu0
    %1684 = vdwg.mxu0
    %v1685 = vmul.f32 %v1671, 0.5
    %v1686 = vmul.f32 %v1674, 0.5
    %v1687 = vmul.f32 %v1679, 0.5
    %v1688 = vmul.f32 %v1682, 0.5
    %v1689 = vmul.f32 %v1671, 0.044715
    %v1690 = vmul.f32 %v1674, 0.044715
    %v1691 = vmul.f32 %v1679, 0.044715
    %v1692 = vmul.f32 %v1682, 0.044715
    %v1693 = vmul.f32 %v1689, %v1671
    %v1694 = vmul.f32 %v1690, %v1674
    %v1695 = vmul.f32 %v1691, %v1679
    %v1696 = vmul.f32 %v1692, %v1682
    %v1697 = vmul.f32 %v1693, %v1671
    %v1698 = vmul.f32 %v1694, %v1674
    %v1699 = vmul.f32 %v1695, %v1679
    %v1700 = vmul.f32 %v1696, %v1682
    %v1701 = vadd.f32 %v1671, %v1697
    %v1702 = vadd.f32 %v1674, %v1698
    %v1703 = vadd.f32 %v1679, %v1699
    %v1704 = vadd.f32 %v1682, %v1700
    %v1705 = vmul.f32 %v1701, 0.7978846
    %v1706 = vmul.f32 %v1702, 0.7978846
    %v1707 = vmul.f32 %v1703, 0.7978846
    %v1708 = vmul.f32 %v1704, 0.7978846
    %v1709 = vtanh.pop %v1705
    %v1710 = vtanh.pop %v1706
    %v1711 = vtanh.pop %v1707
    %v1712 = vtanh.pop %v1708
    %v1713 = vadd.f32 %v1709, 1.0
    %v1714 = vadd.f32 %v1710, 1.0
    %v1715 = vadd.f32 %v1711, 1.0
    %v1716 = vadd.f32 %v1712, 1.0
    %v1717 = vmul.f32 %v1685, %v1713
    %v1718 = vmul.f32 %v1686, %v1714
    %v1719 = vmul.f32 %v1687, %v1715
    %v1720 = vmul.f32 %v1688, %v1716
    %v1721 = vpack.c.bf16 %v1718, %v1717
    %v1722 = vpack.c.bf16 %v1720, %v1719
    %v1723 = vld [vmem:[%s41] sm:$0xf]
    %v1724 = vld [vmem:[%s41 + $0x4] sm:$0xf]
    %v1725 = vld [vmem:[%s41 + $0x8] sm:$0xf]
    %v1726 = vld [vmem:[%s41 + $0xc] sm:$0xf]
    %v1727 = vld [vmem:[%s41 + $0x10] sm:$0xf]
    %v1728 = vld [vmem:[%s41 + $0x14] sm:$0xf]
    %v1729 = vld [vmem:[%s41 + $0x18] sm:$0xf]
    %v1730 = vld [vmem:[%s41 + $0x1c] sm:$0xf]
    %v1731 = vld [vmem:[%s43] sm:$0x1]
    %v1733 = vlaneseq
    %v1734 = vshrl.u32 %v1733, 7
    %v1735 = vsub.s32 0, %v1734
    %v1736 = vrot.slane %v1731, %v1735
    %v1746 = vunpack.c.l.b16 %v1723
    %v1747 = vunpack.c.l.b16 %v1724
    %v1748 = vunpack.c.l.b16 %v1725
    %v1749 = vunpack.c.l.b16 %v1726
    %v1750 = vunpack.c.l.b16 %v1727
    %v1751 = vunpack.c.l.b16 %v1728
    %v1752 = vunpack.c.l.b16 %v1729
    %v1753 = vunpack.c.l.b16 %v1730
    %v1754 = vpack.c.b16 %v1747, %v1746
    %v1755 = vpack.c.b16 %v1749, %v1748
    %v1756 = vpack.c.b16 %v1751, %v1750
    %v1757 = vpack.c.b16 %v1753, %v1752
    %v1763 = vsel %vm278, %v1721, 0
    %v1766 = vsel %vm278, %v1722, 0
    %1768 = vmatprep.subr.bf16.mxu0 0
    %1769 = vmatpush1.bf16.msra.mxu0 %v1754
    %1770 = vmatprep.subr.bf16.mxu0 0
    %1771 = vmatpush1.bf16.msra.mxu0 %v1755
    %1772 = vmatprep.subr.bf16.mxu0 0
    %1773 = vmatpush1.bf16.msra.mxu0 %v1756
    %1774 = vmatprep.subr.bf16.mxu0 0
    %1775 = vmatpush1.bf16.msra.mxu0 %v1757
    %1776 = vmatprep.subr.bf16.mxu0 0
    %1777 = vmatpush1.bf16.msra.mxu0 0
    %1778 = vmatprep.subr.bf16.mxu0 0
    %1779 = vmatpush1.bf16.msra.mxu0 0
    %1780 = vmatprep.subr.bf16.mxu0 0
    %1781 = vmatpush1.bf16.msra.mxu0 0
    %1782 = vmatprep.subr.bf16.mxu0 0
    %1783 = vmatpush1.bf16.msra.mxu0 0
    %1784 = vmatprep.subr.bf16.mxu0 0
    %1785 = vmatpush1.bf16.msra.mxu0 0
    %1786 = vmatprep.subr.bf16.mxu0 0
    %1787 = vmatpush1.bf16.msra.mxu0 0
    %1788 = vmatprep.subr.bf16.mxu0 0
    %1789 = vmatpush1.bf16.msra.mxu0 0
    %1790 = vmatprep.subr.bf16.mxu0 0
    %1791 = vmatpush1.bf16.msra.mxu0 0
    %1792 = vmatprep.subr.bf16.mxu0 0
    %1793 = vmatpush1.bf16.msra.mxu0 0
    %1794 = vmatprep.subr.bf16.mxu0 0
    %1795 = vmatpush1.bf16.msra.mxu0 0
    %1796 = vmatprep.subr.bf16.mxu0 0
    %1797 = vmatpush1.bf16.msra.mxu0 0
    %1798 = vmatprep.subr.bf16.mxu0 0
    %1799 = vmatpush1.bf16.msra.mxu0 0
    %1800 = vmatprep.mubr.bf16.mxu0 0
    %1801 = vmatmul.mubr.bf16.gmra.mrb[0].mxu0 %v1763
    %v1802 = vpop.f32.mrb[0].mxu0
    %v1803 = vadd.f32 %v1736, %v1802
    %v1804 = vpop.f32.mrb[0].mxu0
    %v1805 = vpop.f32.mrb[0].mxu0
    %v1806 = vadd.f32 %v1736, %v1805
    %v1807 = vpop.f32.mrb[0].mxu0
    %1808 = vmatprep.mubr.bf16.mxu0 0
    %1809 = vmatmul.mubr.bf16.gmra.mrb[0].mxu0 %v1766
    %v1810 = vpop.f32.mrb[0].mxu0
    %v1811 = vadd.f32 %v1736, %v1810
    %v1812 = vpop.f32.mrb[0].mxu0
    %v1813 = vpop.f32.mrb[0].mxu0
    %v1814 = vadd.f32 %v1736, %v1813
    %v1815 = vpop.f32.mrb[0].mxu0
    %1816 = vdwg.mxu0
    %v1817 = vadd.f32 %v1601, %v1803
    %v1818 = vadd.f32 %v1602, %v1806
    %v1819 = vadd.f32 %v1603, %v1811
    %v1820 = vadd.f32 %v1604, %v1814
    %v1821 = vld [vmem:[%s45] sm:$0x1]
    %v1822 = vld [vmem:[%s47] sm:$0x1]
    %v1823 = vsel %vm477, %v1817, 0.0
    %1824 = vadd.xlane.f32.xlu0 %v1823
    %v1825 = vpop.xlane.xlu0 %1824
    %v1826 = vsel %vm477, %v1818, 0.0
    %1827 = vadd.xlane.f32.xlu0 %v1826
    %v1828 = vpop.xlane.xlu0 %1827
    %v1829 = vsel %vm477, %v1819, 0.0
    %1830 = vadd.xlane.f32.xlu0 %v1829
    %v1831 = vpop.xlane.xlu0 %1830
    %v1832 = vsel %vm477, %v1820, 0.0
    %1833 = vadd.xlane.f32.xlu0 %v1832
    %v1834 = vpop.xlane.xlu0 %1833
    %v1835 = vmul.f32 %v1825, %v1544
    %v1836 = vmul.f32 %v1828, %v1544
    %v1837 = vmul.f32 %v1831, %v1544
    %v1838 = vmul.f32 %v1834, %v1544
    %v1839 = vsub.f32 %v1817, %v1835
    %v1840 = vsub.f32 %v1818, %v1836
    %v1841 = vsub.f32 %v1819, %v1837
    %v1842 = vsub.f32 %v1820, %v1838
    %v1843 = vmul.f32 %v1839, %v1839
    %v1844 = vmul.f32 %v1840, %v1840
    %v1845 = vmul.f32 %v1841, %v1841
    %v1846 = vmul.f32 %v1842, %v1842
    %v1847 = vsel %vm477, %v1843, 0.0
    %1848 = vadd.xlane.f32.xlu0 %v1847
    %v1849 = vpop.xlane.xlu0 %1848
    %v1850 = vsel %vm477, %v1844, 0.0
    %1851 = vadd.xlane.f32.xlu0 %v1850
    %v1852 = vpop.xlane.xlu0 %1851
    %v1853 = vsel %vm477, %v1845, 0.0
    %1854 = vadd.xlane.f32.xlu0 %v1853
    %v1855 = vpop.xlane.xlu0 %1854
    %v1856 = vsel %vm477, %v1846, 0.0
    %1857 = vadd.xlane.f32.xlu0 %v1856
    %v1858 = vpop.xlane.xlu0 %1857
    %v1859 = vmul.f32 %v1849, %v1544
    %v1860 = vmul.f32 %v1852, %v1544
    %v1861 = vmul.f32 %v1855, %v1544
    %v1862 = vmul.f32 %v1858, %v1544
    %v1863 = vadd.f32 %v1859, 1e-12
    %v1864 = vadd.f32 %v1860, 1e-12
    %v1865 = vadd.f32 %v1861, 1e-12
    %v1866 = vadd.f32 %v1862, 1e-12
    %v1867 = vrsqrt.pop %v1863
    %v1868 = vrsqrt.pop %v1864
    %v1869 = vrsqrt.pop %v1865
    %v1870 = vrsqrt.pop %v1866
    %v1871 = vmul.f32 %v1839, %v1867
    %v1872 = vmul.f32 %v1840, %v1868
    %v1873 = vmul.f32 %v1841, %v1869
    %v1874 = vmul.f32 %v1842, %v1870
    %v1876 = vlaneseq
    %v1877 = vshrl.u32 %v1876, 7
    %v1878 = vsub.s32 0, %v1877
    %v1879 = vrot.slane %v1821, %v1878
    %v1881 = vmul.f32 %v1871, %v1879
    %v1882 = vmul.f32 %v1872, %v1879
    %v1883 = vmul.f32 %v1873, %v1879
    %v1884 = vmul.f32 %v1874, %v1879
    %v1886 = vlaneseq
    %v1887 = vshrl.u32 %v1886, 7
    %v1888 = vsub.s32 0, %v1887
    %v1889 = vrot.slane %v1822, %v1888
    %v1891 = vadd.f32 %v1881, %v1889
    %v1892 = vadd.f32 %v1882, %v1889
    %v1893 = vadd.f32 %v1883, %v1889
    %v1894 = vadd.f32 %v1884, %v1889
    %v1895 = vpack.c.bf16 %v1892, %v1891
    %v1896 = vpack.c.bf16 %v1894, %v1893
    %s1897 = scalar_lea.vmem %s17, 32
    %v1898 = vld [vmem:[%s1897] sm:$0xf]
    %v1899 = vld [vmem:[%s1897 + $0x4] sm:$0xf]
    %v1900 = vld [vmem:[%s1897 + $0x8] sm:$0xf]
    %v1901 = vld [vmem:[%s1897 + $0xc] sm:$0xf]
    %s1902 = scalar_lea.vmem %s19, 2
    %v1903 = vld [vmem:[%s1902] sm:$0x1]
    %v1905 = vlaneseq
    %v1906 = vshrl.u32 %v1905, 7
    %v1907 = vsub.s32 0, %v1906
    %v1908 = vrot.slane %v1903, %v1907
    %v1914 = vunpack.c.l.b16 %v1898
    %v1915 = vunpack.c.l.b16 %v1899
    %v1916 = vunpack.c.l.b16 %v1900
    %v1917 = vunpack.c.l.b16 %v1901
    %v1918 = vpack.c.b16 %v1915, %v1914
    %v1919 = vpack.c.b16 %v1917, %v1916
    %v1923 = vsel %vm477, %v1895, 0
    %v1926 = vsel %vm477, %v1896, 0
    %1928 = vmatprep.subr.bf16.mxu0 0
    %1929 = vmatpush1.bf16.msra.mxu0 %v1918
    %1930 = vmatprep.subr.bf16.mxu0 0
    %1931 = vmatpush1.bf16.msra.mxu0 %v1919
    %1932 = vmatprep.subr.bf16.mxu0 0
    %1933 = vmatpush1.bf16.msra.mxu0 0
    %1934 = vmatprep.subr.bf16.mxu0 0
    %1935 = vmatpush1.bf16.msra.mxu0 0
    %1936 = vmatprep.subr.bf16.mxu0 0
    %1937 = vmatpush1.bf16.msra.mxu0 0
    %1938 = vmatprep.subr.bf16.mxu0 0
    %1939 = vmatpush1.bf16.msra.mxu0 0
    %1940 = vmatprep.subr.bf16.mxu0 0
    %1941 = vmatpush1.bf16.msra.mxu0 0
    %1942 = vmatprep.subr.bf16.mxu0 0
    %1943 = vmatpush1.bf16.msra.mxu0 0
    %1944 = vmatprep.subr.bf16.mxu0 0
    %1945 = vmatpush1.bf16.msra.mxu0 0
    %1946 = vmatprep.subr.bf16.mxu0 0
    %1947 = vmatpush1.bf16.msra.mxu0 0
    %1948 = vmatprep.subr.bf16.mxu0 0
    %1949 = vmatpush1.bf16.msra.mxu0 0
    %1950 = vmatprep.subr.bf16.mxu0 0
    %1951 = vmatpush1.bf16.msra.mxu0 0
    %1952 = vmatprep.subr.bf16.mxu0 0
    %1953 = vmatpush1.bf16.msra.mxu0 0
    %1954 = vmatprep.subr.bf16.mxu0 0
    %1955 = vmatpush1.bf16.msra.mxu0 0
    %1956 = vmatprep.subr.bf16.mxu0 0
    %1957 = vmatpush1.bf16.msra.mxu0 0
    %1958 = vmatprep.subr.bf16.mxu0 0
    %1959 = vmatpush1.bf16.msra.mxu0 0
    %1960 = vmatprep.mubr.bf16.mxu0 0
    %1961 = vmatmul.mubr.bf16.gmra.mrb[0].mxu0 %v1923
    %v1962 = vpop.f32.mrb[0].mxu0
    %v1963 = vadd.f32 %v1908, %v1962
    %v1964 = vpop.f32.mrb[0].mxu0
    %v1965 = vpop.f32.mrb[0].mxu0
    %v1966 = vadd.f32 %v1908, %v1965
    %v1967 = vpop.f32.mrb[0].mxu0
    %1968 = vmatprep.mubr.bf16.mxu0 0
    %1969 = vmatmul.mubr.bf16.gmra.mrb[0].mxu0 %v1926
    %v1970 = vpop.f32.mrb[0].mxu0
    %v1971 = vadd.f32 %v1908, %v1970
    %v1972 = vpop.f32.mrb[0].mxu0
    %v1973 = vpop.f32.mrb[0].mxu0
    %v1974 = vadd.f32 %v1908, %v1973
    %v1975 = vpop.f32.mrb[0].mxu0
    %1976 = vdwg.mxu0
    %v1977 = vpack.c.bf16 %v1966, %v1963
    %v1978 = vpack.c.bf16 %v1974, %v1971
    %s1979 = scalar_lea.vmem %s21, 32
    %v1980 = vld [vmem:[%s1979] sm:$0xf]
    %v1981 = vld [vmem:[%s1979 + $0x4] sm:$0xf]
    %v1982 = vld [vmem:[%s1979 + $0x8] sm:$0xf]
    %v1983 = vld [vmem:[%s1979 + $0xc] sm:$0xf]
    %s1984 = scalar_lea.vmem %s23, 2
    %v1985 = vld [vmem:[%s1984] sm:$0x1]
    %v1987 = vlaneseq
    %v1988 = vshrl.u32 %v1987, 7
    %v1989 = vsub.s32 0, %v1988
    %v1990 = vrot.slane %v1985, %v1989
    %v1996 = vunpack.c.l.b16 %v1980
    %v1997 = vunpack.c.l.b16 %v1981
    %v1998 = vunpack.c.l.b16 %v1982
    %v1999 = vunpack.c.l.b16 %v1983
    %v2000 = vpack.c.b16 %v1997, %v1996
    %v2001 = vpack.c.b16 %v1999, %v1998
    %2004 = vmatprep.subr.bf16.mxu0 0
    %2005 = vmatpush1.bf16.msra.mxu0 %v2000
    %2006 = vmatprep.subr.bf16.mxu0 0
    %2007 = vmatpush1.bf16.msra.mxu0 %v2001
    %2008 = vmatprep.subr.bf16.mxu0 0
    %2009 = vmatpush1.bf16.msra.mxu0 0
    %2010 = vmatprep.subr.bf16.mxu0 0
    %2011 = vmatpush1.bf16.msra.mxu0 0
    %2012 = vmatprep.subr.bf16.mxu0 0
    %2013 = vmatpush1.bf16.msra.mxu0 0
    %2014 = vmatprep.subr.bf16.mxu0 0
    %2015 = vmatpush1.bf16.msra.mxu0 0
    %2016 = vmatprep.subr.bf16.mxu0 0
    %2017 = vmatpush1.bf16.msra.mxu0 0
    %2018 = vmatprep.subr.bf16.mxu0 0
    %2019 = vmatpush1.bf16.msra.mxu0 0
    %2020 = vmatprep.subr.bf16.mxu0 0
    %2021 = vmatpush1.bf16.msra.mxu0 0
    %2022 = vmatprep.subr.bf16.mxu0 0
    %2023 = vmatpush1.bf16.msra.mxu0 0
    %2024 = vmatprep.subr.bf16.mxu0 0
    %2025 = vmatpush1.bf16.msra.mxu0 0
    %2026 = vmatprep.subr.bf16.mxu0 0
    %2027 = vmatpush1.bf16.msra.mxu0 0
    %2028 = vmatprep.subr.bf16.mxu0 0
    %2029 = vmatpush1.bf16.msra.mxu0 0
    %2030 = vmatprep.subr.bf16.mxu0 0
    %2031 = vmatpush1.bf16.msra.mxu0 0
    %2032 = vmatprep.subr.bf16.mxu0 0
    %2033 = vmatpush1.bf16.msra.mxu0 0
    %2034 = vmatprep.subr.bf16.mxu0 0
    %2035 = vmatpush1.bf16.msra.mxu0 0
    %2036 = vmatprep.mubr.bf16.mxu0 0
    %2037 = vmatmul.mubr.bf16.gmra.mrb[0].mxu0 %v1923
    %v2038 = vpop.f32.mrb[0].mxu0
    %v2039 = vadd.f32 %v1990, %v2038
    %v2040 = vpop.f32.mrb[0].mxu0
    %v2041 = vpop.f32.mrb[0].mxu0
    %v2042 = vadd.f32 %v1990, %v2041
    %v2043 = vpop.f32.mrb[0].mxu0
    %2044 = vmatprep.mubr.bf16.mxu0 0
    %2045 = vmatmul.mubr.bf16.gmra.mrb[0].mxu0 %v1926
    %v2046 = vpop.f32.mrb[0].mxu0
    %v2047 = vadd.f32 %v1990, %v2046
    %v2048 = vpop.f32.mrb[0].mxu0
    %v2049 = vpop.f32.mrb[0].mxu0
    %v2050 = vadd.f32 %v1990, %v2049
    %v2051 = vpop.f32.mrb[0].mxu0
    %2052 = vdwg.mxu0
    %v2053 = vpack.c.bf16 %v2042, %v2039
    %v2054 = vpack.c.bf16 %v2050, %v2047
    %s2055 = scalar_lea.vmem %s25, 32
    %v2056 = vld [vmem:[%s2055] sm:$0xf]
    %v2057 = vld [vmem:[%s2055 + $0x4] sm:$0xf]
    %v2058 = vld [vmem:[%s2055 + $0x8] sm:$0xf]
    %v2059 = vld [vmem:[%s2055 + $0xc] sm:$0xf]
    %s2060 = scalar_lea.vmem %s27, 2
    %v2061 = vld [vmem:[%s2060] sm:$0x1]
    %v2063 = vlaneseq
    %v2064 = vshrl.u32 %v2063, 7
    %v2065 = vsub.s32 0, %v2064
    %v2066 = vrot.slane %v2061, %v2065
    %v2072 = vunpack.c.l.b16 %v2056
    %v2073 = vunpack.c.l.b16 %v2057
    %v2074 = vunpack.c.l.b16 %v2058
    %v2075 = vunpack.c.l.b16 %v2059
    %v2076 = vpack.c.b16 %v2073, %v2072
    %v2077 = vpack.c.b16 %v2075, %v2074
    %2080 = vmatprep.subr.bf16.mxu0 0
    %2081 = vmatpush1.bf16.msra.mxu0 %v2076
    %2082 = vmatprep.subr.bf16.mxu0 0
    %2083 = vmatpush1.bf16.msra.mxu0 %v2077
    %2084 = vmatprep.subr.bf16.mxu0 0
    %2085 = vmatpush1.bf16.msra.mxu0 0
    %2086 = vmatprep.subr.bf16.mxu0 0
    %2087 = vmatpush1.bf16.msra.mxu0 0
    %2088 = vmatprep.subr.bf16.mxu0 0
    %2089 = vmatpush1.bf16.msra.mxu0 0
    %2090 = vmatprep.subr.bf16.mxu0 0
    %2091 = vmatpush1.bf16.msra.mxu0 0
    %2092 = vmatprep.subr.bf16.mxu0 0
    %2093 = vmatpush1.bf16.msra.mxu0 0
    %2094 = vmatprep.subr.bf16.mxu0 0
    %2095 = vmatpush1.bf16.msra.mxu0 0
    %2096 = vmatprep.subr.bf16.mxu0 0
    %2097 = vmatpush1.bf16.msra.mxu0 0
    %2098 = vmatprep.subr.bf16.mxu0 0
    %2099 = vmatpush1.bf16.msra.mxu0 0
    %2100 = vmatprep.subr.bf16.mxu0 0
    %2101 = vmatpush1.bf16.msra.mxu0 0
    %2102 = vmatprep.subr.bf16.mxu0 0
    %2103 = vmatpush1.bf16.msra.mxu0 0
    %2104 = vmatprep.subr.bf16.mxu0 0
    %2105 = vmatpush1.bf16.msra.mxu0 0
    %2106 = vmatprep.subr.bf16.mxu0 0
    %2107 = vmatpush1.bf16.msra.mxu0 0
    %2108 = vmatprep.subr.bf16.mxu0 0
    %2109 = vmatpush1.bf16.msra.mxu0 0
    %2110 = vmatprep.subr.bf16.mxu0 0
    %2111 = vmatpush1.bf16.msra.mxu0 0
    %2112 = vmatprep.mubr.bf16.mxu0 0
    %2113 = vmatmul.mubr.bf16.gmra.mrb[0].mxu0 %v1923
    %v2114 = vpop.f32.mrb[0].mxu0
    %v2115 = vadd.f32 %v2066, %v2114
    %v2116 = vpop.f32.mrb[0].mxu0
    %v2117 = vpop.f32.mrb[0].mxu0
    %v2118 = vadd.f32 %v2066, %v2117
    %v2119 = vpop.f32.mrb[0].mxu0
    %2120 = vmatprep.mubr.bf16.mxu0 0
    %2121 = vmatmul.mubr.bf16.gmra.mrb[0].mxu0 %v1926
    %v2122 = vpop.f32.mrb[0].mxu0
    %v2123 = vadd.f32 %v2066, %v2122
    %v2124 = vpop.f32.mrb[0].mxu0
    %v2125 = vpop.f32.mrb[0].mxu0
    %v2126 = vadd.f32 %v2066, %v2125
    %v2127 = vpop.f32.mrb[0].mxu0
    %2128 = vdwg.mxu0
    %v2129 = vpack.c.bf16 %v2118, %v2115
    %v2130 = vpack.c.bf16 %v2126, %v2123
    %v2132 = vsel %vm687, %v1977, 0
    %v2135 = vsel %vm687, %v2053, 0
    %2137 = vmatprep.subr.bf16.mxu0 0
    %2138 = vmatpush1.bf16.xpose.msra.mxu0 %v2135
    %2139 = vmatprep.subr.bf16.mxu0 0
    %2140 = vmatpush1.bf16.xpose.msra.mxu0 0
    %2141 = vmatprep.subr.bf16.mxu0 0
    %2142 = vmatpush1.bf16.xpose.msra.mxu0 0
    %2143 = vmatprep.subr.bf16.mxu0 0
    %2144 = vmatpush1.bf16.xpose.msra.mxu0 0
    %2145 = vmatprep.subr.bf16.mxu0 0
    %2146 = vmatpush1.bf16.xpose.msra.mxu0 0
    %2147 = vmatprep.subr.bf16.mxu0 0
    %2148 = vmatpush1.bf16.xpose.msra.mxu0 0
    %2149 = vmatprep.subr.bf16.mxu0 0
    %2150 = vmatpush1.bf16.xpose.msra.mxu0 0
    %2151 = vmatprep.subr.bf16.mxu0 0
    %2152 = vmatpush1.bf16.xpose.msra.mxu0 0
    %2153 = vmatprep.subr.bf16.mxu0 0
    %2154 = vmatpush1.bf16.xpose.msra.mxu0 0
    %2155 = vmatprep.subr.bf16.mxu0 0
    %2156 = vmatpush1.bf16.xpose.msra.mxu0 0
    %2157 = vmatprep.subr.bf16.mxu0 0
    %2158 = vmatpush1.bf16.xpose.msra.mxu0 0
    %2159 = vmatprep.subr.bf16.mxu0 0
    %2160 = vmatpush1.bf16.xpose.msra.mxu0 0
    %2161 = vmatprep.subr.bf16.mxu0 0
    %2162 = vmatpush1.bf16.xpose.msra.mxu0 0
    %2163 = vmatprep.subr.bf16.mxu0 0
    %2164 = vmatpush1.bf16.xpose.msra.mxu0 0
    %2165 = vmatprep.subr.bf16.mxu0 0
    %2166 = vmatpush1.bf16.xpose.msra.mxu0 0
    %2167 = vmatprep.subr.bf16.mxu0 0
    %2168 = vmatpush1.bf16.xpose.msra.mxu0 0
    %2169 = vmatprep.mubr.bf16.mxu0 0
    %2170 = vmatmul.mubr.bf16.gmra.mrb[0].mxu0 %v2132
    %v2171 = vpop.f32.mrb[0].mxu0
    %v2172 = vadd.f32 %v686, %v2171
    %v2173 = vpop.f32.mrb[0].mxu0
    %v2174 = vpop.f32.mrb[0].mxu0
    %v2175 = vadd.f32 %v686, %v2174
    %v2176 = vpop.f32.mrb[0].mxu0
    %2177 = vdwg.mxu0
    %v2178 = vsel %vm687, %v2172, -inf
    %2179 = vmax.xlane.f32.xlu0 %v2178
    %v2180 = vpop.xlane.xlu0 %2179
    %v2181 = vsel %vm687, %v2175, -inf
    %2182 = vmax.xlane.f32.xlu0 %v2181
    %v2183 = vpop.xlane.xlu0 %2182
    %v2184 = vsub.f32 %v2172, %v2180
    %v2185 = vsub.f32 %v2175, %v2183
    %v2186 = vmul.f32 %v2184, 1.442695
    %v2187 = vpow.pop %v2186
    %v2188 = vmul.f32 %v2185, 1.442695
    %v2189 = vpow.pop %v2188
    %v2190 = vsel %vm687, %v2187, 0.0
    %2191 = vadd.xlane.f32.xlu0 %v2190
    %v2192 = vpop.xlane.xlu0 %2191
    %v2193 = vsel %vm687, %v2189, 0.0
    %2194 = vadd.xlane.f32.xlu0 %v2193
    %v2195 = vpop.xlane.xlu0 %2194
    %v2196 = vrcp.pop %v2192
    %v2197 = vrcp.pop %v2195
    %v2198 = vmul.f32 %v2187, %v2196
    %v2199 = vmul.f32 %v2189, %v2197
    %v2200 = vpack.c.bf16 %v2199, %v2198
    %v2202 = vsel %vm687, %v2200, 0
    %2204 = vmatprep.subr.bf16.mxu0 0
    %2205 = vmatpush1.bf16.msra.mxu0 %v2129
    %2206 = vmatprep.subr.bf16.mxu0 0
    %2207 = vmatpush1.bf16.msra.mxu0 0
    %2208 = vmatprep.subr.bf16.mxu0 0
    %2209 = vmatpush1.bf16.msra.mxu0 0
    %2210 = vmatprep.subr.bf16.mxu0 0
    %2211 = vmatpush1.bf16.msra.mxu0 0
    %2212 = vmatprep.subr.bf16.mxu0 0
    %2213 = vmatpush1.bf16.msra.mxu0 0
    %2214 = vmatprep.subr.bf16.mxu0 0
    %2215 = vmatpush1.bf16.msra.mxu0 0
    %2216 = vmatprep.subr.bf16.mxu0 0
    %2217 = vmatpush1.bf16.msra.mxu0 0
    %2218 = vmatprep.subr.bf16.mxu0 0
    %2219 = vmatpush1.bf16.msra.mxu0 0
    %2220 = vmatprep.subr.bf16.mxu0 0
    %2221 = vmatpush1.bf16.msra.mxu0 0
    %2222 = vmatprep.subr.bf16.mxu0 0
    %2223 = vmatpush1.bf16.msra.mxu0 0
    %2224 = vmatprep.subr.bf16.mxu0 0
    %2225 = vmatpush1.bf16.msra.mxu0 0
    %2226 = vmatprep.subr.bf16.mxu0 0
    %2227 = vmatpush1.bf16.msra.mxu0 0
    %2228 = vmatprep.subr.bf16.mxu0 0
    %2229 = vmatpush1.bf16.msra.mxu0 0
    %2230 = vmatprep.subr.bf16.mxu0 0
    %2231 = vmatpush1.bf16.msra.mxu0 0
    %2232 = vmatprep.subr.bf16.mxu0 0
    %2233 = vmatpush1.bf16.msra.mxu0 0
    %2234 = vmatprep.subr.bf16.mxu0 0
    %2235 = vmatpush1.bf16.msra.mxu0 0
    %2236 = vmatprep.mubr.bf16.mxu0 0
    %2237 = vmatmul.mubr.bf16.gmra.mrb[0].mxu0 %v2202
    %v2238 = vpop.f32.mrb[0].mxu0
    %v2239 = vadd.f32 0.0, %v2238
    %v2240 = vpop.f32.mrb[0].mxu0
    %v2241 = vpop.f32.mrb[0].mxu0
    %v2242 = vadd.f32 0.0, %v2241
    %v2243 = vpop.f32.mrb[0].mxu0
    %2244 = vdwg.mxu0
    %v2245 = vpack.c.bf16 %v2242, %v2239
    %2246 = vst.msk [vmem:[#allocation2] sm:$0xff] %vm687, %v2245
    %v2248 = vsel %vm687, %v1978, 0
    %v2251 = vsel %vm687, %v2054, 0
    %2253 = vmatprep.subr.bf16.mxu0 0
    %2254 = vmatpush1.bf16.xpose.msra.mxu0 %v2251
    %2255 = vmatprep.subr.bf16.mxu0 0
    %2256 = vmatpush1.bf16.xpose.msra.mxu0 0
    %2257 = vmatprep.subr.bf16.mxu0 0
    %2258 = vmatpush1.bf16.xpose.msra.mxu0 0
    %2259 = vmatprep.subr.bf16.mxu0 0
    %2260 = vmatpush1.bf16.xpose.msra.mxu0 0
    %2261 = vmatprep.subr.bf16.mxu0 0
    %2262 = vmatpush1.bf16.xpose.msra.mxu0 0
    %2263 = vmatprep.subr.bf16.mxu0 0
    %2264 = vmatpush1.bf16.xpose.msra.mxu0 0
    %2265 = vmatprep.subr.bf16.mxu0 0
    %2266 = vmatpush1.bf16.xpose.msra.mxu0 0
    %2267 = vmatprep.subr.bf16.mxu0 0
    %2268 = vmatpush1.bf16.xpose.msra.mxu0 0
    %2269 = vmatprep.subr.bf16.mxu0 0
    %2270 = vmatpush1.bf16.xpose.msra.mxu0 0
    %2271 = vmatprep.subr.bf16.mxu0 0
    %2272 = vmatpush1.bf16.xpose.msra.mxu0 0
    %2273 = vmatprep.subr.bf16.mxu0 0
    %2274 = vmatpush1.bf16.xpose.msra.mxu0 0
    %2275 = vmatprep.subr.bf16.mxu0 0
    %2276 = vmatpush1.bf16.xpose.msra.mxu0 0
    %2277 = vmatprep.subr.bf16.mxu0 0
    %2278 = vmatpush1.bf16.xpose.msra.mxu0 0
    %2279 = vmatprep.subr.bf16.mxu0 0
    %2280 = vmatpush1.bf16.xpose.msra.mxu0 0
    %2281 = vmatprep.subr.bf16.mxu0 0
    %2282 = vmatpush1.bf16.xpose.msra.mxu0 0
    %2283 = vmatprep.subr.bf16.mxu0 0
    %2284 = vmatpush1.bf16.xpose.msra.mxu0 0
    %2285 = vmatprep.mubr.bf16.mxu0 0
    %2286 = vmatmul.mubr.bf16.gmra.mrb[0].mxu0 %v2248
    %v2287 = vpop.f32.mrb[0].mxu0
    %v2288 = vadd.f32 %v807, %v2287
    %v2289 = vpop.f32.mrb[0].mxu0
    %v2290 = vpop.f32.mrb[0].mxu0
    %v2291 = vadd.f32 %v807, %v2290
    %v2292 = vpop.f32.mrb[0].mxu0
    %2293 = vdwg.mxu0
    %v2294 = vsel %vm687, %v2288, -inf
    %2295 = vmax.xlane.f32.xlu0 %v2294
    %v2296 = vpop.xlane.xlu0 %2295
    %v2297 = vsel %vm687, %v2291, -inf
    %2298 = vmax.xlane.f32.xlu0 %v2297
    %v2299 = vpop.xlane.xlu0 %2298
    %v2300 = vsub.f32 %v2288, %v2296
    %v2301 = vsub.f32 %v2291, %v2299
    %v2302 = vmul.f32 %v2300, 1.442695
    %v2303 = vpow.pop %v2302
    %v2304 = vmul.f32 %v2301, 1.442695
    %v2305 = vpow.pop %v2304
    %v2306 = vsel %vm687, %v2303, 0.0
    %2307 = vadd.xlane.f32.xlu0 %v2306
    %v2308 = vpop.xlane.xlu0 %2307
    %v2309 = vsel %vm687, %v2305, 0.0
    %2310 = vadd.xlane.f32.xlu0 %v2309
    %v2311 = vpop.xlane.xlu0 %2310
    %v2312 = vrcp.pop %v2308
    %v2313 = vrcp.pop %v2311
    %v2314 = vmul.f32 %v2303, %v2312
    %v2315 = vmul.f32 %v2305, %v2313
    %v2316 = vpack.c.bf16 %v2315, %v2314
    %v2318 = vsel %vm687, %v2316, 0
    %2320 = vmatprep.subr.bf16.mxu0 0
    %2321 = vmatpush1.bf16.msra.mxu0 %v2130
    %2322 = vmatprep.subr.bf16.mxu0 0
    %2323 = vmatpush1.bf16.msra.mxu0 0
    %2324 = vmatprep.subr.bf16.mxu0 0
    %2325 = vmatpush1.bf16.msra.mxu0 0
    %2326 = vmatprep.subr.bf16.mxu0 0
    %2327 = vmatpush1.bf16.msra.mxu0 0
    %2328 = vmatprep.subr.bf16.mxu0 0
    %2329 = vmatpush1.bf16.msra.mxu0 0
    %2330 = vmatprep.subr.bf16.mxu0 0
    %2331 = vmatpush1.bf16.msra.mxu0 0
    %2332 = vmatprep.subr.bf16.mxu0 0
    %2333 = vmatpush1.bf16.msra.mxu0 0
    %2334 = vmatprep.subr.bf16.mxu0 0
    %2335 = vmatpush1.bf16.msra.mxu0 0
    %2336 = vmatprep.subr.bf16.mxu0 0
    %2337 = vmatpush1.bf16.msra.mxu0 0
    %2338 = vmatprep.subr.bf16.mxu0 0
    %2339 = vmatpush1.bf16.msra.mxu0 0
    %2340 = vmatprep.subr.bf16.mxu0 0
    %2341 = vmatpush1.bf16.msra.mxu0 0
    %2342 = vmatprep.subr.bf16.mxu0 0
    %2343 = vmatpush1.bf16.msra.mxu0 0
    %2344 = vmatprep.subr.bf16.mxu0 0
    %2345 = vmatpush1.bf16.msra.mxu0 0
    %2346 = vmatprep.subr.bf16.mxu0 0
    %2347 = vmatpush1.bf16.msra.mxu0 0
    %2348 = vmatprep.subr.bf16.mxu0 0
    %2349 = vmatpush1.bf16.msra.mxu0 0
    %2350 = vmatprep.subr.bf16.mxu0 0
    %2351 = vmatpush1.bf16.msra.mxu0 0
    %2352 = vmatprep.mubr.bf16.mxu0 0
    %2353 = vmatmul.mubr.bf16.gmra.mrb[0].mxu0 %v2318
    %v2354 = vpop.f32.mrb[0].mxu0
    %v2355 = vadd.f32 0.0, %v2354
    %v2356 = vpop.f32.mrb[0].mxu0
    %v2357 = vpop.f32.mrb[0].mxu0
    %v2358 = vadd.f32 0.0, %v2357
    %v2359 = vpop.f32.mrb[0].mxu0
    %2360 = vdwg.mxu0
    %v2361 = vpack.c.bf16 %v2358, %v2355
    %2362 = vst.msk [vmem:[#allocation2 + $0x8] sm:$0xff] %vm687, %v2361
    %v2363 = vld [vmem:[#allocation2] sm:$0xff]
    %v2364 = vld [vmem:[#allocation2 + $0x8] sm:$0xff]
    %s2365 = scalar_lea.vmem %s29, 16
    %v2366 = vld [vmem:[%s2365] sm:$0xf]
    %v2367 = vld [vmem:[%s2365 + $0x4] sm:$0xf]
    %s2368 = scalar_lea.vmem %s17, 48
    %v2369 = vld [vmem:[%s2368] sm:$0xf]
    %v2370 = vld [vmem:[%s2368 + $0x4] sm:$0xf]
    %v2371 = vld [vmem:[%s2368 + $0x8] sm:$0xf]
    %v2372 = vld [vmem:[%s2368 + $0xc] sm:$0xf]
    %s2373 = scalar_lea.vmem %s19, 3
    %v2374 = vld [vmem:[%s2373] sm:$0x1]
    %v2376 = vlaneseq
    %v2377 = vshrl.u32 %v2376, 7
    %v2378 = vsub.s32 0, %v2377
    %v2379 = vrot.slane %v2374, %v2378
    %v2385 = vunpack.c.l.b16 %v2369
    %v2386 = vunpack.c.l.b16 %v2370
    %v2387 = vunpack.c.l.b16 %v2371
    %v2388 = vunpack.c.l.b16 %v2372
    %v2389 = vpack.c.b16 %v2386, %v2385
    %v2390 = vpack.c.b16 %v2388, %v2387
    %2393 = vmatprep.subr.bf16.mxu0 0
    %2394 = vmatpush1.bf16.msra.mxu0 %v2389
    %2395 = vmatprep.subr.bf16.mxu0 0
    %2396 = vmatpush1.bf16.msra.mxu0 %v2390
    %2397 = vmatprep.subr.bf16.mxu0 0
    %2398 = vmatpush1.bf16.msra.mxu0 0
    %2399 = vmatprep.subr.bf16.mxu0 0
    %2400 = vmatpush1.bf16.msra.mxu0 0
    %2401 = vmatprep.subr.bf16.mxu0 0
    %2402 = vmatpush1.bf16.msra.mxu0 0
    %2403 = vmatprep.subr.bf16.mxu0 0
    %2404 = vmatpush1.bf16.msra.mxu0 0
    %2405 = vmatprep.subr.bf16.mxu0 0
    %2406 = vmatpush1.bf16.msra.mxu0 0
    %2407 = vmatprep.subr.bf16.mxu0 0
    %2408 = vmatpush1.bf16.msra.mxu0 0
    %2409 = vmatprep.subr.bf16.mxu0 0
    %2410 = vmatpush1.bf16.msra.mxu0 0
    %2411 = vmatprep.subr.bf16.mxu0 0
    %2412 = vmatpush1.bf16.msra.mxu0 0
    %2413 = vmatprep.subr.bf16.mxu0 0
    %2414 = vmatpush1.bf16.msra.mxu0 0
    %2415 = vmatprep.subr.bf16.mxu0 0
    %2416 = vmatpush1.bf16.msra.mxu0 0
    %2417 = vmatprep.subr.bf16.mxu0 0
    %2418 = vmatpush1.bf16.msra.mxu0 0
    %2419 = vmatprep.subr.bf16.mxu0 0
    %2420 = vmatpush1.bf16.msra.mxu0 0
    %2421 = vmatprep.subr.bf16.mxu0 0
    %2422 = vmatpush1.bf16.msra.mxu0 0
    %2423 = vmatprep.subr.bf16.mxu0 0
    %2424 = vmatpush1.bf16.msra.mxu0 0
    %2425 = vmatprep.mubr.bf16.mxu0 0
    %2426 = vmatmul.mubr.bf16.gmra.mrb[0].mxu0 %v1923
    %v2427 = vpop.f32.mrb[0].mxu0
    %v2428 = vadd.f32 %v2379, %v2427
    %v2429 = vpop.f32.mrb[0].mxu0
    %v2430 = vpop.f32.mrb[0].mxu0
    %v2431 = vadd.f32 %v2379, %v2430
    %v2432 = vpop.f32.mrb[0].mxu0
    %2433 = vmatprep.mubr.bf16.mxu0 0
    %2434 = vmatmul.mubr.bf16.gmra.mrb[0].mxu0 %v1926
    %v2435 = vpop.f32.mrb[0].mxu0
    %v2436 = vadd.f32 %v2379, %v2435
    %v2437 = vpop.f32.mrb[0].mxu0
    %v2438 = vpop.f32.mrb[0].mxu0
    %v2439 = vadd.f32 %v2379, %v2438
    %v2440 = vpop.f32.mrb[0].mxu0
    %2441 = vdwg.mxu0
    %v2442 = vpack.c.bf16 %v2431, %v2428
    %v2443 = vpack.c.bf16 %v2439, %v2436
    %s2444 = scalar_lea.vmem %s21, 48
    %v2445 = vld [vmem:[%s2444] sm:$0xf]
    %v2446 = vld [vmem:[%s2444 + $0x4] sm:$0xf]
    %v2447 = vld [vmem:[%s2444 + $0x8] sm:$0xf]
    %v2448 = vld [vmem:[%s2444 + $0xc] sm:$0xf]
    %s2449 = scalar_lea.vmem %s23, 3
    %v2450 = vld [vmem:[%s2449] sm:$0x1]
    %v2452 = vlaneseq
    %v2453 = vshrl.u32 %v2452, 7
    %v2454 = vsub.s32 0, %v2453
    %v2455 = vrot.slane %v2450, %v2454
    %v2461 = vunpack.c.l.b16 %v2445
    %v2462 = vunpack.c.l.b16 %v2446
    %v2463 = vunpack.c.l.b16 %v2447
    %v2464 = vunpack.c.l.b16 %v2448
    %v2465 = vpack.c.b16 %v2462, %v2461
    %v2466 = vpack.c.b16 %v2464, %v2463
    %2469 = vmatprep.subr.bf16.mxu0 0
    %2470 = vmatpush1.bf16.msra.mxu0 %v2465
    %2471 = vmatprep.subr.bf16.mxu0 0
    %2472 = vmatpush1.bf16.msra.mxu0 %v2466
    %2473 = vmatprep.subr.bf16.mxu0 0
    %2474 = vmatpush1.bf16.msra.mxu0 0
    %2475 = vmatprep.subr.bf16.mxu0 0
    %2476 = vmatpush1.bf16.msra.mxu0 0
    %2477 = vmatprep.subr.bf16.mxu0 0
    %2478 = vmatpush1.bf16.msra.mxu0 0
    %2479 = vmatprep.subr.bf16.mxu0 0
    %2480 = vmatpush1.bf16.msra.mxu0 0
    %2481 = vmatprep.subr.bf16.mxu0 0
    %2482 = vmatpush1.bf16.msra.mxu0 0
    %2483 = vmatprep.subr.bf16.mxu0 0
    %2484 = vmatpush1.bf16.msra.mxu0 0
    %2485 = vmatprep.subr.bf16.mxu0 0
    %2486 = vmatpush1.bf16.msra.mxu0 0
    %2487 = vmatprep.subr.bf16.mxu0 0
    %2488 = vmatpush1.bf16.msra.mxu0 0
    %2489 = vmatprep.subr.bf16.mxu0 0
    %2490 = vmatpush1.bf16.msra.mxu0 0
    %2491 = vmatprep.subr.bf16.mxu0 0
    %2492 = vmatpush1.bf16.msra.mxu0 0
    %2493 = vmatprep.subr.bf16.mxu0 0
    %2494 = vmatpush1.bf16.msra.mxu0 0
    %2495 = vmatprep.subr.bf16.mxu0 0
    %2496 = vmatpush1.bf16.msra.mxu0 0
    %2497 = vmatprep.subr.bf16.mxu0 0
    %2498 = vmatpush1.bf16.msra.mxu0 0
    %2499 = vmatprep.subr.bf16.mxu0 0
    %2500 = vmatpush1.bf16.msra.mxu0 0
    %2501 = vmatprep.mubr.bf16.mxu0 0
    %2502 = vmatmul.mubr.bf16.gmra.mrb[0].mxu0 %v1923
    %v2503 = vpop.f32.mrb[0].mxu0
    %v2504 = vadd.f32 %v2455, %v2503
    %v2505 = vpop.f32.mrb[0].mxu0
    %v2506 = vpop.f32.mrb[0].mxu0
    %v2507 = vadd.f32 %v2455, %v2506
    %v2508 = vpop.f32.mrb[0].mxu0
    %2509 = vmatprep.mubr.bf16.mxu0 0
    %2510 = vmatmul.mubr.bf16.gmra.mrb[0].mxu0 %v1926
    %v2511 = vpop.f32.mrb[0].mxu0
    %v2512 = vadd.f32 %v2455, %v2511
    %v2513 = vpop.f32.mrb[0].mxu0
    %v2514 = vpop.f32.mrb[0].mxu0
    %v2515 = vadd.f32 %v2455, %v2514
    %v2516 = vpop.f32.mrb[0].mxu0
    %2517 = vdwg.mxu0
    %v2518 = vpack.c.bf16 %v2507, %v2504
    %v2519 = vpack.c.bf16 %v2515, %v2512
    %s2520 = scalar_lea.vmem %s25, 48
    %v2521 = vld [vmem:[%s2520] sm:$0xf]
    %v2522 = vld [vmem:[%s2520 + $0x4] sm:$0xf]
    %v2523 = vld [vmem:[%s2520 + $0x8] sm:$0xf]
    %v2524 = vld [vmem:[%s2520 + $0xc] sm:$0xf]
    %s2525 = scalar_lea.vmem %s27, 3
    %v2526 = vld [vmem:[%s2525] sm:$0x1]
    %v2528 = vlaneseq
    %v2529 = vshrl.u32 %v2528, 7
    %v2530 = vsub.s32 0, %v2529
    %v2531 = vrot.slane %v2526, %v2530
    %v2537 = vunpack.c.l.b16 %v2521
    %v2538 = vunpack.c.l.b16 %v2522
    %v2539 = vunpack.c.l.b16 %v2523
    %v2540 = vunpack.c.l.b16 %v2524
    %v2541 = vpack.c.b16 %v2538, %v2537
    %v2542 = vpack.c.b16 %v2540, %v2539
    %2545 = vmatprep.subr.bf16.mxu0 0
    %2546 = vmatpush1.bf16.msra.mxu0 %v2541
    %2547 = vmatprep.subr.bf16.mxu0 0
    %2548 = vmatpush1.bf16.msra.mxu0 %v2542
    %2549 = vmatprep.subr.bf16.mxu0 0
    %2550 = vmatpush1.bf16.msra.mxu0 0
    %2551 = vmatprep.subr.bf16.mxu0 0
    %2552 = vmatpush1.bf16.msra.mxu0 0
    %2553 = vmatprep.subr.bf16.mxu0 0
    %2554 = vmatpush1.bf16.msra.mxu0 0
    %2555 = vmatprep.subr.bf16.mxu0 0
    %2556 = vmatpush1.bf16.msra.mxu0 0
    %2557 = vmatprep.subr.bf16.mxu0 0
    %2558 = vmatpush1.bf16.msra.mxu0 0
    %2559 = vmatprep.subr.bf16.mxu0 0
    %2560 = vmatpush1.bf16.msra.mxu0 0
    %2561 = vmatprep.subr.bf16.mxu0 0
    %2562 = vmatpush1.bf16.msra.mxu0 0
    %2563 = vmatprep.subr.bf16.mxu0 0
    %2564 = vmatpush1.bf16.msra.mxu0 0
    %2565 = vmatprep.subr.bf16.mxu0 0
    %2566 = vmatpush1.bf16.msra.mxu0 0
    %2567 = vmatprep.subr.bf16.mxu0 0
    %2568 = vmatpush1.bf16.msra.mxu0 0
    %2569 = vmatprep.subr.bf16.mxu0 0
    %2570 = vmatpush1.bf16.msra.mxu0 0
    %2571 = vmatprep.subr.bf16.mxu0 0
    %2572 = vmatpush1.bf16.msra.mxu0 0
    %2573 = vmatprep.subr.bf16.mxu0 0
    %2574 = vmatpush1.bf16.msra.mxu0 0
    %2575 = vmatprep.subr.bf16.mxu0 0
    %2576 = vmatpush1.bf16.msra.mxu0 0
    %2577 = vmatprep.mubr.bf16.mxu0 0
    %2578 = vmatmul.mubr.bf16.gmra.mrb[0].mxu0 %v1923
    %v2579 = vpop.f32.mrb[0].mxu0
    %v2580 = vadd.f32 %v2531, %v2579
    %v2581 = vpop.f32.mrb[0].mxu0
    %v2582 = vpop.f32.mrb[0].mxu0
    %v2583 = vadd.f32 %v2531, %v2582
    %v2584 = vpop.f32.mrb[0].mxu0
    %2585 = vmatprep.mubr.bf16.mxu0 0
    %2586 = vmatmul.mubr.bf16.gmra.mrb[0].mxu0 %v1926
    %v2587 = vpop.f32.mrb[0].mxu0
    %v2588 = vadd.f32 %v2531, %v2587
    %v2589 = vpop.f32.mrb[0].mxu0
    %v2590 = vpop.f32.mrb[0].mxu0
    %v2591 = vadd.f32 %v2531, %v2590
    %v2592 = vpop.f32.mrb[0].mxu0
    %2593 = vdwg.mxu0
    %v2594 = vpack.c.bf16 %v2583, %v2580
    %v2595 = vpack.c.bf16 %v2591, %v2588
    %v2597 = vsel %vm687, %v2442, 0
    %v2600 = vsel %vm687, %v2518, 0
    %2602 = vmatprep.subr.bf16.mxu0 0
    %2603 = vmatpush1.bf16.xpose.msra.mxu0 %v2600
    %2604 = vmatprep.subr.bf16.mxu0 0
    %2605 = vmatpush1.bf16.xpose.msra.mxu0 0
    %2606 = vmatprep.subr.bf16.mxu0 0
    %2607 = vmatpush1.bf16.xpose.msra.mxu0 0
    %2608 = vmatprep.subr.bf16.mxu0 0
    %2609 = vmatpush1.bf16.xpose.msra.mxu0 0
    %2610 = vmatprep.subr.bf16.mxu0 0
    %2611 = vmatpush1.bf16.xpose.msra.mxu0 0
    %2612 = vmatprep.subr.bf16.mxu0 0
    %2613 = vmatpush1.bf16.xpose.msra.mxu0 0
    %2614 = vmatprep.subr.bf16.mxu0 0
    %2615 = vmatpush1.bf16.xpose.msra.mxu0 0
    %2616 = vmatprep.subr.bf16.mxu0 0
    %2617 = vmatpush1.bf16.xpose.msra.mxu0 0
    %2618 = vmatprep.subr.bf16.mxu0 0
    %2619 = vmatpush1.bf16.xpose.msra.mxu0 0
    %2620 = vmatprep.subr.bf16.mxu0 0
    %2621 = vmatpush1.bf16.xpose.msra.mxu0 0
    %2622 = vmatprep.subr.bf16.mxu0 0
    %2623 = vmatpush1.bf16.xpose.msra.mxu0 0
    %2624 = vmatprep.subr.bf16.mxu0 0
    %2625 = vmatpush1.bf16.xpose.msra.mxu0 0
    %2626 = vmatprep.subr.bf16.mxu0 0
    %2627 = vmatpush1.bf16.xpose.msra.mxu0 0
    %2628 = vmatprep.subr.bf16.mxu0 0
    %2629 = vmatpush1.bf16.xpose.msra.mxu0 0
    %2630 = vmatprep.subr.bf16.mxu0 0
    %2631 = vmatpush1.bf16.xpose.msra.mxu0 0
    %2632 = vmatprep.subr.bf16.mxu0 0
    %2633 = vmatpush1.bf16.xpose.msra.mxu0 0
    %2634 = vmatprep.mubr.bf16.mxu0 0
    %2635 = vmatmul.mubr.bf16.gmra.mrb[0].mxu0 %v2597
    %v2636 = vpop.f32.mrb[0].mxu0
    %v2637 = vadd.f32 %v686, %v2636
    %v2638 = vpop.f32.mrb[0].mxu0
    %v2639 = vpop.f32.mrb[0].mxu0
    %v2640 = vadd.f32 %v686, %v2639
    %v2641 = vpop.f32.mrb[0].mxu0
    %2642 = vdwg.mxu0
    %v2643 = vsel %vm687, %v2637, -inf
    %2644 = vmax.xlane.f32.xlu0 %v2643
    %v2645 = vpop.xlane.xlu0 %2644
    %v2646 = vsel %vm687, %v2640, -inf
    %2647 = vmax.xlane.f32.xlu0 %v2646
    %v2648 = vpop.xlane.xlu0 %2647
    %v2649 = vsub.f32 %v2637, %v2645
    %v2650 = vsub.f32 %v2640, %v2648
    %v2651 = vmul.f32 %v2649, 1.442695
    %v2652 = vpow.pop %v2651
    %v2653 = vmul.f32 %v2650, 1.442695
    %v2654 = vpow.pop %v2653
    %v2655 = vsel %vm687, %v2652, 0.0
    %2656 = vadd.xlane.f32.xlu0 %v2655
    %v2657 = vpop.xlane.xlu0 %2656
    %v2658 = vsel %vm687, %v2654, 0.0
    %2659 = vadd.xlane.f32.xlu0 %v2658
    %v2660 = vpop.xlane.xlu0 %2659
    %v2661 = vrcp.pop %v2657
    %v2662 = vrcp.pop %v2660
    %v2663 = vmul.f32 %v2652, %v2661
    %v2664 = vmul.f32 %v2654, %v2662
    %v2665 = vpack.c.bf16 %v2664, %v2663
    %v2667 = vsel %vm687, %v2665, 0
    %2669 = vmatprep.subr.bf16.mxu0 0
    %2670 = vmatpush1.bf16.msra.mxu0 %v2594
    %2671 = vmatprep.subr.bf16.mxu0 0
    %2672 = vmatpush1.bf16.msra.mxu0 0
    %2673 = vmatprep.subr.bf16.mxu0 0
    %2674 = vmatpush1.bf16.msra.mxu0 0
    %2675 = vmatprep.subr.bf16.mxu0 0
    %2676 = vmatpush1.bf16.msra.mxu0 0
    %2677 = vmatprep.subr.bf16.mxu0 0
    %2678 = vmatpush1.bf16.msra.mxu0 0
    %2679 = vmatprep.subr.bf16.mxu0 0
    %2680 = vmatpush1.bf16.msra.mxu0 0
    %2681 = vmatprep.subr.bf16.mxu0 0
    %2682 = vmatpush1.bf16.msra.mxu0 0
    %2683 = vmatprep.subr.bf16.mxu0 0
    %2684 = vmatpush1.bf16.msra.mxu0 0
    %2685 = vmatprep.subr.bf16.mxu0 0
    %2686 = vmatpush1.bf16.msra.mxu0 0
    %2687 = vmatprep.subr.bf16.mxu0 0
    %2688 = vmatpush1.bf16.msra.mxu0 0
    %2689 = vmatprep.subr.bf16.mxu0 0
    %2690 = vmatpush1.bf16.msra.mxu0 0
    %2691 = vmatprep.subr.bf16.mxu0 0
    %2692 = vmatpush1.bf16.msra.mxu0 0
    %2693 = vmatprep.subr.bf16.mxu0 0
    %2694 = vmatpush1.bf16.msra.mxu0 0
    %2695 = vmatprep.subr.bf16.mxu0 0
    %2696 = vmatpush1.bf16.msra.mxu0 0
    %2697 = vmatprep.subr.bf16.mxu0 0
    %2698 = vmatpush1.bf16.msra.mxu0 0
    %2699 = vmatprep.subr.bf16.mxu0 0
    %2700 = vmatpush1.bf16.msra.mxu0 0
    %2701 = vmatprep.mubr.bf16.mxu0 0
    %2702 = vmatmul.mubr.bf16.gmra.mrb[0].mxu0 %v2667
    %v2703 = vpop.f32.mrb[0].mxu0
    %v2704 = vadd.f32 0.0, %v2703
    %v2705 = vpop.f32.mrb[0].mxu0
    %v2706 = vpop.f32.mrb[0].mxu0
    %v2707 = vadd.f32 0.0, %v2706
    %v2708 = vpop.f32.mrb[0].mxu0
    %2709 = vdwg.mxu0
    %v2710 = vpack.c.bf16 %v2707, %v2704
    %2711 = vst.msk [vmem:[#allocation2] sm:$0xff] %vm687, %v2710
    %v2713 = vsel %vm687, %v2443, 0
    %v2716 = vsel %vm687, %v2519, 0
    %2718 = vmatprep.subr.bf16.mxu0 0
    %2719 = vmatpush1.bf16.xpose.msra.mxu0 %v2716
    %2720 = vmatprep.subr.bf16.mxu0 0
    %2721 = vmatpush1.bf16.xpose.msra.mxu0 0
    %2722 = vmatprep.subr.bf16.mxu0 0
    %2723 = vmatpush1.bf16.xpose.msra.mxu0 0
    %2724 = vmatprep.subr.bf16.mxu0 0
    %2725 = vmatpush1.bf16.xpose.msra.mxu0 0
    %2726 = vmatprep.subr.bf16.mxu0 0
    %2727 = vmatpush1.bf16.xpose.msra.mxu0 0
    %2728 = vmatprep.subr.bf16.mxu0 0
    %2729 = vmatpush1.bf16.xpose.msra.mxu0 0
    %2730 = vmatprep.subr.bf16.mxu0 0
    %2731 = vmatpush1.bf16.xpose.msra.mxu0 0
    %2732 = vmatprep.subr.bf16.mxu0 0
    %2733 = vmatpush1.bf16.xpose.msra.mxu0 0
    %2734 = vmatprep.subr.bf16.mxu0 0
    %2735 = vmatpush1.bf16.xpose.msra.mxu0 0
    %2736 = vmatprep.subr.bf16.mxu0 0
    %2737 = vmatpush1.bf16.xpose.msra.mxu0 0
    %2738 = vmatprep.subr.bf16.mxu0 0
    %2739 = vmatpush1.bf16.xpose.msra.mxu0 0
    %2740 = vmatprep.subr.bf16.mxu0 0
    %2741 = vmatpush1.bf16.xpose.msra.mxu0 0
    %2742 = vmatprep.subr.bf16.mxu0 0
    %2743 = vmatpush1.bf16.xpose.msra.mxu0 0
    %2744 = vmatprep.subr.bf16.mxu0 0
    %2745 = vmatpush1.bf16.xpose.msra.mxu0 0
    %2746 = vmatprep.subr.bf16.mxu0 0
    %2747 = vmatpush1.bf16.xpose.msra.mxu0 0
    %2748 = vmatprep.subr.bf16.mxu0 0
    %2749 = vmatpush1.bf16.xpose.msra.mxu0 0
    %2750 = vmatprep.mubr.bf16.mxu0 0
    %2751 = vmatmul.mubr.bf16.gmra.mrb[0].mxu0 %v2713
    %v2752 = vpop.f32.mrb[0].mxu0
    %v2753 = vadd.f32 %v807, %v2752
    %v2754 = vpop.f32.mrb[0].mxu0
    %v2755 = vpop.f32.mrb[0].mxu0
    %v2756 = vadd.f32 %v807, %v2755
    %v2757 = vpop.f32.mrb[0].mxu0
    %2758 = vdwg.mxu0
    %v2759 = vsel %vm687, %v2753, -inf
    %2760 = vmax.xlane.f32.xlu0 %v2759
    %v2761 = vpop.xlane.xlu0 %2760
    %v2762 = vsel %vm687, %v2756, -inf
    %2763 = vmax.xlane.f32.xlu0 %v2762
    %v2764 = vpop.xlane.xlu0 %2763
    %v2765 = vsub.f32 %v2753, %v2761
    %v2766 = vsub.f32 %v2756, %v2764
    %v2767 = vmul.f32 %v2765, 1.442695
    %v2768 = vpow.pop %v2767
    %v2769 = vmul.f32 %v2766, 1.442695
    %v2770 = vpow.pop %v2769
    %v2771 = vsel %vm687, %v2768, 0.0
    %2772 = vadd.xlane.f32.xlu0 %v2771
    %v2773 = vpop.xlane.xlu0 %2772
    %v2774 = vsel %vm687, %v2770, 0.0
    %2775 = vadd.xlane.f32.xlu0 %v2774
    %v2776 = vpop.xlane.xlu0 %2775
    %v2777 = vrcp.pop %v2773
    %v2778 = vrcp.pop %v2776
    %v2779 = vmul.f32 %v2768, %v2777
    %v2780 = vmul.f32 %v2770, %v2778
    %v2781 = vpack.c.bf16 %v2780, %v2779
    %v2783 = vsel %vm687, %v2781, 0
    %2785 = vmatprep.subr.bf16.mxu0 0
    %2786 = vmatpush1.bf16.msra.mxu0 %v2595
    %2787 = vmatprep.subr.bf16.mxu0 0
    %2788 = vmatpush1.bf16.msra.mxu0 0
    %2789 = vmatprep.subr.bf16.mxu0 0
    %2790 = vmatpush1.bf16.msra.mxu0 0
    %2791 = vmatprep.subr.bf16.mxu0 0
    %2792 = vmatpush1.bf16.msra.mxu0 0
    %2793 = vmatprep.subr.bf16.mxu0 0
    %2794 = vmatpush1.bf16.msra.mxu0 0
    %2795 = vmatprep.subr.bf16.mxu0 0
    %2796 = vmatpush1.bf16.msra.mxu0 0
    %2797 = vmatprep.subr.bf16.mxu0 0
    %2798 = vmatpush1.bf16.msra.mxu0 0
    %2799 = vmatprep.subr.bf16.mxu0 0
    %2800 = vmatpush1.bf16.msra.mxu0 0
    %2801 = vmatprep.subr.bf16.mxu0 0
    %2802 = vmatpush1.bf16.msra.mxu0 0
    %2803 = vmatprep.subr.bf16.mxu0 0
    %2804 = vmatpush1.bf16.msra.mxu0 0
    %2805 = vmatprep.subr.bf16.mxu0 0
    %2806 = vmatpush1.bf16.msra.mxu0 0
    %2807 = vmatprep.subr.bf16.mxu0 0
    %2808 = vmatpush1.bf16.msra.mxu0 0
    %2809 = vmatprep.subr.bf16.mxu0 0
    %2810 = vmatpush1.bf16.msra.mxu0 0
    %2811 = vmatprep.subr.bf16.mxu0 0
    %2812 = vmatpush1.bf16.msra.mxu0 0
    %2813 = vmatprep.subr.bf16.mxu0 0
    %2814 = vmatpush1.bf16.msra.mxu0 0
    %2815 = vmatprep.subr.bf16.mxu0 0
    %2816 = vmatpush1.bf16.msra.mxu0 0
    %2817 = vmatprep.mubr.bf16.mxu0 0
    %2818 = vmatmul.mubr.bf16.gmra.mrb[0].mxu0 %v2783
    %v2819 = vpop.f32.mrb[0].mxu0
    %v2820 = vadd.f32 0.0, %v2819
    %v2821 = vpop.f32.mrb[0].mxu0
    %v2822 = vpop.f32.mrb[0].mxu0
    %v2823 = vadd.f32 0.0, %v2822
    %v2824 = vpop.f32.mrb[0].mxu0
    %2825 = vdwg.mxu0
    %v2826 = vpack.c.bf16 %v2823, %v2820
    %2827 = vst.msk [vmem:[#allocation2 + $0x8] sm:$0xff] %vm687, %v2826
    %v2828 = vld [vmem:[#allocation2] sm:$0xff]
    %v2829 = vld [vmem:[#allocation2 + $0x8] sm:$0xff]
    %s2830 = scalar_lea.vmem %s29, 24
    %v2831 = vld [vmem:[%s2830] sm:$0xf]
    %v2832 = vld [vmem:[%s2830 + $0x4] sm:$0xf]
    %v2835 = vunpack.c.l.b16 %v2831
    %v2836 = vunpack.c.l.b16 %v2832
    %v2837 = vpack.c.b16 %v2836, %v2835
    %v2840 = vsel %vm687, %v2828, 0
    %v2843 = vsel %vm687, %v2829, 0
    %2845 = vmatprep.subr.bf16.mxu0 0
    %2846 = vmatpush1.bf16.msra.mxu0 %v2837
    %2847 = vmatprep.subr.bf16.mxu0 0
    %2848 = vmatpush1.bf16.msra.mxu0 0
    %2849 = vmatprep.subr.bf16.mxu0 0
    %2850 = vmatpush1.bf16.msra.mxu0 0
    %2851 = vmatprep.subr.bf16.mxu0 0
    %2852 = vmatpush1.bf16.msra.mxu0 0
    %2853 = vmatprep.subr.bf16.mxu0 0
    %2854 = vmatpush1.bf16.msra.mxu0 0
    %2855 = vmatprep.subr.bf16.mxu0 0
    %2856 = vmatpush1.bf16.msra.mxu0 0
    %2857 = vmatprep.subr.bf16.mxu0 0
    %2858 = vmatpush1.bf16.msra.mxu0 0
    %2859 = vmatprep.subr.bf16.mxu0 0
    %2860 = vmatpush1.bf16.msra.mxu0 0
    %2861 = vmatprep.subr.bf16.mxu0 0
    %2862 = vmatpush1.bf16.msra.mxu0 0
    %2863 = vmatprep.subr.bf16.mxu0 0
    %2864 = vmatpush1.bf16.msra.mxu0 0
    %2865 = vmatprep.subr.bf16.mxu0 0
    %2866 = vmatpush1.bf16.msra.mxu0 0
    %2867 = vmatprep.subr.bf16.mxu0 0
    %2868 = vmatpush1.bf16.msra.mxu0 0
    %2869 = vmatprep.subr.bf16.mxu0 0
    %2870 = vmatpush1.bf16.msra.mxu0 0
    %2871 = vmatprep.subr.bf16.mxu0 0
    %2872 = vmatpush1.bf16.msra.mxu0 0
    %2873 = vmatprep.subr.bf16.mxu0 0
    %2874 = vmatpush1.bf16.msra.mxu0 0
    %2875 = vmatprep.subr.bf16.mxu0 0
    %2876 = vmatpush1.bf16.msra.mxu0 0
    %2877 = vmatprep.mubr.bf16.mxu0 0
    %2878 = vmatmul.mubr.bf16.gmra.mrb[0].mxu0 %v2840
    %v2879 = vpop.f32.mrb[0].mxu0
    %v2880 = vadd.f32 0.0, %v2879
    %v2881 = vpop.f32.mrb[0].mxu0
    %v2882 = vpop.f32.mrb[0].mxu0
    %v2883 = vadd.f32 0.0, %v2882
    %v2884 = vpop.f32.mrb[0].mxu0
    %2885 = vmatprep.mubr.bf16.mxu0 0
    %2886 = vmatmul.mubr.bf16.gmra.mrb[0].mxu0 %v2843
    %v2887 = vpop.f32.mrb[0].mxu0
    %v2888 = vadd.f32 0.0, %v2887
    %v2889 = vpop.f32.mrb[0].mxu0
    %v2890 = vpop.f32.mrb[0].mxu0
    %v2891 = vadd.f32 0.0, %v2890
    %v2892 = vpop.f32.mrb[0].mxu0
    %2893 = vdwg.mxu0
    %v2896 = vunpack.c.l.b16 %v2366
    %v2897 = vunpack.c.l.b16 %v2367
    %v2898 = vpack.c.b16 %v2897, %v2896
    %v2901 = vsel %vm687, %v2363, 0
    %v2904 = vsel %vm687, %v2364, 0
    %2906 = vmatprep.subr.bf16.mxu0 0
    %2907 = vmatpush1.bf16.msra.mxu0 %v2898
    %2908 = vmatprep.subr.bf16.mxu0 0
    %2909 = vmatpush1.bf16.msra.mxu0 0
    %2910 = vmatprep.subr.bf16.mxu0 0
    %2911 = vmatpush1.bf16.msra.mxu0 0
    %2912 = vmatprep.subr.bf16.mxu0 0
    %2913 = vmatpush1.bf16.msra.mxu0 0
    %2914 = vmatprep.subr.bf16.mxu0 0
    %2915 = vmatpush1.bf16.msra.mxu0 0
    %2916 = vmatprep.subr.bf16.mxu0 0
    %2917 = vmatpush1.bf16.msra.mxu0 0
    %2918 = vmatprep.subr.bf16.mxu0 0
    %2919 = vmatpush1.bf16.msra.mxu0 0
    %2920 = vmatprep.subr.bf16.mxu0 0
    %2921 = vmatpush1.bf16.msra.mxu0 0
    %2922 = vmatprep.subr.bf16.mxu0 0
    %2923 = vmatpush1.bf16.msra.mxu0 0
    %2924 = vmatprep.subr.bf16.mxu0 0
    %2925 = vmatpush1.bf16.msra.mxu0 0
    %2926 = vmatprep.subr.bf16.mxu0 0
    %2927 = vmatpush1.bf16.msra.mxu0 0
    %2928 = vmatprep.subr.bf16.mxu0 0
    %2929 = vmatpush1.bf16.msra.mxu0 0
    %2930 = vmatprep.subr.bf16.mxu0 0
    %2931 = vmatpush1.bf16.msra.mxu0 0
    %2932 = vmatprep.subr.bf16.mxu0 0
    %2933 = vmatpush1.bf16.msra.mxu0 0
    %2934 = vmatprep.subr.bf16.mxu0 0
    %2935 = vmatpush1.bf16.msra.mxu0 0
    %2936 = vmatprep.subr.bf16.mxu0 0
    %2937 = vmatpush1.bf16.msra.mxu0 0
    %2938 = vmatprep.mubr.bf16.mxu0 0
    %2939 = vmatmul.mubr.bf16.gmra.mrb[0].mxu0 %v2901
    %v2940 = vpop.f32.mrb[0].mxu0
    %v2941 = vadd.f32 %v2880, %v2940
    %v2942 = vpop.f32.mrb[0].mxu0
    %v2943 = vpop.f32.mrb[0].mxu0
    %v2944 = vadd.f32 %v2883, %v2943
    %v2945 = vpop.f32.mrb[0].mxu0
    %2946 = vmatprep.mubr.bf16.mxu0 0
    %2947 = vmatmul.mubr.bf16.gmra.mrb[0].mxu0 %v2904
    %v2948 = vpop.f32.mrb[0].mxu0
    %v2949 = vadd.f32 %v2888, %v2948
    %v2950 = vpop.f32.mrb[0].mxu0
    %v2951 = vpop.f32.mrb[0].mxu0
    %v2952 = vadd.f32 %v2891, %v2951
    %v2953 = vpop.f32.mrb[0].mxu0
    %2954 = vdwg.mxu0
    %s2955 = scalar_lea.vmem %s31, 1
    %v2956 = vld [vmem:[%s2955] sm:$0x1]
    %v2958 = vlaneseq
    %v2959 = vshrl.u32 %v2958, 7
    %v2960 = vsub.s32 0, %v2959
    %v2961 = vrot.slane %v2956, %v2960
    %v2963 = vadd.f32 %v2941, %v2961
    %v2964 = vadd.f32 %v2944, %v2961
    %v2965 = vadd.f32 %v2949, %v2961
    %v2966 = vadd.f32 %v2952, %v2961
    %v2967 = vadd.f32 %v1891, %v2963
    %v2968 = vadd.f32 %v1892, %v2964
    %v2969 = vadd.f32 %v1893, %v2965
    %v2970 = vadd.f32 %v1894, %v2966
    %s2971 = scalar_lea.vmem %s33, 1
    %v2972 = vld [vmem:[%s2971] sm:$0x1]
    %s2973 = scalar_lea.vmem %s35, 1
    %v2974 = vld [vmem:[%s2973] sm:$0x1]
    %v2975 = vsel %vm477, %v2967, 0.0
    %2976 = vadd.xlane.f32.xlu0 %v2975
    %v2977 = vpop.xlane.xlu0 %2976
    %v2978 = vsel %vm477, %v2968, 0.0
    %2979 = vadd.xlane.f32.xlu0 %v2978
    %v2980 = vpop.xlane.xlu0 %2979
    %v2981 = vsel %vm477, %v2969, 0.0
    %2982 = vadd.xlane.f32.xlu0 %v2981
    %v2983 = vpop.xlane.xlu0 %2982
    %v2984 = vsel %vm477, %v2970, 0.0
    %2985 = vadd.xlane.f32.xlu0 %v2984
    %v2986 = vpop.xlane.xlu0 %2985
    %v2987 = vmul.f32 %v2977, %v1544
    %v2988 = vmul.f32 %v2980, %v1544
    %v2989 = vmul.f32 %v2983, %v1544
    %v2990 = vmul.f32 %v2986, %v1544
    %v2991 = vsub.f32 %v2967, %v2987
    %v2992 = vsub.f32 %v2968, %v2988
    %v2993 = vsub.f32 %v2969, %v2989
    %v2994 = vsub.f32 %v2970, %v2990
    %v2995 = vmul.f32 %v2991, %v2991
    %v2996 = vmul.f32 %v2992, %v2992
    %v2997 = vmul.f32 %v2993, %v2993
    %v2998 = vmul.f32 %v2994, %v2994
    %v2999 = vsel %vm477, %v2995, 0.0
    %3000 = vadd.xlane.f32.xlu0 %v2999
    %v3001 = vpop.xlane.xlu0 %3000
    %v3002 = vsel %vm477, %v2996, 0.0
    %3003 = vadd.xlane.f32.xlu0 %v3002
    %v3004 = vpop.xlane.xlu0 %3003
    %v3005 = vsel %vm477, %v2997, 0.0
    %3006 = vadd.xlane.f32.xlu0 %v3005
    %v3007 = vpop.xlane.xlu0 %3006
    %v3008 = vsel %vm477, %v2998, 0.0
    %3009 = vadd.xlane.f32.xlu0 %v3008
    %v3010 = vpop.xlane.xlu0 %3009
    %v3011 = vmul.f32 %v3001, %v1544
    %v3012 = vmul.f32 %v3004, %v1544
    %v3013 = vmul.f32 %v3007, %v1544
    %v3014 = vmul.f32 %v3010, %v1544
    %v3015 = vadd.f32 %v3011, 1e-12
    %v3016 = vadd.f32 %v3012, 1e-12
    %v3017 = vadd.f32 %v3013, 1e-12
    %v3018 = vadd.f32 %v3014, 1e-12
    %v3019 = vrsqrt.pop %v3015
    %v3020 = vrsqrt.pop %v3016
    %v3021 = vrsqrt.pop %v3017
    %v3022 = vrsqrt.pop %v3018
    %v3023 = vmul.f32 %v2991, %v3019
    %v3024 = vmul.f32 %v2992, %v3020
    %v3025 = vmul.f32 %v2993, %v3021
    %v3026 = vmul.f32 %v2994, %v3022
    %v3028 = vlaneseq
    %v3029 = vshrl.u32 %v3028, 7
    %v3030 = vsub.s32 0, %v3029
    %v3031 = vrot.slane %v2972, %v3030
    %v3033 = vmul.f32 %v3023, %v3031
    %v3034 = vmul.f32 %v3024, %v3031
    %v3035 = vmul.f32 %v3025, %v3031
    %v3036 = vmul.f32 %v3026, %v3031
    %v3038 = vlaneseq
    %v3039 = vshrl.u32 %v3038, 7
    %v3040 = vsub.s32 0, %v3039
    %v3041 = vrot.slane %v2974, %v3040
    %v3043 = vadd.f32 %v3033, %v3041
    %v3044 = vadd.f32 %v3034, %v3041
    %v3045 = vadd.f32 %v3035, %v3041
    %v3046 = vadd.f32 %v3036, %v3041
    %v3047 = vpack.c.bf16 %v3044, %v3043
    %v3048 = vpack.c.bf16 %v3046, %v3045
    %s3049 = scalar_lea.vmem %s37, 16
    %v3050 = vld [vmem:[%s3049] sm:$0xf]
    %v3051 = vld [vmem:[%s3049 + $0x4] sm:$0xf]
    %v3052 = vld [vmem:[%s3049 + $0x8] sm:$0xf]
    %v3053 = vld [vmem:[%s3049 + $0xc] sm:$0xf]
    %s3054 = scalar_lea.vmem %s39, 1
    %v3055 = vld [vmem:[%s3054] sm:$0x1]
    %v3057 = vlaneseq
    %v3058 = vshrl.u32 %v3057, 7
    %v3059 = vsub.s32 0, %v3058
    %v3060 = vrot.slane %v3055, %v3059
    %v3066 = vunpack.c.l.b16 %v3050
    %v3067 = vunpack.c.l.b16 %v3051
    %v3068 = vunpack.c.l.b16 %v3052
    %v3069 = vunpack.c.l.b16 %v3053
    %v3070 = vpack.c.b16 %v3067, %v3066
    %v3071 = vpack.c.b16 %v3069, %v3068
    %v3075 = vsel %vm477, %v3047, 0
    %v3078 = vsel %vm477, %v3048, 0
    %3080 = vmatprep.subr.bf16.mxu0 0
    %3081 = vmatpush1.bf16.msra.mxu0 %v3070
    %3082 = vmatprep.subr.bf16.mxu0 0
    %3083 = vmatpush1.bf16.msra.mxu0 %v3071
    %3084 = vmatprep.subr.bf16.mxu0 0
    %3085 = vmatpush1.bf16.msra.mxu0 0
    %3086 = vmatprep.subr.bf16.mxu0 0
    %3087 = vmatpush1.bf16.msra.mxu0 0
    %3088 = vmatprep.subr.bf16.mxu0 0
    %3089 = vmatpush1.bf16.msra.mxu0 0
    %3090 = vmatprep.subr.bf16.mxu0 0
    %3091 = vmatpush1.bf16.msra.mxu0 0
    %3092 = vmatprep.subr.bf16.mxu0 0
    %3093 = vmatpush1.bf16.msra.mxu0 0
    %3094 = vmatprep.subr.bf16.mxu0 0
    %3095 = vmatpush1.bf16.msra.mxu0 0
    %3096 = vmatprep.subr.bf16.mxu0 0
    %3097 = vmatpush1.bf16.msra.mxu0 0
    %3098 = vmatprep.subr.bf16.mxu0 0
    %3099 = vmatpush1.bf16.msra.mxu0 0
    %3100 = vmatprep.subr.bf16.mxu0 0
    %3101 = vmatpush1.bf16.msra.mxu0 0
    %3102 = vmatprep.subr.bf16.mxu0 0
    %3103 = vmatpush1.bf16.msra.mxu0 0
    %3104 = vmatprep.subr.bf16.mxu0 0
    %3105 = vmatpush1.bf16.msra.mxu0 0
    %3106 = vmatprep.subr.bf16.mxu0 0
    %3107 = vmatpush1.bf16.msra.mxu0 0
    %3108 = vmatprep.subr.bf16.mxu0 0
    %3109 = vmatpush1.bf16.msra.mxu0 0
    %3110 = vmatprep.subr.bf16.mxu0 0
    %3111 = vmatpush1.bf16.msra.mxu0 0
    %3112 = vmatprep.mubr.bf16.mxu0 0
    %3113 = vmatmul.mubr.bf16.gmra.mrb[0].mxu0 %v3075
    %v3114 = vpop.f32.mrb[0].mxu0
    %v3115 = vadd.f32 %v3060, %v3114
    %v3116 = vpop.f32.mrb[0].mxu0
    %v3117 = vpop.f32.mrb[0].mxu0
    %v3118 = vadd.f32 %v3060, %v3117
    %v3119 = vpop.f32.mrb[0].mxu0
    %3120 = vmatprep.mubr.bf16.mxu0 0
    %3121 = vmatmul.mubr.bf16.gmra.mrb[0].mxu0 %v3078
    %v3122 = vpop.f32.mrb[0].mxu0
    %v3123 = vadd.f32 %v3060, %v3122
    %v3124 = vpop.f32.mrb[0].mxu0
    %v3125 = vpop.f32.mrb[0].mxu0
    %v3126 = vadd.f32 %v3060, %v3125
    %v3127 = vpop.f32.mrb[0].mxu0
    %3128 = vdwg.mxu0
    %v3129 = vmul.f32 %v3115, 0.5
    %v3130 = vmul.f32 %v3118, 0.5
    %v3131 = vmul.f32 %v3123, 0.5
    %v3132 = vmul.f32 %v3126, 0.5
    %v3133 = vmul.f32 %v3115, 0.044715
    %v3134 = vmul.f32 %v3118, 0.044715
    %v3135 = vmul.f32 %v3123, 0.044715
    %v3136 = vmul.f32 %v3126, 0.044715
    %v3137 = vmul.f32 %v3133, %v3115
    %v3138 = vmul.f32 %v3134, %v3118
    %v3139 = vmul.f32 %v3135, %v3123
    %v3140 = vmul.f32 %v3136, %v3126
    %v3141 = vmul.f32 %v3137, %v3115
    %v3142 = vmul.f32 %v3138, %v3118
    %v3143 = vmul.f32 %v3139, %v3123
    %v3144 = vmul.f32 %v3140, %v3126
    %v3145 = vadd.f32 %v3115, %v3141
    %v3146 = vadd.f32 %v3118, %v3142
    %v3147 = vadd.f32 %v3123, %v3143
    %v3148 = vadd.f32 %v3126, %v3144
    %v3149 = vmul.f32 %v3145, 0.7978846
    %v3150 = vmul.f32 %v3146, 0.7978846
    %v3151 = vmul.f32 %v3147, 0.7978846
    %v3152 = vmul.f32 %v3148, 0.7978846
    %v3153 = vtanh.pop %v3149
    %v3154 = vtanh.pop %v3150
    %v3155 = vtanh.pop %v3151
    %v3156 = vtanh.pop %v3152
    %v3157 = vadd.f32 %v3153, 1.0
    %v3158 = vadd.f32 %v3154, 1.0
    %v3159 = vadd.f32 %v3155, 1.0
    %v3160 = vadd.f32 %v3156, 1.0
    %v3161 = vmul.f32 %v3129, %v3157
    %v3162 = vmul.f32 %v3130, %v3158
    %v3163 = vmul.f32 %v3131, %v3159
    %v3164 = vmul.f32 %v3132, %v3160
    %v3165 = vpack.c.bf16 %v3162, %v3161
    %v3166 = vpack.c.bf16 %v3164, %v3163
    %s3167 = scalar_lea.vmem %s41, 32
    %v3168 = vld [vmem:[%s3167] sm:$0xf]
    %v3169 = vld [vmem:[%s3167 + $0x4] sm:$0xf]
    %v3170 = vld [vmem:[%s3167 + $0x8] sm:$0xf]
    %v3171 = vld [vmem:[%s3167 + $0xc] sm:$0xf]
    %v3172 = vld [vmem:[%s3167 + $0x10] sm:$0xf]
    %v3173 = vld [vmem:[%s3167 + $0x14] sm:$0xf]
    %v3174 = vld [vmem:[%s3167 + $0x18] sm:$0xf]
    %v3175 = vld [vmem:[%s3167 + $0x1c] sm:$0xf]
    %s3176 = scalar_lea.vmem %s43, 1
    %v3177 = vld [vmem:[%s3176] sm:$0x1]
    %v3179 = vlaneseq
    %v3180 = vshrl.u32 %v3179, 7
    %v3181 = vsub.s32 0, %v3180
    %v3182 = vrot.slane %v3177, %v3181
    %v3192 = vunpack.c.l.b16 %v3168
    %v3193 = vunpack.c.l.b16 %v3169
    %v3194 = vunpack.c.l.b16 %v3170
    %v3195 = vunpack.c.l.b16 %v3171
    %v3196 = vunpack.c.l.b16 %v3172
    %v3197 = vunpack.c.l.b16 %v3173
    %v3198 = vunpack.c.l.b16 %v3174
    %v3199 = vunpack.c.l.b16 %v3175
    %v3200 = vpack.c.b16 %v3193, %v3192
    %v3201 = vpack.c.b16 %v3195, %v3194
    %v3202 = vpack.c.b16 %v3197, %v3196
    %v3203 = vpack.c.b16 %v3199, %v3198
    %v3209 = vsel %vm278, %v3165, 0
    %v3212 = vsel %vm278, %v3166, 0
    %3214 = vmatprep.subr.bf16.mxu0 0
    %3215 = vmatpush1.bf16.msra.mxu0 %v3200
    %3216 = vmatprep.subr.bf16.mxu0 0
    %3217 = vmatpush1.bf16.msra.mxu0 %v3201
    %3218 = vmatprep.subr.bf16.mxu0 0
    %3219 = vmatpush1.bf16.msra.mxu0 %v3202
    %3220 = vmatprep.subr.bf16.mxu0 0
    %3221 = vmatpush1.bf16.msra.mxu0 %v3203
    %3222 = vmatprep.subr.bf16.mxu0 0
    %3223 = vmatpush1.bf16.msra.mxu0 0
    %3224 = vmatprep.subr.bf16.mxu0 0
    %3225 = vmatpush1.bf16.msra.mxu0 0
    %3226 = vmatprep.subr.bf16.mxu0 0
    %3227 = vmatpush1.bf16.msra.mxu0 0
    %3228 = vmatprep.subr.bf16.mxu0 0
    %3229 = vmatpush1.bf16.msra.mxu0 0
    %3230 = vmatprep.subr.bf16.mxu0 0
    %3231 = vmatpush1.bf16.msra.mxu0 0
    %3232 = vmatprep.subr.bf16.mxu0 0
    %3233 = vmatpush1.bf16.msra.mxu0 0
    %3234 = vmatprep.subr.bf16.mxu0 0
    %3235 = vmatpush1.bf16.msra.mxu0 0
    %3236 = vmatprep.subr.bf16.mxu0 0
    %3237 = vmatpush1.bf16.msra.mxu0 0
    %3238 = vmatprep.subr.bf16.mxu0 0
    %3239 = vmatpush1.bf16.msra.mxu0 0
    %3240 = vmatprep.subr.bf16.mxu0 0
    %3241 = vmatpush1.bf16.msra.mxu0 0
    %3242 = vmatprep.subr.bf16.mxu0 0
    %3243 = vmatpush1.bf16.msra.mxu0 0
    %3244 = vmatprep.subr.bf16.mxu0 0
    %3245 = vmatpush1.bf16.msra.mxu0 0
    %3246 = vmatprep.mubr.bf16.mxu0 0
    %3247 = vmatmul.mubr.bf16.gmra.mrb[0].mxu0 %v3209
    %v3248 = vpop.f32.mrb[0].mxu0
    %v3249 = vadd.f32 %v3182, %v3248
    %v3250 = vpop.f32.mrb[0].mxu0
    %v3251 = vpop.f32.mrb[0].mxu0
    %v3252 = vadd.f32 %v3182, %v3251
    %v3253 = vpop.f32.mrb[0].mxu0
    %3254 = vmatprep.mubr.bf16.mxu0 0
    %3255 = vmatmul.mubr.bf16.gmra.mrb[0].mxu0 %v3212
    %v3256 = vpop.f32.mrb[0].mxu0
    %v3257 = vadd.f32 %v3182, %v3256
    %v3258 = vpop.f32.mrb[0].mxu0
    %v3259 = vpop.f32.mrb[0].mxu0
    %v3260 = vadd.f32 %v3182, %v3259
    %v3261 = vpop.f32.mrb[0].mxu0
    %3262 = vdwg.mxu0
    %v3263 = vadd.f32 %v3043, %v3249
    %v3264 = vadd.f32 %v3044, %v3252
    %v3265 = vadd.f32 %v3045, %v3257
    %v3266 = vadd.f32 %v3046, %v3260
    %s3267 = scalar_lea.vmem %s45, 1
    %v3268 = vld [vmem:[%s3267] sm:$0x1]
    %s3269 = scalar_lea.vmem %s47, 1
    %v3270 = vld [vmem:[%s3269] sm:$0x1]
    %v3271 = vsel %vm477, %v3263, 0.0
    %3272 = vadd.xlane.f32.xlu0 %v3271
    %v3273 = vpop.xlane.xlu0 %3272
    %v3274 = vsel %vm477, %v3264, 0.0
    %3275 = vadd.xlane.f32.xlu0 %v3274
    %v3276 = vpop.xlane.xlu0 %3275
    %v3277 = vsel %vm477, %v3265, 0.0
    %3278 = vadd.xlane.f32.xlu0 %v3277
    %v3279 = vpop.xlane.xlu0 %3278
    %v3280 = vsel %vm477, %v3266, 0.0
    %3281 = vadd.xlane.f32.xlu0 %v3280
    %v3282 = vpop.xlane.xlu0 %3281
    %v3283 = vmul.f32 %v3273, %v1544
    %v3284 = vmul.f32 %v3276, %v1544
    %v3285 = vmul.f32 %v3279, %v1544
    %v3286 = vmul.f32 %v3282, %v1544
    %v3287 = vsub.f32 %v3263, %v3283
    %v3288 = vsub.f32 %v3264, %v3284
    %v3289 = vsub.f32 %v3265, %v3285
    %v3290 = vsub.f32 %v3266, %v3286
    %v3291 = vmul.f32 %v3287, %v3287
    %v3292 = vmul.f32 %v3288, %v3288
    %v3293 = vmul.f32 %v3289, %v3289
    %v3294 = vmul.f32 %v3290, %v3290
    %v3295 = vsel %vm477, %v3291, 0.0
    %3296 = vadd.xlane.f32.xlu0 %v3295
    %v3297 = vpop.xlane.xlu0 %3296
    %v3298 = vsel %vm477, %v3292, 0.0
    %3299 = vadd.xlane.f32.xlu0 %v3298
    %v3300 = vpop.xlane.xlu0 %3299
    %v3301 = vsel %vm477, %v3293, 0.0
    %3302 = vadd.xlane.f32.xlu0 %v3301
    %v3303 = vpop.xlane.xlu0 %3302
    %v3304 = vsel %vm477, %v3294, 0.0
    %3305 = vadd.xlane.f32.xlu0 %v3304
    %v3306 = vpop.xlane.xlu0 %3305
    %v3307 = vmul.f32 %v3297, %v1544
    %v3308 = vmul.f32 %v3300, %v1544
    %v3309 = vmul.f32 %v3303, %v1544
    %v3310 = vmul.f32 %v3306, %v1544
    %v3311 = vadd.f32 %v3307, 1e-12
    %v3312 = vadd.f32 %v3308, 1e-12
    %v3313 = vadd.f32 %v3309, 1e-12
    %v3314 = vadd.f32 %v3310, 1e-12
    %v3315 = vrsqrt.pop %v3311
    %v3316 = vrsqrt.pop %v3312
    %v3317 = vrsqrt.pop %v3313
    %v3318 = vrsqrt.pop %v3314
    %v3319 = vmul.f32 %v3287, %v3315
    %v3320 = vmul.f32 %v3288, %v3316
    %v3321 = vmul.f32 %v3289, %v3317
    %v3322 = vmul.f32 %v3290, %v3318
    %v3324 = vlaneseq
    %v3325 = vshrl.u32 %v3324, 7
    %v3326 = vsub.s32 0, %v3325
    %v3327 = vrot.slane %v3268, %v3326
    %v3329 = vmul.f32 %v3319, %v3327
    %v3330 = vmul.f32 %v3320, %v3327
    %v3331 = vmul.f32 %v3321, %v3327
    %v3332 = vmul.f32 %v3322, %v3327
    %v3334 = vlaneseq
    %v3335 = vshrl.u32 %v3334, 7
    %v3336 = vsub.s32 0, %v3335
    %v3337 = vrot.slane %v3270, %v3336
    %v3339 = vadd.f32 %v3329, %v3337
    %v3340 = vadd.f32 %v3330, %v3337
    %v3341 = vadd.f32 %v3331, %v3337
    %v3342 = vadd.f32 %v3332, %v3337
    %v3343 = vpack.c.bf16 %v3340, %v3339
    %v3344 = vpack.c.bf16 %v3342, %v3341
    %v3345 = vld [vmem:[%s49] sm:$0xf]
    %v3346 = vld [vmem:[%s49 + $0x4] sm:$0xf]
    %v3347 = vld [vmem:[%s49 + $0x8] sm:$0xf]
    %v3348 = vld [vmem:[%s49 + $0xc] sm:$0xf]
    %v3349 = vld [vmem:[%s51] sm:$0x1]
    %v3351 = vlaneseq
    %v3352 = vshrl.u32 %v3351, 7
    %v3353 = vsub.s32 0, %v3352
    %v3354 = vrot.slane %v3349, %v3353
    %v3360 = vunpack.c.l.b16 %v3345
    %v3361 = vunpack.c.l.b16 %v3346
    %v3362 = vunpack.c.l.b16 %v3347
    %v3363 = vunpack.c.l.b16 %v3348
    %v3364 = vpack.c.b16 %v3361, %v3360
    %v3365 = vpack.c.b16 %v3363, %v3362
    %v3369 = vsel %vm477, %v3343, 0
    %v3372 = vsel %vm477, %v3344, 0
    %3374 = vmatprep.subr.bf16.mxu0 0
    %3375 = vmatpush1.bf16.msra.mxu0 %v3364
    %3376 = vmatprep.subr.bf16.mxu0 0
    %3377 = vmatpush1.bf16.msra.mxu0 %v3365
    %3378 = vmatprep.subr.bf16.mxu0 0
    %3379 = vmatpush1.bf16.msra.mxu0 0
    %3380 = vmatprep.subr.bf16.mxu0 0
    %3381 = vmatpush1.bf16.msra.mxu0 0
    %3382 = vmatprep.subr.bf16.mxu0 0
    %3383 = vmatpush1.bf16.msra.mxu0 0
    %3384 = vmatprep.subr.bf16.mxu0 0
    %3385 = vmatpush1.bf16.msra.mxu0 0
    %3386 = vmatprep.subr.bf16.mxu0 0
    %3387 = vmatpush1.bf16.msra.mxu0 0
    %3388 = vmatprep.subr.bf16.mxu0 0
    %3389 = vmatpush1.bf16.msra.mxu0 0
    %3390 = vmatprep.subr.bf16.mxu0 0
    %3391 = vmatpush1.bf16.msra.mxu0 0
    %3392 = vmatprep.subr.bf16.mxu0 0
    %3393 = vmatpush1.bf16.msra.mxu0 0
    %3394 = vmatprep.subr.bf16.mxu0 0
    %3395 = vmatpush1.bf16.msra.mxu0 0
    %3396 = vmatprep.subr.bf16.mxu0 0
    %3397 = vmatpush1.bf16.msra.mxu0 0
    %3398 = vmatprep.subr.bf16.mxu0 0
    %3399 = vmatpush1.bf16.msra.mxu0 0
    %3400 = vmatprep.subr.bf16.mxu0 0
    %3401 = vmatpush1.bf16.msra.mxu0 0
    %3402 = vmatprep.subr.bf16.mxu0 0
    %3403 = vmatpush1.bf16.msra.mxu0 0
    %3404 = vmatprep.subr.bf16.mxu0 0
    %3405 = vmatpush1.bf16.msra.mxu0 0
    %3406 = vmatprep.mubr.bf16.mxu0 0
    %3407 = vmatmul.mubr.bf16.gmra.mrb[0].mxu0 %v3369
    %v3408 = vpop.f32.mrb[0].mxu0
    %v3409 = vadd.f32 %v3354, %v3408
    %v3410 = vpop.f32.mrb[0].mxu0
    %v3411 = vpop.f32.mrb[0].mxu0
    %v3412 = vadd.f32 %v3354, %v3411
    %v3413 = vpop.f32.mrb[0].mxu0
    %3414 = vmatprep.mubr.bf16.mxu0 0
    %3415 = vmatmul.mubr.bf16.gmra.mrb[0].mxu0 %v3372
    %v3416 = vpop.f32.mrb[0].mxu0
    %v3417 = vadd.f32 %v3354, %v3416
    %v3418 = vpop.f32.mrb[0].mxu0
    %v3419 = vpop.f32.mrb[0].mxu0
    %v3420 = vadd.f32 %v3354, %v3419
    %v3421 = vpop.f32.mrb[0].mxu0
    %3422 = vdwg.mxu0
    %v3423 = vmul.f32 %v3409, 0.5
    %v3424 = vmul.f32 %v3412, 0.5
    %v3425 = vmul.f32 %v3417, 0.5
    %v3426 = vmul.f32 %v3420, 0.5
    %v3427 = vmul.f32 %v3409, 0.044715
    %v3428 = vmul.f32 %v3412, 0.044715
    %v3429 = vmul.f32 %v3417, 0.044715
    %v3430 = vmul.f32 %v3420, 0.044715
    %v3431 = vmul.f32 %v3427, %v3409
    %v3432 = vmul.f32 %v3428, %v3412
    %v3433 = vmul.f32 %v3429, %v3417
    %v3434 = vmul.f32 %v3430, %v3420
    %v3435 = vmul.f32 %v3431, %v3409
    %v3436 = vmul.f32 %v3432, %v3412
    %v3437 = vmul.f32 %v3433, %v3417
    %v3438 = vmul.f32 %v3434, %v3420
    %v3439 = vadd.f32 %v3409, %v3435
    %v3440 = vadd.f32 %v3412, %v3436
    %v3441 = vadd.f32 %v3417, %v3437
    %v3442 = vadd.f32 %v3420, %v3438
    %v3443 = vmul.f32 %v3439, 0.7978846
    %v3444 = vmul.f32 %v3440, 0.7978846
    %v3445 = vmul.f32 %v3441, 0.7978846
    %v3446 = vmul.f32 %v3442, 0.7978846
    %v3447 = vtanh.pop %v3443
    %v3448 = vtanh.pop %v3444
    %v3449 = vtanh.pop %v3445
    %v3450 = vtanh.pop %v3446
    %v3451 = vadd.f32 %v3447, 1.0
    %v3452 = vadd.f32 %v3448, 1.0
    %v3453 = vadd.f32 %v3449, 1.0
    %v3454 = vadd.f32 %v3450, 1.0
    %v3455 = vmul.f32 %v3423, %v3451
    %v3456 = vmul.f32 %v3424, %v3452
    %v3457 = vmul.f32 %v3425, %v3453
    %v3458 = vmul.f32 %v3426, %v3454
    %v3459 = vld [vmem:[%s53] sm:$0x1]
    %v3460 = vld [vmem:[%s55] sm:$0x1]
    %v3461 = vsel %vm278, %v3455, 0.0
    %3462 = vadd.xlane.f32.xlu0 %v3461
    %v3463 = vpop.xlane.xlu0 %3462
    %v3464 = vsel %vm278, %v3456, 0.0
    %3465 = vadd.xlane.f32.xlu0 %v3464
    %v3466 = vpop.xlane.xlu0 %3465
    %v3467 = vsel %vm278, %v3457, 0.0
    %3468 = vadd.xlane.f32.xlu0 %v3467
    %v3469 = vpop.xlane.xlu0 %3468
    %v3470 = vsel %vm278, %v3458, 0.0
    %3471 = vadd.xlane.f32.xlu0 %v3470
    %v3472 = vpop.xlane.xlu0 %3471
    %v3473 = vmul.f32 %v3463, %v291
    %v3474 = vmul.f32 %v3466, %v291
    %v3475 = vmul.f32 %v3469, %v291
    %v3476 = vmul.f32 %v3472, %v291
    %v3477 = vsub.f32 %v3455, %v3473
    %v3478 = vsub.f32 %v3456, %v3474
    %v3479 = vsub.f32 %v3457, %v3475
    %v3480 = vsub.f32 %v3458, %v3476
    %v3481 = vmul.f32 %v3477, %v3477
    %v3482 = vmul.f32 %v3478, %v3478
    %v3483 = vmul.f32 %v3479, %v3479
    %v3484 = vmul.f32 %v3480, %v3480
    %v3485 = vsel %vm278, %v3481, 0.0
    %3486 = vadd.xlane.f32.xlu0 %v3485
    %v3487 = vpop.xlane.xlu0 %3486
    %v3488 = vsel %vm278, %v3482, 0.0
    %3489 = vadd.xlane.f32.xlu0 %v3488
    %v3490 = vpop.xlane.xlu0 %3489
    %v3491 = vsel %vm278, %v3483, 0.0
    %3492 = vadd.xlane.f32.xlu0 %v3491
    %v3493 = vpop.xlane.xlu0 %3492
    %v3494 = vsel %vm278, %v3484, 0.0
    %3495 = vadd.xlane.f32.xlu0 %v3494
    %v3496 = vpop.xlane.xlu0 %3495
    %v3497 = vmul.f32 %v3487, %v291
    %v3498 = vmul.f32 %v3490, %v291
    %v3499 = vmul.f32 %v3493, %v291
    %v3500 = vmul.f32 %v3496, %v291
    %v3501 = vadd.f32 %v3497, 1e-12
    %v3502 = vadd.f32 %v3498, 1e-12
    %v3503 = vadd.f32 %v3499, 1e-12
    %v3504 = vadd.f32 %v3500, 1e-12
    %v3505 = vrsqrt.pop %v3501
    %v3506 = vrsqrt.pop %v3502
    %v3507 = vrsqrt.pop %v3503
    %v3508 = vrsqrt.pop %v3504
    %v3509 = vmul.f32 %v3477, %v3505
    %v3510 = vmul.f32 %v3478, %v3506
    %v3511 = vmul.f32 %v3479, %v3507
    %v3512 = vmul.f32 %v3480, %v3508
    %v3514 = vlaneseq
    %v3515 = vshrl.u32 %v3514, 7
    %v3516 = vsub.s32 0, %v3515
    %v3517 = vrot.slane %v3459, %v3516
    %v3519 = vmul.f32 %v3509, %v3517
    %v3520 = vmul.f32 %v3510, %v3517
    %v3521 = vmul.f32 %v3511, %v3517
    %v3522 = vmul.f32 %v3512, %v3517
    %v3524 = vlaneseq
    %v3525 = vshrl.u32 %v3524, 7
    %v3526 = vsub.s32 0, %v3525
    %v3527 = vrot.slane %v3460, %v3526
    %v3529 = vadd.f32 %v3519, %v3527
    %v3530 = vadd.f32 %v3520, %v3527
    %v3531 = vadd.f32 %v3521, %v3527
    %v3532 = vadd.f32 %v3522, %v3527
    %v3533 = vpack.c.bf16 %v3530, %v3529
    %v3534 = vpack.c.bf16 %v3532, %v3531
    %v3535 = vld [vmem:[%s57] sm:$0xf]
    %v3536 = vld [vmem:[%s57 + $0x4] sm:$0xf]
    %v3537 = vld [vmem:[%s57 + $0x8] sm:$0xf]
    %v3538 = vld [vmem:[%s57 + $0xc] sm:$0xf]
    %v3539 = vld [vmem:[%s57 + $0x10] sm:$0xf]
    %v3540 = vld [vmem:[%s57 + $0x14] sm:$0xf]
    %v3541 = vld [vmem:[%s57 + $0x18] sm:$0xf]
    %v3542 = vld [vmem:[%s57 + $0x1c] sm:$0xf]
    %v3543 = vld [vmem:[%s59] sm:$0x1]
    %v3545 = vlaneseq
    %v3546 = vshrl.u32 %v3545, 7
    %v3547 = vsub.s32 0, %v3546
    %v3548 = vrot.slane %v3543, %v3547
    %v3558 = vunpack.c.l.b16 %v3535
    %v3559 = vunpack.c.l.b16 %v3536
    %v3560 = vunpack.c.l.b16 %v3537
    %v3561 = vunpack.c.l.b16 %v3538
    %v3562 = vunpack.c.l.b16 %v3539
    %v3563 = vunpack.c.l.b16 %v3540
    %v3564 = vunpack.c.l.b16 %v3541
    %v3565 = vunpack.c.l.b16 %v3542
    %v3566 = vpack.c.b16 %v3559, %v3558
    %v3567 = vpack.c.b16 %v3561, %v3560
    %v3568 = vpack.c.b16 %v3563, %v3562
    %v3569 = vpack.c.b16 %v3565, %v3564
    %v3575 = vsel %vm278, %v3533, 0
    %v3578 = vsel %vm278, %v3534, 0
    %3580 = vmatprep.subr.bf16.mxu0 0
    %3581 = vmatpush1.bf16.msra.mxu0 %v3566
    %3582 = vmatprep.subr.bf16.mxu0 0
    %3583 = vmatpush1.bf16.msra.mxu0 %v3567
    %3584 = vmatprep.subr.bf16.mxu0 0
    %3585 = vmatpush1.bf16.msra.mxu0 %v3568
    %3586 = vmatprep.subr.bf16.mxu0 0
    %3587 = vmatpush1.bf16.msra.mxu0 %v3569
    %3588 = vmatprep.subr.bf16.mxu0 0
    %3589 = vmatpush1.bf16.msra.mxu0 0
    %3590 = vmatprep.subr.bf16.mxu0 0
    %3591 = vmatpush1.bf16.msra.mxu0 0
    %3592 = vmatprep.subr.bf16.mxu0 0
    %3593 = vmatpush1.bf16.msra.mxu0 0
    %3594 = vmatprep.subr.bf16.mxu0 0
    %3595 = vmatpush1.bf16.msra.mxu0 0
    %3596 = vmatprep.subr.bf16.mxu0 0
    %3597 = vmatpush1.bf16.msra.mxu0 0
    %3598 = vmatprep.subr.bf16.mxu0 0
    %3599 = vmatpush1.bf16.msra.mxu0 0
    %3600 = vmatprep.subr.bf16.mxu0 0
    %3601 = vmatpush1.bf16.msra.mxu0 0
    %3602 = vmatprep.subr.bf16.mxu0 0
    %3603 = vmatpush1.bf16.msra.mxu0 0
    %3604 = vmatprep.subr.bf16.mxu0 0
    %3605 = vmatpush1.bf16.msra.mxu0 0
    %3606 = vmatprep.subr.bf16.mxu0 0
    %3607 = vmatpush1.bf16.msra.mxu0 0
    %3608 = vmatprep.subr.bf16.mxu0 0
    %3609 = vmatpush1.bf16.msra.mxu0 0
    %3610 = vmatprep.subr.bf16.mxu0 0
    %3611 = vmatpush1.bf16.msra.mxu0 0
    %3612 = vmatprep.mubr.bf16.mxu0 0
    %3613 = vmatmul.mubr.bf16.gmra.mrb[0].mxu0 %v3575
    %v3614 = vpop.f32.mrb[0].mxu0
    %v3615 = vadd.f32 %v3548, %v3614
    %v3616 = vpop.f32.mrb[0].mxu0
    %v3617 = vpop.f32.mrb[0].mxu0
    %v3618 = vadd.f32 %v3548, %v3617
    %v3619 = vpop.f32.mrb[0].mxu0
    %3620 = vmatprep.mubr.bf16.mxu0 0
    %3621 = vmatmul.mubr.bf16.gmra.mrb[0].mxu0 %v3578
    %v3622 = vpop.f32.mrb[0].mxu0
    %v3623 = vadd.f32 %v3548, %v3622
    %v3624 = vpop.f32.mrb[0].mxu0
    %v3625 = vpop.f32.mrb[0].mxu0
    %v3626 = vadd.f32 %v3548, %v3625
    %v3627 = vpop.f32.mrb[0].mxu0
    %3628 = vdwg.mxu0
    %3629 = vst [vmem:[#allocation3] sm:$0xff] %v3615
    %3630 = vst [vmem:[#allocation3 + $0x8] sm:$0xff] %v3618
    %3631 = vst [vmem:[#allocation3 + $0x10] sm:$0xff] %v3623
    %3632 = vst [vmem:[#allocation3 + $0x18] sm:$0xff] %v3626
    %3633 = vmax.xlane.f32.xlu0 %v3615
    %v3634 = vpop.xlane.xlu0 %3633
    %3635 = vmax.xlane.f32.xlu0 %v3618
    %v3636 = vpop.xlane.xlu0 %3635
    %3637 = vmax.xlane.f32.xlu0 %v3623
    %v3638 = vpop.xlane.xlu0 %3637
    %3639 = vmax.xlane.f32.xlu0 %v3626
    %v3640 = vpop.xlane.xlu0 %3639
    %vm3641 = vcmp.eq.f32.partialorder %v3615, %v3634
    %vm3642 = vcmp.eq.f32.partialorder %v3618, %v3636
    %vm3643 = vcmp.eq.f32.partialorder %v3623, %v3638
    %vm3644 = vcmp.eq.f32.partialorder %v3626, %v3640
    %v3645 = vsel %vm3641, %v136, 128
    %v3646 = vsel %vm3642, %v136, 128
    %v3647 = vsel %vm3643, %v136, 128
    %v3648 = vsel %vm3644, %v136, 128
    %v3649 = vand.u32 %v3645, 65535
    %v3650 = vshra.s32 %v3645, 16
    %v3651 = vcvt.s32.f32 %v3649
    %v3652 = vcvt.s32.f32 %v3650
    %3653 = vmin.xlane.f32.xlu0 %v3652
    %v3654 = vpop.xlane.xlu0 %3653
    %vm3655 = vcmp.eq.f32.partialorder %v3652, %v3654
    %v3656 = vsel %vm3655, %v3651, inf
    %3657 = vmin.xlane.f32.xlu0 %v3656
    %v3658 = vpop.xlane.xlu0 %3657
    %v3659 = vcvt.f32.s32 %v3658
    %v3660 = vcvt.f32.s32 %v3654
    %v3661 = vshll.u32 %v3660, 16
    %v3662 = vadd.s32 %v3661, %v3659
    %v3663 = vand.u32 %v3646, 65535
    %v3664 = vshra.s32 %v3646, 16
    %v3665 = vcvt.s32.f32 %v3663
    %v3666 = vcvt.s32.f32 %v3664
    %3667 = vmin.xlane.f32.xlu0 %v3666
    %v3668 = vpop.xlane.xlu0 %3667
    %vm3669 = vcmp.eq.f32.partialorder %v3666, %v3668
    %v3670 = vsel %vm3669, %v3665, inf
    %3671 = vmin.xlane.f32.xlu0 %v3670
    %v3672 = vpop.xlane.xlu0 %3671
    %v3673 = vcvt.f32.s32 %v3672
    %v3674 = vcvt.f32.s32 %v3668
    %v3675 = vshll.u32 %v3674, 16
    %v3676 = vadd.s32 %v3675, %v3673
    %v3677 = vand.u32 %v3647, 65535
    %v3678 = vshra.s32 %v3647, 16
    %v3679 = vcvt.s32.f32 %v3677
    %v3680 = vcvt.s32.f32 %v3678
    %3681 = vmin.xlane.f32.xlu0 %v3680
    %v3682 = vpop.xlane.xlu0 %3681
    %vm3683 = vcmp.eq.f32.partialorder %v3680, %v3682
    %v3684 = vsel %vm3683, %v3679, inf
    %3685 = vmin.xlane.f32.xlu0 %v3684
    %v3686 = vpop.xlane.xlu0 %3685
    %v3687 = vcvt.f32.s32 %v3686
    %v3688 = vcvt.f32.s32 %v3682
    %v3689 = vshll.u32 %v3688, 16
    %v3690 = vadd.s32 %v3689, %v3687
    %v3691 = vand.u32 %v3648, 65535
    %v3692 = vshra.s32 %v3648, 16
    %v3693 = vcvt.s32.f32 %v3691
    %v3694 = vcvt.s32.f32 %v3692
    %3695 = vmin.xlane.f32.xlu0 %v3694
    %v3696 = vpop.xlane.xlu0 %3695
    %vm3697 = vcmp.eq.f32.partialorder %v3694, %v3696
    %v3698 = vsel %vm3697, %v3693, inf
    %3699 = vmin.xlane.f32.xlu0 %v3698
    %v3700 = vpop.xlane.xlu0 %3699
    %v3701 = vcvt.f32.s32 %v3700
    %v3702 = vcvt.f32.s32 %v3696
    %v3703 = vshll.u32 %v3702, 16
    %v3704 = vadd.s32 %v3703, %v3701
    %vm3705 = vcmask 7168
    %3706 = vst.msk [vmem:[%s63] sm:$0xff] %vm3705, %v3662
    %3707 = vst.msk [vmem:[%s63 + $0x8] sm:$0xff] %vm3705, %v3676
    %3708 = vst.msk [vmem:[%s63 + $0x10] sm:$0xff] %vm3705, %v3690
    %3709 = vst.msk [vmem:[%s63 + $0x18] sm:$0xff] %vm3705, %v3704
    // Predicated region
    $region122: #{model_forward.2} parent=1 // pred_check
      _
    $region123: #{model_forward.2} parent=1 // pred_check_branch
      %3711 = sbr.rel (0) target = $region125
    $region124: #{model_forward.2} parent=1 // pred_region
      %s3713 = ssub.s32 512, 512
      %3714 = vsyncadd [#allocation4], %s3713
      %s3715 = sshll.u32 [#allocation3], 4
      %s3716 = int_to_ptr.vmem [resolvable:$true] %s3715
      %3721 = dma.vmem_to_hbm [thread:$0]  %s3716, 512, %s61, [#allocation4], 128, 128, 8
    $region125: #{model_forward.2} parent=1 // pred_fallthru
      _
    // Predicated region
    $region126: #{model_forward.2} parent=1 // pred_check
      _
    $region127: #{model_forward.2} parent=1 // pred_check_branch
      %3723 = sbr.rel (0) target = $region129
    $region128: #{model_forward.2} parent=1 // pred_region
      _
    $region129: #{model_forward.2} parent=1 // pred_fallthru
      _
    // Predicated region
    $region130: #{model_forward.2} parent=1 // pred_check
      _
    $region131: #{model_forward.2} parent=1 // pred_check_branch
      %3725 = sbr.rel (0) target = $region133
    $region132: #{model_forward.2} parent=1 // pred_region
      %3726 = dma.done [#allocation4], 512
    $region133: #{model_forward.2} parent=1 // pred_fallthru
      _
    // Predicated region
    $region134: #{model_forward.2} parent=1 // pred_check
      _
    $region135: #{model_forward.2} parent=1 // pred_check_branch
      %3728 = sbr.rel (0) target = $region137
    $region136: #{model_forward.2} parent=1 // pred_region
      _
    $region137: #{model_forward.2} parent=1 // pred_fallthru
      _
    %3729 = vsyncpa [#allocation4], 1

// kernel: model_forward.3
$region0: #{model_forward.3}
  #allocation0 [shape = 'u32[]', space=smem, size = 0x4, offset = 0x4, fixed_abs, tag = 'smem constant byte address 0x4 - core index']
  #allocation1 [shape = 'u32[144,128]{1,0:T(1,128)}', space=vmem, size = 0x12000, scoped, tag = 'internal scratch']
  #allocation2 [shape = 'bf16[32,32]{1,0:T(16,128)(2,1)}', space=vmem, size = 0x2000, scoped, tag = 'scratch operand']
  #allocation3 [shape = 'f32[1,1]{1,0:T(1,128)S(1)}', space=vmem, size = 0x200, scoped, tag = 'scoped memory for model_forward.3']
  %s0 = inlined_call_operand.vmem [shape: s32[32,1], index: 0, kind: input, shape index: {}]
  %s1 = inlined_call_operand.vmem [shape: s32[32,1], index: 1, kind: input, shape index: {}]
  %s2 = inlined_call_operand.vmem [shape: s32[2,16], index: 2, kind: input, shape index: {}]
  %s3 = inlined_call_operand.vmem [shape: bf16[128,64], index: 3, kind: input, shape index: {}]
  %s4 = inlined_call_operand.vmem [shape: f32[32,64], index: 4, kind: input, shape index: {}]
  %s5 = inlined_call_operand.vmem [shape: f32[1,64], index: 5, kind: input, shape index: {}]
  %s6 = inlined_call_operand.vmem [shape: f32[1,64], index: 6, kind: input, shape index: {}]
  %s7 = inlined_call_operand.vmem [shape: bf16[4,64,32], index: 7, kind: input, shape index: {}]
  %s8 = inlined_call_operand.vmem [shape: f32[4,1,32], index: 8, kind: input, shape index: {}]
  %s9 = inlined_call_operand.vmem [shape: bf16[4,64,32], index: 9, kind: input, shape index: {}]
  %s10 = inlined_call_operand.vmem [shape: f32[4,1,32], index: 10, kind: input, shape index: {}]
  %s11 = inlined_call_operand.vmem [shape: bf16[4,64,32], index: 11, kind: input, shape index: {}]
  %s12 = inlined_call_operand.vmem [shape: f32[4,1,32], index: 12, kind: input, shape index: {}]
  %s13 = inlined_call_operand.vmem [shape: bf16[4,32,64], index: 13, kind: input, shape index: {}]
  %s14 = inlined_call_operand.vmem [shape: f32[2,1,64], index: 14, kind: input, shape index: {}]
  %s15 = inlined_call_operand.vmem [shape: f32[2,1,64], index: 15, kind: input, shape index: {}]
  %s16 = inlined_call_operand.vmem [shape: f32[2,1,64], index: 16, kind: input, shape index: {}]
  %s17 = inlined_call_operand.vmem [shape: bf16[2,64,128], index: 17, kind: input, shape index: {}]
  %s18 = inlined_call_operand.vmem [shape: f32[2,1,128], index: 18, kind: input, shape index: {}]
  %s19 = inlined_call_operand.vmem [shape: bf16[2,128,64], index: 19, kind: input, shape index: {}]
  %s20 = inlined_call_operand.vmem [shape: f32[2,1,64], index: 20, kind: input, shape index: {}]
  %s21 = inlined_call_operand.vmem [shape: f32[2,1,64], index: 21, kind: input, shape index: {}]
  %s22 = inlined_call_operand.vmem [shape: f32[2,1,64], index: 22, kind: input, shape index: {}]
  %s23 = inlined_call_operand.vmem [shape: bf16[64,64], index: 23, kind: input, shape index: {}]
  %s24 = inlined_call_operand.vmem [shape: f32[1,64], index: 24, kind: input, shape index: {}]
  %s25 = inlined_call_operand.vmem [shape: bf16[64,1], index: 25, kind: input, shape index: {}]
  %s26 = inlined_call_operand.<no memory space> [shape: f32[1,1], index: 26, kind: input, shape index: {}]
  %s27 = inlined_call_operand.vmem [shape: f32[32,1], index: 27, kind: output, shape index: {0}]
  %s28 = inlined_call_operand.vmem [shape: f32[32,1], index: 28, kind: output, shape index: {1}]
  %29 = xla_tuple %s27, %s28
  %s30 = sld [smem:[#allocation0]]
  $region126: #{model_forward.3} parent=0
    _
  %s32 = ssub.s32 1, %s30
  %s33 = scalar_select 0, %s32, %s30
  %v34 = vstv %s26
  %35 = vst [vmem:[#allocation3] sm:$0x1] %v34
  // Predicated region
  $region2: #{model_forward.3} parent=0 // pred_check
    _
  $region3: #{model_forward.3} parent=0 // pred_check_branch
    %37 = sbr.rel (0) target = $region5
  $region4: #{model_forward.3} parent=0 // pred_region
    _
  $region5: #{model_forward.3} parent=0 // pred_fallthru
    _
  // Predicated region
  $region6: #{model_forward.3} parent=0 // pred_check
    _
  $region7: #{model_forward.3} parent=0 // pred_check_branch
    %39 = sbr.rel (0) target = $region9
  $region8: #{model_forward.3} parent=0 // pred_region
    _
  $region9: #{model_forward.3} parent=0 // pred_fallthru
    _
  // Predicated region
  $region10: #{model_forward.3} parent=0 // pred_check
    _
  $region11: #{model_forward.3} parent=0 // pred_check_branch
    %41 = sbr.rel (0) target = $region13
  $region12: #{model_forward.3} parent=0 // pred_region
    _
  $region13: #{model_forward.3} parent=0 // pred_fallthru
    _
  // Predicated region
  $region14: #{model_forward.3} parent=0 // pred_check
    _
  $region15: #{model_forward.3} parent=0 // pred_check_branch
    %43 = sbr.rel (0) target = $region17
  $region16: #{model_forward.3} parent=0 // pred_region
    _
  $region17: #{model_forward.3} parent=0 // pred_fallthru
    _
  // Predicated region
  $region18: #{model_forward.3} parent=0 // pred_check
    _
  $region19: #{model_forward.3} parent=0 // pred_check_branch
    %45 = sbr.rel (0) target = $region21
  $region20: #{model_forward.3} parent=0 // pred_region
    _
  $region21: #{model_forward.3} parent=0 // pred_fallthru
    _
  // Predicated region
  $region22: #{model_forward.3} parent=0 // pred_check
    _
  $region23: #{model_forward.3} parent=0 // pred_check_branch
    %47 = sbr.rel (0) target = $region25
  $region24: #{model_forward.3} parent=0 // pred_region
    _
  $region25: #{model_forward.3} parent=0 // pred_fallthru
    _
  // Predicated region
  $region26: #{model_forward.3} parent=0 // pred_check
    _
  $region27: #{model_forward.3} parent=0 // pred_check_branch
    %49 = sbr.rel (0) target = $region29
  $region28: #{model_forward.3} parent=0 // pred_region
    _
  $region29: #{model_forward.3} parent=0 // pred_fallthru
    _
  // Predicated region
  $region30: #{model_forward.3} parent=0 // pred_check
    _
  $region31: #{model_forward.3} parent=0 // pred_check_branch
    %51 = sbr.rel (0) target = $region33
  $region32: #{model_forward.3} parent=0 // pred_region
    _
  $region33: #{model_forward.3} parent=0 // pred_fallthru
    _
  // Predicated region
  $region34: #{model_forward.3} parent=0 // pred_check
    _
  $region35: #{model_forward.3} parent=0 // pred_check_branch
    %53 = sbr.rel (0) target = $region37
  $region36: #{model_forward.3} parent=0 // pred_region
    _
  $region37: #{model_forward.3} parent=0 // pred_fallthru
    _
  // Predicated region
  $region38: #{model_forward.3} parent=0 // pred_check
    _
  $region39: #{model_forward.3} parent=0 // pred_check_branch
    %55 = sbr.rel (0) target = $region41
  $region40: #{model_forward.3} parent=0 // pred_region
    _
  $region41: #{model_forward.3} parent=0 // pred_fallthru
    _
  // Predicated region
  $region42: #{model_forward.3} parent=0 // pred_check
    _
  $region43: #{model_forward.3} parent=0 // pred_check_branch
    %57 = sbr.rel (0) target = $region45
  $region44: #{model_forward.3} parent=0 // pred_region
    _
  $region45: #{model_forward.3} parent=0 // pred_fallthru
    _
  // Predicated region
  $region46: #{model_forward.3} parent=0 // pred_check
    _
  $region47: #{model_forward.3} parent=0 // pred_check_branch
    %59 = sbr.rel (0) target = $region49
  $region48: #{model_forward.3} parent=0 // pred_region
    _
  $region49: #{model_forward.3} parent=0 // pred_fallthru
    _
  // Predicated region
  $region50: #{model_forward.3} parent=0 // pred_check
    _
  $region51: #{model_forward.3} parent=0 // pred_check_branch
    %61 = sbr.rel (0) target = $region53
  $region52: #{model_forward.3} parent=0 // pred_region
    _
  $region53: #{model_forward.3} parent=0 // pred_fallthru
    _
  // Predicated region
  $region54: #{model_forward.3} parent=0 // pred_check
    _
  $region55: #{model_forward.3} parent=0 // pred_check_branch
    %63 = sbr.rel (0) target = $region57
  $region56: #{model_forward.3} parent=0 // pred_region
    _
  $region57: #{model_forward.3} parent=0 // pred_fallthru
    _
  // Predicated region
  $region58: #{model_forward.3} parent=0 // pred_check
    _
  $region59: #{model_forward.3} parent=0 // pred_check_branch
    %65 = sbr.rel (0) target = $region61
  $region60: #{model_forward.3} parent=0 // pred_region
    _
  $region61: #{model_forward.3} parent=0 // pred_fallthru
    _
  // Predicated region
  $region62: #{model_forward.3} parent=0 // pred_check
    _
  $region63: #{model_forward.3} parent=0 // pred_check_branch
    %67 = sbr.rel (0) target = $region65
  $region64: #{model_forward.3} parent=0 // pred_region
    _
  $region65: #{model_forward.3} parent=0 // pred_fallthru
    _
  // Predicated region
  $region66: #{model_forward.3} parent=0 // pred_check
    _
  $region67: #{model_forward.3} parent=0 // pred_check_branch
    %69 = sbr.rel (0) target = $region69
  $region68: #{model_forward.3} parent=0 // pred_region
    _
  $region69: #{model_forward.3} parent=0 // pred_fallthru
    _
  // Predicated region
  $region70: #{model_forward.3} parent=0 // pred_check
    _
  $region71: #{model_forward.3} parent=0 // pred_check_branch
    %71 = sbr.rel (0) target = $region73
  $region72: #{model_forward.3} parent=0 // pred_region
    _
  $region73: #{model_forward.3} parent=0 // pred_fallthru
    _
  // Predicated region
  $region74: #{model_forward.3} parent=0 // pred_check
    _
  $region75: #{model_forward.3} parent=0 // pred_check_branch
    %73 = sbr.rel (0) target = $region77
  $region76: #{model_forward.3} parent=0 // pred_region
    _
  $region77: #{model_forward.3} parent=0 // pred_fallthru
    _
  // Predicated region
  $region78: #{model_forward.3} parent=0 // pred_check
    _
  $region79: #{model_forward.3} parent=0 // pred_check_branch
    %75 = sbr.rel (0) target = $region81
  $region80: #{model_forward.3} parent=0 // pred_region
    _
  $region81: #{model_forward.3} parent=0 // pred_fallthru
    _
  // Predicated region
  $region82: #{model_forward.3} parent=0 // pred_check
    _
  $region83: #{model_forward.3} parent=0 // pred_check_branch
    %77 = sbr.rel (0) target = $region85
  $region84: #{model_forward.3} parent=0 // pred_region
    _
  $region85: #{model_forward.3} parent=0 // pred_fallthru
    _
  // Predicated region
  $region86: #{model_forward.3} parent=0 // pred_check
    _
  $region87: #{model_forward.3} parent=0 // pred_check_branch
    %79 = sbr.rel (0) target = $region89
  $region88: #{model_forward.3} parent=0 // pred_region
    _
  $region89: #{model_forward.3} parent=0 // pred_fallthru
    _
  // Predicated region
  $region90: #{model_forward.3} parent=0 // pred_check
    _
  $region91: #{model_forward.3} parent=0 // pred_check_branch
    %81 = sbr.rel (0) target = $region93
  $region92: #{model_forward.3} parent=0 // pred_region
    _
  $region93: #{model_forward.3} parent=0 // pred_fallthru
    _
  // Predicated region
  $region94: #{model_forward.3} parent=0 // pred_check
    _
  $region95: #{model_forward.3} parent=0 // pred_check_branch
    %83 = sbr.rel (0) target = $region97
  $region96: #{model_forward.3} parent=0 // pred_region
    _
  $region97: #{model_forward.3} parent=0 // pred_fallthru
    _
  // Predicated region
  $region98: #{model_forward.3} parent=0 // pred_check
    _
  $region99: #{model_forward.3} parent=0 // pred_check_branch
    %85 = sbr.rel (0) target = $region101
  $region100: #{model_forward.3} parent=0 // pred_region
    _
  $region101: #{model_forward.3} parent=0 // pred_fallthru
    _
  // Predicated region
  $region102: #{model_forward.3} parent=0 // pred_check
    _
  $region103: #{model_forward.3} parent=0 // pred_check_branch
    %87 = sbr.rel (0) target = $region105
  $region104: #{model_forward.3} parent=0 // pred_region
    _
  $region105: #{model_forward.3} parent=0 // pred_fallthru
    _
  // Predicated region
  $region106: #{model_forward.3} parent=0 // pred_check
    _
  $region107: #{model_forward.3} parent=0 // pred_check_branch
    %89 = sbr.rel (0) target = $region109
  $region108: #{model_forward.3} parent=0 // pred_region
    _
  $region109: #{model_forward.3} parent=0 // pred_fallthru
    _
  %v91 = vld [vmem:[%s0] sm:$0xff]
  %v92 = vld [vmem:[%s0 + $0x8] sm:$0xff]
  %v93 = vld [vmem:[%s0 + $0x10] sm:$0xff]
  %v94 = vld [vmem:[%s0 + $0x18] sm:$0xff]
  %v95 = vlaneseq
  %v96 = vand.u32 %v95, 127
  %97 = vset.pattern.permute.xlu0 0
  %98 = vperm.xlu0 %97, %v91
  %v99 = vpop.permute.xlu0 %98
  %100 = vset.pattern.permute.xlu0 0
  %101 = vperm.xlu0 %100, %v92
  %v102 = vpop.permute.xlu0 %101
  %103 = vset.pattern.permute.xlu0 0
  %104 = vperm.xlu0 %103, %v93
  %v105 = vpop.permute.xlu0 %104
  %106 = vset.pattern.permute.xlu0 0
  %107 = vperm.xlu0 %106, %v94
  %v108 = vpop.permute.xlu0 %107
  %vm109 = vcmp.eq.s32.totalorder %v96, %v99
  %vm110 = vcmp.eq.s32.totalorder %v96, %v102
  %vm111 = vcmp.eq.s32.totalorder %v96, %v105
  %vm112 = vcmp.eq.s32.totalorder %v96, %v108
  %v113 = vsel %vm109, 1.0, 0.0
  %v114 = vsel %vm110, 1.0, 0.0
  %v115 = vsel %vm111, 1.0, 0.0
  %v116 = vsel %vm112, 1.0, 0.0
  %v117 = vpack.c.bf16 %v114, %v113
  %v118 = vpack.c.bf16 %v116, %v115
  %v119 = vld [vmem:[%s3] sm:$0xf]
  %v120 = vld [vmem:[%s3 + $0x4] sm:$0xf]
  %v121 = vld [vmem:[%s3 + $0x8] sm:$0xf]
  %v122 = vld [vmem:[%s3 + $0xc] sm:$0xf]
  %v123 = vld [vmem:[%s3 + $0x10] sm:$0xf]
  %v124 = vld [vmem:[%s3 + $0x14] sm:$0xf]
  %v125 = vld [vmem:[%s3 + $0x18] sm:$0xf]
  %v126 = vld [vmem:[%s3 + $0x1c] sm:$0xf]
  %v127 = vld [vmem:[%s3 + $0x20] sm:$0xf]
  %v128 = vld [vmem:[%s3 + $0x24] sm:$0xf]
  %v129 = vld [vmem:[%s3 + $0x28] sm:$0xf]
  %v130 = vld [vmem:[%s3 + $0x2c] sm:$0xf]
  %v131 = vld [vmem:[%s3 + $0x30] sm:$0xf]
  %v132 = vld [vmem:[%s3 + $0x34] sm:$0xf]
  %v133 = vld [vmem:[%s3 + $0x38] sm:$0xf]
  %v134 = vld [vmem:[%s3 + $0x3c] sm:$0xf]
  %v135 = vld [vmem:[%s4] sm:$0xff]
  %v136 = vld [vmem:[%s4 + $0x8] sm:$0xff]
  %v137 = vld [vmem:[%s4 + $0x10] sm:$0xff]
  %v138 = vld [vmem:[%s4 + $0x18] sm:$0xff]
  %v155 = vunpack.c.l.b16 %v119
  %v156 = vunpack.c.l.b16 %v120
  %v157 = vunpack.c.l.b16 %v121
  %v158 = vunpack.c.l.b16 %v122
  %v159 = vunpack.c.l.b16 %v123
  %v160 = vunpack.c.l.b16 %v124
  %v161 = vunpack.c.l.b16 %v125
  %v162 = vunpack.c.l.b16 %v126
  %v163 = vunpack.c.l.b16 %v127
  %v164 = vunpack.c.l.b16 %v128
  %v165 = vunpack.c.l.b16 %v129
  %v166 = vunpack.c.l.b16 %v130
  %v167 = vunpack.c.l.b16 %v131
  %v168 = vunpack.c.l.b16 %v132
  %v169 = vunpack.c.l.b16 %v133
  %v170 = vunpack.c.l.b16 %v134
  %v171 = vpack.c.b16 %v156, %v155
  %v172 = vpack.c.b16 %v158, %v157
  %v173 = vpack.c.b16 %v160, %v159
  %v174 = vpack.c.b16 %v162, %v161
  %v175 = vpack.c.b16 %v164, %v163
  %v176 = vpack.c.b16 %v166, %v165
  %v177 = vpack.c.b16 %v168, %v167
  %v178 = vpack.c.b16 %v170, %v169
  %187 = vmatprep.subr.bf16.mxu0 0
  %188 = vmatpush1.bf16.msra.mxu0 %v171
  %189 = vmatprep.subr.bf16.mxu0 0
  %190 = vmatpush1.bf16.msra.mxu0 %v172
  %191 = vmatprep.subr.bf16.mxu0 0
  %192 = vmatpush1.bf16.msra.mxu0 %v173
  %193 = vmatprep.subr.bf16.mxu0 0
  %194 = vmatpush1.bf16.msra.mxu0 %v174
  %195 = vmatprep.subr.bf16.mxu0 0
  %196 = vmatpush1.bf16.msra.mxu0 %v175
  %197 = vmatprep.subr.bf16.mxu0 0
  %198 = vmatpush1.bf16.msra.mxu0 %v176
  %199 = vmatprep.subr.bf16.mxu0 0
  %200 = vmatpush1.bf16.msra.mxu0 %v177
  %201 = vmatprep.subr.bf16.mxu0 0
  %202 = vmatpush1.bf16.msra.mxu0 %v178
  %203 = vmatprep.subr.bf16.mxu0 0
  %204 = vmatpush1.bf16.msra.mxu0 0
  %205 = vmatprep.subr.bf16.mxu0 0
  %206 = vmatpush1.bf16.msra.mxu0 0
  %207 = vmatprep.subr.bf16.mxu0 0
  %208 = vmatpush1.bf16.msra.mxu0 0
  %209 = vmatprep.subr.bf16.mxu0 0
  %210 = vmatpush1.bf16.msra.mxu0 0
  %211 = vmatprep.subr.bf16.mxu0 0
  %212 = vmatpush1.bf16.msra.mxu0 0
  %213 = vmatprep.subr.bf16.mxu0 0
  %214 = vmatpush1.bf16.msra.mxu0 0
  %215 = vmatprep.subr.bf16.mxu0 0
  %216 = vmatpush1.bf16.msra.mxu0 0
  %217 = vmatprep.subr.bf16.mxu0 0
  %218 = vmatpush1.bf16.msra.mxu0 0
  %219 = vmatprep.mubr.bf16.mxu0 0
  %220 = vmatmul.mubr.bf16.gmra.mrb[0].mxu0 %v117
  %v221 = vpop.f32.mrb[0].mxu0
  %v222 = vadd.f32 %v135, %v221
  %v223 = vpop.f32.mrb[0].mxu0
  %v224 = vpop.f32.mrb[0].mxu0
  %v225 = vadd.f32 %v136, %v224
  %v226 = vpop.f32.mrb[0].mxu0
  %227 = vmatprep.mubr.bf16.mxu0 0
  %228 = vmatmul.mubr.bf16.gmra.mrb[0].mxu0 %v118
  %v229 = vpop.f32.mrb[0].mxu0
  %v230 = vadd.f32 %v137, %v229
  %v231 = vpop.f32.mrb[0].mxu0
  %v232 = vpop.f32.mrb[0].mxu0
  %v233 = vadd.f32 %v138, %v232
  %v234 = vpop.f32.mrb[0].mxu0
  %235 = vdwg.mxu0
  %v236 = vld [vmem:[%s5] sm:$0x1]
  %v237 = vld [vmem:[%s6] sm:$0x1]
  %vm238 = vcmask 523264
  %v239 = vsel %vm238, %v222, 0.0
  %240 = vadd.xlane.f32.xlu0 %v239
  %v241 = vpop.xlane.xlu0 %240
  %v242 = vsel %vm238, %v225, 0.0
  %243 = vadd.xlane.f32.xlu0 %v242
  %v244 = vpop.xlane.xlu0 %243
  %v245 = vsel %vm238, %v230, 0.0
  %246 = vadd.xlane.f32.xlu0 %v245
  %v247 = vpop.xlane.xlu0 %246
  %v248 = vsel %vm238, %v233, 0.0
  %249 = vadd.xlane.f32.xlu0 %v248
  %v250 = vpop.xlane.xlu0 %249
  %v251 = vrcp.pop 64.0
  %v252 = vmul.f32 %v241, %v251
  %v253 = vmul.f32 %v244, %v251
  %v254 = vmul.f32 %v247, %v251
  %v255 = vmul.f32 %v250, %v251
  %v256 = vsub.f32 %v222, %v252
  %v257 = vsub.f32 %v225, %v253
  %v258 = vsub.f32 %v230, %v254
  %v259 = vsub.f32 %v233, %v255
  %v260 = vmul.f32 %v256, %v256
  %v261 = vmul.f32 %v257, %v257
  %v262 = vmul.f32 %v258, %v258
  %v263 = vmul.f32 %v259, %v259
  %v264 = vsel %vm238, %v260, 0.0
  %265 = vadd.xlane.f32.xlu0 %v264
  %v266 = vpop.xlane.xlu0 %265
  %v267 = vsel %vm238, %v261, 0.0
  %268 = vadd.xlane.f32.xlu0 %v267
  %v269 = vpop.xlane.xlu0 %268
  %v270 = vsel %vm238, %v262, 0.0
  %271 = vadd.xlane.f32.xlu0 %v270
  %v272 = vpop.xlane.xlu0 %271
  %v273 = vsel %vm238, %v263, 0.0
  %274 = vadd.xlane.f32.xlu0 %v273
  %v275 = vpop.xlane.xlu0 %274
  %v276 = vmul.f32 %v266, %v251
  %v277 = vmul.f32 %v269, %v251
  %v278 = vmul.f32 %v272, %v251
  %v279 = vmul.f32 %v275, %v251
  %v280 = vadd.f32 %v276, 1e-12
  %v281 = vadd.f32 %v277, 1e-12
  %v282 = vadd.f32 %v278, 1e-12
  %v283 = vadd.f32 %v279, 1e-12
  %v284 = vrsqrt.pop %v280
  %v285 = vrsqrt.pop %v281
  %v286 = vrsqrt.pop %v282
  %v287 = vrsqrt.pop %v283
  %v288 = vmul.f32 %v256, %v284
  %v289 = vmul.f32 %v257, %v285
  %v290 = vmul.f32 %v258, %v286
  %v291 = vmul.f32 %v259, %v287
  %v293 = vlaneseq
  %v294 = vshrl.u32 %v293, 7
  %v295 = vsub.s32 0, %v294
  %v296 = vrot.slane %v236, %v295
  %v298 = vmul.f32 %v288, %v296
  %v299 = vmul.f32 %v289, %v296
  %v300 = vmul.f32 %v290, %v296
  %v301 = vmul.f32 %v291, %v296
  %v303 = vlaneseq
  %v304 = vshrl.u32 %v303, 7
  %v305 = vsub.s32 0, %v304
  %v306 = vrot.slane %v237, %v305
  %v308 = vadd.f32 %v298, %v306
  %v309 = vadd.f32 %v299, %v306
  %v310 = vadd.f32 %v300, %v306
  %v311 = vadd.f32 %v301, %v306
  %v312 = vld [vmem:[%s2] sm:$0x3]
  %v313 = vcvt.s32.f32 %v312
  %v314 = vsub.f32 1.0, %v313
  %v315 = vmul.f32 %v314, -10000.0
  %v316 = vpack.c.bf16 %v309, %v308
  %v317 = vpack.c.bf16 %v311, %v310
  %v318 = vld [vmem:[%s7] sm:$0xf]
  %v319 = vld [vmem:[%s7 + $0x4] sm:$0xf]
  %v320 = vld [vmem:[%s7 + $0x8] sm:$0xf]
  %v321 = vld [vmem:[%s7 + $0xc] sm:$0xf]
  %v322 = vld [vmem:[%s7 + $0x10] sm:$0xf]
  %v323 = vld [vmem:[%s7 + $0x14] sm:$0xf]
  %v324 = vld [vmem:[%s7 + $0x18] sm:$0xf]
  %v325 = vld [vmem:[%s7 + $0x1c] sm:$0xf]
  %v326 = vld [vmem:[%s8] sm:$0x1]
  %v328 = vlaneseq
  %v329 = vshrl.u32 %v328, 7
  %v330 = vsub.s32 0, %v329
  %v331 = vrot.slane %v326, %v330
  %v341 = vunpack.c.l.b16 %v318
  %v342 = vunpack.c.l.b16 %v319
  %v343 = vunpack.c.l.b16 %v320
  %v344 = vunpack.c.l.b16 %v321
  %v345 = vunpack.c.l.b16 %v322
  %v346 = vunpack.c.l.b16 %v323
  %v347 = vunpack.c.l.b16 %v324
  %v348 = vunpack.c.l.b16 %v325
  %v349 = vpack.c.b16 %v342, %v341
  %v350 = vpack.c.b16 %v344, %v343
  %v351 = vpack.c.b16 %v346, %v345
  %v352 = vpack.c.b16 %v348, %v347
  %v358 = vsel %vm238, %v316, 0
  %v361 = vsel %vm238, %v317, 0
  %363 = vmatprep.subr.bf16.mxu0 0
  %364 = vmatpush1.bf16.msra.mxu0 %v349
  %365 = vmatprep.subr.bf16.mxu0 0
  %366 = vmatpush1.bf16.msra.mxu0 %v350
  %367 = vmatprep.subr.bf16.mxu0 0
  %368 = vmatpush1.bf16.msra.mxu0 %v351
  %369 = vmatprep.subr.bf16.mxu0 0
  %370 = vmatpush1.bf16.msra.mxu0 %v352
  %371 = vmatprep.subr.bf16.mxu0 0
  %372 = vmatpush1.bf16.msra.mxu0 0
  %373 = vmatprep.subr.bf16.mxu0 0
  %374 = vmatpush1.bf16.msra.mxu0 0
  %375 = vmatprep.subr.bf16.mxu0 0
  %376 = vmatpush1.bf16.msra.mxu0 0
  %377 = vmatprep.subr.bf16.mxu0 0
  %378 = vmatpush1.bf16.msra.mxu0 0
  %379 = vmatprep.subr.bf16.mxu0 0
  %380 = vmatpush1.bf16.msra.mxu0 0
  %381 = vmatprep.subr.bf16.mxu0 0
  %382 = vmatpush1.bf16.msra.mxu0 0
  %383 = vmatprep.subr.bf16.mxu0 0
  %384 = vmatpush1.bf16.msra.mxu0 0
  %385 = vmatprep.subr.bf16.mxu0 0
  %386 = vmatpush1.bf16.msra.mxu0 0
  %387 = vmatprep.subr.bf16.mxu0 0
  %388 = vmatpush1.bf16.msra.mxu0 0
  %389 = vmatprep.subr.bf16.mxu0 0
  %390 = vmatpush1.bf16.msra.mxu0 0
  %391 = vmatprep.subr.bf16.mxu0 0
  %392 = vmatpush1.bf16.msra.mxu0 0
  %393 = vmatprep.subr.bf16.mxu0 0
  %394 = vmatpush1.bf16.msra.mxu0 0
  %395 = vmatprep.mubr.bf16.mxu0 0
  %396 = vmatmul.mubr.bf16.gmra.mrb[0].mxu0 %v358
  %v397 = vpop.f32.mrb[0].mxu0
  %v398 = vadd.f32 %v331, %v397
  %v399 = vpop.f32.mrb[0].mxu0
  %v400 = vpop.f32.mrb[0].mxu0
  %v401 = vadd.f32 %v331, %v400
  %v402 = vpop.f32.mrb[0].mxu0
  %403 = vmatprep.mubr.bf16.mxu0 0
  %404 = vmatmul.mubr.bf16.gmra.mrb[0].mxu0 %v361
  %v405 = vpop.f32.mrb[0].mxu0
  %v406 = vadd.f32 %v331, %v405
  %v407 = vpop.f32.mrb[0].mxu0
  %v408 = vpop.f32.mrb[0].mxu0
  %v409 = vadd.f32 %v331, %v408
  %v410 = vpop.f32.mrb[0].mxu0
  %411 = vdwg.mxu0
  %v412 = vpack.c.bf16 %v401, %v398
  %v413 = vpack.c.bf16 %v409, %v406
  %v414 = vld [vmem:[%s9] sm:$0xf]
  %v415 = vld [vmem:[%s9 + $0x4] sm:$0xf]
  %v416 = vld [vmem:[%s9 + $0x8] sm:$0xf]
  %v417 = vld [vmem:[%s9 + $0xc] sm:$0xf]
  %v418 = vld [vmem:[%s9 + $0x10] sm:$0xf]
  %v419 = vld [vmem:[%s9 + $0x14] sm:$0xf]
  %v420 = vld [vmem:[%s9 + $0x18] sm:$0xf]
  %v421 = vld [vmem:[%s9 + $0x1c] sm:$0xf]
  %v422 = vld [vmem:[%s10] sm:$0x1]
  %v424 = vlaneseq
  %v425 = vshrl.u32 %v424, 7
  %v426 = vsub.s32 0, %v425
  %v427 = vrot.slane %v422, %v426
  %v437 = vunpack.c.l.b16 %v414
  %v438 = vunpack.c.l.b16 %v415
  %v439 = vunpack.c.l.b16 %v416
  %v440 = vunpack.c.l.b16 %v417
  %v441 = vunpack.c.l.b16 %v418
  %v442 = vunpack.c.l.b16 %v419
  %v443 = vunpack.c.l.b16 %v420
  %v444 = vunpack.c.l.b16 %v421
  %v445 = vpack.c.b16 %v438, %v437
  %v446 = vpack.c.b16 %v440, %v439
  %v447 = vpack.c.b16 %v442, %v441
  %v448 = vpack.c.b16 %v444, %v443
  %453 = vmatprep.subr.bf16.mxu0 0
  %454 = vmatpush1.bf16.msra.mxu0 %v445
  %455 = vmatprep.subr.bf16.mxu0 0
  %456 = vmatpush1.bf16.msra.mxu0 %v446
  %457 = vmatprep.subr.bf16.mxu0 0
  %458 = vmatpush1.bf16.msra.mxu0 %v447
  %459 = vmatprep.subr.bf16.mxu0 0
  %460 = vmatpush1.bf16.msra.mxu0 %v448
  %461 = vmatprep.subr.bf16.mxu0 0
  %462 = vmatpush1.bf16.msra.mxu0 0
  %463 = vmatprep.subr.bf16.mxu0 0
  %464 = vmatpush1.bf16.msra.mxu0 0
  %465 = vmatprep.subr.bf16.mxu0 0
  %466 = vmatpush1.bf16.msra.mxu0 0
  %467 = vmatprep.subr.bf16.mxu0 0
  %468 = vmatpush1.bf16.msra.mxu0 0
  %469 = vmatprep.subr.bf16.mxu0 0
  %470 = vmatpush1.bf16.msra.mxu0 0
  %471 = vmatprep.subr.bf16.mxu0 0
  %472 = vmatpush1.bf16.msra.mxu0 0
  %473 = vmatprep.subr.bf16.mxu0 0
  %474 = vmatpush1.bf16.msra.mxu0 0
  %475 = vmatprep.subr.bf16.mxu0 0
  %476 = vmatpush1.bf16.msra.mxu0 0
  %477 = vmatprep.subr.bf16.mxu0 0
  %478 = vmatpush1.bf16.msra.mxu0 0
  %479 = vmatprep.subr.bf16.mxu0 0
  %480 = vmatpush1.bf16.msra.mxu0 0
  %481 = vmatprep.subr.bf16.mxu0 0
  %482 = vmatpush1.bf16.msra.mxu0 0
  %483 = vmatprep.subr.bf16.mxu0 0
  %484 = vmatpush1.bf16.msra.mxu0 0
  %485 = vmatprep.mubr.bf16.mxu0 0
  %486 = vmatmul.mubr.bf16.gmra.mrb[0].mxu0 %v358
  %v487 = vpop.f32.mrb[0].mxu0
  %v488 = vadd.f32 %v427, %v487
  %v489 = vpop.f32.mrb[0].mxu0
  %v490 = vpop.f32.mrb[0].mxu0
  %v491 = vadd.f32 %v427, %v490
  %v492 = vpop.f32.mrb[0].mxu0
  %493 = vmatprep.mubr.bf16.mxu0 0
  %494 = vmatmul.mubr.bf16.gmra.mrb[0].mxu0 %v361
  %v495 = vpop.f32.mrb[0].mxu0
  %v496 = vadd.f32 %v427, %v495
  %v497 = vpop.f32.mrb[0].mxu0
  %v498 = vpop.f32.mrb[0].mxu0
  %v499 = vadd.f32 %v427, %v498
  %v500 = vpop.f32.mrb[0].mxu0
  %501 = vdwg.mxu0
  %v502 = vpack.c.bf16 %v491, %v488
  %v503 = vpack.c.bf16 %v499, %v496
  %v504 = vld [vmem:[%s11] sm:$0xf]
  %v505 = vld [vmem:[%s11 + $0x4] sm:$0xf]
  %v506 = vld [vmem:[%s11 + $0x8] sm:$0xf]
  %v507 = vld [vmem:[%s11 + $0xc] sm:$0xf]
  %v508 = vld [vmem:[%s11 + $0x10] sm:$0xf]
  %v509 = vld [vmem:[%s11 + $0x14] sm:$0xf]
  %v510 = vld [vmem:[%s11 + $0x18] sm:$0xf]
  %v511 = vld [vmem:[%s11 + $0x1c] sm:$0xf]
  %v512 = vld [vmem:[%s12] sm:$0x1]
  %v514 = vlaneseq
  %v515 = vshrl.u32 %v514, 7
  %v516 = vsub.s32 0, %v515
  %v517 = vrot.slane %v512, %v516
  %v527 = vunpack.c.l.b16 %v504
  %v528 = vunpack.c.l.b16 %v505
  %v529 = vunpack.c.l.b16 %v506
  %v530 = vunpack.c.l.b16 %v507
  %v531 = vunpack.c.l.b16 %v508
  %v532 = vunpack.c.l.b16 %v509
  %v533 = vunpack.c.l.b16 %v510
  %v534 = vunpack.c.l.b16 %v511
  %v535 = vpack.c.b16 %v528, %v527
  %v536 = vpack.c.b16 %v530, %v529
  %v537 = vpack.c.b16 %v532, %v531
  %v538 = vpack.c.b16 %v534, %v533
  %543 = vmatprep.subr.bf16.mxu0 0
  %544 = vmatpush1.bf16.msra.mxu0 %v535
  %545 = vmatprep.subr.bf16.mxu0 0
  %546 = vmatpush1.bf16.msra.mxu0 %v536
  %547 = vmatprep.subr.bf16.mxu0 0
  %548 = vmatpush1.bf16.msra.mxu0 %v537
  %549 = vmatprep.subr.bf16.mxu0 0
  %550 = vmatpush1.bf16.msra.mxu0 %v538
  %551 = vmatprep.subr.bf16.mxu0 0
  %552 = vmatpush1.bf16.msra.mxu0 0
  %553 = vmatprep.subr.bf16.mxu0 0
  %554 = vmatpush1.bf16.msra.mxu0 0
  %555 = vmatprep.subr.bf16.mxu0 0
  %556 = vmatpush1.bf16.msra.mxu0 0
  %557 = vmatprep.subr.bf16.mxu0 0
  %558 = vmatpush1.bf16.msra.mxu0 0
  %559 = vmatprep.subr.bf16.mxu0 0
  %560 = vmatpush1.bf16.msra.mxu0 0
  %561 = vmatprep.subr.bf16.mxu0 0
  %562 = vmatpush1.bf16.msra.mxu0 0
  %563 = vmatprep.subr.bf16.mxu0 0
  %564 = vmatpush1.bf16.msra.mxu0 0
  %565 = vmatprep.subr.bf16.mxu0 0
  %566 = vmatpush1.bf16.msra.mxu0 0
  %567 = vmatprep.subr.bf16.mxu0 0
  %568 = vmatpush1.bf16.msra.mxu0 0
  %569 = vmatprep.subr.bf16.mxu0 0
  %570 = vmatpush1.bf16.msra.mxu0 0
  %571 = vmatprep.subr.bf16.mxu0 0
  %572 = vmatpush1.bf16.msra.mxu0 0
  %573 = vmatprep.subr.bf16.mxu0 0
  %574 = vmatpush1.bf16.msra.mxu0 0
  %575 = vmatprep.mubr.bf16.mxu0 0
  %576 = vmatmul.mubr.bf16.gmra.mrb[0].mxu0 %v358
  %v577 = vpop.f32.mrb[0].mxu0
  %v578 = vadd.f32 %v517, %v577
  %v579 = vpop.f32.mrb[0].mxu0
  %v580 = vpop.f32.mrb[0].mxu0
  %v581 = vadd.f32 %v517, %v580
  %v582 = vpop.f32.mrb[0].mxu0
  %583 = vmatprep.mubr.bf16.mxu0 0
  %584 = vmatmul.mubr.bf16.gmra.mrb[0].mxu0 %v361
  %v585 = vpop.f32.mrb[0].mxu0
  %v586 = vadd.f32 %v517, %v585
  %v587 = vpop.f32.mrb[0].mxu0
  %v588 = vpop.f32.mrb[0].mxu0
  %v589 = vadd.f32 %v517, %v588
  %v590 = vpop.f32.mrb[0].mxu0
  %591 = vdwg.mxu0
  %v592 = vpack.c.bf16 %v581, %v578
  %v593 = vpack.c.bf16 %v589, %v586
  %v594 = vlaneseq
  %v595 = vshrl.u32 %v594, 7
  %v596 = vsub.s32 0, %v595
  %v597 = vrot.slane %v315, %v596
  %vm598 = vcmask 261120
  %v600 = vsel %vm598, %v412, 0
  %v603 = vsel %vm598, %v502, 0
  %605 = vmatprep.subr.bf16.mxu0 0
  %606 = vmatpush1.bf16.xpose.msra.mxu0 %v603
  %607 = vmatprep.subr.bf16.mxu0 0
  %608 = vmatpush1.bf16.xpose.msra.mxu0 0
  %609 = vmatprep.subr.bf16.mxu0 0
  %610 = vmatpush1.bf16.xpose.msra.mxu0 0
  %611 = vmatprep.subr.bf16.mxu0 0
  %612 = vmatpush1.bf16.xpose.msra.mxu0 0
  %613 = vmatprep.subr.bf16.mxu0 0
  %614 = vmatpush1.bf16.xpose.msra.mxu0 0
  %615 = vmatprep.subr.bf16.mxu0 0
  %616 = vmatpush1.bf16.xpose.msra.mxu0 0
  %617 = vmatprep.subr.bf16.mxu0 0
  %618 = vmatpush1.bf16.xpose.msra.mxu0 0
  %619 = vmatprep.subr.bf16.mxu0 0
  %620 = vmatpush1.bf16.xpose.msra.mxu0 0
  %621 = vmatprep.subr.bf16.mxu0 0
  %622 = vmatpush1.bf16.xpose.msra.mxu0 0
  %623 = vmatprep.subr.bf16.mxu0 0
  %624 = vmatpush1.bf16.xpose.msra.mxu0 0
  %625 = vmatprep.subr.bf16.mxu0 0
  %626 = vmatpush1.bf16.xpose.msra.mxu0 0
  %627 = vmatprep.subr.bf16.mxu0 0
  %628 = vmatpush1.bf16.xpose.msra.mxu0 0
  %629 = vmatprep.subr.bf16.mxu0 0
  %630 = vmatpush1.bf16.xpose.msra.mxu0 0
  %631 = vmatprep.subr.bf16.mxu0 0
  %632 = vmatpush1.bf16.xpose.msra.mxu0 0
  %633 = vmatprep.subr.bf16.mxu0 0
  %634 = vmatpush1.bf16.xpose.msra.mxu0 0
  %635 = vmatprep.subr.bf16.mxu0 0
  %636 = vmatpush1.bf16.xpose.msra.mxu0 0
  %637 = vmatprep.mubr.bf16.mxu0 0
  %638 = vmatmul.mubr.bf16.gmra.mrb[0].mxu0 %v600
  %v639 = vpop.f32.mrb[0].mxu0
  %v640 = vadd.f32 %v597, %v639
  %v641 = vpop.f32.mrb[0].mxu0
  %v642 = vpop.f32.mrb[0].mxu0
  %v643 = vadd.f32 %v597, %v642
  %v644 = vpop.f32.mrb[0].mxu0
  %645 = vdwg.mxu0
  %vm646 = vcmask 130048
  %v647 = vsel %vm646, %v640, -inf
  %648 = vmax.xlane.f32.xlu0 %v647
  %v649 = vpop.xlane.xlu0 %648
  %v650 = vsel %vm646, %v643, -inf
  %651 = vmax.xlane.f32.xlu0 %v650
  %v652 = vpop.xlane.xlu0 %651
  %v653 = vsub.f32 %v640, %v649
  %v654 = vsub.f32 %v643, %v652
  %v655 = vmul.f32 %v653, 1.442695
  %v656 = vpow.pop %v655
  %v657 = vmul.f32 %v654, 1.442695
  %v658 = vpow.pop %v657
  %v659 = vsel %vm646, %v656, 0.0
  %660 = vadd.xlane.f32.xlu0 %v659
  %v661 = vpop.xlane.xlu0 %660
  %v662 = vsel %vm646, %v658, 0.0
  %663 = vadd.xlane.f32.xlu0 %v662
  %v664 = vpop.xlane.xlu0 %663
  %v665 = vrcp.pop %v661
  %v666 = vrcp.pop %v664
  %v667 = vmul.f32 %v656, %v665
  %v668 = vmul.f32 %v658, %v666
  %v669 = vpack.c.bf16 %v668, %v667
  %v671 = vsel %vm646, %v669, 0
  %673 = vmatprep.subr.bf16.mxu0 0
  %674 = vmatpush1.bf16.msra.mxu0 %v592
  %675 = vmatprep.subr.bf16.mxu0 0
  %676 = vmatpush1.bf16.msra.mxu0 0
  %677 = vmatprep.subr.bf16.mxu0 0
  %678 = vmatpush1.bf16.msra.mxu0 0
  %679 = vmatprep.subr.bf16.mxu0 0
  %680 = vmatpush1.bf16.msra.mxu0 0
  %681 = vmatprep.subr.bf16.mxu0 0
  %682 = vmatpush1.bf16.msra.mxu0 0
  %683 = vmatprep.subr.bf16.mxu0 0
  %684 = vmatpush1.bf16.msra.mxu0 0
  %685 = vmatprep.subr.bf16.mxu0 0
  %686 = vmatpush1.bf16.msra.mxu0 0
  %687 = vmatprep.subr.bf16.mxu0 0
  %688 = vmatpush1.bf16.msra.mxu0 0
  %689 = vmatprep.subr.bf16.mxu0 0
  %690 = vmatpush1.bf16.msra.mxu0 0
  %691 = vmatprep.subr.bf16.mxu0 0
  %692 = vmatpush1.bf16.msra.mxu0 0
  %693 = vmatprep.subr.bf16.mxu0 0
  %694 = vmatpush1.bf16.msra.mxu0 0
  %695 = vmatprep.subr.bf16.mxu0 0
  %696 = vmatpush1.bf16.msra.mxu0 0
  %697 = vmatprep.subr.bf16.mxu0 0
  %698 = vmatpush1.bf16.msra.mxu0 0
  %699 = vmatprep.subr.bf16.mxu0 0
  %700 = vmatpush1.bf16.msra.mxu0 0
  %701 = vmatprep.subr.bf16.mxu0 0
  %702 = vmatpush1.bf16.msra.mxu0 0
  %703 = vmatprep.subr.bf16.mxu0 0
  %704 = vmatpush1.bf16.msra.mxu0 0
  %705 = vmatprep.mubr.bf16.mxu0 0
  %706 = vmatmul.mubr.bf16.gmra.mrb[0].mxu0 %v671
  %v707 = vpop.f32.mrb[0].mxu0
  %v708 = vadd.f32 0.0, %v707
  %v709 = vpop.f32.mrb[0].mxu0
  %v710 = vpop.f32.mrb[0].mxu0
  %v711 = vadd.f32 0.0, %v710
  %v712 = vpop.f32.mrb[0].mxu0
  %713 = vdwg.mxu0
  %v714 = vpack.c.bf16 %v711, %v708
  %715 = vst.msk [vmem:[#allocation2] sm:$0xff] %vm598, %v714
  %v716 = vlaneseq
  %v717 = vshrl.u32 %v716, 7
  %v718 = vsub.s32 1, %v717
  %v719 = vrot.slane %v315, %v718
  %v721 = vsel %vm598, %v413, 0
  %v724 = vsel %vm598, %v503, 0
  %726 = vmatprep.subr.bf16.mxu0 0
  %727 = vmatpush1.bf16.xpose.msra.mxu0 %v724
  %728 = vmatprep.subr.bf16.mxu0 0
  %729 = vmatpush1.bf16.xpose.msra.mxu0 0
  %730 = vmatprep.subr.bf16.mxu0 0
  %731 = vmatpush1.bf16.xpose.msra.mxu0 0
  %732 = vmatprep.subr.bf16.mxu0 0
  %733 = vmatpush1.bf16.xpose.msra.mxu0 0
  %734 = vmatprep.subr.bf16.mxu0 0
  %735 = vmatpush1.bf16.xpose.msra.mxu0 0
  %736 = vmatprep.subr.bf16.mxu0 0
  %737 = vmatpush1.bf16.xpose.msra.mxu0 0
  %738 = vmatprep.subr.bf16.mxu0 0
  %739 = vmatpush1.bf16.xpose.msra.mxu0 0
  %740 = vmatprep.subr.bf16.mxu0 0
  %741 = vmatpush1.bf16.xpose.msra.mxu0 0
  %742 = vmatprep.subr.bf16.mxu0 0
  %743 = vmatpush1.bf16.xpose.msra.mxu0 0
  %744 = vmatprep.subr.bf16.mxu0 0
  %745 = vmatpush1.bf16.xpose.msra.mxu0 0
  %746 = vmatprep.subr.bf16.mxu0 0
  %747 = vmatpush1.bf16.xpose.msra.mxu0 0
  %748 = vmatprep.subr.bf16.mxu0 0
  %749 = vmatpush1.bf16.xpose.msra.mxu0 0
  %750 = vmatprep.subr.bf16.mxu0 0
  %751 = vmatpush1.bf16.xpose.msra.mxu0 0
  %752 = vmatprep.subr.bf16.mxu0 0
  %753 = vmatpush1.bf16.xpose.msra.mxu0 0
  %754 = vmatprep.subr.bf16.mxu0 0
  %755 = vmatpush1.bf16.xpose.msra.mxu0 0
  %756 = vmatprep.subr.bf16.mxu0 0
  %757 = vmatpush1.bf16.xpose.msra.mxu0 0
  %758 = vmatprep.mubr.bf16.mxu0 0
  %759 = vmatmul.mubr.bf16.gmra.mrb[0].mxu0 %v721
  %v760 = vpop.f32.mrb[0].mxu0
  %v761 = vadd.f32 %v719, %v760
  %v762 = vpop.f32.mrb[0].mxu0
  %v763 = vpop.f32.mrb[0].mxu0
  %v764 = vadd.f32 %v719, %v763
  %v765 = vpop.f32.mrb[0].mxu0
  %766 = vdwg.mxu0
  %v767 = vsel %vm646, %v761, -inf
  %768 = vmax.xlane.f32.xlu0 %v767
  %v769 = vpop.xlane.xlu0 %768
  %v770 = vsel %vm646, %v764, -inf
  %771 = vmax.xlane.f32.xlu0 %v770
  %v772 = vpop.xlane.xlu0 %771
  %v773 = vsub.f32 %v761, %v769
  %v774 = vsub.f32 %v764, %v772
  %v775 = vmul.f32 %v773, 1.442695
  %v776 = vpow.pop %v775
  %v777 = vmul.f32 %v774, 1.442695
  %v778 = vpow.pop %v777
  %v779 = vsel %vm646, %v776, 0.0
  %780 = vadd.xlane.f32.xlu0 %v779
  %v781 = vpop.xlane.xlu0 %780
  %v782 = vsel %vm646, %v778, 0.0
  %783 = vadd.xlane.f32.xlu0 %v782
  %v784 = vpop.xlane.xlu0 %783
  %v785 = vrcp.pop %v781
  %v786 = vrcp.pop %v784
  %v787 = vmul.f32 %v776, %v785
  %v788 = vmul.f32 %v778, %v786
  %v789 = vpack.c.bf16 %v788, %v787
  %v791 = vsel %vm646, %v789, 0
  %793 = vmatprep.subr.bf16.mxu0 0
  %794 = vmatpush1.bf16.msra.mxu0 %v593
  %795 = vmatprep.subr.bf16.mxu0 0
  %796 = vmatpush1.bf16.msra.mxu0 0
  %797 = vmatprep.subr.bf16.mxu0 0
  %798 = vmatpush1.bf16.msra.mxu0 0
  %799 = vmatprep.subr.bf16.mxu0 0
  %800 = vmatpush1.bf16.msra.mxu0 0
  %801 = vmatprep.subr.bf16.mxu0 0
  %802 = vmatpush1.bf16.msra.mxu0 0
  %803 = vmatprep.subr.bf16.mxu0 0
  %804 = vmatpush1.bf16.msra.mxu0 0
  %805 = vmatprep.subr.bf16.mxu0 0
  %806 = vmatpush1.bf16.msra.mxu0 0
  %807 = vmatprep.subr.bf16.mxu0 0
  %808 = vmatpush1.bf16.msra.mxu0 0
  %809 = vmatprep.subr.bf16.mxu0 0
  %810 = vmatpush1.bf16.msra.mxu0 0
  %811 = vmatprep.subr.bf16.mxu0 0
  %812 = vmatpush1.bf16.msra.mxu0 0
  %813 = vmatprep.subr.bf16.mxu0 0
  %814 = vmatpush1.bf16.msra.mxu0 0
  %815 = vmatprep.subr.bf16.mxu0 0
  %816 = vmatpush1.bf16.msra.mxu0 0
  %817 = vmatprep.subr.bf16.mxu0 0
  %818 = vmatpush1.bf16.msra.mxu0 0
  %819 = vmatprep.subr.bf16.mxu0 0
  %820 = vmatpush1.bf16.msra.mxu0 0
  %821 = vmatprep.subr.bf16.mxu0 0
  %822 = vmatpush1.bf16.msra.mxu0 0
  %823 = vmatprep.subr.bf16.mxu0 0
  %824 = vmatpush1.bf16.msra.mxu0 0
  %825 = vmatprep.mubr.bf16.mxu0 0
  %826 = vmatmul.mubr.bf16.gmra.mrb[0].mxu0 %v791
  %v827 = vpop.f32.mrb[0].mxu0
  %v828 = vadd.f32 0.0, %v827
  %v829 = vpop.f32.mrb[0].mxu0
  %v830 = vpop.f32.mrb[0].mxu0
  %v831 = vadd.f32 0.0, %v830
  %v832 = vpop.f32.mrb[0].mxu0
  %833 = vdwg.mxu0
  %v834 = vpack.c.bf16 %v831, %v828
  %835 = vst.msk [vmem:[#allocation2 + $0x8] sm:$0xff] %vm598, %v834
  %v836 = vld [vmem:[#allocation2] sm:$0xff]
  %v837 = vld [vmem:[#allocation2 + $0x8] sm:$0xff]
  %v838 = vld [vmem:[%s13] sm:$0xf]
  %v839 = vld [vmem:[%s13 + $0x4] sm:$0xf]
  %v840 = vld [vmem:[%s13 + $0x8] sm:$0xf]
  %v841 = vld [vmem:[%s13 + $0xc] sm:$0xf]
  %s842 = scalar_lea.vmem %s7, 32
  %v843 = vld [vmem:[%s842] sm:$0xf]
  %v844 = vld [vmem:[%s842 + $0x4] sm:$0xf]
  %v845 = vld [vmem:[%s842 + $0x8] sm:$0xf]
  %v846 = vld [vmem:[%s842 + $0xc] sm:$0xf]
  %v847 = vld [vmem:[%s842 + $0x10] sm:$0xf]
  %v848 = vld [vmem:[%s842 + $0x14] sm:$0xf]
  %v849 = vld [vmem:[%s842 + $0x18] sm:$0xf]
  %v850 = vld [vmem:[%s842 + $0x1c] sm:$0xf]
  %s851 = scalar_lea.vmem %s8, 1
  %v852 = vld [vmem:[%s851] sm:$0x1]
  %v854 = vlaneseq
  %v855 = vshrl.u32 %v854, 7
  %v856 = vsub.s32 0, %v855
  %v857 = vrot.slane %v852, %v856
  %v867 = vunpack.c.l.b16 %v843
  %v868 = vunpack.c.l.b16 %v844
  %v869 = vunpack.c.l.b16 %v845
  %v870 = vunpack.c.l.b16 %v846
  %v871 = vunpack.c.l.b16 %v847
  %v872 = vunpack.c.l.b16 %v848
  %v873 = vunpack.c.l.b16 %v849
  %v874 = vunpack.c.l.b16 %v850
  %v875 = vpack.c.b16 %v868, %v867
  %v876 = vpack.c.b16 %v870, %v869
  %v877 = vpack.c.b16 %v872, %v871
  %v878 = vpack.c.b16 %v874, %v873
  %883 = vmatprep.subr.bf16.mxu0 0
  %884 = vmatpush1.bf16.msra.mxu0 %v875
  %885 = vmatprep.subr.bf16.mxu0 0
  %886 = vmatpush1.bf16.msra.mxu0 %v876
  %887 = vmatprep.subr.bf16.mxu0 0
  %888 = vmatpush1.bf16.msra.mxu0 %v877
  %889 = vmatprep.subr.bf16.mxu0 0
  %890 = vmatpush1.bf16.msra.mxu0 %v878
  %891 = vmatprep.subr.bf16.mxu0 0
  %892 = vmatpush1.bf16.msra.mxu0 0
  %893 = vmatprep.subr.bf16.mxu0 0
  %894 = vmatpush1.bf16.msra.mxu0 0
  %895 = vmatprep.subr.bf16.mxu0 0
  %896 = vmatpush1.bf16.msra.mxu0 0
  %897 = vmatprep.subr.bf16.mxu0 0
  %898 = vmatpush1.bf16.msra.mxu0 0
  %899 = vmatprep.subr.bf16.mxu0 0
  %900 = vmatpush1.bf16.msra.mxu0 0
  %901 = vmatprep.subr.bf16.mxu0 0
  %902 = vmatpush1.bf16.msra.mxu0 0
  %903 = vmatprep.subr.bf16.mxu0 0
  %904 = vmatpush1.bf16.msra.mxu0 0
  %905 = vmatprep.subr.bf16.mxu0 0
  %906 = vmatpush1.bf16.msra.mxu0 0
  %907 = vmatprep.subr.bf16.mxu0 0
  %908 = vmatpush1.bf16.msra.mxu0 0
  %909 = vmatprep.subr.bf16.mxu0 0
  %910 = vmatpush1.bf16.msra.mxu0 0
  %911 = vmatprep.subr.bf16.mxu0 0
  %912 = vmatpush1.bf16.msra.mxu0 0
  %913 = vmatprep.subr.bf16.mxu0 0
  %914 = vmatpush1.bf16.msra.mxu0 0
  %915 = vmatprep.mubr.bf16.mxu0 0
  %916 = vmatmul.mubr.bf16.gmra.mrb[0].mxu0 %v358
  %v917 = vpop.f32.mrb[0].mxu0
  %v918 = vadd.f32 %v857, %v917
  %v919 = vpop.f32.mrb[0].mxu0
  %v920 = vpop.f32.mrb[0].mxu0
  %v921 = vadd.f32 %v857, %v920
  %v922 = vpop.f32.mrb[0].mxu0
  %923 = vmatprep.mubr.bf16.mxu0 0
  %924 = vmatmul.mubr.bf16.gmra.mrb[0].mxu0 %v361
  %v925 = vpop.f32.mrb[0].mxu0
  %v926 = vadd.f32 %v857, %v925
  %v927 = vpop.f32.mrb[0].mxu0
  %v928 = vpop.f32.mrb[0].mxu0
  %v929 = vadd.f32 %v857, %v928
  %v930 = vpop.f32.mrb[0].mxu0
  %931 = vdwg.mxu0
  %v932 = vpack.c.bf16 %v921, %v918
  %v933 = vpack.c.bf16 %v929, %v926
  %s934 = scalar_lea.vmem %s9, 32
  %v935 = vld [vmem:[%s934] sm:$0xf]
  %v936 = vld [vmem:[%s934 + $0x4] sm:$0xf]
  %v937 = vld [vmem:[%s934 + $0x8] sm:$0xf]
  %v938 = vld [vmem:[%s934 + $0xc] sm:$0xf]
  %v939 = vld [vmem:[%s934 + $0x10] sm:$0xf]
  %v940 = vld [vmem:[%s934 + $0x14] sm:$0xf]
  %v941 = vld [vmem:[%s934 + $0x18] sm:$0xf]
  %v942 = vld [vmem:[%s934 + $0x1c] sm:$0xf]
  %s943 = scalar_lea.vmem %s10, 1
  %v944 = vld [vmem:[%s943] sm:$0x1]
  %v946 = vlaneseq
  %v947 = vshrl.u32 %v946, 7
  %v948 = vsub.s32 0, %v947
  %v949 = vrot.slane %v944, %v948
  %v959 = vunpack.c.l.b16 %v935
  %v960 = vunpack.c.l.b16 %v936
  %v961 = vunpack.c.l.b16 %v937
  %v962 = vunpack.c.l.b16 %v938
  %v963 = vunpack.c.l.b16 %v939
  %v964 = vunpack.c.l.b16 %v940
  %v965 = vunpack.c.l.b16 %v941
  %v966 = vunpack.c.l.b16 %v942
  %v967 = vpack.c.b16 %v960, %v959
  %v968 = vpack.c.b16 %v962, %v961
  %v969 = vpack.c.b16 %v964, %v963
  %v970 = vpack.c.b16 %v966, %v965
  %975 = vmatprep.subr.bf16.mxu0 0
  %976 = vmatpush1.bf16.msra.mxu0 %v967
  %977 = vmatprep.subr.bf16.mxu0 0
  %978 = vmatpush1.bf16.msra.mxu0 %v968
  %979 = vmatprep.subr.bf16.mxu0 0
  %980 = vmatpush1.bf16.msra.mxu0 %v969
  %981 = vmatprep.subr.bf16.mxu0 0
  %982 = vmatpush1.bf16.msra.mxu0 %v970
  %983 = vmatprep.subr.bf16.mxu0 0
  %984 = vmatpush1.bf16.msra.mxu0 0
  %985 = vmatprep.subr.bf16.mxu0 0
  %986 = vmatpush1.bf16.msra.mxu0 0
  %987 = vmatprep.subr.bf16.mxu0 0
  %988 = vmatpush1.bf16.msra.mxu0 0
  %989 = vmatprep.subr.bf16.mxu0 0
  %990 = vmatpush1.bf16.msra.mxu0 0
  %991 = vmatprep.subr.bf16.mxu0 0
  %992 = vmatpush1.bf16.msra.mxu0 0
  %993 = vmatprep.subr.bf16.mxu0 0
  %994 = vmatpush1.bf16.msra.mxu0 0
  %995 = vmatprep.subr.bf16.mxu0 0
  %996 = vmatpush1.bf16.msra.mxu0 0
  %997 = vmatprep.subr.bf16.mxu0 0
  %998 = vmatpush1.bf16.msra.mxu0 0
  %999 = vmatprep.subr.bf16.mxu0 0
  %1000 = vmatpush1.bf16.msra.mxu0 0
  %1001 = vmatprep.subr.bf16.mxu0 0
  %1002 = vmatpush1.bf16.msra.mxu0 0
  %1003 = vmatprep.subr.bf16.mxu0 0
  %1004 = vmatpush1.bf16.msra.mxu0 0
  %1005 = vmatprep.subr.bf16.mxu0 0
  %1006 = vmatpush1.bf16.msra.mxu0 0
  %1007 = vmatprep.mubr.bf16.mxu0 0
  %1008 = vmatmul.mubr.bf16.gmra.mrb[0].mxu0 %v358
  %v1009 = vpop.f32.mrb[0].mxu0
  %v1010 = vadd.f32 %v949, %v1009
  %v1011 = vpop.f32.mrb[0].mxu0
  %v1012 = vpop.f32.mrb[0].mxu0
  %v1013 = vadd.f32 %v949, %v1012
  %v1014 = vpop.f32.mrb[0].mxu0
  %1015 = vmatprep.mubr.bf16.mxu0 0
  %1016 = vmatmul.mubr.bf16.gmra.mrb[0].mxu0 %v361
  %v1017 = vpop.f32.mrb[0].mxu0
  %v1018 = vadd.f32 %v949, %v1017
  %v1019 = vpop.f32.mrb[0].mxu0
  %v1020 = vpop.f32.mrb[0].mxu0
  %v1021 = vadd.f32 %v949, %v1020
  %v1022 = vpop.f32.mrb[0].mxu0
  %1023 = vdwg.mxu0
  %v1024 = vpack.c.bf16 %v1013, %v1010
  %v1025 = vpack.c.bf16 %v1021, %v1018
  %s1026 = scalar_lea.vmem %s11, 32
  %v1027 = vld [vmem:[%s1026] sm:$0xf]
  %v1028 = vld [vmem:[%s1026 + $0x4] sm:$0xf]
  %v1029 = vld [vmem:[%s1026 + $0x8] sm:$0xf]
  %v1030 = vld [vmem:[%s1026 + $0xc] sm:$0xf]
  %v1031 = vld [vmem:[%s1026 + $0x10] sm:$0xf]
  %v1032 = vld [vmem:[%s1026 + $0x14] sm:$0xf]
  %v1033 = vld [vmem:[%s1026 + $0x18] sm:$0xf]
  %v1034 = vld [vmem:[%s1026 + $0x1c] sm:$0xf]
  %s1035 = scalar_lea.vmem %s12, 1
  %v1036 = vld [vmem:[%s1035] sm:$0x1]
  %v1038 = vlaneseq
  %v1039 = vshrl.u32 %v1038, 7
  %v1040 = vsub.s32 0, %v1039
  %v1041 = vrot.slane %v1036, %v1040
  %v1051 = vunpack.c.l.b16 %v1027
  %v1052 = vunpack.c.l.b16 %v1028
  %v1053 = vunpack.c.l.b16 %v1029
  %v1054 = vunpack.c.l.b16 %v1030
  %v1055 = vunpack.c.l.b16 %v1031
  %v1056 = vunpack.c.l.b16 %v1032
  %v1057 = vunpack.c.l.b16 %v1033
  %v1058 = vunpack.c.l.b16 %v1034
  %v1059 = vpack.c.b16 %v1052, %v1051
  %v1060 = vpack.c.b16 %v1054, %v1053
  %v1061 = vpack.c.b16 %v1056, %v1055
  %v1062 = vpack.c.b16 %v1058, %v1057
  %1067 = vmatprep.subr.bf16.mxu0 0
  %1068 = vmatpush1.bf16.msra.mxu0 %v1059
  %1069 = vmatprep.subr.bf16.mxu0 0
  %1070 = vmatpush1.bf16.msra.mxu0 %v1060
  %1071 = vmatprep.subr.bf16.mxu0 0
  %1072 = vmatpush1.bf16.msra.mxu0 %v1061
  %1073 = vmatprep.subr.bf16.mxu0 0
  %1074 = vmatpush1.bf16.msra.mxu0 %v1062
  %1075 = vmatprep.subr.bf16.mxu0 0
  %1076 = vmatpush1.bf16.msra.mxu0 0
  %1077 = vmatprep.subr.bf16.mxu0 0
  %1078 = vmatpush1.bf16.msra.mxu0 0
  %1079 = vmatprep.subr.bf16.mxu0 0
  %1080 = vmatpush1.bf16.msra.mxu0 0
  %1081 = vmatprep.subr.bf16.mxu0 0
  %1082 = vmatpush1.bf16.msra.mxu0 0
  %1083 = vmatprep.subr.bf16.mxu0 0
  %1084 = vmatpush1.bf16.msra.mxu0 0
  %1085 = vmatprep.subr.bf16.mxu0 0
  %1086 = vmatpush1.bf16.msra.mxu0 0
  %1087 = vmatprep.subr.bf16.mxu0 0
  %1088 = vmatpush1.bf16.msra.mxu0 0
  %1089 = vmatprep.subr.bf16.mxu0 0
  %1090 = vmatpush1.bf16.msra.mxu0 0
  %1091 = vmatprep.subr.bf16.mxu0 0
  %1092 = vmatpush1.bf16.msra.mxu0 0
  %1093 = vmatprep.subr.bf16.mxu0 0
  %1094 = vmatpush1.bf16.msra.mxu0 0
  %1095 = vmatprep.subr.bf16.mxu0 0
  %1096 = vmatpush1.bf16.msra.mxu0 0
  %1097 = vmatprep.subr.bf16.mxu0 0
  %1098 = vmatpush1.bf16.msra.mxu0 0
  %1099 = vmatprep.mubr.bf16.mxu0 0
  %1100 = vmatmul.mubr.bf16.gmra.mrb[0].mxu0 %v358
  %v1101 = vpop.f32.mrb[0].mxu0
  %v1102 = vadd.f32 %v1041, %v1101
  %v1103 = vpop.f32.mrb[0].mxu0
  %v1104 = vpop.f32.mrb[0].mxu0
  %v1105 = vadd.f32 %v1041, %v1104
  %v1106 = vpop.f32.mrb[0].mxu0
  %1107 = vmatprep.mubr.bf16.mxu0 0
  %1108 = vmatmul.mubr.bf16.gmra.mrb[0].mxu0 %v361
  %v1109 = vpop.f32.mrb[0].mxu0
  %v1110 = vadd.f32 %v1041, %v1109
  %v1111 = vpop.f32.mrb[0].mxu0
  %v1112 = vpop.f32.mrb[0].mxu0
  %v1113 = vadd.f32 %v1041, %v1112
  %v1114 = vpop.f32.mrb[0].mxu0
  %1115 = vdwg.mxu0
  %v1116 = vpack.c.bf16 %v1105, %v1102
  %v1117 = vpack.c.bf16 %v1113, %v1110
  %v1119 = vsel %vm598, %v932, 0
  %v1122 = vsel %vm598, %v1024, 0
  %1124 = vmatprep.subr.bf16.mxu0 0
  %1125 = vmatpush1.bf16.xpose.msra.mxu0 %v1122
  %1126 = vmatprep.subr.bf16.mxu0 0
  %1127 = vmatpush1.bf16.xpose.msra.mxu0 0
  %1128 = vmatprep.subr.bf16.mxu0 0
  %1129 = vmatpush1.bf16.xpose.msra.mxu0 0
  %1130 = vmatprep.subr.bf16.mxu0 0
  %1131 = vmatpush1.bf16.xpose.msra.mxu0 0
  %1132 = vmatprep.subr.bf16.mxu0 0
  %1133 = vmatpush1.bf16.xpose.msra.mxu0 0
  %1134 = vmatprep.subr.bf16.mxu0 0
  %1135 = vmatpush1.bf16.xpose.msra.mxu0 0
  %1136 = vmatprep.subr.bf16.mxu0 0
  %1137 = vmatpush1.bf16.xpose.msra.mxu0 0
  %1138 = vmatprep.subr.bf16.mxu0 0
  %1139 = vmatpush1.bf16.xpose.msra.mxu0 0
  %1140 = vmatprep.subr.bf16.mxu0 0
  %1141 = vmatpush1.bf16.xpose.msra.mxu0 0
  %1142 = vmatprep.subr.bf16.mxu0 0
  %1143 = vmatpush1.bf16.xpose.msra.mxu0 0
  %1144 = vmatprep.subr.bf16.mxu0 0
  %1145 = vmatpush1.bf16.xpose.msra.mxu0 0
  %1146 = vmatprep.subr.bf16.mxu0 0
  %1147 = vmatpush1.bf16.xpose.msra.mxu0 0
  %1148 = vmatprep.subr.bf16.mxu0 0
  %1149 = vmatpush1.bf16.xpose.msra.mxu0 0
  %1150 = vmatprep.subr.bf16.mxu0 0
  %1151 = vmatpush1.bf16.xpose.msra.mxu0 0
  %1152 = vmatprep.subr.bf16.mxu0 0
  %1153 = vmatpush1.bf16.xpose.msra.mxu0 0
  %1154 = vmatprep.subr.bf16.mxu0 0
  %1155 = vmatpush1.bf16.xpose.msra.mxu0 0
  %1156 = vmatprep.mubr.bf16.mxu0 0
  %1157 = vmatmul.mubr.bf16.gmra.mrb[0].mxu0 %v1119
  %v1158 = vpop.f32.mrb[0].mxu0
  %v1159 = vadd.f32 %v597, %v1158
  %v1160 = vpop.f32.mrb[0].mxu0
  %v1161 = vpop.f32.mrb[0].mxu0
  %v1162 = vadd.f32 %v597, %v1161
  %v1163 = vpop.f32.mrb[0].mxu0
  %1164 = vdwg.mxu0
  %v1165 = vsel %vm646, %v1159, -inf
  %1166 = vmax.xlane.f32.xlu0 %v1165
  %v1167 = vpop.xlane.xlu0 %1166
  %v1168 = vsel %vm646, %v1162, -inf
  %1169 = vmax.xlane.f32.xlu0 %v1168
  %v1170 = vpop.xlane.xlu0 %1169
  %v1171 = vsub.f32 %v1159, %v1167
  %v1172 = vsub.f32 %v1162, %v1170
  %v1173 = vmul.f32 %v1171, 1.442695
  %v1174 = vpow.pop %v1173
  %v1175 = vmul.f32 %v1172, 1.442695
  %v1176 = vpow.pop %v1175
  %v1177 = vsel %vm646, %v1174, 0.0
  %1178 = vadd.xlane.f32.xlu0 %v1177
  %v1179 = vpop.xlane.xlu0 %1178
  %v1180 = vsel %vm646, %v1176, 0.0
  %1181 = vadd.xlane.f32.xlu0 %v1180
  %v1182 = vpop.xlane.xlu0 %1181
  %v1183 = vrcp.pop %v1179
  %v1184 = vrcp.pop %v1182
  %v1185 = vmul.f32 %v1174, %v1183
  %v1186 = vmul.f32 %v1176, %v1184
  %v1187 = vpack.c.bf16 %v1186, %v1185
  %v1189 = vsel %vm646, %v1187, 0
  %1191 = vmatprep.subr.bf16.mxu0 0
  %1192 = vmatpush1.bf16.msra.mxu0 %v1116
  %1193 = vmatprep.subr.bf16.mxu0 0
  %1194 = vmatpush1.bf16.msra.mxu0 0
  %1195 = vmatprep.subr.bf16.mxu0 0
  %1196 = vmatpush1.bf16.msra.mxu0 0
  %1197 = vmatprep.subr.bf16.mxu0 0
  %1198 = vmatpush1.bf16.msra.mxu0 0
  %1199 = vmatprep.subr.bf16.mxu0 0
  %1200 = vmatpush1.bf16.msra.mxu0 0
  %1201 = vmatprep.subr.bf16.mxu0 0
  %1202 = vmatpush1.bf16.msra.mxu0 0
  %1203 = vmatprep.subr.bf16.mxu0 0
  %1204 = vmatpush1.bf16.msra.mxu0 0
  %1205 = vmatprep.subr.bf16.mxu0 0
  %1206 = vmatpush1.bf16.msra.mxu0 0
  %1207 = vmatprep.subr.bf16.mxu0 0
  %1208 = vmatpush1.bf16.msra.mxu0 0
  %1209 = vmatprep.subr.bf16.mxu0 0
  %1210 = vmatpush1.bf16.msra.mxu0 0
  %1211 = vmatprep.subr.bf16.mxu0 0
  %1212 = vmatpush1.bf16.msra.mxu0 0
  %1213 = vmatprep.subr.bf16.mxu0 0
  %1214 = vmatpush1.bf16.msra.mxu0 0
  %1215 = vmatprep.subr.bf16.mxu0 0
  %1216 = vmatpush1.bf16.msra.mxu0 0
  %1217 = vmatprep.subr.bf16.mxu0 0
  %1218 = vmatpush1.bf16.msra.mxu0 0
  %1219 = vmatprep.subr.bf16.mxu0 0
  %1220 = vmatpush1.bf16.msra.mxu0 0
  %1221 = vmatprep.subr.bf16.mxu0 0
  %1222 = vmatpush1.bf16.msra.mxu0 0
  %1223 = vmatprep.mubr.bf16.mxu0 0
  %1224 = vmatmul.mubr.bf16.gmra.mrb[0].mxu0 %v1189
  %v1225 = vpop.f32.mrb[0].mxu0
  %v1226 = vadd.f32 0.0, %v1225
  %v1227 = vpop.f32.mrb[0].mxu0
  %v1228 = vpop.f32.mrb[0].mxu0
  %v1229 = vadd.f32 0.0, %v1228
  %v1230 = vpop.f32.mrb[0].mxu0
  %1231 = vdwg.mxu0
  %v1232 = vpack.c.bf16 %v1229, %v1226
  %1233 = vst.msk [vmem:[#allocation2] sm:$0xff] %vm598, %v1232
  %v1235 = vsel %vm598, %v933, 0
  %v1238 = vsel %vm598, %v1025, 0
  %1240 = vmatprep.subr.bf16.mxu0 0
  %1241 = vmatpush1.bf16.xpose.msra.mxu0 %v1238
  %1242 = vmatprep.subr.bf16.mxu0 0
  %1243 = vmatpush1.bf16.xpose.msra.mxu0 0
  %1244 = vmatprep.subr.bf16.mxu0 0
  %1245 = vmatpush1.bf16.xpose.msra.mxu0 0
  %1246 = vmatprep.subr.bf16.mxu0 0
  %1247 = vmatpush1.bf16.xpose.msra.mxu0 0
  %1248 = vmatprep.subr.bf16.mxu0 0
  %1249 = vmatpush1.bf16.xpose.msra.mxu0 0
  %1250 = vmatprep.subr.bf16.mxu0 0
  %1251 = vmatpush1.bf16.xpose.msra.mxu0 0
  %1252 = vmatprep.subr.bf16.mxu0 0
  %1253 = vmatpush1.bf16.xpose.msra.mxu0 0
  %1254 = vmatprep.subr.bf16.mxu0 0
  %1255 = vmatpush1.bf16.xpose.msra.mxu0 0
  %1256 = vmatprep.subr.bf16.mxu0 0
  %1257 = vmatpush1.bf16.xpose.msra.mxu0 0
  %1258 = vmatprep.subr.bf16.mxu0 0
  %1259 = vmatpush1.bf16.xpose.msra.mxu0 0
  %1260 = vmatprep.subr.bf16.mxu0 0
  %1261 = vmatpush1.bf16.xpose.msra.mxu0 0
  %1262 = vmatprep.subr.bf16.mxu0 0
  %1263 = vmatpush1.bf16.xpose.msra.mxu0 0
  %1264 = vmatprep.subr.bf16.mxu0 0
  %1265 = vmatpush1.bf16.xpose.msra.mxu0 0
  %1266 = vmatprep.subr.bf16.mxu0 0
  %1267 = vmatpush1.bf16.xpose.msra.mxu0 0
  %1268 = vmatprep.subr.bf16.mxu0 0
  %1269 = vmatpush1.bf16.xpose.msra.mxu0 0
  %1270 = vmatprep.subr.bf16.mxu0 0
  %1271 = vmatpush1.bf16.xpose.msra.mxu0 0
  %1272 = vmatprep.mubr.bf16.mxu0 0
  %1273 = vmatmul.mubr.bf16.gmra.mrb[0].mxu0 %v1235
  %v1274 = vpop.f32.mrb[0].mxu0
  %v1275 = vadd.f32 %v719, %v1274
  %v1276 = vpop.f32.mrb[0].mxu0
  %v1277 = vpop.f32.mrb[0].mxu0
  %v1278 = vadd.f32 %v719, %v1277
  %v1279 = vpop.f32.mrb[0].mxu0
  %1280 = vdwg.mxu0
  %v1281 = vsel %vm646, %v1275, -inf
  %1282 = vmax.xlane.f32.xlu0 %v1281
  %v1283 = vpop.xlane.xlu0 %1282
  %v1284 = vsel %vm646, %v1278, -inf
  %1285 = vmax.xlane.f32.xlu0 %v1284
  %v1286 = vpop.xlane.xlu0 %1285
  %v1287 = vsub.f32 %v1275, %v1283
  %v1288 = vsub.f32 %v1278, %v1286
  %v1289 = vmul.f32 %v1287, 1.442695
  %v1290 = vpow.pop %v1289
  %v1291 = vmul.f32 %v1288, 1.442695
  %v1292 = vpow.pop %v1291
  %v1293 = vsel %vm646, %v1290, 0.0
  %1294 = vadd.xlane.f32.xlu0 %v1293
  %v1295 = vpop.xlane.xlu0 %1294
  %v1296 = vsel %vm646, %v1292, 0.0
  %1297 = vadd.xlane.f32.xlu0 %v1296
  %v1298 = vpop.xlane.xlu0 %1297
  %v1299 = vrcp.pop %v1295
  %v1300 = vrcp.pop %v1298
  %v1301 = vmul.f32 %v1290, %v1299
  %v1302 = vmul.f32 %v1292, %v1300
  %v1303 = vpack.c.bf16 %v1302, %v1301
  %v1305 = vsel %vm646, %v1303, 0
  %1307 = vmatprep.subr.bf16.mxu0 0
  %1308 = vmatpush1.bf16.msra.mxu0 %v1117
  %1309 = vmatprep.subr.bf16.mxu0 0
  %1310 = vmatpush1.bf16.msra.mxu0 0
  %1311 = vmatprep.subr.bf16.mxu0 0
  %1312 = vmatpush1.bf16.msra.mxu0 0
  %1313 = vmatprep.subr.bf16.mxu0 0
  %1314 = vmatpush1.bf16.msra.mxu0 0
  %1315 = vmatprep.subr.bf16.mxu0 0
  %1316 = vmatpush1.bf16.msra.mxu0 0
  %1317 = vmatprep.subr.bf16.mxu0 0
  %1318 = vmatpush1.bf16.msra.mxu0 0
  %1319 = vmatprep.subr.bf16.mxu0 0
  %1320 = vmatpush1.bf16.msra.mxu0 0
  %1321 = vmatprep.subr.bf16.mxu0 0
  %1322 = vmatpush1.bf16.msra.mxu0 0
  %1323 = vmatprep.subr.bf16.mxu0 0
  %1324 = vmatpush1.bf16.msra.mxu0 0
  %1325 = vmatprep.subr.bf16.mxu0 0
  %1326 = vmatpush1.bf16.msra.mxu0 0
  %1327 = vmatprep.subr.bf16.mxu0 0
  %1328 = vmatpush1.bf16.msra.mxu0 0
  %1329 = vmatprep.subr.bf16.mxu0 0
  %1330 = vmatpush1.bf16.msra.mxu0 0
  %1331 = vmatprep.subr.bf16.mxu0 0
  %1332 = vmatpush1.bf16.msra.mxu0 0
  %1333 = vmatprep.subr.bf16.mxu0 0
  %1334 = vmatpush1.bf16.msra.mxu0 0
  %1335 = vmatprep.subr.bf16.mxu0 0
  %1336 = vmatpush1.bf16.msra.mxu0 0
  %1337 = vmatprep.subr.bf16.mxu0 0
  %1338 = vmatpush1.bf16.msra.mxu0 0
  %1339 = vmatprep.mubr.bf16.mxu0 0
  %1340 = vmatmul.mubr.bf16.gmra.mrb[0].mxu0 %v1305
  %v1341 = vpop.f32.mrb[0].mxu0
  %v1342 = vadd.f32 0.0, %v1341
  %v1343 = vpop.f32.mrb[0].mxu0
  %v1344 = vpop.f32.mrb[0].mxu0
  %v1345 = vadd.f32 0.0, %v1344
  %v1346 = vpop.f32.mrb[0].mxu0
  %1347 = vdwg.mxu0
  %v1348 = vpack.c.bf16 %v1345, %v1342
  %1349 = vst.msk [vmem:[#allocation2 + $0x8] sm:$0xff] %vm598, %v1348
  %v1350 = vld [vmem:[#allocation2] sm:$0xff]
  %v1351 = vld [vmem:[#allocation2 + $0x8] sm:$0xff]
  %s1352 = scalar_lea.vmem %s13, 16
  %v1353 = vld [vmem:[%s1352] sm:$0xf]
  %v1354 = vld [vmem:[%s1352 + $0x4] sm:$0xf]
  %v1355 = vld [vmem:[%s1352 + $0x8] sm:$0xf]
  %v1356 = vld [vmem:[%s1352 + $0xc] sm:$0xf]
  %v1361 = vunpack.c.l.b16 %v1353
  %v1362 = vunpack.c.l.b16 %v1354
  %v1363 = vunpack.c.l.b16 %v1355
  %v1364 = vunpack.c.l.b16 %v1356
  %v1365 = vpack.c.b16 %v1362, %v1361
  %v1366 = vpack.c.b16 %v1364, %v1363
  %v1370 = vsel %vm598, %v1350, 0
  %v1373 = vsel %vm598, %v1351, 0
  %1375 = vmatprep.subr.bf16.mxu0 0
  %1376 = vmatpush1.bf16.msra.mxu0 %v1365
  %1377 = vmatprep.subr.bf16.mxu0 0
  %1378 = vmatpush1.bf16.msra.mxu0 %v1366
  %1379 = vmatprep.subr.bf16.mxu0 0
  %1380 = vmatpush1.bf16.msra.mxu0 0
  %1381 = vmatprep.subr.bf16.mxu0 0
  %1382 = vmatpush1.bf16.msra.mxu0 0
  %1383 = vmatprep.subr.bf16.mxu0 0
  %1384 = vmatpush1.bf16.msra.mxu0 0
  %1385 = vmatprep.subr.bf16.mxu0 0
  %1386 = vmatpush1.bf16.msra.mxu0 0
  %1387 = vmatprep.subr.bf16.mxu0 0
  %1388 = vmatpush1.bf16.msra.mxu0 0
  %1389 = vmatprep.subr.bf16.mxu0 0
  %1390 = vmatpush1.bf16.msra.mxu0 0
  %1391 = vmatprep.subr.bf16.mxu0 0
  %1392 = vmatpush1.bf16.msra.mxu0 0
  %1393 = vmatprep.subr.bf16.mxu0 0
  %1394 = vmatpush1.bf16.msra.mxu0 0
  %1395 = vmatprep.subr.bf16.mxu0 0
  %1396 = vmatpush1.bf16.msra.mxu0 0
  %1397 = vmatprep.subr.bf16.mxu0 0
  %1398 = vmatpush1.bf16.msra.mxu0 0
  %1399 = vmatprep.subr.bf16.mxu0 0
  %1400 = vmatpush1.bf16.msra.mxu0 0
  %1401 = vmatprep.subr.bf16.mxu0 0
  %1402 = vmatpush1.bf16.msra.mxu0 0
  %1403 = vmatprep.subr.bf16.mxu0 0
  %1404 = vmatpush1.bf16.msra.mxu0 0
  %1405 = vmatprep.subr.bf16.mxu0 0
  %1406 = vmatpush1.bf16.msra.mxu0 0
  %1407 = vmatprep.mubr.bf16.mxu0 0
  %1408 = vmatmul.mubr.bf16.gmra.mrb[0].mxu0 %v1370
  %v1409 = vpop.f32.mrb[0].mxu0
  %v1410 = vadd.f32 0.0, %v1409
  %v1411 = vpop.f32.mrb[0].mxu0
  %v1412 = vpop.f32.mrb[0].mxu0
  %v1413 = vadd.f32 0.0, %v1412
  %v1414 = vpop.f32.mrb[0].mxu0
  %1415 = vmatprep.mubr.bf16.mxu0 0
  %1416 = vmatmul.mubr.bf16.gmra.mrb[0].mxu0 %v1373
  %v1417 = vpop.f32.mrb[0].mxu0
  %v1418 = vadd.f32 0.0, %v1417
  %v1419 = vpop.f32.mrb[0].mxu0
  %v1420 = vpop.f32.mrb[0].mxu0
  %v1421 = vadd.f32 0.0, %v1420
  %v1422 = vpop.f32.mrb[0].mxu0
  %1423 = vdwg.mxu0
  %v1428 = vunpack.c.l.b16 %v838
  %v1429 = vunpack.c.l.b16 %v839
  %v1430 = vunpack.c.l.b16 %v840
  %v1431 = vunpack.c.l.b16 %v841
  %v1432 = vpack.c.b16 %v1429, %v1428
  %v1433 = vpack.c.b16 %v1431, %v1430
  %v1437 = vsel %vm598, %v836, 0
  %v1440 = vsel %vm598, %v837, 0
  %1442 = vmatprep.subr.bf16.mxu0 0
  %1443 = vmatpush1.bf16.msra.mxu0 %v1432
  %1444 = vmatprep.subr.bf16.mxu0 0
  %1445 = vmatpush1.bf16.msra.mxu0 %v1433
  %1446 = vmatprep.subr.bf16.mxu0 0
  %1447 = vmatpush1.bf16.msra.mxu0 0
  %1448 = vmatprep.subr.bf16.mxu0 0
  %1449 = vmatpush1.bf16.msra.mxu0 0
  %1450 = vmatprep.subr.bf16.mxu0 0
  %1451 = vmatpush1.bf16.msra.mxu0 0
  %1452 = vmatprep.subr.bf16.mxu0 0
  %1453 = vmatpush1.bf16.msra.mxu0 0
  %1454 = vmatprep.subr.bf16.mxu0 0
  %1455 = vmatpush1.bf16.msra.mxu0 0
  %1456 = vmatprep.subr.bf16.mxu0 0
  %1457 = vmatpush1.bf16.msra.mxu0 0
  %1458 = vmatprep.subr.bf16.mxu0 0
  %1459 = vmatpush1.bf16.msra.mxu0 0
  %1460 = vmatprep.subr.bf16.mxu0 0
  %1461 = vmatpush1.bf16.msra.mxu0 0
  %1462 = vmatprep.subr.bf16.mxu0 0
  %1463 = vmatpush1.bf16.msra.mxu0 0
  %1464 = vmatprep.subr.bf16.mxu0 0
  %1465 = vmatpush1.bf16.msra.mxu0 0
  %1466 = vmatprep.subr.bf16.mxu0 0
  %1467 = vmatpush1.bf16.msra.mxu0 0
  %1468 = vmatprep.subr.bf16.mxu0 0
  %1469 = vmatpush1.bf16.msra.mxu0 0
  %1470 = vmatprep.subr.bf16.mxu0 0
  %1471 = vmatpush1.bf16.msra.mxu0 0
  %1472 = vmatprep.subr.bf16.mxu0 0
  %1473 = vmatpush1.bf16.msra.mxu0 0
  %1474 = vmatprep.mubr.bf16.mxu0 0
  %1475 = vmatmul.mubr.bf16.gmra.mrb[0].mxu0 %v1437
  %v1476 = vpop.f32.mrb[0].mxu0
  %v1477 = vadd.f32 %v1410, %v1476
  %v1478 = vpop.f32.mrb[0].mxu0
  %v1479 = vpop.f32.mrb[0].mxu0
  %v1480 = vadd.f32 %v1413, %v1479
  %v1481 = vpop.f32.mrb[0].mxu0
  %1482 = vmatprep.mubr.bf16.mxu0 0
  %1483 = vmatmul.mubr.bf16.gmra.mrb[0].mxu0 %v1440
  %v1484 = vpop.f32.mrb[0].mxu0
  %v1485 = vadd.f32 %v1418, %v1484
  %v1486 = vpop.f32.mrb[0].mxu0
  %v1487 = vpop.f32.mrb[0].mxu0
  %v1488 = vadd.f32 %v1421, %v1487
  %v1489 = vpop.f32.mrb[0].mxu0
  %1490 = vdwg.mxu0
  %v1491 = vld [vmem:[%s14] sm:$0x1]
  %v1493 = vlaneseq
  %v1494 = vshrl.u32 %v1493, 7
  %v1495 = vsub.s32 0, %v1494
  %v1496 = vrot.slane %v1491, %v1495
  %v1498 = vadd.f32 %v1477, %v1496
  %v1499 = vadd.f32 %v1480, %v1496
  %v1500 = vadd.f32 %v1485, %v1496
  %v1501 = vadd.f32 %v1488, %v1496
  %v1502 = vadd.f32 %v308, %v1498
  %v1503 = vadd.f32 %v309, %v1499
  %v1504 = vadd.f32 %v310, %v1500
  %v1505 = vadd.f32 %v311, %v1501
  %v1506 = vld [vmem:[%s15] sm:$0x1]
  %v1507 = vld [vmem:[%s16] sm:$0x1]
  %v1508 = vsel %vm238, %v1502, 0.0
  %1509 = vadd.xlane.f32.xlu0 %v1508
  %v1510 = vpop.xlane.xlu0 %1509
  %v1511 = vsel %vm238, %v1503, 0.0
  %1512 = vadd.xlane.f32.xlu0 %v1511
  %v1513 = vpop.xlane.xlu0 %1512
  %v1514 = vsel %vm238, %v1504, 0.0
  %1515 = vadd.xlane.f32.xlu0 %v1514
  %v1516 = vpop.xlane.xlu0 %1515
  %v1517 = vsel %vm238, %v1505, 0.0
  %1518 = vadd.xlane.f32.xlu0 %v1517
  %v1519 = vpop.xlane.xlu0 %1518
  %v1520 = vmul.f32 %v1510, %v251
  %v1521 = vmul.f32 %v1513, %v251
  %v1522 = vmul.f32 %v1516, %v251
  %v1523 = vmul.f32 %v1519, %v251
  %v1524 = vsub.f32 %v1502, %v1520
  %v1525 = vsub.f32 %v1503, %v1521
  %v1526 = vsub.f32 %v1504, %v1522
  %v1527 = vsub.f32 %v1505, %v1523
  %v1528 = vmul.f32 %v1524, %v1524
  %v1529 = vmul.f32 %v1525, %v1525
  %v1530 = vmul.f32 %v1526, %v1526
  %v1531 = vmul.f32 %v1527, %v1527
  %v1532 = vsel %vm238, %v1528, 0.0
  %1533 = vadd.xlane.f32.xlu0 %v1532
  %v1534 = vpop.xlane.xlu0 %1533
  %v1535 = vsel %vm238, %v1529, 0.0
  %1536 = vadd.xlane.f32.xlu0 %v1535
  %v1537 = vpop.xlane.xlu0 %1536
  %v1538 = vsel %vm238, %v1530, 0.0
  %1539 = vadd.xlane.f32.xlu0 %v1538
  %v1540 = vpop.xlane.xlu0 %1539
  %v1541 = vsel %vm238, %v1531, 0.0
  %1542 = vadd.xlane.f32.xlu0 %v1541
  %v1543 = vpop.xlane.xlu0 %1542
  %v1544 = vmul.f32 %v1534, %v251
  %v1545 = vmul.f32 %v1537, %v251
  %v1546 = vmul.f32 %v1540, %v251
  %v1547 = vmul.f32 %v1543, %v251
  %v1548 = vadd.f32 %v1544, 1e-12
  %v1549 = vadd.f32 %v1545, 1e-12
  %v1550 = vadd.f32 %v1546, 1e-12
  %v1551 = vadd.f32 %v1547, 1e-12
  %v1552 = vrsqrt.pop %v1548
  %v1553 = vrsqrt.pop %v1549
  %v1554 = vrsqrt.pop %v1550
  %v1555 = vrsqrt.pop %v1551
  %v1556 = vmul.f32 %v1524, %v1552
  %v1557 = vmul.f32 %v1525, %v1553
  %v1558 = vmul.f32 %v1526, %v1554
  %v1559 = vmul.f32 %v1527, %v1555
  %v1561 = vlaneseq
  %v1562 = vshrl.u32 %v1561, 7
  %v1563 = vsub.s32 0, %v1562
  %v1564 = vrot.slane %v1506, %v1563
  %v1566 = vmul.f32 %v1556, %v1564
  %v1567 = vmul.f32 %v1557, %v1564
  %v1568 = vmul.f32 %v1558, %v1564
  %v1569 = vmul.f32 %v1559, %v1564
  %v1571 = vlaneseq
  %v1572 = vshrl.u32 %v1571, 7
  %v1573 = vsub.s32 0, %v1572
  %v1574 = vrot.slane %v1507, %v1573
  %v1576 = vadd.f32 %v1566, %v1574
  %v1577 = vadd.f32 %v1567, %v1574
  %v1578 = vadd.f32 %v1568, %v1574
  %v1579 = vadd.f32 %v1569, %v1574
  %v1580 = vpack.c.bf16 %v1577, %v1576
  %v1581 = vpack.c.bf16 %v1579, %v1578
  %v1582 = vld [vmem:[%s17] sm:$0xf]
  %v1583 = vld [vmem:[%s17 + $0x4] sm:$0xf]
  %v1584 = vld [vmem:[%s17 + $0x8] sm:$0xf]
  %v1585 = vld [vmem:[%s17 + $0xc] sm:$0xf]
  %v1586 = vld [vmem:[%s17 + $0x10] sm:$0xf]
  %v1587 = vld [vmem:[%s17 + $0x14] sm:$0xf]
  %v1588 = vld [vmem:[%s17 + $0x18] sm:$0xf]
  %v1589 = vld [vmem:[%s17 + $0x1c] sm:$0xf]
  %v1590 = vld [vmem:[%s18] sm:$0x1]
  %v1592 = vlaneseq
  %v1593 = vshrl.u32 %v1592, 7
  %v1594 = vsub.s32 0, %v1593
  %v1595 = vrot.slane %v1590, %v1594
  %v1605 = vunpack.c.l.b16 %v1582
  %v1606 = vunpack.c.l.b16 %v1583
  %v1607 = vunpack.c.l.b16 %v1584
  %v1608 = vunpack.c.l.b16 %v1585
  %v1609 = vunpack.c.l.b16 %v1586
  %v1610 = vunpack.c.l.b16 %v1587
  %v1611 = vunpack.c.l.b16 %v1588
  %v1612 = vunpack.c.l.b16 %v1589
  %v1613 = vpack.c.b16 %v1606, %v1605
  %v1614 = vpack.c.b16 %v1608, %v1607
  %v1615 = vpack.c.b16 %v1610, %v1609
  %v1616 = vpack.c.b16 %v1612, %v1611
  %v1622 = vsel %vm238, %v1580, 0
  %v1625 = vsel %vm238, %v1581, 0
  %1627 = vmatprep.subr.bf16.mxu0 0
  %1628 = vmatpush1.bf16.msra.mxu0 %v1613
  %1629 = vmatprep.subr.bf16.mxu0 0
  %1630 = vmatpush1.bf16.msra.mxu0 %v1614
  %1631 = vmatprep.subr.bf16.mxu0 0
  %1632 = vmatpush1.bf16.msra.mxu0 %v1615
  %1633 = vmatprep.subr.bf16.mxu0 0
  %1634 = vmatpush1.bf16.msra.mxu0 %v1616
  %1635 = vmatprep.subr.bf16.mxu0 0
  %1636 = vmatpush1.bf16.msra.mxu0 0
  %1637 = vmatprep.subr.bf16.mxu0 0
  %1638 = vmatpush1.bf16.msra.mxu0 0
  %1639 = vmatprep.subr.bf16.mxu0 0
  %1640 = vmatpush1.bf16.msra.mxu0 0
  %1641 = vmatprep.subr.bf16.mxu0 0
  %1642 = vmatpush1.bf16.msra.mxu0 0
  %1643 = vmatprep.subr.bf16.mxu0 0
  %1644 = vmatpush1.bf16.msra.mxu0 0
  %1645 = vmatprep.subr.bf16.mxu0 0
  %1646 = vmatpush1.bf16.msra.mxu0 0
  %1647 = vmatprep.subr.bf16.mxu0 0
  %1648 = vmatpush1.bf16.msra.mxu0 0
  %1649 = vmatprep.subr.bf16.mxu0 0
  %1650 = vmatpush1.bf16.msra.mxu0 0
  %1651 = vmatprep.subr.bf16.mxu0 0
  %1652 = vmatpush1.bf16.msra.mxu0 0
  %1653 = vmatprep.subr.bf16.mxu0 0
  %1654 = vmatpush1.bf16.msra.mxu0 0
  %1655 = vmatprep.subr.bf16.mxu0 0
  %1656 = vmatpush1.bf16.msra.mxu0 0
  %1657 = vmatprep.subr.bf16.mxu0 0
  %1658 = vmatpush1.bf16.msra.mxu0 0
  %1659 = vmatprep.mubr.bf16.mxu0 0
  %1660 = vmatmul.mubr.bf16.gmra.mrb[0].mxu0 %v1622
  %v1661 = vpop.f32.mrb[0].mxu0
  %v1662 = vadd.f32 %v1595, %v1661
  %v1663 = vpop.f32.mrb[0].mxu0
  %v1664 = vpop.f32.mrb[0].mxu0
  %v1665 = vadd.f32 %v1595, %v1664
  %v1666 = vpop.f32.mrb[0].mxu0
  %1667 = vmatprep.mubr.bf16.mxu0 0
  %1668 = vmatmul.mubr.bf16.gmra.mrb[0].mxu0 %v1625
  %v1669 = vpop.f32.mrb[0].mxu0
  %v1670 = vadd.f32 %v1595, %v1669
  %v1671 = vpop.f32.mrb[0].mxu0
  %v1672 = vpop.f32.mrb[0].mxu0
  %v1673 = vadd.f32 %v1595, %v1672
  %v1674 = vpop.f32.mrb[0].mxu0
  %1675 = vdwg.mxu0
  %v1676 = vmul.f32 %v1662, 0.5
  %v1677 = vmul.f32 %v1665, 0.5
  %v1678 = vmul.f32 %v1670, 0.5
  %v1679 = vmul.f32 %v1673, 0.5
  %v1680 = vmul.f32 %v1662, 0.044715
  %v1681 = vmul.f32 %v1665, 0.044715
  %v1682 = vmul.f32 %v1670, 0.044715
  %v1683 = vmul.f32 %v1673, 0.044715
  %v1684 = vmul.f32 %v1680, %v1662
  %v1685 = vmul.f32 %v1681, %v1665
  %v1686 = vmul.f32 %v1682, %v1670
  %v1687 = vmul.f32 %v1683, %v1673
  %v1688 = vmul.f32 %v1684, %v1662
  %v1689 = vmul.f32 %v1685, %v1665
  %v1690 = vmul.f32 %v1686, %v1670
  %v1691 = vmul.f32 %v1687, %v1673
  %v1692 = vadd.f32 %v1662, %v1688
  %v1693 = vadd.f32 %v1665, %v1689
  %v1694 = vadd.f32 %v1670, %v1690
  %v1695 = vadd.f32 %v1673, %v1691
  %v1696 = vmul.f32 %v1692, 0.7978846
  %v1697 = vmul.f32 %v1693, 0.7978846
  %v1698 = vmul.f32 %v1694, 0.7978846
  %v1699 = vmul.f32 %v1695, 0.7978846
  %v1700 = vtanh.pop %v1696
  %v1701 = vtanh.pop %v1697
  %v1702 = vtanh.pop %v1698
  %v1703 = vtanh.pop %v1699
  %v1704 = vadd.f32 %v1700, 1.0
  %v1705 = vadd.f32 %v1701, 1.0
  %v1706 = vadd.f32 %v1702, 1.0
  %v1707 = vadd.f32 %v1703, 1.0
  %v1708 = vmul.f32 %v1676, %v1704
  %v1709 = vmul.f32 %v1677, %v1705
  %v1710 = vmul.f32 %v1678, %v1706
  %v1711 = vmul.f32 %v1679, %v1707
  %v1712 = vpack.c.bf16 %v1709, %v1708
  %v1713 = vpack.c.bf16 %v1711, %v1710
  %v1714 = vld [vmem:[%s19] sm:$0xf]
  %v1715 = vld [vmem:[%s19 + $0x4] sm:$0xf]
  %v1716 = vld [vmem:[%s19 + $0x8] sm:$0xf]
  %v1717 = vld [vmem:[%s19 + $0xc] sm:$0xf]
  %v1718 = vld [vmem:[%s19 + $0x10] sm:$0xf]
  %v1719 = vld [vmem:[%s19 + $0x14] sm:$0xf]
  %v1720 = vld [vmem:[%s19 + $0x18] sm:$0xf]
  %v1721 = vld [vmem:[%s19 + $0x1c] sm:$0xf]
  %v1722 = vld [vmem:[%s19 + $0x20] sm:$0xf]
  %v1723 = vld [vmem:[%s19 + $0x24] sm:$0xf]
  %v1724 = vld [vmem:[%s19 + $0x28] sm:$0xf]
  %v1725 = vld [vmem:[%s19 + $0x2c] sm:$0xf]
  %v1726 = vld [vmem:[%s19 + $0x30] sm:$0xf]
  %v1727 = vld [vmem:[%s19 + $0x34] sm:$0xf]
  %v1728 = vld [vmem:[%s19 + $0x38] sm:$0xf]
  %v1729 = vld [vmem:[%s19 + $0x3c] sm:$0xf]
  %v1730 = vld [vmem:[%s20] sm:$0x1]
  %v1732 = vlaneseq
  %v1733 = vshrl.u32 %v1732, 7
  %v1734 = vsub.s32 0, %v1733
  %v1735 = vrot.slane %v1730, %v1734
  %v1753 = vunpack.c.l.b16 %v1714
  %v1754 = vunpack.c.l.b16 %v1715
  %v1755 = vunpack.c.l.b16 %v1716
  %v1756 = vunpack.c.l.b16 %v1717
  %v1757 = vunpack.c.l.b16 %v1718
  %v1758 = vunpack.c.l.b16 %v1719
  %v1759 = vunpack.c.l.b16 %v1720
  %v1760 = vunpack.c.l.b16 %v1721
  %v1761 = vunpack.c.l.b16 %v1722
  %v1762 = vunpack.c.l.b16 %v1723
  %v1763 = vunpack.c.l.b16 %v1724
  %v1764 = vunpack.c.l.b16 %v1725
  %v1765 = vunpack.c.l.b16 %v1726
  %v1766 = vunpack.c.l.b16 %v1727
  %v1767 = vunpack.c.l.b16 %v1728
  %v1768 = vunpack.c.l.b16 %v1729
  %v1769 = vpack.c.b16 %v1754, %v1753
  %v1770 = vpack.c.b16 %v1756, %v1755
  %v1771 = vpack.c.b16 %v1758, %v1757
  %v1772 = vpack.c.b16 %v1760, %v1759
  %v1773 = vpack.c.b16 %v1762, %v1761
  %v1774 = vpack.c.b16 %v1764, %v1763
  %v1775 = vpack.c.b16 %v1766, %v1765
  %v1776 = vpack.c.b16 %v1768, %v1767
  %1785 = vmatprep.subr.bf16.mxu0 0
  %1786 = vmatpush1.bf16.msra.mxu0 %v1769
  %1787 = vmatprep.subr.bf16.mxu0 0
  %1788 = vmatpush1.bf16.msra.mxu0 %v1770
  %1789 = vmatprep.subr.bf16.mxu0 0
  %1790 = vmatpush1.bf16.msra.mxu0 %v1771
  %1791 = vmatprep.subr.bf16.mxu0 0
  %1792 = vmatpush1.bf16.msra.mxu0 %v1772
  %1793 = vmatprep.subr.bf16.mxu0 0
  %1794 = vmatpush1.bf16.msra.mxu0 %v1773
  %1795 = vmatprep.subr.bf16.mxu0 0
  %1796 = vmatpush1.bf16.msra.mxu0 %v1774
  %1797 = vmatprep.subr.bf16.mxu0 0
  %1798 = vmatpush1.bf16.msra.mxu0 %v1775
  %1799 = vmatprep.subr.bf16.mxu0 0
  %1800 = vmatpush1.bf16.msra.mxu0 %v1776
  %1801 = vmatprep.subr.bf16.mxu0 0
  %1802 = vmatpush1.bf16.msra.mxu0 0
  %1803 = vmatprep.subr.bf16.mxu0 0
  %1804 = vmatpush1.bf16.msra.mxu0 0
  %1805 = vmatprep.subr.bf16.mxu0 0
  %1806 = vmatpush1.bf16.msra.mxu0 0
  %1807 = vmatprep.subr.bf16.mxu0 0
  %1808 = vmatpush1.bf16.msra.mxu0 0
  %1809 = vmatprep.subr.bf16.mxu0 0
  %1810 = vmatpush1.bf16.msra.mxu0 0
  %1811 = vmatprep.subr.bf16.mxu0 0
  %1812 = vmatpush1.bf16.msra.mxu0 0
  %1813 = vmatprep.subr.bf16.mxu0 0
  %1814 = vmatpush1.bf16.msra.mxu0 0
  %1815 = vmatprep.subr.bf16.mxu0 0
  %1816 = vmatpush1.bf16.msra.mxu0 0
  %1817 = vmatprep.mubr.bf16.mxu0 0
  %1818 = vmatmul.mubr.bf16.gmra.mrb[0].mxu0 %v1712
  %v1819 = vpop.f32.mrb[0].mxu0
  %v1820 = vadd.f32 %v1735, %v1819
  %v1821 = vpop.f32.mrb[0].mxu0
  %v1822 = vpop.f32.mrb[0].mxu0
  %v1823 = vadd.f32 %v1735, %v1822
  %v1824 = vpop.f32.mrb[0].mxu0
  %1825 = vmatprep.mubr.bf16.mxu0 0
  %1826 = vmatmul.mubr.bf16.gmra.mrb[0].mxu0 %v1713
  %v1827 = vpop.f32.mrb[0].mxu0
  %v1828 = vadd.f32 %v1735, %v1827
  %v1829 = vpop.f32.mrb[0].mxu0
  %v1830 = vpop.f32.mrb[0].mxu0
  %v1831 = vadd.f32 %v1735, %v1830
  %v1832 = vpop.f32.mrb[0].mxu0
  %1833 = vdwg.mxu0
  %v1834 = vadd.f32 %v1576, %v1820
  %v1835 = vadd.f32 %v1577, %v1823
  %v1836 = vadd.f32 %v1578, %v1828
  %v1837 = vadd.f32 %v1579, %v1831
  %v1838 = vld [vmem:[%s21] sm:$0x1]
  %v1839 = vld [vmem:[%s22] sm:$0x1]
  %v1840 = vsel %vm238, %v1834, 0.0
  %1841 = vadd.xlane.f32.xlu0 %v1840
  %v1842 = vpop.xlane.xlu0 %1841
  %v1843 = vsel %vm238, %v1835, 0.0
  %1844 = vadd.xlane.f32.xlu0 %v1843
  %v1845 = vpop.xlane.xlu0 %1844
  %v1846 = vsel %vm238, %v1836, 0.0
  %1847 = vadd.xlane.f32.xlu0 %v1846
  %v1848 = vpop.xlane.xlu0 %1847
  %v1849 = vsel %vm238, %v1837, 0.0
  %1850 = vadd.xlane.f32.xlu0 %v1849
  %v1851 = vpop.xlane.xlu0 %1850
  %v1852 = vmul.f32 %v1842, %v251
  %v1853 = vmul.f32 %v1845, %v251
  %v1854 = vmul.f32 %v1848, %v251
  %v1855 = vmul.f32 %v1851, %v251
  %v1856 = vsub.f32 %v1834, %v1852
  %v1857 = vsub.f32 %v1835, %v1853
  %v1858 = vsub.f32 %v1836, %v1854
  %v1859 = vsub.f32 %v1837, %v1855
  %v1860 = vmul.f32 %v1856, %v1856
  %v1861 = vmul.f32 %v1857, %v1857
  %v1862 = vmul.f32 %v1858, %v1858
  %v1863 = vmul.f32 %v1859, %v1859
  %v1864 = vsel %vm238, %v1860, 0.0
  %1865 = vadd.xlane.f32.xlu0 %v1864
  %v1866 = vpop.xlane.xlu0 %1865
  %v1867 = vsel %vm238, %v1861, 0.0
  %1868 = vadd.xlane.f32.xlu0 %v1867
  %v1869 = vpop.xlane.xlu0 %1868
  %v1870 = vsel %vm238, %v1862, 0.0
  %1871 = vadd.xlane.f32.xlu0 %v1870
  %v1872 = vpop.xlane.xlu0 %1871
  %v1873 = vsel %vm238, %v1863, 0.0
  %1874 = vadd.xlane.f32.xlu0 %v1873
  %v1875 = vpop.xlane.xlu0 %1874
  %v1876 = vmul.f32 %v1866, %v251
  %v1877 = vmul.f32 %v1869, %v251
  %v1878 = vmul.f32 %v1872, %v251
  %v1879 = vmul.f32 %v1875, %v251
  %v1880 = vadd.f32 %v1876, 1e-12
  %v1881 = vadd.f32 %v1877, 1e-12
  %v1882 = vadd.f32 %v1878, 1e-12
  %v1883 = vadd.f32 %v1879, 1e-12
  %v1884 = vrsqrt.pop %v1880
  %v1885 = vrsqrt.pop %v1881
  %v1886 = vrsqrt.pop %v1882
  %v1887 = vrsqrt.pop %v1883
  %v1888 = vmul.f32 %v1856, %v1884
  %v1889 = vmul.f32 %v1857, %v1885
  %v1890 = vmul.f32 %v1858, %v1886
  %v1891 = vmul.f32 %v1859, %v1887
  %v1893 = vlaneseq
  %v1894 = vshrl.u32 %v1893, 7
  %v1895 = vsub.s32 0, %v1894
  %v1896 = vrot.slane %v1838, %v1895
  %v1898 = vmul.f32 %v1888, %v1896
  %v1899 = vmul.f32 %v1889, %v1896
  %v1900 = vmul.f32 %v1890, %v1896
  %v1901 = vmul.f32 %v1891, %v1896
  %v1903 = vlaneseq
  %v1904 = vshrl.u32 %v1903, 7
  %v1905 = vsub.s32 0, %v1904
  %v1906 = vrot.slane %v1839, %v1905
  %v1908 = vadd.f32 %v1898, %v1906
  %v1909 = vadd.f32 %v1899, %v1906
  %v1910 = vadd.f32 %v1900, %v1906
  %v1911 = vadd.f32 %v1901, %v1906
  %v1912 = vpack.c.bf16 %v1909, %v1908
  %v1913 = vpack.c.bf16 %v1911, %v1910
  %s1914 = scalar_lea.vmem %s7, 64
  %v1915 = vld [vmem:[%s1914] sm:$0xf]
  %v1916 = vld [vmem:[%s1914 + $0x4] sm:$0xf]
  %v1917 = vld [vmem:[%s1914 + $0x8] sm:$0xf]
  %v1918 = vld [vmem:[%s1914 + $0xc] sm:$0xf]
  %v1919 = vld [vmem:[%s1914 + $0x10] sm:$0xf]
  %v1920 = vld [vmem:[%s1914 + $0x14] sm:$0xf]
  %v1921 = vld [vmem:[%s1914 + $0x18] sm:$0xf]
  %v1922 = vld [vmem:[%s1914 + $0x1c] sm:$0xf]
  %s1923 = scalar_lea.vmem %s8, 2
  %v1924 = vld [vmem:[%s1923] sm:$0x1]
  %v1926 = vlaneseq
  %v1927 = vshrl.u32 %v1926, 7
  %v1928 = vsub.s32 0, %v1927
  %v1929 = vrot.slane %v1924, %v1928
  %v1939 = vunpack.c.l.b16 %v1915
  %v1940 = vunpack.c.l.b16 %v1916
  %v1941 = vunpack.c.l.b16 %v1917
  %v1942 = vunpack.c.l.b16 %v1918
  %v1943 = vunpack.c.l.b16 %v1919
  %v1944 = vunpack.c.l.b16 %v1920
  %v1945 = vunpack.c.l.b16 %v1921
  %v1946 = vunpack.c.l.b16 %v1922
  %v1947 = vpack.c.b16 %v1940, %v1939
  %v1948 = vpack.c.b16 %v1942, %v1941
  %v1949 = vpack.c.b16 %v1944, %v1943
  %v1950 = vpack.c.b16 %v1946, %v1945
  %v1956 = vsel %vm238, %v1912, 0
  %v1959 = vsel %vm238, %v1913, 0
  %1961 = vmatprep.subr.bf16.mxu0 0
  %1962 = vmatpush1.bf16.msra.mxu0 %v1947
  %1963 = vmatprep.subr.bf16.mxu0 0
  %1964 = vmatpush1.bf16.msra.mxu0 %v1948
  %1965 = vmatprep.subr.bf16.mxu0 0
  %1966 = vmatpush1.bf16.msra.mxu0 %v1949
  %1967 = vmatprep.subr.bf16.mxu0 0
  %1968 = vmatpush1.bf16.msra.mxu0 %v1950
  %1969 = vmatprep.subr.bf16.mxu0 0
  %1970 = vmatpush1.bf16.msra.mxu0 0
  %1971 = vmatprep.subr.bf16.mxu0 0
  %1972 = vmatpush1.bf16.msra.mxu0 0
  %1973 = vmatprep.subr.bf16.mxu0 0
  %1974 = vmatpush1.bf16.msra.mxu0 0
  %1975 = vmatprep.subr.bf16.mxu0 0
  %1976 = vmatpush1.bf16.msra.mxu0 0
  %1977 = vmatprep.subr.bf16.mxu0 0
  %1978 = vmatpush1.bf16.msra.mxu0 0
  %1979 = vmatprep.subr.bf16.mxu0 0
  %1980 = vmatpush1.bf16.msra.mxu0 0
  %1981 = vmatprep.subr.bf16.mxu0 0
  %1982 = vmatpush1.bf16.msra.mxu0 0
  %1983 = vmatprep.subr.bf16.mxu0 0
  %1984 = vmatpush1.bf16.msra.mxu0 0
  %1985 = vmatprep.subr.bf16.mxu0 0
  %1986 = vmatpush1.bf16.msra.mxu0 0
  %1987 = vmatprep.subr.bf16.mxu0 0
  %1988 = vmatpush1.bf16.msra.mxu0 0
  %1989 = vmatprep.subr.bf16.mxu0 0
  %1990 = vmatpush1.bf16.msra.mxu0 0
  %1991 = vmatprep.subr.bf16.mxu0 0
  %1992 = vmatpush1.bf16.msra.mxu0 0
  %1993 = vmatprep.mubr.bf16.mxu0 0
  %1994 = vmatmul.mubr.bf16.gmra.mrb[0].mxu0 %v1956
  %v1995 = vpop.f32.mrb[0].mxu0
  %v1996 = vadd.f32 %v1929, %v1995
  %v1997 = vpop.f32.mrb[0].mxu0
  %v1998 = vpop.f32.mrb[0].mxu0
  %v1999 = vadd.f32 %v1929, %v1998
  %v2000 = vpop.f32.mrb[0].mxu0
  %2001 = vmatprep.mubr.bf16.mxu0 0
  %2002 = vmatmul.mubr.bf16.gmra.mrb[0].mxu0 %v1959
  %v2003 = vpop.f32.mrb[0].mxu0
  %v2004 = vadd.f32 %v1929, %v2003
  %v2005 = vpop.f32.mrb[0].mxu0
  %v2006 = vpop.f32.mrb[0].mxu0
  %v2007 = vadd.f32 %v1929, %v2006
  %v2008 = vpop.f32.mrb[0].mxu0
  %2009 = vdwg.mxu0
  %v2010 = vpack.c.bf16 %v1999, %v1996
  %v2011 = vpack.c.bf16 %v2007, %v2004
  %s2012 = scalar_lea.vmem %s9, 64
  %v2013 = vld [vmem:[%s2012] sm:$0xf]
  %v2014 = vld [vmem:[%s2012 + $0x4] sm:$0xf]
  %v2015 = vld [vmem:[%s2012 + $0x8] sm:$0xf]
  %v2016 = vld [vmem:[%s2012 + $0xc] sm:$0xf]
  %v2017 = vld [vmem:[%s2012 + $0x10] sm:$0xf]
  %v2018 = vld [vmem:[%s2012 + $0x14] sm:$0xf]
  %v2019 = vld [vmem:[%s2012 + $0x18] sm:$0xf]
  %v2020 = vld [vmem:[%s2012 + $0x1c] sm:$0xf]
  %s2021 = scalar_lea.vmem %s10, 2
  %v2022 = vld [vmem:[%s2021] sm:$0x1]
  %v2024 = vlaneseq
  %v2025 = vshrl.u32 %v2024, 7
  %v2026 = vsub.s32 0, %v2025
  %v2027 = vrot.slane %v2022, %v2026
  %v2037 = vunpack.c.l.b16 %v2013
  %v2038 = vunpack.c.l.b16 %v2014
  %v2039 = vunpack.c.l.b16 %v2015
  %v2040 = vunpack.c.l.b16 %v2016
  %v2041 = vunpack.c.l.b16 %v2017
  %v2042 = vunpack.c.l.b16 %v2018
  %v2043 = vunpack.c.l.b16 %v2019
  %v2044 = vunpack.c.l.b16 %v2020
  %v2045 = vpack.c.b16 %v2038, %v2037
  %v2046 = vpack.c.b16 %v2040, %v2039
  %v2047 = vpack.c.b16 %v2042, %v2041
  %v2048 = vpack.c.b16 %v2044, %v2043
  %2053 = vmatprep.subr.bf16.mxu0 0
  %2054 = vmatpush1.bf16.msra.mxu0 %v2045
  %2055 = vmatprep.subr.bf16.mxu0 0
  %2056 = vmatpush1.bf16.msra.mxu0 %v2046
  %2057 = vmatprep.subr.bf16.mxu0 0
  %2058 = vmatpush1.bf16.msra.mxu0 %v2047
  %2059 = vmatprep.subr.bf16.mxu0 0
  %2060 = vmatpush1.bf16.msra.mxu0 %v2048
  %2061 = vmatprep.subr.bf16.mxu0 0
  %2062 = vmatpush1.bf16.msra.mxu0 0
  %2063 = vmatprep.subr.bf16.mxu0 0
  %2064 = vmatpush1.bf16.msra.mxu0 0
  %2065 = vmatprep.subr.bf16.mxu0 0
  %2066 = vmatpush1.bf16.msra.mxu0 0
  %2067 = vmatprep.subr.bf16.mxu0 0
  %2068 = vmatpush1.bf16.msra.mxu0 0
  %2069 = vmatprep.subr.bf16.mxu0 0
  %2070 = vmatpush1.bf16.msra.mxu0 0
  %2071 = vmatprep.subr.bf16.mxu0 0
  %2072 = vmatpush1.bf16.msra.mxu0 0
  %2073 = vmatprep.subr.bf16.mxu0 0
  %2074 = vmatpush1.bf16.msra.mxu0 0
  %2075 = vmatprep.subr.bf16.mxu0 0
  %2076 = vmatpush1.bf16.msra.mxu0 0
  %2077 = vmatprep.subr.bf16.mxu0 0
  %2078 = vmatpush1.bf16.msra.mxu0 0
  %2079 = vmatprep.subr.bf16.mxu0 0
  %2080 = vmatpush1.bf16.msra.mxu0 0
  %2081 = vmatprep.subr.bf16.mxu0 0
  %2082 = vmatpush1.bf16.msra.mxu0 0
  %2083 = vmatprep.subr.bf16.mxu0 0
  %2084 = vmatpush1.bf16.msra.mxu0 0
  %2085 = vmatprep.mubr.bf16.mxu0 0
  %2086 = vmatmul.mubr.bf16.gmra.mrb[0].mxu0 %v1956
  %v2087 = vpop.f32.mrb[0].mxu0
  %v2088 = vadd.f32 %v2027, %v2087
  %v2089 = vpop.f32.mrb[0].mxu0
  %v2090 = vpop.f32.mrb[0].mxu0
  %v2091 = vadd.f32 %v2027, %v2090
  %v2092 = vpop.f32.mrb[0].mxu0
  %2093 = vmatprep.mubr.bf16.mxu0 0
  %2094 = vmatmul.mubr.bf16.gmra.mrb[0].mxu0 %v1959
  %v2095 = vpop.f32.mrb[0].mxu0
  %v2096 = vadd.f32 %v2027, %v2095
  %v2097 = vpop.f32.mrb[0].mxu0
  %v2098 = vpop.f32.mrb[0].mxu0
  %v2099 = vadd.f32 %v2027, %v2098
  %v2100 = vpop.f32.mrb[0].mxu0
  %2101 = vdwg.mxu0
  %v2102 = vpack.c.bf16 %v2091, %v2088
  %v2103 = vpack.c.bf16 %v2099, %v2096
  %s2104 = scalar_lea.vmem %s11, 64
  %v2105 = vld [vmem:[%s2104] sm:$0xf]
  %v2106 = vld [vmem:[%s2104 + $0x4] sm:$0xf]
  %v2107 = vld [vmem:[%s2104 + $0x8] sm:$0xf]
  %v2108 = vld [vmem:[%s2104 + $0xc] sm:$0xf]
  %v2109 = vld [vmem:[%s2104 + $0x10] sm:$0xf]
  %v2110 = vld [vmem:[%s2104 + $0x14] sm:$0xf]
  %v2111 = vld [vmem:[%s2104 + $0x18] sm:$0xf]
  %v2112 = vld [vmem:[%s2104 + $0x1c] sm:$0xf]
  %s2113 = scalar_lea.vmem %s12, 2
  %v2114 = vld [vmem:[%s2113] sm:$0x1]
  %v2116 = vlaneseq
  %v2117 = vshrl.u32 %v2116, 7
  %v2118 = vsub.s32 0, %v2117
  %v2119 = vrot.slane %v2114, %v2118
  %v2129 = vunpack.c.l.b16 %v2105
  %v2130 = vunpack.c.l.b16 %v2106
  %v2131 = vunpack.c.l.b16 %v2107
  %v2132 = vunpack.c.l.b16 %v2108
  %v2133 = vunpack.c.l.b16 %v2109
  %v2134 = vunpack.c.l.b16 %v2110
  %v2135 = vunpack.c.l.b16 %v2111
  %v2136 = vunpack.c.l.b16 %v2112
  %v2137 = vpack.c.b16 %v2130, %v2129
  %v2138 = vpack.c.b16 %v2132, %v2131
  %v2139 = vpack.c.b16 %v2134, %v2133
  %v2140 = vpack.c.b16 %v2136, %v2135
  %2145 = vmatprep.subr.bf16.mxu0 0
  %2146 = vmatpush1.bf16.msra.mxu0 %v2137
  %2147 = vmatprep.subr.bf16.mxu0 0
  %2148 = vmatpush1.bf16.msra.mxu0 %v2138
  %2149 = vmatprep.subr.bf16.mxu0 0
  %2150 = vmatpush1.bf16.msra.mxu0 %v2139
  %2151 = vmatprep.subr.bf16.mxu0 0
  %2152 = vmatpush1.bf16.msra.mxu0 %v2140
  %2153 = vmatprep.subr.bf16.mxu0 0
  %2154 = vmatpush1.bf16.msra.mxu0 0
  %2155 = vmatprep.subr.bf16.mxu0 0
  %2156 = vmatpush1.bf16.msra.mxu0 0
  %2157 = vmatprep.subr.bf16.mxu0 0
  %2158 = vmatpush1.bf16.msra.mxu0 0
  %2159 = vmatprep.subr.bf16.mxu0 0
  %2160 = vmatpush1.bf16.msra.mxu0 0
  %2161 = vmatprep.subr.bf16.mxu0 0
  %2162 = vmatpush1.bf16.msra.mxu0 0
  %2163 = vmatprep.subr.bf16.mxu0 0
  %2164 = vmatpush1.bf16.msra.mxu0 0
  %2165 = vmatprep.subr.bf16.mxu0 0
  %2166 = vmatpush1.bf16.msra.mxu0 0
  %2167 = vmatprep.subr.bf16.mxu0 0
  %2168 = vmatpush1.bf16.msra.mxu0 0
  %2169 = vmatprep.subr.bf16.mxu0 0
  %2170 = vmatpush1.bf16.msra.mxu0 0
  %2171 = vmatprep.subr.bf16.mxu0 0
  %2172 = vmatpush1.bf16.msra.mxu0 0
  %2173 = vmatprep.subr.bf16.mxu0 0
  %2174 = vmatpush1.bf16.msra.mxu0 0
  %2175 = vmatprep.subr.bf16.mxu0 0
  %2176 = vmatpush1.bf16.msra.mxu0 0
  %2177 = vmatprep.mubr.bf16.mxu0 0
  %2178 = vmatmul.mubr.bf16.gmra.mrb[0].mxu0 %v1956
  %v2179 = vpop.f32.mrb[0].mxu0
  %v2180 = vadd.f32 %v2119, %v2179
  %v2181 = vpop.f32.mrb[0].mxu0
  %v2182 = vpop.f32.mrb[0].mxu0
  %v2183 = vadd.f32 %v2119, %v2182
  %v2184 = vpop.f32.mrb[0].mxu0
  %2185 = vmatprep.mubr.bf16.mxu0 0
  %2186 = vmatmul.mubr.bf16.gmra.mrb[0].mxu0 %v1959
  %v2187 = vpop.f32.mrb[0].mxu0
  %v2188 = vadd.f32 %v2119, %v2187
  %v2189 = vpop.f32.mrb[0].mxu0
  %v2190 = vpop.f32.mrb[0].mxu0
  %v2191 = vadd.f32 %v2119, %v2190
  %v2192 = vpop.f32.mrb[0].mxu0
  %2193 = vdwg.mxu0
  %v2194 = vpack.c.bf16 %v2183, %v2180
  %v2195 = vpack.c.bf16 %v2191, %v2188
  %v2197 = vsel %vm598, %v2010, 0
  %v2200 = vsel %vm598, %v2102, 0
  %2202 = vmatprep.subr.bf16.mxu0 0
  %2203 = vmatpush1.bf16.xpose.msra.mxu0 %v2200
  %2204 = vmatprep.subr.bf16.mxu0 0
  %2205 = vmatpush1.bf16.xpose.msra.mxu0 0
  %2206 = vmatprep.subr.bf16.mxu0 0
  %2207 = vmatpush1.bf16.xpose.msra.mxu0 0
  %2208 = vmatprep.subr.bf16.mxu0 0
  %2209 = vmatpush1.bf16.xpose.msra.mxu0 0
  %2210 = vmatprep.subr.bf16.mxu0 0
  %2211 = vmatpush1.bf16.xpose.msra.mxu0 0
  %2212 = vmatprep.subr.bf16.mxu0 0
  %2213 = vmatpush1.bf16.xpose.msra.mxu0 0
  %2214 = vmatprep.subr.bf16.mxu0 0
  %2215 = vmatpush1.bf16.xpose.msra.mxu0 0
  %2216 = vmatprep.subr.bf16.mxu0 0
  %2217 = vmatpush1.bf16.xpose.msra.mxu0 0
  %2218 = vmatprep.subr.bf16.mxu0 0
  %2219 = vmatpush1.bf16.xpose.msra.mxu0 0
  %2220 = vmatprep.subr.bf16.mxu0 0
  %2221 = vmatpush1.bf16.xpose.msra.mxu0 0
  %2222 = vmatprep.subr.bf16.mxu0 0
  %2223 = vmatpush1.bf16.xpose.msra.mxu0 0
  %2224 = vmatprep.subr.bf16.mxu0 0
  %2225 = vmatpush1.bf16.xpose.msra.mxu0 0
  %2226 = vmatprep.subr.bf16.mxu0 0
  %2227 = vmatpush1.bf16.xpose.msra.mxu0 0
  %2228 = vmatprep.subr.bf16.mxu0 0
  %2229 = vmatpush1.bf16.xpose.msra.mxu0 0
  %2230 = vmatprep.subr.bf16.mxu0 0
  %2231 = vmatpush1.bf16.xpose.msra.mxu0 0
  %2232 = vmatprep.subr.bf16.mxu0 0
  %2233 = vmatpush1.bf16.xpose.msra.mxu0 0
  %2234 = vmatprep.mubr.bf16.mxu0 0
  %2235 = vmatmul.mubr.bf16.gmra.mrb[0].mxu0 %v2197
  %v2236 = vpop.f32.mrb[0].mxu0
  %v2237 = vadd.f32 %v597, %v2236
  %v2238 = vpop.f32.mrb[0].mxu0
  %v2239 = vpop.f32.mrb[0].mxu0
  %v2240 = vadd.f32 %v597, %v2239
  %v2241 = vpop.f32.mrb[0].mxu0
  %2242 = vdwg.mxu0
  %v2243 = vsel %vm646, %v2237, -inf
  %2244 = vmax.xlane.f32.xlu0 %v2243
  %v2245 = vpop.xlane.xlu0 %2244
  %v2246 = vsel %vm646, %v2240, -inf
  %2247 = vmax.xlane.f32.xlu0 %v2246
  %v2248 = vpop.xlane.xlu0 %2247
  %v2249 = vsub.f32 %v2237, %v2245
  %v2250 = vsub.f32 %v2240, %v2248
  %v2251 = vmul.f32 %v2249, 1.442695
  %v2252 = vpow.pop %v2251
  %v2253 = vmul.f32 %v2250, 1.442695
  %v2254 = vpow.pop %v2253
  %v2255 = vsel %vm646, %v2252, 0.0
  %2256 = vadd.xlane.f32.xlu0 %v2255
  %v2257 = vpop.xlane.xlu0 %2256
  %v2258 = vsel %vm646, %v2254, 0.0
  %2259 = vadd.xlane.f32.xlu0 %v2258
  %v2260 = vpop.xlane.xlu0 %2259
  %v2261 = vrcp.pop %v2257
  %v2262 = vrcp.pop %v2260
  %v2263 = vmul.f32 %v2252, %v2261
  %v2264 = vmul.f32 %v2254, %v2262
  %v2265 = vpack.c.bf16 %v2264, %v2263
  %v2267 = vsel %vm646, %v2265, 0
  %2269 = vmatprep.subr.bf16.mxu0 0
  %2270 = vmatpush1.bf16.msra.mxu0 %v2194
  %2271 = vmatprep.subr.bf16.mxu0 0
  %2272 = vmatpush1.bf16.msra.mxu0 0
  %2273 = vmatprep.subr.bf16.mxu0 0
  %2274 = vmatpush1.bf16.msra.mxu0 0
  %2275 = vmatprep.subr.bf16.mxu0 0
  %2276 = vmatpush1.bf16.msra.mxu0 0
  %2277 = vmatprep.subr.bf16.mxu0 0
  %2278 = vmatpush1.bf16.msra.mxu0 0
  %2279 = vmatprep.subr.bf16.mxu0 0
  %2280 = vmatpush1.bf16.msra.mxu0 0
  %2281 = vmatprep.subr.bf16.mxu0 0
  %2282 = vmatpush1.bf16.msra.mxu0 0
  %2283 = vmatprep.subr.bf16.mxu0 0
  %2284 = vmatpush1.bf16.msra.mxu0 0
  %2285 = vmatprep.subr.bf16.mxu0 0
  %2286 = vmatpush1.bf16.msra.mxu0 0
  %2287 = vmatprep.subr.bf16.mxu0 0
  %2288 = vmatpush1.bf16.msra.mxu0 0
  %2289 = vmatprep.subr.bf16.mxu0 0
  %2290 = vmatpush1.bf16.msra.mxu0 0
  %2291 = vmatprep.subr.bf16.mxu0 0
  %2292 = vmatpush1.bf16.msra.mxu0 0
  %2293 = vmatprep.subr.bf16.mxu0 0
  %2294 = vmatpush1.bf16.msra.mxu0 0
  %2295 = vmatprep.subr.bf16.mxu0 0
  %2296 = vmatpush1.bf16.msra.mxu0 0
  %2297 = vmatprep.subr.bf16.mxu0 0
  %2298 = vmatpush1.bf16.msra.mxu0 0
  %2299 = vmatprep.subr.bf16.mxu0 0
  %2300 = vmatpush1.bf16.msra.mxu0 0
  %2301 = vmatprep.mubr.bf16.mxu0 0
  %2302 = vmatmul.mubr.bf16.gmra.mrb[0].mxu0 %v2267
  %v2303 = vpop.f32.mrb[0].mxu0
  %v2304 = vadd.f32 0.0, %v2303
  %v2305 = vpop.f32.mrb[0].mxu0
  %v2306 = vpop.f32.mrb[0].mxu0
  %v2307 = vadd.f32 0.0, %v2306
  %v2308 = vpop.f32.mrb[0].mxu0
  %2309 = vdwg.mxu0
  %v2310 = vpack.c.bf16 %v2307, %v2304
  %2311 = vst.msk [vmem:[#allocation2] sm:$0xff] %vm598, %v2310
  %v2313 = vsel %vm598, %v2011, 0
  %v2316 = vsel %vm598, %v2103, 0
  %2318 = vmatprep.subr.bf16.mxu0 0
  %2319 = vmatpush1.bf16.xpose.msra.mxu0 %v2316
  %2320 = vmatprep.subr.bf16.mxu0 0
  %2321 = vmatpush1.bf16.xpose.msra.mxu0 0
  %2322 = vmatprep.subr.bf16.mxu0 0
  %2323 = vmatpush1.bf16.xpose.msra.mxu0 0
  %2324 = vmatprep.subr.bf16.mxu0 0
  %2325 = vmatpush1.bf16.xpose.msra.mxu0 0
  %2326 = vmatprep.subr.bf16.mxu0 0
  %2327 = vmatpush1.bf16.xpose.msra.mxu0 0
  %2328 = vmatprep.subr.bf16.mxu0 0
  %2329 = vmatpush1.bf16.xpose.msra.mxu0 0
  %2330 = vmatprep.subr.bf16.mxu0 0
  %2331 = vmatpush1.bf16.xpose.msra.mxu0 0
  %2332 = vmatprep.subr.bf16.mxu0 0
  %2333 = vmatpush1.bf16.xpose.msra.mxu0 0
  %2334 = vmatprep.subr.bf16.mxu0 0
  %2335 = vmatpush1.bf16.xpose.msra.mxu0 0
  %2336 = vmatprep.subr.bf16.mxu0 0
  %2337 = vmatpush1.bf16.xpose.msra.mxu0 0
  %2338 = vmatprep.subr.bf16.mxu0 0
  %2339 = vmatpush1.bf16.xpose.msra.mxu0 0
  %2340 = vmatprep.subr.bf16.mxu0 0
  %2341 = vmatpush1.bf16.xpose.msra.mxu0 0
  %2342 = vmatprep.subr.bf16.mxu0 0
  %2343 = vmatpush1.bf16.xpose.msra.mxu0 0
  %2344 = vmatprep.subr.bf16.mxu0 0
  %2345 = vmatpush1.bf16.xpose.msra.mxu0 0
  %2346 = vmatprep.subr.bf16.mxu0 0
  %2347 = vmatpush1.bf16.xpose.msra.mxu0 0
  %2348 = vmatprep.subr.bf16.mxu0 0
  %2349 = vmatpush1.bf16.xpose.msra.mxu0 0
  %2350 = vmatprep.mubr.bf16.mxu0 0
  %2351 = vmatmul.mubr.bf16.gmra.mrb[0].mxu0 %v2313
  %v2352 = vpop.f32.mrb[0].mxu0
  %v2353 = vadd.f32 %v719, %v2352
  %v2354 = vpop.f32.mrb[0].mxu0
  %v2355 = vpop.f32.mrb[0].mxu0
  %v2356 = vadd.f32 %v719, %v2355
  %v2357 = vpop.f32.mrb[0].mxu0
  %2358 = vdwg.mxu0
  %v2359 = vsel %vm646, %v2353, -inf
  %2360 = vmax.xlane.f32.xlu0 %v2359
  %v2361 = vpop.xlane.xlu0 %2360
  %v2362 = vsel %vm646, %v2356, -inf
  %2363 = vmax.xlane.f32.xlu0 %v2362
  %v2364 = vpop.xlane.xlu0 %2363
  %v2365 = vsub.f32 %v2353, %v2361
  %v2366 = vsub.f32 %v2356, %v2364
  %v2367 = vmul.f32 %v2365, 1.442695
  %v2368 = vpow.pop %v2367
  %v2369 = vmul.f32 %v2366, 1.442695
  %v2370 = vpow.pop %v2369
  %v2371 = vsel %vm646, %v2368, 0.0
  %2372 = vadd.xlane.f32.xlu0 %v2371
  %v2373 = vpop.xlane.xlu0 %2372
  %v2374 = vsel %vm646, %v2370, 0.0
  %2375 = vadd.xlane.f32.xlu0 %v2374
  %v2376 = vpop.xlane.xlu0 %2375
  %v2377 = vrcp.pop %v2373
  %v2378 = vrcp.pop %v2376
  %v2379 = vmul.f32 %v2368, %v2377
  %v2380 = vmul.f32 %v2370, %v2378
  %v2381 = vpack.c.bf16 %v2380, %v2379
  %v2383 = vsel %vm646, %v2381, 0
  %2385 = vmatprep.subr.bf16.mxu0 0
  %2386 = vmatpush1.bf16.msra.mxu0 %v2195
  %2387 = vmatprep.subr.bf16.mxu0 0
  %2388 = vmatpush1.bf16.msra.mxu0 0
  %2389 = vmatprep.subr.bf16.mxu0 0
  %2390 = vmatpush1.bf16.msra.mxu0 0
  %2391 = vmatprep.subr.bf16.mxu0 0
  %2392 = vmatpush1.bf16.msra.mxu0 0
  %2393 = vmatprep.subr.bf16.mxu0 0
  %2394 = vmatpush1.bf16.msra.mxu0 0
  %2395 = vmatprep.subr.bf16.mxu0 0
  %2396 = vmatpush1.bf16.msra.mxu0 0
  %2397 = vmatprep.subr.bf16.mxu0 0
  %2398 = vmatpush1.bf16.msra.mxu0 0
  %2399 = vmatprep.subr.bf16.mxu0 0
  %2400 = vmatpush1.bf16.msra.mxu0 0
  %2401 = vmatprep.subr.bf16.mxu0 0
  %2402 = vmatpush1.bf16.msra.mxu0 0
  %2403 = vmatprep.subr.bf16.mxu0 0
  %2404 = vmatpush1.bf16.msra.mxu0 0
  %2405 = vmatprep.subr.bf16.mxu0 0
  %2406 = vmatpush1.bf16.msra.mxu0 0
  %2407 = vmatprep.subr.bf16.mxu0 0
  %2408 = vmatpush1.bf16.msra.mxu0 0
  %2409 = vmatprep.subr.bf16.mxu0 0
  %2410 = vmatpush1.bf16.msra.mxu0 0
  %2411 = vmatprep.subr.bf16.mxu0 0
  %2412 = vmatpush1.bf16.msra.mxu0 0
  %2413 = vmatprep.subr.bf16.mxu0 0
  %2414 = vmatpush1.bf16.msra.mxu0 0
  %2415 = vmatprep.subr.bf16.mxu0 0
  %2416 = vmatpush1.bf16.msra.mxu0 0
  %2417 = vmatprep.mubr.bf16.mxu0 0
  %2418 = vmatmul.mubr.bf16.gmra.mrb[0].mxu0 %v2383
  %v2419 = vpop.f32.mrb[0].mxu0
  %v2420 = vadd.f32 0.0, %v2419
  %v2421 = vpop.f32.mrb[0].mxu0
  %v2422 = vpop.f32.mrb[0].mxu0
  %v2423 = vadd.f32 0.0, %v2422
  %v2424 = vpop.f32.mrb[0].mxu0
  %2425 = vdwg.mxu0
  %v2426 = vpack.c.bf16 %v2423, %v2420
  %2427 = vst.msk [vmem:[#allocation2 + $0x8] sm:$0xff] %vm598, %v2426
  %v2428 = vld [vmem:[#allocation2] sm:$0xff]
  %v2429 = vld [vmem:[#allocation2 + $0x8] sm:$0xff]
  %s2430 = scalar_lea.vmem %s13, 32
  %v2431 = vld [vmem:[%s2430] sm:$0xf]
  %v2432 = vld [vmem:[%s2430 + $0x4] sm:$0xf]
  %v2433 = vld [vmem:[%s2430 + $0x8] sm:$0xf]
  %v2434 = vld [vmem:[%s2430 + $0xc] sm:$0xf]
  %s2435 = scalar_lea.vmem %s7, 96
  %v2436 = vld [vmem:[%s2435] sm:$0xf]
  %v2437 = vld [vmem:[%s2435 + $0x4] sm:$0xf]
  %v2438 = vld [vmem:[%s2435 + $0x8] sm:$0xf]
  %v2439 = vld [vmem:[%s2435 + $0xc] sm:$0xf]
  %v2440 = vld [vmem:[%s2435 + $0x10] sm:$0xf]
  %v2441 = vld [vmem:[%s2435 + $0x14] sm:$0xf]
  %v2442 = vld [vmem:[%s2435 + $0x18] sm:$0xf]
  %v2443 = vld [vmem:[%s2435 + $0x1c] sm:$0xf]
  %s2444 = scalar_lea.vmem %s8, 3
  %v2445 = vld [vmem:[%s2444] sm:$0x1]
  %v2447 = vlaneseq
  %v2448 = vshrl.u32 %v2447, 7
  %v2449 = vsub.s32 0, %v2448
  %v2450 = vrot.slane %v2445, %v2449
  %v2460 = vunpack.c.l.b16 %v2436
  %v2461 = vunpack.c.l.b16 %v2437
  %v2462 = vunpack.c.l.b16 %v2438
  %v2463 = vunpack.c.l.b16 %v2439
  %v2464 = vunpack.c.l.b16 %v2440
  %v2465 = vunpack.c.l.b16 %v2441
  %v2466 = vunpack.c.l.b16 %v2442
  %v2467 = vunpack.c.l.b16 %v2443
  %v2468 = vpack.c.b16 %v2461, %v2460
  %v2469 = vpack.c.b16 %v2463, %v2462
  %v2470 = vpack.c.b16 %v2465, %v2464
  %v2471 = vpack.c.b16 %v2467, %v2466
  %2476 = vmatprep.subr.bf16.mxu0 0
  %2477 = vmatpush1.bf16.msra.mxu0 %v2468
  %2478 = vmatprep.subr.bf16.mxu0 0
  %2479 = vmatpush1.bf16.msra.mxu0 %v2469
  %2480 = vmatprep.subr.bf16.mxu0 0
  %2481 = vmatpush1.bf16.msra.mxu0 %v2470
  %2482 = vmatprep.subr.bf16.mxu0 0
  %2483 = vmatpush1.bf16.msra.mxu0 %v2471
  %2484 = vmatprep.subr.bf16.mxu0 0
  %2485 = vmatpush1.bf16.msra.mxu0 0
  %2486 = vmatprep.subr.bf16.mxu0 0
  %2487 = vmatpush1.bf16.msra.mxu0 0
  %2488 = vmatprep.subr.bf16.mxu0 0
  %2489 = vmatpush1.bf16.msra.mxu0 0
  %2490 = vmatprep.subr.bf16.mxu0 0
  %2491 = vmatpush1.bf16.msra.mxu0 0
  %2492 = vmatprep.subr.bf16.mxu0 0
  %2493 = vmatpush1.bf16.msra.mxu0 0
  %2494 = vmatprep.subr.bf16.mxu0 0
  %2495 = vmatpush1.bf16.msra.mxu0 0
  %2496 = vmatprep.subr.bf16.mxu0 0
  %2497 = vmatpush1.bf16.msra.mxu0 0
  %2498 = vmatprep.subr.bf16.mxu0 0
  %2499 = vmatpush1.bf16.msra.mxu0 0
  %2500 = vmatprep.subr.bf16.mxu0 0
  %2501 = vmatpush1.bf16.msra.mxu0 0
  %2502 = vmatprep.subr.bf16.mxu0 0
  %2503 = vmatpush1.bf16.msra.mxu0 0
  %2504 = vmatprep.subr.bf16.mxu0 0
  %2505 = vmatpush1.bf16.msra.mxu0 0
  %2506 = vmatprep.subr.bf16.mxu0 0
  %2507 = vmatpush1.bf16.msra.mxu0 0
  %2508 = vmatprep.mubr.bf16.mxu0 0
  %2509 = vmatmul.mubr.bf16.gmra.mrb[0].mxu0 %v1956
  %v2510 = vpop.f32.mrb[0].mxu0
  %v2511 = vadd.f32 %v2450, %v2510
  %v2512 = vpop.f32.mrb[0].mxu0
  %v2513 = vpop.f32.mrb[0].mxu0
  %v2514 = vadd.f32 %v2450, %v2513
  %v2515 = vpop.f32.mrb[0].mxu0
  %2516 = vmatprep.mubr.bf16.mxu0 0
  %2517 = vmatmul.mubr.bf16.gmra.mrb[0].mxu0 %v1959
  %v2518 = vpop.f32.mrb[0].mxu0
  %v2519 = vadd.f32 %v2450, %v2518
  %v2520 = vpop.f32.mrb[0].mxu0
  %v2521 = vpop.f32.mrb[0].mxu0
  %v2522 = vadd.f32 %v2450, %v2521
  %v2523 = vpop.f32.mrb[0].mxu0
  %2524 = vdwg.mxu0
  %v2525 = vpack.c.bf16 %v2514, %v2511
  %v2526 = vpack.c.bf16 %v2522, %v2519
  %s2527 = scalar_lea.vmem %s9, 96
  %v2528 = vld [vmem:[%s2527] sm:$0xf]
  %v2529 = vld [vmem:[%s2527 + $0x4] sm:$0xf]
  %v2530 = vld [vmem:[%s2527 + $0x8] sm:$0xf]
  %v2531 = vld [vmem:[%s2527 + $0xc] sm:$0xf]
  %v2532 = vld [vmem:[%s2527 + $0x10] sm:$0xf]
  %v2533 = vld [vmem:[%s2527 + $0x14] sm:$0xf]
  %v2534 = vld [vmem:[%s2527 + $0x18] sm:$0xf]
  %v2535 = vld [vmem:[%s2527 + $0x1c] sm:$0xf]
  %s2536 = scalar_lea.vmem %s10, 3
  %v2537 = vld [vmem:[%s2536] sm:$0x1]
  %v2539 = vlaneseq
  %v2540 = vshrl.u32 %v2539, 7
  %v2541 = vsub.s32 0, %v2540
  %v2542 = vrot.slane %v2537, %v2541
  %v2552 = vunpack.c.l.b16 %v2528
  %v2553 = vunpack.c.l.b16 %v2529
  %v2554 = vunpack.c.l.b16 %v2530
  %v2555 = vunpack.c.l.b16 %v2531
  %v2556 = vunpack.c.l.b16 %v2532
  %v2557 = vunpack.c.l.b16 %v2533
  %v2558 = vunpack.c.l.b16 %v2534
  %v2559 = vunpack.c.l.b16 %v2535
  %v2560 = vpack.c.b16 %v2553, %v2552
  %v2561 = vpack.c.b16 %v2555, %v2554
  %v2562 = vpack.c.b16 %v2557, %v2556
  %v2563 = vpack.c.b16 %v2559, %v2558
  %2568 = vmatprep.subr.bf16.mxu0 0
  %2569 = vmatpush1.bf16.msra.mxu0 %v2560
  %2570 = vmatprep.subr.bf16.mxu0 0
  %2571 = vmatpush1.bf16.msra.mxu0 %v2561
  %2572 = vmatprep.subr.bf16.mxu0 0
  %2573 = vmatpush1.bf16.msra.mxu0 %v2562
  %2574 = vmatprep.subr.bf16.mxu0 0
  %2575 = vmatpush1.bf16.msra.mxu0 %v2563
  %2576 = vmatprep.subr.bf16.mxu0 0
  %2577 = vmatpush1.bf16.msra.mxu0 0
  %2578 = vmatprep.subr.bf16.mxu0 0
  %2579 = vmatpush1.bf16.msra.mxu0 0
  %2580 = vmatprep.subr.bf16.mxu0 0
  %2581 = vmatpush1.bf16.msra.mxu0 0
  %2582 = vmatprep.subr.bf16.mxu0 0
  %2583 = vmatpush1.bf16.msra.mxu0 0
  %2584 = vmatprep.subr.bf16.mxu0 0
  %2585 = vmatpush1.bf16.msra.mxu0 0
  %2586 = vmatprep.subr.bf16.mxu0 0
  %2587 = vmatpush1.bf16.msra.mxu0 0
  %2588 = vmatprep.subr.bf16.mxu0 0
  %2589 = vmatpush1.bf16.msra.mxu0 0
  %2590 = vmatprep.subr.bf16.mxu0 0
  %2591 = vmatpush1.bf16.msra.mxu0 0
  %2592 = vmatprep.subr.bf16.mxu0 0
  %2593 = vmatpush1.bf16.msra.mxu0 0
  %2594 = vmatprep.subr.bf16.mxu0 0
  %2595 = vmatpush1.bf16.msra.mxu0 0
  %2596 = vmatprep.subr.bf16.mxu0 0
  %2597 = vmatpush1.bf16.msra.mxu0 0
  %2598 = vmatprep.subr.bf16.mxu0 0
  %2599 = vmatpush1.bf16.msra.mxu0 0
  %2600 = vmatprep.mubr.bf16.mxu0 0
  %2601 = vmatmul.mubr.bf16.gmra.mrb[0].mxu0 %v1956
  %v2602 = vpop.f32.mrb[0].mxu0
  %v2603 = vadd.f32 %v2542, %v2602
  %v2604 = vpop.f32.mrb[0].mxu0
  %v2605 = vpop.f32.mrb[0].mxu0
  %v2606 = vadd.f32 %v2542, %v2605
  %v2607 = vpop.f32.mrb[0].mxu0
  %2608 = vmatprep.mubr.bf16.mxu0 0
  %2609 = vmatmul.mubr.bf16.gmra.mrb[0].mxu0 %v1959
  %v2610 = vpop.f32.mrb[0].mxu0
  %v2611 = vadd.f32 %v2542, %v2610
  %v2612 = vpop.f32.mrb[0].mxu0
  %v2613 = vpop.f32.mrb[0].mxu0
  %v2614 = vadd.f32 %v2542, %v2613
  %v2615 = vpop.f32.mrb[0].mxu0
  %2616 = vdwg.mxu0
  %v2617 = vpack.c.bf16 %v2606, %v2603
  %v2618 = vpack.c.bf16 %v2614, %v2611
  %s2619 = scalar_lea.vmem %s11, 96
  %v2620 = vld [vmem:[%s2619] sm:$0xf]
  %v2621 = vld [vmem:[%s2619 + $0x4] sm:$0xf]
  %v2622 = vld [vmem:[%s2619 + $0x8] sm:$0xf]
  %v2623 = vld [vmem:[%s2619 + $0xc] sm:$0xf]
  %v2624 = vld [vmem:[%s2619 + $0x10] sm:$0xf]
  %v2625 = vld [vmem:[%s2619 + $0x14] sm:$0xf]
  %v2626 = vld [vmem:[%s2619 + $0x18] sm:$0xf]
  %v2627 = vld [vmem:[%s2619 + $0x1c] sm:$0xf]
  %s2628 = scalar_lea.vmem %s12, 3
  %v2629 = vld [vmem:[%s2628] sm:$0x1]
  %v2631 = vlaneseq
  %v2632 = vshrl.u32 %v2631, 7
  %v2633 = vsub.s32 0, %v2632
  %v2634 = vrot.slane %v2629, %v2633
  %v2644 = vunpack.c.l.b16 %v2620
  %v2645 = vunpack.c.l.b16 %v2621
  %v2646 = vunpack.c.l.b16 %v2622
  %v2647 = vunpack.c.l.b16 %v2623
  %v2648 = vunpack.c.l.b16 %v2624
  %v2649 = vunpack.c.l.b16 %v2625
  %v2650 = vunpack.c.l.b16 %v2626
  %v2651 = vunpack.c.l.b16 %v2627
  %v2652 = vpack.c.b16 %v2645, %v2644
  %v2653 = vpack.c.b16 %v2647, %v2646
  %v2654 = vpack.c.b16 %v2649, %v2648
  %v2655 = vpack.c.b16 %v2651, %v2650
  %2660 = vmatprep.subr.bf16.mxu0 0
  %2661 = vmatpush1.bf16.msra.mxu0 %v2652
  %2662 = vmatprep.subr.bf16.mxu0 0
  %2663 = vmatpush1.bf16.msra.mxu0 %v2653
  %2664 = vmatprep.subr.bf16.mxu0 0
  %2665 = vmatpush1.bf16.msra.mxu0 %v2654
  %2666 = vmatprep.subr.bf16.mxu0 0
  %2667 = vmatpush1.bf16.msra.mxu0 %v2655
  %2668 = vmatprep.subr.bf16.mxu0 0
  %2669 = vmatpush1.bf16.msra.mxu0 0
  %2670 = vmatprep.subr.bf16.mxu0 0
  %2671 = vmatpush1.bf16.msra.mxu0 0
  %2672 = vmatprep.subr.bf16.mxu0 0
  %2673 = vmatpush1.bf16.msra.mxu0 0
  %2674 = vmatprep.subr.bf16.mxu0 0
  %2675 = vmatpush1.bf16.msra.mxu0 0
  %2676 = vmatprep.subr.bf16.mxu0 0
  %2677 = vmatpush1.bf16.msra.mxu0 0
  %2678 = vmatprep.subr.bf16.mxu0 0
  %2679 = vmatpush1.bf16.msra.mxu0 0
  %2680 = vmatprep.subr.bf16.mxu0 0
  %2681 = vmatpush1.bf16.msra.mxu0 0
  %2682 = vmatprep.subr.bf16.mxu0 0
  %2683 = vmatpush1.bf16.msra.mxu0 0
  %2684 = vmatprep.subr.bf16.mxu0 0
  %2685 = vmatpush1.bf16.msra.mxu0 0
  %2686 = vmatprep.subr.bf16.mxu0 0
  %2687 = vmatpush1.bf16.msra.mxu0 0
  %2688 = vmatprep.subr.bf16.mxu0 0
  %2689 = vmatpush1.bf16.msra.mxu0 0
  %2690 = vmatprep.subr.bf16.mxu0 0
  %2691 = vmatpush1.bf16.msra.mxu0 0
  %2692 = vmatprep.mubr.bf16.mxu0 0
  %2693 = vmatmul.mubr.bf16.gmra.mrb[0].mxu0 %v1956
  %v2694 = vpop.f32.mrb[0].mxu0
  %v2695 = vadd.f32 %v2634, %v2694
  %v2696 = vpop.f32.mrb[0].mxu0
  %v2697 = vpop.f32.mrb[0].mxu0
  %v2698 = vadd.f32 %v2634, %v2697
  %v2699 = vpop.f32.mrb[0].mxu0
  %2700 = vmatprep.mubr.bf16.mxu0 0
  %2701 = vmatmul.mubr.bf16.gmra.mrb[0].mxu0 %v1959
  %v2702 = vpop.f32.mrb[0].mxu0
  %v2703 = vadd.f32 %v2634, %v2702
  %v2704 = vpop.f32.mrb[0].mxu0
  %v2705 = vpop.f32.mrb[0].mxu0
  %v2706 = vadd.f32 %v2634, %v2705
  %v2707 = vpop.f32.mrb[0].mxu0
  %2708 = vdwg.mxu0
  %v2709 = vpack.c.bf16 %v2698, %v2695
  %v2710 = vpack.c.bf16 %v2706, %v2703
  %v2712 = vsel %vm598, %v2525, 0
  %v2715 = vsel %vm598, %v2617, 0
  %2717 = vmatprep.subr.bf16.mxu0 0
  %2718 = vmatpush1.bf16.xpose.msra.mxu0 %v2715
  %2719 = vmatprep.subr.bf16.mxu0 0
  %2720 = vmatpush1.bf16.xpose.msra.mxu0 0
  %2721 = vmatprep.subr.bf16.mxu0 0
  %2722 = vmatpush1.bf16.xpose.msra.mxu0 0
  %2723 = vmatprep.subr.bf16.mxu0 0
  %2724 = vmatpush1.bf16.xpose.msra.mxu0 0
  %2725 = vmatprep.subr.bf16.mxu0 0
  %2726 = vmatpush1.bf16.xpose.msra.mxu0 0
  %2727 = vmatprep.subr.bf16.mxu0 0
  %2728 = vmatpush1.bf16.xpose.msra.mxu0 0
  %2729 = vmatprep.subr.bf16.mxu0 0
  %2730 = vmatpush1.bf16.xpose.msra.mxu0 0
  %2731 = vmatprep.subr.bf16.mxu0 0
  %2732 = vmatpush1.bf16.xpose.msra.mxu0 0
  %2733 = vmatprep.subr.bf16.mxu0 0
  %2734 = vmatpush1.bf16.xpose.msra.mxu0 0
  %2735 = vmatprep.subr.bf16.mxu0 0
  %2736 = vmatpush1.bf16.xpose.msra.mxu0 0
  %2737 = vmatprep.subr.bf16.mxu0 0
  %2738 = vmatpush1.bf16.xpose.msra.mxu0 0
  %2739 = vmatprep.subr.bf16.mxu0 0
  %2740 = vmatpush1.bf16.xpose.msra.mxu0 0
  %2741 = vmatprep.subr.bf16.mxu0 0
  %2742 = vmatpush1.bf16.xpose.msra.mxu0 0
  %2743 = vmatprep.subr.bf16.mxu0 0
  %2744 = vmatpush1.bf16.xpose.msra.mxu0 0
  %2745 = vmatprep.subr.bf16.mxu0 0
  %2746 = vmatpush1.bf16.xpose.msra.mxu0 0
  %2747 = vmatprep.subr.bf16.mxu0 0
  %2748 = vmatpush1.bf16.xpose.msra.mxu0 0
  %2749 = vmatprep.mubr.bf16.mxu0 0
  %2750 = vmatmul.mubr.bf16.gmra.mrb[0].mxu0 %v2712
  %v2751 = vpop.f32.mrb[0].mxu0
  %v2752 = vadd.f32 %v597, %v2751
  %v2753 = vpop.f32.mrb[0].mxu0
  %v2754 = vpop.f32.mrb[0].mxu0
  %v2755 = vadd.f32 %v597, %v2754
  %v2756 = vpop.f32.mrb[0].mxu0
  %2757 = vdwg.mxu0
  %v2758 = vsel %vm646, %v2752, -inf
  %2759 = vmax.xlane.f32.xlu0 %v2758
  %v2760 = vpop.xlane.xlu0 %2759
  %v2761 = vsel %vm646, %v2755, -inf
  %2762 = vmax.xlane.f32.xlu0 %v2761
  %v2763 = vpop.xlane.xlu0 %2762
  %v2764 = vsub.f32 %v2752, %v2760
  %v2765 = vsub.f32 %v2755, %v2763
  %v2766 = vmul.f32 %v2764, 1.442695
  %v2767 = vpow.pop %v2766
  %v2768 = vmul.f32 %v2765, 1.442695
  %v2769 = vpow.pop %v2768
  %v2770 = vsel %vm646, %v2767, 0.0
  %2771 = vadd.xlane.f32.xlu0 %v2770
  %v2772 = vpop.xlane.xlu0 %2771
  %v2773 = vsel %vm646, %v2769, 0.0
  %2774 = vadd.xlane.f32.xlu0 %v2773
  %v2775 = vpop.xlane.xlu0 %2774
  %v2776 = vrcp.pop %v2772
  %v2777 = vrcp.pop %v2775
  %v2778 = vmul.f32 %v2767, %v2776
  %v2779 = vmul.f32 %v2769, %v2777
  %v2780 = vpack.c.bf16 %v2779, %v2778
  %v2782 = vsel %vm646, %v2780, 0
  %2784 = vmatprep.subr.bf16.mxu0 0
  %2785 = vmatpush1.bf16.msra.mxu0 %v2709
  %2786 = vmatprep.subr.bf16.mxu0 0
  %2787 = vmatpush1.bf16.msra.mxu0 0
  %2788 = vmatprep.subr.bf16.mxu0 0
  %2789 = vmatpush1.bf16.msra.mxu0 0
  %2790 = vmatprep.subr.bf16.mxu0 0
  %2791 = vmatpush1.bf16.msra.mxu0 0
  %2792 = vmatprep.subr.bf16.mxu0 0
  %2793 = vmatpush1.bf16.msra.mxu0 0
  %2794 = vmatprep.subr.bf16.mxu0 0
  %2795 = vmatpush1.bf16.msra.mxu0 0
  %2796 = vmatprep.subr.bf16.mxu0 0
  %2797 = vmatpush1.bf16.msra.mxu0 0
  %2798 = vmatprep.subr.bf16.mxu0 0
  %2799 = vmatpush1.bf16.msra.mxu0 0
  %2800 = vmatprep.subr.bf16.mxu0 0
  %2801 = vmatpush1.bf16.msra.mxu0 0
  %2802 = vmatprep.subr.bf16.mxu0 0
  %2803 = vmatpush1.bf16.msra.mxu0 0
  %2804 = vmatprep.subr.bf16.mxu0 0
  %2805 = vmatpush1.bf16.msra.mxu0 0
  %2806 = vmatprep.subr.bf16.mxu0 0
  %2807 = vmatpush1.bf16.msra.mxu0 0
  %2808 = vmatprep.subr.bf16.mxu0 0
  %2809 = vmatpush1.bf16.msra.mxu0 0
  %2810 = vmatprep.subr.bf16.mxu0 0
  %2811 = vmatpush1.bf16.msra.mxu0 0
  %2812 = vmatprep.subr.bf16.mxu0 0
  %2813 = vmatpush1.bf16.msra.mxu0 0
  %2814 = vmatprep.subr.bf16.mxu0 0
  %2815 = vmatpush1.bf16.msra.mxu0 0
  %2816 = vmatprep.mubr.bf16.mxu0 0
  %2817 = vmatmul.mubr.bf16.gmra.mrb[0].mxu0 %v2782
  %v2818 = vpop.f32.mrb[0].mxu0
  %v2819 = vadd.f32 0.0, %v2818
  %v2820 = vpop.f32.mrb[0].mxu0
  %v2821 = vpop.f32.mrb[0].mxu0
  %v2822 = vadd.f32 0.0, %v2821
  %v2823 = vpop.f32.mrb[0].mxu0
  %2824 = vdwg.mxu0
  %v2825 = vpack.c.bf16 %v2822, %v2819
  %2826 = vst.msk [vmem:[#allocation2] sm:$0xff] %vm598, %v2825
  %v2828 = vsel %vm598, %v2526, 0
  %v2831 = vsel %vm598, %v2618, 0
  %2833 = vmatprep.subr.bf16.mxu0 0
  %2834 = vmatpush1.bf16.xpose.msra.mxu0 %v2831
  %2835 = vmatprep.subr.bf16.mxu0 0
  %2836 = vmatpush1.bf16.xpose.msra.mxu0 0
  %2837 = vmatprep.subr.bf16.mxu0 0
  %2838 = vmatpush1.bf16.xpose.msra.mxu0 0
  %2839 = vmatprep.subr.bf16.mxu0 0
  %2840 = vmatpush1.bf16.xpose.msra.mxu0 0
  %2841 = vmatprep.subr.bf16.mxu0 0
  %2842 = vmatpush1.bf16.xpose.msra.mxu0 0
  %2843 = vmatprep.subr.bf16.mxu0 0
  %2844 = vmatpush1.bf16.xpose.msra.mxu0 0
  %2845 = vmatprep.subr.bf16.mxu0 0
  %2846 = vmatpush1.bf16.xpose.msra.mxu0 0
  %2847 = vmatprep.subr.bf16.mxu0 0
  %2848 = vmatpush1.bf16.xpose.msra.mxu0 0
  %2849 = vmatprep.subr.bf16.mxu0 0
  %2850 = vmatpush1.bf16.xpose.msra.mxu0 0
  %2851 = vmatprep.subr.bf16.mxu0 0
  %2852 = vmatpush1.bf16.xpose.msra.mxu0 0
  %2853 = vmatprep.subr.bf16.mxu0 0
  %2854 = vmatpush1.bf16.xpose.msra.mxu0 0
  %2855 = vmatprep.subr.bf16.mxu0 0
  %2856 = vmatpush1.bf16.xpose.msra.mxu0 0
  %2857 = vmatprep.subr.bf16.mxu0 0
  %2858 = vmatpush1.bf16.xpose.msra.mxu0 0
  %2859 = vmatprep.subr.bf16.mxu0 0
  %2860 = vmatpush1.bf16.xpose.msra.mxu0 0
  %2861 = vmatprep.subr.bf16.mxu0 0
  %2862 = vmatpush1.bf16.xpose.msra.mxu0 0
  %2863 = vmatprep.subr.bf16.mxu0 0
  %2864 = vmatpush1.bf16.xpose.msra.mxu0 0
  %2865 = vmatprep.mubr.bf16.mxu0 0
  %2866 = vmatmul.mubr.bf16.gmra.mrb[0].mxu0 %v2828
  %v2867 = vpop.f32.mrb[0].mxu0
  %v2868 = vadd.f32 %v719, %v2867
  %v2869 = vpop.f32.mrb[0].mxu0
  %v2870 = vpop.f32.mrb[0].mxu0
  %v2871 = vadd.f32 %v719, %v2870
  %v2872 = vpop.f32.mrb[0].mxu0
  %2873 = vdwg.mxu0
  %v2874 = vsel %vm646, %v2868, -inf
  %2875 = vmax.xlane.f32.xlu0 %v2874
  %v2876 = vpop.xlane.xlu0 %2875
  %v2877 = vsel %vm646, %v2871, -inf
  %2878 = vmax.xlane.f32.xlu0 %v2877
  %v2879 = vpop.xlane.xlu0 %2878
  %v2880 = vsub.f32 %v2868, %v2876
  %v2881 = vsub.f32 %v2871, %v2879
  %v2882 = vmul.f32 %v2880, 1.442695
  %v2883 = vpow.pop %v2882
  %v2884 = vmul.f32 %v2881, 1.442695
  %v2885 = vpow.pop %v2884
  %v2886 = vsel %vm646, %v2883, 0.0
  %2887 = vadd.xlane.f32.xlu0 %v2886
  %v2888 = vpop.xlane.xlu0 %2887
  %v2889 = vsel %vm646, %v2885, 0.0
  %2890 = vadd.xlane.f32.xlu0 %v2889
  %v2891 = vpop.xlane.xlu0 %2890
  %v2892 = vrcp.pop %v2888
  %v2893 = vrcp.pop %v2891
  %v2894 = vmul.f32 %v2883, %v2892
  %v2895 = vmul.f32 %v2885, %v2893
  %v2896 = vpack.c.bf16 %v2895, %v2894
  %v2898 = vsel %vm646, %v2896, 0
  %2900 = vmatprep.subr.bf16.mxu0 0
  %2901 = vmatpush1.bf16.msra.mxu0 %v2710
  %2902 = vmatprep.subr.bf16.mxu0 0
  %2903 = vmatpush1.bf16.msra.mxu0 0
  %2904 = vmatprep.subr.bf16.mxu0 0
  %2905 = vmatpush1.bf16.msra.mxu0 0
  %2906 = vmatprep.subr.bf16.mxu0 0
  %2907 = vmatpush1.bf16.msra.mxu0 0
  %2908 = vmatprep.subr.bf16.mxu0 0
  %2909 = vmatpush1.bf16.msra.mxu0 0
  %2910 = vmatprep.subr.bf16.mxu0 0
  %2911 = vmatpush1.bf16.msra.mxu0 0
  %2912 = vmatprep.subr.bf16.mxu0 0
  %2913 = vmatpush1.bf16.msra.mxu0 0
  %2914 = vmatprep.subr.bf16.mxu0 0
  %2915 = vmatpush1.bf16.msra.mxu0 0
  %2916 = vmatprep.subr.bf16.mxu0 0
  %2917 = vmatpush1.bf16.msra.mxu0 0
  %2918 = vmatprep.subr.bf16.mxu0 0
  %2919 = vmatpush1.bf16.msra.mxu0 0
  %2920 = vmatprep.subr.bf16.mxu0 0
  %2921 = vmatpush1.bf16.msra.mxu0 0
  %2922 = vmatprep.subr.bf16.mxu0 0
  %2923 = vmatpush1.bf16.msra.mxu0 0
  %2924 = vmatprep.subr.bf16.mxu0 0
  %2925 = vmatpush1.bf16.msra.mxu0 0
  %2926 = vmatprep.subr.bf16.mxu0 0
  %2927 = vmatpush1.bf16.msra.mxu0 0
  %2928 = vmatprep.subr.bf16.mxu0 0
  %2929 = vmatpush1.bf16.msra.mxu0 0
  %2930 = vmatprep.subr.bf16.mxu0 0
  %2931 = vmatpush1.bf16.msra.mxu0 0
  %2932 = vmatprep.mubr.bf16.mxu0 0
  %2933 = vmatmul.mubr.bf16.gmra.mrb[0].mxu0 %v2898
  %v2934 = vpop.f32.mrb[0].mxu0
  %v2935 = vadd.f32 0.0, %v2934
  %v2936 = vpop.f32.mrb[0].mxu0
  %v2937 = vpop.f32.mrb[0].mxu0
  %v2938 = vadd.f32 0.0, %v2937
  %v2939 = vpop.f32.mrb[0].mxu0
  %2940 = vdwg.mxu0
  %v2941 = vpack.c.bf16 %v2938, %v2935
  %2942 = vst.msk [vmem:[#allocation2 + $0x8] sm:$0xff] %vm598, %v2941
  %v2943 = vld [vmem:[#allocation2] sm:$0xff]
  %v2944 = vld [vmem:[#allocation2 + $0x8] sm:$0xff]
  %s2945 = scalar_lea.vmem %s13, 48
  %v2946 = vld [vmem:[%s2945] sm:$0xf]
  %v2947 = vld [vmem:[%s2945 + $0x4] sm:$0xf]
  %v2948 = vld [vmem:[%s2945 + $0x8] sm:$0xf]
  %v2949 = vld [vmem:[%s2945 + $0xc] sm:$0xf]
  %v2954 = vunpack.c.l.b16 %v2946
  %v2955 = vunpack.c.l.b16 %v2947
  %v2956 = vunpack.c.l.b16 %v2948
  %v2957 = vunpack.c.l.b16 %v2949
  %v2958 = vpack.c.b16 %v2955, %v2954
  %v2959 = vpack.c.b16 %v2957, %v2956
  %v2963 = vsel %vm598, %v2943, 0
  %v2966 = vsel %vm598, %v2944, 0
  %2968 = vmatprep.subr.bf16.mxu0 0
  %2969 = vmatpush1.bf16.msra.mxu0 %v2958
  %2970 = vmatprep.subr.bf16.mxu0 0
  %2971 = vmatpush1.bf16.msra.mxu0 %v2959
  %2972 = vmatprep.subr.bf16.mxu0 0
  %2973 = vmatpush1.bf16.msra.mxu0 0
  %2974 = vmatprep.subr.bf16.mxu0 0
  %2975 = vmatpush1.bf16.msra.mxu0 0
  %2976 = vmatprep.subr.bf16.mxu0 0
  %2977 = vmatpush1.bf16.msra.mxu0 0
  %2978 = vmatprep.subr.bf16.mxu0 0
  %2979 = vmatpush1.bf16.msra.mxu0 0
  %2980 = vmatprep.subr.bf16.mxu0 0
  %2981 = vmatpush1.bf16.msra.mxu0 0
  %2982 = vmatprep.subr.bf16.mxu0 0
  %2983 = vmatpush1.bf16.msra.mxu0 0
  %2984 = vmatprep.subr.bf16.mxu0 0
  %2985 = vmatpush1.bf16.msra.mxu0 0
  %2986 = vmatprep.subr.bf16.mxu0 0
  %2987 = vmatpush1.bf16.msra.mxu0 0
  %2988 = vmatprep.subr.bf16.mxu0 0
  %2989 = vmatpush1.bf16.msra.mxu0 0
  %2990 = vmatprep.subr.bf16.mxu0 0
  %2991 = vmatpush1.bf16.msra.mxu0 0
  %2992 = vmatprep.subr.bf16.mxu0 0
  %2993 = vmatpush1.bf16.msra.mxu0 0
  %2994 = vmatprep.subr.bf16.mxu0 0
  %2995 = vmatpush1.bf16.msra.mxu0 0
  %2996 = vmatprep.subr.bf16.mxu0 0
  %2997 = vmatpush1.bf16.msra.mxu0 0
  %2998 = vmatprep.subr.bf16.mxu0 0
  %2999 = vmatpush1.bf16.msra.mxu0 0
  %3000 = vmatprep.mubr.bf16.mxu0 0
  %3001 = vmatmul.mubr.bf16.gmra.mrb[0].mxu0 %v2963
  %v3002 = vpop.f32.mrb[0].mxu0
  %v3003 = vadd.f32 0.0, %v3002
  %v3004 = vpop.f32.mrb[0].mxu0
  %v3005 = vpop.f32.mrb[0].mxu0
  %v3006 = vadd.f32 0.0, %v3005
  %v3007 = vpop.f32.mrb[0].mxu0
  %3008 = vmatprep.mubr.bf16.mxu0 0
  %3009 = vmatmul.mubr.bf16.gmra.mrb[0].mxu0 %v2966
  %v3010 = vpop.f32.mrb[0].mxu0
  %v3011 = vadd.f32 0.0, %v3010
  %v3012 = vpop.f32.mrb[0].mxu0
  %v3013 = vpop.f32.mrb[0].mxu0
  %v3014 = vadd.f32 0.0, %v3013
  %v3015 = vpop.f32.mrb[0].mxu0
  %3016 = vdwg.mxu0
  %v3021 = vunpack.c.l.b16 %v2431
  %v3022 = vunpack.c.l.b16 %v2432
  %v3023 = vunpack.c.l.b16 %v2433
  %v3024 = vunpack.c.l.b16 %v2434
  %v3025 = vpack.c.b16 %v3022, %v3021
  %v3026 = vpack.c.b16 %v3024, %v3023
  %v3030 = vsel %vm598, %v2428, 0
  %v3033 = vsel %vm598, %v2429, 0
  %3035 = vmatprep.subr.bf16.mxu0 0
  %3036 = vmatpush1.bf16.msra.mxu0 %v3025
  %3037 = vmatprep.subr.bf16.mxu0 0
  %3038 = vmatpush1.bf16.msra.mxu0 %v3026
  %3039 = vmatprep.subr.bf16.mxu0 0
  %3040 = vmatpush1.bf16.msra.mxu0 0
  %3041 = vmatprep.subr.bf16.mxu0 0
  %3042 = vmatpush1.bf16.msra.mxu0 0
  %3043 = vmatprep.subr.bf16.mxu0 0
  %3044 = vmatpush1.bf16.msra.mxu0 0
  %3045 = vmatprep.subr.bf16.mxu0 0
  %3046 = vmatpush1.bf16.msra.mxu0 0
  %3047 = vmatprep.subr.bf16.mxu0 0
  %3048 = vmatpush1.bf16.msra.mxu0 0
  %3049 = vmatprep.subr.bf16.mxu0 0
  %3050 = vmatpush1.bf16.msra.mxu0 0
  %3051 = vmatprep.subr.bf16.mxu0 0
  %3052 = vmatpush1.bf16.msra.mxu0 0
  %3053 = vmatprep.subr.bf16.mxu0 0
  %3054 = vmatpush1.bf16.msra.mxu0 0
  %3055 = vmatprep.subr.bf16.mxu0 0
  %3056 = vmatpush1.bf16.msra.mxu0 0
  %3057 = vmatprep.subr.bf16.mxu0 0
  %3058 = vmatpush1.bf16.msra.mxu0 0
  %3059 = vmatprep.subr.bf16.mxu0 0
  %3060 = vmatpush1.bf16.msra.mxu0 0
  %3061 = vmatprep.subr.bf16.mxu0 0
  %3062 = vmatpush1.bf16.msra.mxu0 0
  %3063 = vmatprep.subr.bf16.mxu0 0
  %3064 = vmatpush1.bf16.msra.mxu0 0
  %3065 = vmatprep.subr.bf16.mxu0 0
  %3066 = vmatpush1.bf16.msra.mxu0 0
  %3067 = vmatprep.mubr.bf16.mxu0 0
  %3068 = vmatmul.mubr.bf16.gmra.mrb[0].mxu0 %v3030
  %v3069 = vpop.f32.mrb[0].mxu0
  %v3070 = vadd.f32 %v3003, %v3069
  %v3071 = vpop.f32.mrb[0].mxu0
  %v3072 = vpop.f32.mrb[0].mxu0
  %v3073 = vadd.f32 %v3006, %v3072
  %v3074 = vpop.f32.mrb[0].mxu0
  %3075 = vmatprep.mubr.bf16.mxu0 0
  %3076 = vmatmul.mubr.bf16.gmra.mrb[0].mxu0 %v3033
  %v3077 = vpop.f32.mrb[0].mxu0
  %v3078 = vadd.f32 %v3011, %v3077
  %v3079 = vpop.f32.mrb[0].mxu0
  %v3080 = vpop.f32.mrb[0].mxu0
  %v3081 = vadd.f32 %v3014, %v3080
  %v3082 = vpop.f32.mrb[0].mxu0
  %3083 = vdwg.mxu0
  %s3084 = scalar_lea.vmem %s14, 1
  %v3085 = vld [vmem:[%s3084] sm:$0x1]
  %v3087 = vlaneseq
  %v3088 = vshrl.u32 %v3087, 7
  %v3089 = vsub.s32 0, %v3088
  %v3090 = vrot.slane %v3085, %v3089
  %v3092 = vadd.f32 %v3070, %v3090
  %v3093 = vadd.f32 %v3073, %v3090
  %v3094 = vadd.f32 %v3078, %v3090
  %v3095 = vadd.f32 %v3081, %v3090
  %v3096 = vadd.f32 %v1908, %v3092
  %v3097 = vadd.f32 %v1909, %v3093
  %v3098 = vadd.f32 %v1910, %v3094
  %v3099 = vadd.f32 %v1911, %v3095
  %s3100 = scalar_lea.vmem %s15, 1
  %v3101 = vld [vmem:[%s3100] sm:$0x1]
  %s3102 = scalar_lea.vmem %s16, 1
  %v3103 = vld [vmem:[%s3102] sm:$0x1]
  %v3104 = vsel %vm238, %v3096, 0.0
  %3105 = vadd.xlane.f32.xlu0 %v3104
  %v3106 = vpop.xlane.xlu0 %3105
  %v3107 = vsel %vm238, %v3097, 0.0
  %3108 = vadd.xlane.f32.xlu0 %v3107
  %v3109 = vpop.xlane.xlu0 %3108
  %v3110 = vsel %vm238, %v3098, 0.0
  %3111 = vadd.xlane.f32.xlu0 %v3110
  %v3112 = vpop.xlane.xlu0 %3111
  %v3113 = vsel %vm238, %v3099, 0.0
  %3114 = vadd.xlane.f32.xlu0 %v3113
  %v3115 = vpop.xlane.xlu0 %3114
  %v3116 = vmul.f32 %v3106, %v251
  %v3117 = vmul.f32 %v3109, %v251
  %v3118 = vmul.f32 %v3112, %v251
  %v3119 = vmul.f32 %v3115, %v251
  %v3120 = vsub.f32 %v3096, %v3116
  %v3121 = vsub.f32 %v3097, %v3117
  %v3122 = vsub.f32 %v3098, %v3118
  %v3123 = vsub.f32 %v3099, %v3119
  %v3124 = vmul.f32 %v3120, %v3120
  %v3125 = vmul.f32 %v3121, %v3121
  %v3126 = vmul.f32 %v3122, %v3122
  %v3127 = vmul.f32 %v3123, %v3123
  %v3128 = vsel %vm238, %v3124, 0.0
  %3129 = vadd.xlane.f32.xlu0 %v3128
  %v3130 = vpop.xlane.xlu0 %3129
  %v3131 = vsel %vm238, %v3125, 0.0
  %3132 = vadd.xlane.f32.xlu0 %v3131
  %v3133 = vpop.xlane.xlu0 %3132
  %v3134 = vsel %vm238, %v3126, 0.0
  %3135 = vadd.xlane.f32.xlu0 %v3134
  %v3136 = vpop.xlane.xlu0 %3135
  %v3137 = vsel %vm238, %v3127, 0.0
  %3138 = vadd.xlane.f32.xlu0 %v3137
  %v3139 = vpop.xlane.xlu0 %3138
  %v3140 = vmul.f32 %v3130, %v251
  %v3141 = vmul.f32 %v3133, %v251
  %v3142 = vmul.f32 %v3136, %v251
  %v3143 = vmul.f32 %v3139, %v251
  %v3144 = vadd.f32 %v3140, 1e-12
  %v3145 = vadd.f32 %v3141, 1e-12
  %v3146 = vadd.f32 %v3142, 1e-12
  %v3147 = vadd.f32 %v3143, 1e-12
  %v3148 = vrsqrt.pop %v3144
  %v3149 = vrsqrt.pop %v3145
  %v3150 = vrsqrt.pop %v3146
  %v3151 = vrsqrt.pop %v3147
  %v3152 = vmul.f32 %v3120, %v3148
  %v3153 = vmul.f32 %v3121, %v3149
  %v3154 = vmul.f32 %v3122, %v3150
  %v3155 = vmul.f32 %v3123, %v3151
  %v3157 = vlaneseq
  %v3158 = vshrl.u32 %v3157, 7
  %v3159 = vsub.s32 0, %v3158
  %v3160 = vrot.slane %v3101, %v3159
  %v3162 = vmul.f32 %v3152, %v3160
  %v3163 = vmul.f32 %v3153, %v3160
  %v3164 = vmul.f32 %v3154, %v3160
  %v3165 = vmul.f32 %v3155, %v3160
  %v3167 = vlaneseq
  %v3168 = vshrl.u32 %v3167, 7
  %v3169 = vsub.s32 0, %v3168
  %v3170 = vrot.slane %v3103, %v3169
  %v3172 = vadd.f32 %v3162, %v3170
  %v3173 = vadd.f32 %v3163, %v3170
  %v3174 = vadd.f32 %v3164, %v3170
  %v3175 = vadd.f32 %v3165, %v3170
  %v3176 = vpack.c.bf16 %v3173, %v3172
  %v3177 = vpack.c.bf16 %v3175, %v3174
  %s3178 = scalar_lea.vmem %s17, 32
  %v3179 = vld [vmem:[%s3178] sm:$0xf]
  %v3180 = vld [vmem:[%s3178 + $0x4] sm:$0xf]
  %v3181 = vld [vmem:[%s3178 + $0x8] sm:$0xf]
  %v3182 = vld [vmem:[%s3178 + $0xc] sm:$0xf]
  %v3183 = vld [vmem:[%s3178 + $0x10] sm:$0xf]
  %v3184 = vld [vmem:[%s3178 + $0x14] sm:$0xf]
  %v3185 = vld [vmem:[%s3178 + $0x18] sm:$0xf]
  %v3186 = vld [vmem:[%s3178 + $0x1c] sm:$0xf]
  %s3187 = scalar_lea.vmem %s18, 1
  %v3188 = vld [vmem:[%s3187] sm:$0x1]
  %v3190 = vlaneseq
  %v3191 = vshrl.u32 %v3190, 7
  %v3192 = vsub.s32 0, %v3191
  %v3193 = vrot.slane %v3188, %v3192
  %v3203 = vunpack.c.l.b16 %v3179
  %v3204 = vunpack.c.l.b16 %v3180
  %v3205 = vunpack.c.l.b16 %v3181
  %v3206 = vunpack.c.l.b16 %v3182
  %v3207 = vunpack.c.l.b16 %v3183
  %v3208 = vunpack.c.l.b16 %v3184
  %v3209 = vunpack.c.l.b16 %v3185
  %v3210 = vunpack.c.l.b16 %v3186
  %v3211 = vpack.c.b16 %v3204, %v3203
  %v3212 = vpack.c.b16 %v3206, %v3205
  %v3213 = vpack.c.b16 %v3208, %v3207
  %v3214 = vpack.c.b16 %v3210, %v3209
  %v3220 = vsel %vm238, %v3176, 0
  %v3223 = vsel %vm238, %v3177, 0
  %3225 = vmatprep.subr.bf16.mxu0 0
  %3226 = vmatpush1.bf16.msra.mxu0 %v3211
  %3227 = vmatprep.subr.bf16.mxu0 0
  %3228 = vmatpush1.bf16.msra.mxu0 %v3212
  %3229 = vmatprep.subr.bf16.mxu0 0
  %3230 = vmatpush1.bf16.msra.mxu0 %v3213
  %3231 = vmatprep.subr.bf16.mxu0 0
  %3232 = vmatpush1.bf16.msra.mxu0 %v3214
  %3233 = vmatprep.subr.bf16.mxu0 0
  %3234 = vmatpush1.bf16.msra.mxu0 0
  %3235 = vmatprep.subr.bf16.mxu0 0
  %3236 = vmatpush1.bf16.msra.mxu0 0
  %3237 = vmatprep.subr.bf16.mxu0 0
  %3238 = vmatpush1.bf16.msra.mxu0 0
  %3239 = vmatprep.subr.bf16.mxu0 0
  %3240 = vmatpush1.bf16.msra.mxu0 0
  %3241 = vmatprep.subr.bf16.mxu0 0
  %3242 = vmatpush1.bf16.msra.mxu0 0
  %3243 = vmatprep.subr.bf16.mxu0 0
  %3244 = vmatpush1.bf16.msra.mxu0 0
  %3245 = vmatprep.subr.bf16.mxu0 0
  %3246 = vmatpush1.bf16.msra.mxu0 0
  %3247 = vmatprep.subr.bf16.mxu0 0
  %3248 = vmatpush1.bf16.msra.mxu0 0
  %3249 = vmatprep.subr.bf16.mxu0 0
  %3250 = vmatpush1.bf16.msra.mxu0 0
  %3251 = vmatprep.subr.bf16.mxu0 0
  %3252 = vmatpush1.bf16.msra.mxu0 0
  %3253 = vmatprep.subr.bf16.mxu0 0
  %3254 = vmatpush1.bf16.msra.mxu0 0
  %3255 = vmatprep.subr.bf16.mxu0 0
  %3256 = vmatpush1.bf16.msra.mxu0 0
  %3257 = vmatprep.mubr.bf16.mxu0 0
  %3258 = vmatmul.mubr.bf16.gmra.mrb[0].mxu0 %v3220
  %v3259 = vpop.f32.mrb[0].mxu0
  %v3260 = vadd.f32 %v3193, %v3259
  %v3261 = vpop.f32.mrb[0].mxu0
  %v3262 = vpop.f32.mrb[0].mxu0
  %v3263 = vadd.f32 %v3193, %v3262
  %v3264 = vpop.f32.mrb[0].mxu0
  %3265 = vmatprep.mubr.bf16.mxu0 0
  %3266 = vmatmul.mubr.bf16.gmra.mrb[0].mxu0 %v3223
  %v3267 = vpop.f32.mrb[0].mxu0
  %v3268 = vadd.f32 %v3193, %v3267
  %v3269 = vpop.f32.mrb[0].mxu0
  %v3270 = vpop.f32.mrb[0].mxu0
  %v3271 = vadd.f32 %v3193, %v3270
  %v3272 = vpop.f32.mrb[0].mxu0
  %3273 = vdwg.mxu0
  %v3274 = vmul.f32 %v3260, 0.5
  %v3275 = vmul.f32 %v3263, 0.5
  %v3276 = vmul.f32 %v3268, 0.5
  %v3277 = vmul.f32 %v3271, 0.5
  %v3278 = vmul.f32 %v3260, 0.044715
  %v3279 = vmul.f32 %v3263, 0.044715
  %v3280 = vmul.f32 %v3268, 0.044715
  %v3281 = vmul.f32 %v3271, 0.044715
  %v3282 = vmul.f32 %v3278, %v3260
  %v3283 = vmul.f32 %v3279, %v3263
  %v3284 = vmul.f32 %v3280, %v3268
  %v3285 = vmul.f32 %v3281, %v3271
  %v3286 = vmul.f32 %v3282, %v3260
  %v3287 = vmul.f32 %v3283, %v3263
  %v3288 = vmul.f32 %v3284, %v3268
  %v3289 = vmul.f32 %v3285, %v3271
  %v3290 = vadd.f32 %v3260, %v3286
  %v3291 = vadd.f32 %v3263, %v3287
  %v3292 = vadd.f32 %v3268, %v3288
  %v3293 = vadd.f32 %v3271, %v3289
  %v3294 = vmul.f32 %v3290, 0.7978846
  %v3295 = vmul.f32 %v3291, 0.7978846
  %v3296 = vmul.f32 %v3292, 0.7978846
  %v3297 = vmul.f32 %v3293, 0.7978846
  %v3298 = vtanh.pop %v3294
  %v3299 = vtanh.pop %v3295
  %v3300 = vtanh.pop %v3296
  %v3301 = vtanh.pop %v3297
  %v3302 = vadd.f32 %v3298, 1.0
  %v3303 = vadd.f32 %v3299, 1.0
  %v3304 = vadd.f32 %v3300, 1.0
  %v3305 = vadd.f32 %v3301, 1.0
  %v3306 = vmul.f32 %v3274, %v3302
  %v3307 = vmul.f32 %v3275, %v3303
  %v3308 = vmul.f32 %v3276, %v3304
  %v3309 = vmul.f32 %v3277, %v3305
  %v3310 = vpack.c.bf16 %v3307, %v3306
  %v3311 = vpack.c.bf16 %v3309, %v3308
  %s3312 = scalar_lea.vmem %s19, 64
  %v3313 = vld [vmem:[%s3312] sm:$0xf]
  %v3314 = vld [vmem:[%s3312 + $0x4] sm:$0xf]
  %v3315 = vld [vmem:[%s3312 + $0x8] sm:$0xf]
  %v3316 = vld [vmem:[%s3312 + $0xc] sm:$0xf]
  %v3317 = vld [vmem:[%s3312 + $0x10] sm:$0xf]
  %v3318 = vld [vmem:[%s3312 + $0x14] sm:$0xf]
  %v3319 = vld [vmem:[%s3312 + $0x18] sm:$0xf]
  %v3320 = vld [vmem:[%s3312 + $0x1c] sm:$0xf]
  %v3321 = vld [vmem:[%s3312 + $0x20] sm:$0xf]
  %v3322 = vld [vmem:[%s3312 + $0x24] sm:$0xf]
  %v3323 = vld [vmem:[%s3312 + $0x28] sm:$0xf]
  %v3324 = vld [vmem:[%s3312 + $0x2c] sm:$0xf]
  %v3325 = vld [vmem:[%s3312 + $0x30] sm:$0xf]
  %v3326 = vld [vmem:[%s3312 + $0x34] sm:$0xf]
  %v3327 = vld [vmem:[%s3312 + $0x38] sm:$0xf]
  %v3328 = vld [vmem:[%s3312 + $0x3c] sm:$0xf]
  %s3329 = scalar_lea.vmem %s20, 1
  %v3330 = vld [vmem:[%s3329] sm:$0x1]
  %v3332 = vlaneseq
  %v3333 = vshrl.u32 %v3332, 7
  %v3334 = vsub.s32 0, %v3333
  %v3335 = vrot.slane %v3330, %v3334
  %v3353 = vunpack.c.l.b16 %v3313
  %v3354 = vunpack.c.l.b16 %v3314
  %v3355 = vunpack.c.l.b16 %v3315
  %v3356 = vunpack.c.l.b16 %v3316
  %v3357 = vunpack.c.l.b16 %v3317
  %v3358 = vunpack.c.l.b16 %v3318
  %v3359 = vunpack.c.l.b16 %v3319
  %v3360 = vunpack.c.l.b16 %v3320
  %v3361 = vunpack.c.l.b16 %v3321
  %v3362 = vunpack.c.l.b16 %v3322
  %v3363 = vunpack.c.l.b16 %v3323
  %v3364 = vunpack.c.l.b16 %v3324
  %v3365 = vunpack.c.l.b16 %v3325
  %v3366 = vunpack.c.l.b16 %v3326
  %v3367 = vunpack.c.l.b16 %v3327
  %v3368 = vunpack.c.l.b16 %v3328
  %v3369 = vpack.c.b16 %v3354, %v3353
  %v3370 = vpack.c.b16 %v3356, %v3355
  %v3371 = vpack.c.b16 %v3358, %v3357
  %v3372 = vpack.c.b16 %v3360, %v3359
  %v3373 = vpack.c.b16 %v3362, %v3361
  %v3374 = vpack.c.b16 %v3364, %v3363
  %v3375 = vpack.c.b16 %v3366, %v3365
  %v3376 = vpack.c.b16 %v3368, %v3367
  %3385 = vmatprep.subr.bf16.mxu0 0
  %3386 = vmatpush1.bf16.msra.mxu0 %v3369
  %3387 = vmatprep.subr.bf16.mxu0 0
  %3388 = vmatpush1.bf16.msra.mxu0 %v3370
  %3389 = vmatprep.subr.bf16.mxu0 0
  %3390 = vmatpush1.bf16.msra.mxu0 %v3371
  %3391 = vmatprep.subr.bf16.mxu0 0
  %3392 = vmatpush1.bf16.msra.mxu0 %v3372
  %3393 = vmatprep.subr.bf16.mxu0 0
  %3394 = vmatpush1.bf16.msra.mxu0 %v3373
  %3395 = vmatprep.subr.bf16.mxu0 0
  %3396 = vmatpush1.bf16.msra.mxu0 %v3374
  %3397 = vmatprep.subr.bf16.mxu0 0
  %3398 = vmatpush1.bf16.msra.mxu0 %v3375
  %3399 = vmatprep.subr.bf16.mxu0 0
  %3400 = vmatpush1.bf16.msra.mxu0 %v3376
  %3401 = vmatprep.subr.bf16.mxu0 0
  %3402 = vmatpush1.bf16.msra.mxu0 0
  %3403 = vmatprep.subr.bf16.mxu0 0
  %3404 = vmatpush1.bf16.msra.mxu0 0
  %3405 = vmatprep.subr.bf16.mxu0 0
  %3406 = vmatpush1.bf16.msra.mxu0 0
  %3407 = vmatprep.subr.bf16.mxu0 0
  %3408 = vmatpush1.bf16.msra.mxu0 0
  %3409 = vmatprep.subr.bf16.mxu0 0
  %3410 = vmatpush1.bf16.msra.mxu0 0
  %3411 = vmatprep.subr.bf16.mxu0 0
  %3412 = vmatpush1.bf16.msra.mxu0 0
  %3413 = vmatprep.subr.bf16.mxu0 0
  %3414 = vmatpush1.bf16.msra.mxu0 0
  %3415 = vmatprep.subr.bf16.mxu0 0
  %3416 = vmatpush1.bf16.msra.mxu0 0
  %3417 = vmatprep.mubr.bf16.mxu0 0
  %3418 = vmatmul.mubr.bf16.gmra.mrb[0].mxu0 %v3310
  %v3419 = vpop.f32.mrb[0].mxu0
  %v3420 = vadd.f32 %v3335, %v3419
  %v3421 = vpop.f32.mrb[0].mxu0
  %v3422 = vpop.f32.mrb[0].mxu0
  %v3423 = vadd.f32 %v3335, %v3422
  %v3424 = vpop.f32.mrb[0].mxu0
  %3425 = vmatprep.mubr.bf16.mxu0 0
  %3426 = vmatmul.mubr.bf16.gmra.mrb[0].mxu0 %v3311
  %v3427 = vpop.f32.mrb[0].mxu0
  %v3428 = vadd.f32 %v3335, %v3427
  %v3429 = vpop.f32.mrb[0].mxu0
  %v3430 = vpop.f32.mrb[0].mxu0
  %v3431 = vadd.f32 %v3335, %v3430
  %v3432 = vpop.f32.mrb[0].mxu0
  %3433 = vdwg.mxu0
  %v3434 = vadd.f32 %v3172, %v3420
  %v3435 = vadd.f32 %v3173, %v3423
  %v3436 = vadd.f32 %v3174, %v3428
  %v3437 = vadd.f32 %v3175, %v3431
  %s3438 = scalar_lea.vmem %s21, 1
  %v3439 = vld [vmem:[%s3438] sm:$0x1]
  %s3440 = scalar_lea.vmem %s22, 1
  %v3441 = vld [vmem:[%s3440] sm:$0x1]
  %v3442 = vsel %vm238, %v3434, 0.0
  %3443 = vadd.xlane.f32.xlu0 %v3442
  %v3444 = vpop.xlane.xlu0 %3443
  %v3445 = vsel %vm238, %v3435, 0.0
  %3446 = vadd.xlane.f32.xlu0 %v3445
  %v3447 = vpop.xlane.xlu0 %3446
  %v3448 = vsel %vm238, %v3436, 0.0
  %3449 = vadd.xlane.f32.xlu0 %v3448
  %v3450 = vpop.xlane.xlu0 %3449
  %v3451 = vsel %vm238, %v3437, 0.0
  %3452 = vadd.xlane.f32.xlu0 %v3451
  %v3453 = vpop.xlane.xlu0 %3452
  %v3454 = vmul.f32 %v3444, %v251
  %v3455 = vmul.f32 %v3447, %v251
  %v3456 = vmul.f32 %v3450, %v251
  %v3457 = vmul.f32 %v3453, %v251
  %v3458 = vsub.f32 %v3434, %v3454
  %v3459 = vsub.f32 %v3435, %v3455
  %v3460 = vsub.f32 %v3436, %v3456
  %v3461 = vsub.f32 %v3437, %v3457
  %v3462 = vmul.f32 %v3458, %v3458
  %v3463 = vmul.f32 %v3459, %v3459
  %v3464 = vmul.f32 %v3460, %v3460
  %v3465 = vmul.f32 %v3461, %v3461
  %v3466 = vsel %vm238, %v3462, 0.0
  %3467 = vadd.xlane.f32.xlu0 %v3466
  %v3468 = vpop.xlane.xlu0 %3467
  %v3469 = vsel %vm238, %v3463, 0.0
  %3470 = vadd.xlane.f32.xlu0 %v3469
  %v3471 = vpop.xlane.xlu0 %3470
  %v3472 = vsel %vm238, %v3464, 0.0
  %3473 = vadd.xlane.f32.xlu0 %v3472
  %v3474 = vpop.xlane.xlu0 %3473
  %v3475 = vsel %vm238, %v3465, 0.0
  %3476 = vadd.xlane.f32.xlu0 %v3475
  %v3477 = vpop.xlane.xlu0 %3476
  %v3478 = vmul.f32 %v3468, %v251
  %v3479 = vmul.f32 %v3471, %v251
  %v3480 = vmul.f32 %v3474, %v251
  %v3481 = vmul.f32 %v3477, %v251
  %v3482 = vadd.f32 %v3478, 1e-12
  %v3483 = vadd.f32 %v3479, 1e-12
  %v3484 = vadd.f32 %v3480, 1e-12
  %v3485 = vadd.f32 %v3481, 1e-12
  %v3486 = vrsqrt.pop %v3482
  %v3487 = vrsqrt.pop %v3483
  %v3488 = vrsqrt.pop %v3484
  %v3489 = vrsqrt.pop %v3485
  %v3490 = vmul.f32 %v3458, %v3486
  %v3491 = vmul.f32 %v3459, %v3487
  %v3492 = vmul.f32 %v3460, %v3488
  %v3493 = vmul.f32 %v3461, %v3489
  %v3495 = vlaneseq
  %v3496 = vshrl.u32 %v3495, 7
  %v3497 = vsub.s32 0, %v3496
  %v3498 = vrot.slane %v3439, %v3497
  %v3500 = vmul.f32 %v3490, %v3498
  %v3501 = vmul.f32 %v3491, %v3498
  %v3502 = vmul.f32 %v3492, %v3498
  %v3503 = vmul.f32 %v3493, %v3498
  %v3505 = vlaneseq
  %v3506 = vshrl.u32 %v3505, 7
  %v3507 = vsub.s32 0, %v3506
  %v3508 = vrot.slane %v3441, %v3507
  %v3510 = vadd.f32 %v3500, %v3508
  %v3511 = vadd.f32 %v3501, %v3508
  %v3512 = vadd.f32 %v3502, %v3508
  %v3513 = vadd.f32 %v3503, %v3508
  %v3514 = vpack.c.bf16 %v3511, %v3510
  %v3515 = vpack.c.bf16 %v3513, %v3512
  %v3516 = vld [vmem:[%s23] sm:$0xf]
  %v3517 = vld [vmem:[%s23 + $0x4] sm:$0xf]
  %v3518 = vld [vmem:[%s23 + $0x8] sm:$0xf]
  %v3519 = vld [vmem:[%s23 + $0xc] sm:$0xf]
  %v3520 = vld [vmem:[%s23 + $0x10] sm:$0xf]
  %v3521 = vld [vmem:[%s23 + $0x14] sm:$0xf]
  %v3522 = vld [vmem:[%s23 + $0x18] sm:$0xf]
  %v3523 = vld [vmem:[%s23 + $0x1c] sm:$0xf]
  %v3524 = vld [vmem:[%s24] sm:$0x1]
  %v3526 = vlaneseq
  %v3527 = vshrl.u32 %v3526, 7
  %v3528 = vsub.s32 0, %v3527
  %v3529 = vrot.slane %v3524, %v3528
  %v3539 = vunpack.c.l.b16 %v3516
  %v3540 = vunpack.c.l.b16 %v3517
  %v3541 = vunpack.c.l.b16 %v3518
  %v3542 = vunpack.c.l.b16 %v3519
  %v3543 = vunpack.c.l.b16 %v3520
  %v3544 = vunpack.c.l.b16 %v3521
  %v3545 = vunpack.c.l.b16 %v3522
  %v3546 = vunpack.c.l.b16 %v3523
  %v3547 = vpack.c.b16 %v3540, %v3539
  %v3548 = vpack.c.b16 %v3542, %v3541
  %v3549 = vpack.c.b16 %v3544, %v3543
  %v3550 = vpack.c.b16 %v3546, %v3545
  %v3556 = vsel %vm238, %v3514, 0
  %v3559 = vsel %vm238, %v3515, 0
  %3561 = vmatprep.subr.bf16.mxu0 0
  %3562 = vmatpush1.bf16.msra.mxu0 %v3547
  %3563 = vmatprep.subr.bf16.mxu0 0
  %3564 = vmatpush1.bf16.msra.mxu0 %v3548
  %3565 = vmatprep.subr.bf16.mxu0 0
  %3566 = vmatpush1.bf16.msra.mxu0 %v3549
  %3567 = vmatprep.subr.bf16.mxu0 0
  %3568 = vmatpush1.bf16.msra.mxu0 %v3550
  %3569 = vmatprep.subr.bf16.mxu0 0
  %3570 = vmatpush1.bf16.msra.mxu0 0
  %3571 = vmatprep.subr.bf16.mxu0 0
  %3572 = vmatpush1.bf16.msra.mxu0 0
  %3573 = vmatprep.subr.bf16.mxu0 0
  %3574 = vmatpush1.bf16.msra.mxu0 0
  %3575 = vmatprep.subr.bf16.mxu0 0
  %3576 = vmatpush1.bf16.msra.mxu0 0
  %3577 = vmatprep.subr.bf16.mxu0 0
  %3578 = vmatpush1.bf16.msra.mxu0 0
  %3579 = vmatprep.subr.bf16.mxu0 0
  %3580 = vmatpush1.bf16.msra.mxu0 0
  %3581 = vmatprep.subr.bf16.mxu0 0
  %3582 = vmatpush1.bf16.msra.mxu0 0
  %3583 = vmatprep.subr.bf16.mxu0 0
  %3584 = vmatpush1.bf16.msra.mxu0 0
  %3585 = vmatprep.subr.bf16.mxu0 0
  %3586 = vmatpush1.bf16.msra.mxu0 0
  %3587 = vmatprep.subr.bf16.mxu0 0
  %3588 = vmatpush1.bf16.msra.mxu0 0
  %3589 = vmatprep.subr.bf16.mxu0 0
  %3590 = vmatpush1.bf16.msra.mxu0 0
  %3591 = vmatprep.subr.bf16.mxu0 0
  %3592 = vmatpush1.bf16.msra.mxu0 0
  %3593 = vmatprep.mubr.bf16.mxu0 0
  %3594 = vmatmul.mubr.bf16.gmra.mrb[0].mxu0 %v3556
  %v3595 = vpop.f32.mrb[0].mxu0
  %v3596 = vadd.f32 %v3529, %v3595
  %v3597 = vpop.f32.mrb[0].mxu0
  %v3598 = vpop.f32.mrb[0].mxu0
  %v3599 = vadd.f32 %v3529, %v3598
  %v3600 = vpop.f32.mrb[0].mxu0
  %3601 = vmatprep.mubr.bf16.mxu0 0
  %3602 = vmatmul.mubr.bf16.gmra.mrb[0].mxu0 %v3559
  %v3603 = vpop.f32.mrb[0].mxu0
  %v3604 = vadd.f32 %v3529, %v3603
  %v3605 = vpop.f32.mrb[0].mxu0
  %v3606 = vpop.f32.mrb[0].mxu0
  %v3607 = vadd.f32 %v3529, %v3606
  %v3608 = vpop.f32.mrb[0].mxu0
  %3609 = vdwg.mxu0
  %v3610 = vmul.f32 %v3596, 0.5
  %v3611 = vmul.f32 %v3599, 0.5
  %v3612 = vmul.f32 %v3604, 0.5
  %v3613 = vmul.f32 %v3607, 0.5
  %v3614 = vmul.f32 %v3596, 0.044715
  %v3615 = vmul.f32 %v3599, 0.044715
  %v3616 = vmul.f32 %v3604, 0.044715
  %v3617 = vmul.f32 %v3607, 0.044715
  %v3618 = vmul.f32 %v3614, %v3596
  %v3619 = vmul.f32 %v3615, %v3599
  %v3620 = vmul.f32 %v3616, %v3604
  %v3621 = vmul.f32 %v3617, %v3607
  %v3622 = vmul.f32 %v3618, %v3596
  %v3623 = vmul.f32 %v3619, %v3599
  %v3624 = vmul.f32 %v3620, %v3604
  %v3625 = vmul.f32 %v3621, %v3607
  %v3626 = vadd.f32 %v3596, %v3622
  %v3627 = vadd.f32 %v3599, %v3623
  %v3628 = vadd.f32 %v3604, %v3624
  %v3629 = vadd.f32 %v3607, %v3625
  %v3630 = vmul.f32 %v3626, 0.7978846
  %v3631 = vmul.f32 %v3627, 0.7978846
  %v3632 = vmul.f32 %v3628, 0.7978846
  %v3633 = vmul.f32 %v3629, 0.7978846
  %v3634 = vtanh.pop %v3630
  %v3635 = vtanh.pop %v3631
  %v3636 = vtanh.pop %v3632
  %v3637 = vtanh.pop %v3633
  %v3638 = vadd.f32 %v3634, 1.0
  %v3639 = vadd.f32 %v3635, 1.0
  %v3640 = vadd.f32 %v3636, 1.0
  %v3641 = vadd.f32 %v3637, 1.0
  %v3642 = vmul.f32 %v3610, %v3638
  %v3643 = vmul.f32 %v3611, %v3639
  %v3644 = vmul.f32 %v3612, %v3640
  %v3645 = vmul.f32 %v3613, %v3641
  %v3646 = vpack.c.bf16 %v3643, %v3642
  %v3647 = vpack.c.bf16 %v3645, %v3644
  %v3648 = vld [vmem:[%s25] sm:$0xf]
  %v3649 = vld [vmem:[%s25 + $0x4] sm:$0xf]
  %v3650 = vld [vmem:[%s25 + $0x8] sm:$0xf]
  %v3651 = vld [vmem:[%s25 + $0xc] sm:$0xf]
  %v3652 = vld [vmem:[%s25 + $0x10] sm:$0xf]
  %v3653 = vld [vmem:[%s25 + $0x14] sm:$0xf]
  %v3654 = vld [vmem:[%s25 + $0x18] sm:$0xf]
  %v3655 = vld [vmem:[%s25 + $0x1c] sm:$0xf]
  %v3656 = vld [vmem:[#allocation3] sm:$0x1]
  %v3658 = vlaneseq
  %v3659 = vshrl.u32 %v3658, 7
  %v3660 = vsub.s32 0, %v3659
  %v3661 = vrot.slane %v3656, %v3660
  %v3671 = vunpack.c.l.b16 %v3648
  %v3672 = vunpack.c.l.b16 %v3649
  %v3673 = vunpack.c.l.b16 %v3650
  %v3674 = vunpack.c.l.b16 %v3651
  %v3675 = vunpack.c.l.b16 %v3652
  %v3676 = vunpack.c.l.b16 %v3653
  %v3677 = vunpack.c.l.b16 %v3654
  %v3678 = vunpack.c.l.b16 %v3655
  %v3679 = vpack.c.b16 %v3672, %v3671
  %v3680 = vpack.c.b16 %v3674, %v3673
  %v3681 = vpack.c.b16 %v3676, %v3675
  %v3682 = vpack.c.b16 %v3678, %v3677
  %v3688 = vsel %vm238, %v3646, 0
  %v3691 = vsel %vm238, %v3647, 0
  %3693 = vmatprep.subr.bf16.mxu0 0
  %3694 = vmatpush1.bf16.msra.mxu0 %v3679
  %3695 = vmatprep.subr.bf16.mxu0 0
  %3696 = vmatpush1.bf16.msra.mxu0 %v3680
  %3697 = vmatprep.subr.bf16.mxu0 0
  %3698 = vmatpush1.bf16.msra.mxu0 %v3681
  %3699 = vmatprep.subr.bf16.mxu0 0
  %3700 = vmatpush1.bf16.msra.mxu0 %v3682
  %3701 = vmatprep.subr.bf16.mxu0 0
  %3702 = vmatpush1.bf16.msra.mxu0 0
  %3703 = vmatprep.subr.bf16.mxu0 0
  %3704 = vmatpush1.bf16.msra.mxu0 0
  %3705 = vmatprep.subr.bf16.mxu0 0
  %3706 = vmatpush1.bf16.msra.mxu0 0
  %3707 = vmatprep.subr.bf16.mxu0 0
  %3708 = vmatpush1.bf16.msra.mxu0 0
  %3709 = vmatprep.subr.bf16.mxu0 0
  %3710 = vmatpush1.bf16.msra.mxu0 0
  %3711 = vmatprep.subr.bf16.mxu0 0
  %3712 = vmatpush1.bf16.msra.mxu0 0
  %3713 = vmatprep.subr.bf16.mxu0 0
  %3714 = vmatpush1.bf16.msra.mxu0 0
  %3715 = vmatprep.subr.bf16.mxu0 0
  %3716 = vmatpush1.bf16.msra.mxu0 0
  %3717 = vmatprep.subr.bf16.mxu0 0
  %3718 = vmatpush1.bf16.msra.mxu0 0
  %3719 = vmatprep.subr.bf16.mxu0 0
  %3720 = vmatpush1.bf16.msra.mxu0 0
  %3721 = vmatprep.subr.bf16.mxu0 0
  %3722 = vmatpush1.bf16.msra.mxu0 0
  %3723 = vmatprep.subr.bf16.mxu0 0
  %3724 = vmatpush1.bf16.msra.mxu0 0
  %3725 = vmatprep.mubr.bf16.mxu0 0
  %3726 = vmatmul.mubr.bf16.gmra.mrb[0].mxu0 %v3688
  %v3727 = vpop.f32.mrb[0].mxu0
  %v3728 = vadd.f32 %v3661, %v3727
  %v3729 = vpop.f32.mrb[0].mxu0
  %v3730 = vpop.f32.mrb[0].mxu0
  %v3731 = vadd.f32 %v3661, %v3730
  %v3732 = vpop.f32.mrb[0].mxu0
  %3733 = vmatprep.mubr.bf16.mxu0 0
  %3734 = vmatmul.mubr.bf16.gmra.mrb[0].mxu0 %v3691
  %v3735 = vpop.f32.mrb[0].mxu0
  %v3736 = vadd.f32 %v3661, %v3735
  %v3737 = vpop.f32.mrb[0].mxu0
  %v3738 = vpop.f32.mrb[0].mxu0
  %v3739 = vadd.f32 %v3661, %v3738
  %v3740 = vpop.f32.mrb[0].mxu0
  %3741 = vdwg.mxu0
  %vm3742 = vcmask 7168
  %3743 = vst.msk [vmem:[%s27] sm:$0xff] %vm3742, %v3728
  %3744 = vst.msk [vmem:[%s27 + $0x8] sm:$0xff] %vm3742, %v3731
  %3745 = vst.msk [vmem:[%s27 + $0x10] sm:$0xff] %vm3742, %v3736
  %3746 = vst.msk [vmem:[%s27 + $0x18] sm:$0xff] %vm3742, %v3739
  %v3747 = vld [vmem:[%s1] sm:$0xff]
  %v3748 = vld [vmem:[%s1 + $0x8] sm:$0xff]
  %v3749 = vld [vmem:[%s1 + $0x10] sm:$0xff]
  %v3750 = vld [vmem:[%s1 + $0x18] sm:$0xff]
  %vm3751 = vcmp.ne.s32.totalorder %v91, %v3747
  %vm3752 = vcmp.ne.s32.totalorder %v92, %v3748
  %vm3753 = vcmp.ne.s32.totalorder %v93, %v3749
  %vm3754 = vcmp.ne.s32.totalorder %v94, %v3750
  %v3755 = vsel %vm3751, 1, 0
  %v3756 = vsel %vm3752, 1, 0
  %v3757 = vsel %vm3753, 1, 0
  %v3758 = vsel %vm3754, 1, 0
  %v3759 = vcvt.s32.f32 %v3755
  %v3760 = vcvt.s32.f32 %v3756
  %v3761 = vcvt.s32.f32 %v3757
  %v3762 = vcvt.s32.f32 %v3758
  %3763 = vst.msk [vmem:[%s28] sm:$0xff] %vm3742, %v3759
  %3764 = vst.msk [vmem:[%s28 + $0x8] sm:$0xff] %vm3742, %v3760
  %3765 = vst.msk [vmem:[%s28 + $0x10] sm:$0xff] %vm3742, %v3761
  %3766 = vst.msk [vmem:[%s28 + $0x18] sm:$0xff] %vm3742, %v3762
  // Predicated region
  $region110: #{model_forward.3} parent=0 // pred_check
    _
  $region111: #{model_forward.3} parent=0 // pred_check_branch
    %3768 = sbr.rel (0) target = $region113
  $region112: #{model_forward.3} parent=0 // pred_region
    _
  $region113: #{model_forward.3} parent=0 // pred_fallthru
    _
  // Predicated region
  $region114: #{model_forward.3} parent=0 // pred_check
    _
  $region115: #{model_forward.3} parent=0 // pred_check_branch
    %3770 = sbr.rel (0) target = $region117
  $region116: #{model_forward.3} parent=0 // pred_region
    _
  $region117: #{model_forward.3} parent=0 // pred_fallthru
    _
  // Predicated region
  $region118: #{model_forward.3} parent=0 // pred_check
    _
  $region119: #{model_forward.3} parent=0 // pred_check_branch
    %3772 = sbr.rel (0) target = $region121
  $region120: #{model_forward.3} parent=0 // pred_region
    _
  $region121: #{model_forward.3} parent=0 // pred_fallthru
    _
  // Predicated region
  $region122: #{model_forward.3} parent=0 // pred_check
    _
  $region123: #{model_forward.3} parent=0 // pred_check_branch
    %3774 = sbr.rel (0) target = $region125
  $region124: #{model_forward.3} parent=0 // pred_region
    _
  $region125: #{model_forward.3} parent=0 // pred_fallthru
    _

</llo_original>
